<compile_context>
chip_gen: v5e
topology: v5e:2x2
jax: 0.10.0
libtpu: 0.0.40
codegen_flags: <defaults>
</compile_context>

<pallas_src>
import functools

import jax
import jax.numpy as jnp
from jax import lax
from jax.experimental import pallas as pl
from jax.experimental.pallas import tpu as pltpu

N_EMBD = 64
NUM_HEADS = 4
HEAD_SIZE = N_EMBD // NUM_HEADS  # 16


def mha_kernel(x_ref, wqkv_ref, wp_ref, bp_ref, o_ref, qkv_ref, cat_ref,
               *, num_heads, head_size):
    bt, t, c = x_ref.shape
    rows = bt * t
    scale = c ** (-0.5)  # matches the PyTorch module: scaled by C (= n_embd)

    # ---- fused QKV projection: one (rows, C) @ (C, 3C) MXU matmul -------------
    # Result goes straight to a VMEM scratch so the per-head 16-lane slices are
    # cheap vector loads instead of ~24 vregs pinned across the unrolled loop.
    x2d = x_ref[...].reshape(rows, c)
    qkv_ref[...] = jnp.dot(x2d, wqkv_ref[...], preferred_element_type=jnp.float32)

    # ---- causal additive mask, built once (shared by all heads) ---------------
    # Large finite negative instead of -inf; the diagonal is always unmasked so
    # max-subtraction never sees an all-masked row (no NaN risk).
    row_i = lax.broadcasted_iota(jnp.int32, (t, t), 0)
    col_i = lax.broadcasted_iota(jnp.int32, (t, t), 1)
    mask_bias = jnp.where(row_i >= col_i, 0.0, -1e30).astype(jnp.float32)  # (T, T)

    # ---- per-head attention; head outputs concatenated by lane offset ---------
    for h in range(num_heads):
        qs = h * head_size
        ks = c + h * head_size
        vs = 2 * c + h * head_size
        qh = qkv_ref[:, qs:qs + head_size].reshape(bt, t, head_size)  # (Bt, T, hs)
        kh = qkv_ref[:, ks:ks + head_size].reshape(bt, t, head_size)  # (Bt, T, hs)
        vh = qkv_ref[:, vs:vs + head_size].reshape(bt, t, head_size)  # (Bt, T, hs)

        # scores: contract over the last dim of both operands (no explicit .T)
        wei = jnp.einsum("btd,bsd->bts", qh, kh,
                         preferred_element_type=jnp.float32) * scale   # (Bt, T, T)
        wei = wei + mask_bias[None, :, :]

        # exact softmax: EUP has huge slack at these shapes, so no approx recip
        wei = wei - wei.max(axis=-1, keepdims=True)
        p = jnp.exp(wei)
        p = p / p.sum(axis=-1, keepdims=True)

        head_out = jnp.einsum("bts,bsd->btd", p, vh,
                              preferred_element_type=jnp.float32)      # (Bt, T, hs)

        # concat-by-lane: 4 x 16 lanes = 64 lanes, within a single 128-lane vreg
        cat_ref[:, qs:qs + head_size] = head_out.reshape(rows, head_size)

    # ---- output projection: one K=64 matmul instead of 4 padded K=16 matmuls --
    out = jnp.dot(cat_ref[...], wp_ref[...], preferred_element_type=jnp.float32)
    out = out + bp_ref[...].astype(jnp.float32)              # (rows, C) + (1, C)
    o_ref[...] = out.reshape(bt, t, c).astype(o_ref.dtype)


def _tensorcores_per_chip():
    """Best-effort TensorCores-per-chip: 2 on v7x (and v4/v5p megacore), else 1.

    Only used to decide whether a second grid step is worth paying for
    (megacore sharding); a wrong guess is still functionally correct.
    """
    try:
        kind = jax.devices()[0].device_kind.lower().replace(" ", "")
    except Exception:
        return 1
    if any(tag in kind for tag in ("v7", "tpu7", "v4", "v5p")):
        return 2
    return 1


def _pick_block_b(B, T, num_cores, max_rows=1024):
    """Largest divisor of B with block_b*T <= max_rows.

    Keeps the grid at >= num_cores steps (when B allows) so every TensorCore
    gets work; on single-TC chips this collapses to grid=1 / block_b=B.
    """
    best = 1
    for cand in range(1, B + 1):
        if B % cand:
            continue
        if cand * T > max_rows:
            continue
        if B >= num_cores and (B // cand) < num_cores:
            continue
        best = cand
    return best


def fuse_qkv_weights(wq, wk, wv):
    """Fuse the three (C, C) projection weights into one (C, 3C) weight.

    Call once for static weights (hoisted out of the per-call wrapper so the
    48 KiB fused weight isn't re-materialized in HBM on every invocation).
    """
    return jnp.concatenate([wq, wk, wv], axis=1)


def multi_head_attention(x, wqkv, wp, bp,
                         *, num_heads=NUM_HEADS, head_size=HEAD_SIZE, block_b=None):
    """x: (B, T, C); wqkv: (C, 3C) fused [Wq|Wk|Wv]; wp: (C, C); bp: (1, C)."""
    B, T, C = x.shape
    assert wqkv.shape == (C, 3 * C)
    if block_b is None:
        block_b = _pick_block_b(B, T, _tensorcores_per_chip())
    assert B % block_b == 0
    rows = block_b * T

    kernel = functools.partial(mha_kernel, num_heads=num_heads, head_size=head_size)
    full = lambda shape: pl.BlockSpec(shape, lambda b: (0,) * len(shape))

    return pl.pallas_call(
        kernel,
        out_shape=jax.ShapeDtypeStruct((B, T, C), x.dtype),
        grid_spec=pltpu.PrefetchScalarGridSpec(
            num_scalar_prefetch=0,
            grid=(B // block_b,),
            in_specs=[
                pl.BlockSpec((block_b, T, C), lambda b: (b, 0, 0)),  # x tile
                full((C, 3 * C)),                                    # fused Wqkv
                full((C, C)),                                        # Wp
                full((1, C)),                                        # bp
            ],
            out_specs=pl.BlockSpec((block_b, T, C), lambda b: (b, 0, 0)),
            scratch_shapes=[
                pltpu.VMEM((rows, 3 * C), jnp.float32),  # fused QKV activations
                pltpu.VMEM((rows, C), jnp.float32),      # concatenated head outputs
            ],
        ),
        compiler_params=pltpu.CompilerParams(
            dimension_semantics=("parallel",),
            vmem_limit_bytes=32 * 1024 * 1024,  # working set << 1 MiB on all gens
        ),
    )(x, wqkv, wp, bp)


def reference_mha(x, wq, wk, wv, wp, bp, *, num_heads=NUM_HEADS, head_size=HEAD_SIZE):
    """Plain-JAX replica of the PyTorch forward, for verification."""
    B, T, C = x.shape
    q = x @ wq
    k = x @ wk
    v = x @ wv
    mask = jnp.tril(jnp.ones((T, T), dtype=bool))
    outs = []
    for h in range(num_heads):
        sl = slice(h * head_size, (h + 1) * head_size)
        wei = jnp.einsum("btd,bsd->bts", q[..., sl], k[..., sl]) * C ** (-0.5)
        wei = jnp.where(mask, wei, -jnp.inf)
        wei = jax.nn.softmax(wei, axis=-1)
        outs.append(jnp.einsum("bts,bsd->btd", wei, v[..., sl]))
    cat = jnp.concatenate(outs, axis=-1)
    return cat @ wp + bp


if __name__ == "__main__":
    B, T, C = 8, 32, N_EMBD  # small; single-TC chips run this as one 256-row step

    key = jax.random.PRNGKey(0)
    kx, kq, kk, kv, kp, kb = jax.random.split(key, 6)

    x = jax.random.normal(kx, (B, T, C), dtype=jnp.float32)
    # Deterministic parameter init; stored as (in, out) so the kernel does x @ W.
    wq = jax.random.normal(kq, (C, C), dtype=jnp.float32) * 0.1
    wk = jax.random.normal(kk, (C, C), dtype=jnp.float32) * 0.1
    wv = jax.random.normal(kv, (C, C), dtype=jnp.float32) * 0.1
    wp = jax.random.normal(kp, (C, C), dtype=jnp.float32) * 0.1
    bp = jax.random.normal(kb, (1, C), dtype=jnp.float32) * 0.1

    # Fuse the static QKV weights once, outside the per-call wrapper.
    wqkv = fuse_qkv_weights(wq, wk, wv)

    out = multi_head_attention(x, wqkv, wp, bp)
    out = jax.block_until_ready(out)

    ref = reference_mha(x, wq, wk, wv, wp, bp)
    assert out.shape == (B, T, C)
    # Softmax is now exact; tolerance only covers TPU matmul rounding differences
    # between the Pallas MXU path and the plain-XLA reference path.
    assert jnp.allclose(out, ref, atol=2e-3, rtol=2e-3), (
        "mismatch vs reference, max abs diff = %s" % jnp.max(jnp.abs(out - ref)))

    print("KERNEL_OK")
</pallas_src>

<mosaic_0001>
module attributes {stable_mosaic.version = 11 : i64} {
  func.func @mha_kernel(%arg0: i32, %arg1: memref<8x32x64xf32, #tpu.memory_space<vmem>>, %arg2: memref<64x192xf32, #tpu.memory_space<vmem>>, %arg3: memref<64x64xf32, #tpu.memory_space<vmem>>, %arg4: memref<1x64xf32, #tpu.memory_space<vmem>>, %arg5: memref<8x32x64xf32, #tpu.memory_space<vmem>>, %arg6: memref<256x192xf32, #tpu.memory_space<vmem>>, %arg7: memref<256x64xf32, #tpu.memory_space<vmem>>) attributes {dimension_semantics = [#tpu.dimension_semantics<parallel>], iteration_bounds = array<i64: 1>, scalar_prefetch = 0 : i64, scratch_operands = 2 : i64, tpu.core_type = #tpu.core_type<tc>, window_params = [{transform_indices = @transform_0, window_bounds = array<i64: 8, 32, 64>}, {pipeline_mode = #tpu.pipeline_mode<synchronous>, transform_indices = @transform_1, window_bounds = array<i64: 64, 192>}, {pipeline_mode = #tpu.pipeline_mode<synchronous>, transform_indices = @transform_2, window_bounds = array<i64: 64, 64>}, {pipeline_mode = #tpu.pipeline_mode<synchronous>, transform_indices = @transform_3, window_bounds = array<i64: 1, 64>}, {transform_indices = @transform_4, window_bounds = array<i64: 8, 32, 64>}]} {
    %c0 = arith.constant 0 : index
    %c0_0 = arith.constant 0 : index
    %c0_1 = arith.constant 0 : index
    %0 = vector.load %arg1[%c0, %c0_0, %c0_1] : memref<8x32x64xf32, #tpu.memory_space<vmem>>, vector<8x32x64xf32>
    %1 = vector.shape_cast %0 : vector<8x32x64xf32> to vector<256x64xf32>
    %c0_2 = arith.constant 0 : index
    %c0_3 = arith.constant 0 : index
    %2 = vector.load %arg2[%c0_2, %c0_3] : memref<64x192xf32, #tpu.memory_space<vmem>>, vector<64x192xf32>
    %cst = arith.constant dense<0.000000e+00> : vector<256x192xf32>
    %3 = tpu.matmul %1, %2, %cst {dimension_numbers = #tpu.dot_dimension_numbers<[1], [0], [0], [1], [0, 0, 1, 1], [], []>} : vector<256x64xf32>, vector<64x192xf32>, vector<256x192xf32> -> vector<256x192xf32>
    %c0_4 = arith.constant 0 : index
    %c0_5 = arith.constant 0 : index
    %4 = vector.load %arg6[%c0_4, %c0_5] : memref<256x192xf32, #tpu.memory_space<vmem>>, vector<256x192xf32>
    tpu.vector_store %arg6[%c0_4, %c0_5], %3 {strides = array<i32>} : memref<256x192xf32, #tpu.memory_space<vmem>>, vector<256x192xf32>,
    %5 = tpu.iota {dimensions = array<i32: 0>} : vector<32x32xi32>
    %6 = tpu.iota {dimensions = array<i32: 1>} : vector<32x32xi32>
    %7 = arith.cmpi sge, %5, %6 : vector<32x32xi32>
    %cst_6 = arith.constant 0.000000e+00 : f32
    %cst_7 = arith.constant -1.000000e+30 : f32
    %8 = vector.broadcast %cst_6 : f32 to vector<32x32xf32>
    %9 = vector.broadcast %cst_7 : f32 to vector<32x32xf32>
    %10 = arith.select %7, %8, %9 : vector<32x32xi1>, vector<32x32xf32>
    %c0_8 = arith.constant 0 : index
    %c0_9 = arith.constant 0 : index
    %11 = vector.load %arg6[%c0_8, %c0_9] : memref<256x192xf32, #tpu.memory_space<vmem>>, vector<256x16xf32>
    %12 = vector.shape_cast %11 : vector<256x16xf32> to vector<8x32x16xf32>
    %c0_10 = arith.constant 0 : index
    %c64 = arith.constant 64 : index
    %13 = vector.load %arg6[%c0_10, %c64] : memref<256x192xf32, #tpu.memory_space<vmem>>, vector<256x16xf32>
    %14 = vector.shape_cast %13 : vector<256x16xf32> to vector<8x32x16xf32>
    %c0_11 = arith.constant 0 : index
    %c128 = arith.constant 128 : index
    %15 = vector.load %arg6[%c0_11, %c128] : memref<256x192xf32, #tpu.memory_space<vmem>>, vector<256x16xf32>
    %16 = vector.shape_cast %15 : vector<256x16xf32> to vector<8x32x16xf32>
    "tpu.trace_start"() <{level = 10 : i32, message = "btd,bsd->bts"}> : () -> ()
    %cst_12 = arith.constant dense<0.000000e+00> : vector<8x32x32xf32>
    %17 = tpu.matmul %12, %14, %cst_12 {dimension_numbers = #tpu.dot_dimension_numbers<[2], [2], [1], [1], [0, 0, 0, 1, 1, 1], [0], [0]>} : vector<8x32x16xf32>, vector<8x32x16xf32>, vector<8x32x32xf32> -> vector<8x32x32xf32>
    "tpu.trace_stop"() : () -> ()
    %cst_13 = arith.constant 1.250000e-01 : f32
    %18 = vector.broadcast %cst_13 : f32 to vector<8x32x32xf32>
    %19 = arith.mulf %17, %18 : vector<8x32x32xf32>
    %20 = vector.shape_cast %10 : vector<32x32xf32> to vector<1x32x32xf32>
    %21 = vector.broadcast %20 : vector<1x32x32xf32> to vector<8x32x32xf32>
    %22 = arith.addf %19, %21 : vector<8x32x32xf32>
    %cst_14 = arith.constant dense<0xFF800000> : vector<8x32xf32>
    %23 = vector.multi_reduction <maximumf>, %22, %cst_14 [2] : vector<8x32x32xf32> to vector<8x32xf32>
    %24 = vector.shape_cast %23 : vector<8x32xf32> to vector<8x32x1xf32>
    %25 = vector.broadcast %24 : vector<8x32x1xf32> to vector<8x32x32xf32>
    %26 = arith.subf %22, %25 : vector<8x32x32xf32>
    %27 = math.exp %26 : vector<8x32x32xf32>
    %cst_15 = arith.constant dense<0.000000e+00> : vector<8x32xf32>
    %28 = vector.multi_reduction <add>, %27, %cst_15 [2] : vector<8x32x32xf32> to vector<8x32xf32>
    %29 = vector.shape_cast %28 : vector<8x32xf32> to vector<8x32x1xf32>
    %30 = vector.broadcast %29 : vector<8x32x1xf32> to vector<8x32x32xf32>
    %31 = arith.divf %27, %30 : vector<8x32x32xf32>
    "tpu.trace_start"() <{level = 10 : i32, message = "bts,bsd->btd"}> : () -> ()
    %cst_16 = arith.constant dense<0.000000e+00> : vector<8x32x16xf32>
    %32 = tpu.matmul %31, %16, %cst_16 {dimension_numbers = #tpu.dot_dimension_numbers<[2], [1], [1], [2], [0, 0, 0, 1, 1, 2], [0], [0]>} : vector<8x32x32xf32>, vector<8x32x16xf32>, vector<8x32x16xf32> -> vector<8x32x16xf32>
    "tpu.trace_stop"() : () -> ()
    %33 = vector.shape_cast %32 : vector<8x32x16xf32> to vector<256x16xf32>
    %c0_17 = arith.constant 0 : index
    %c0_18 = arith.constant 0 : index
    %34 = vector.load %arg7[%c0_17, %c0_18] : memref<256x64xf32, #tpu.memory_space<vmem>>, vector<256x16xf32>
    tpu.vector_store %arg7[%c0_17, %c0_18], %33 {strides = array<i32>} : memref<256x64xf32, #tpu.memory_space<vmem>>, vector<256x16xf32>,
    %c0_19 = arith.constant 0 : index
    %c16 = arith.constant 16 : index
    %35 = vector.load %arg6[%c0_19, %c16] : memref<256x192xf32, #tpu.memory_space<vmem>>, vector<256x16xf32>
    %36 = vector.shape_cast %35 : vector<256x16xf32> to vector<8x32x16xf32>
    %c0_20 = arith.constant 0 : index
    %c80 = arith.constant 80 : index
    %37 = vector.load %arg6[%c0_20, %c80] : memref<256x192xf32, #tpu.memory_space<vmem>>, vector<256x16xf32>
    %38 = vector.shape_cast %37 : vector<256x16xf32> to vector<8x32x16xf32>
    %c0_21 = arith.constant 0 : index
    %c144 = arith.constant 144 : index
    %39 = vector.load %arg6[%c0_21, %c144] : memref<256x192xf32, #tpu.memory_space<vmem>>, vector<256x16xf32>
    %40 = vector.shape_cast %39 : vector<256x16xf32> to vector<8x32x16xf32>
    "tpu.trace_start"() <{level = 10 : i32, message = "btd,bsd->bts"}> : () -> ()
    %cst_22 = arith.constant dense<0.000000e+00> : vector<8x32x32xf32>
    %41 = tpu.matmul %36, %38, %cst_22 {dimension_numbers = #tpu.dot_dimension_numbers<[2], [2], [1], [1], [0, 0, 0, 1, 1, 1], [0], [0]>} : vector<8x32x16xf32>, vector<8x32x16xf32>, vector<8x32x32xf32> -> vector<8x32x32xf32>
    "tpu.trace_stop"() : () -> ()
    %cst_23 = arith.constant 1.250000e-01 : f32
    %42 = vector.broadcast %cst_23 : f32 to vector<8x32x32xf32>
    %43 = arith.mulf %41, %42 : vector<8x32x32xf32>
    %44 = vector.shape_cast %10 : vector<32x32xf32> to vector<1x32x32xf32>
    %45 = vector.broadcast %44 : vector<1x32x32xf32> to vector<8x32x32xf32>
    %46 = arith.addf %43, %45 : vector<8x32x32xf32>
    %cst_24 = arith.constant dense<0xFF800000> : vector<8x32xf32>
    %47 = vector.multi_reduction <maximumf>, %46, %cst_24 [2] : vector<8x32x32xf32> to vector<8x32xf32>
    %48 = vector.shape_cast %47 : vector<8x32xf32> to vector<8x32x1xf32>
    %49 = vector.broadcast %48 : vector<8x32x1xf32> to vector<8x32x32xf32>
    %50 = arith.subf %46, %49 : vector<8x32x32xf32>
    %51 = math.exp %50 : vector<8x32x32xf32>
    %cst_25 = arith.constant dense<0.000000e+00> : vector<8x32xf32>
    %52 = vector.multi_reduction <add>, %51, %cst_25 [2] : vector<8x32x32xf32> to vector<8x32xf32>
    %53 = vector.shape_cast %52 : vector<8x32xf32> to vector<8x32x1xf32>
    %54 = vector.broadcast %53 : vector<8x32x1xf32> to vector<8x32x32xf32>
    %55 = arith.divf %51, %54 : vector<8x32x32xf32>
    "tpu.trace_start"() <{level = 10 : i32, message = "bts,bsd->btd"}> : () -> ()
    %cst_26 = arith.constant dense<0.000000e+00> : vector<8x32x16xf32>
    %56 = tpu.matmul %55, %40, %cst_26 {dimension_numbers = #tpu.dot_dimension_numbers<[2], [1], [1], [2], [0, 0, 0, 1, 1, 2], [0], [0]>} : vector<8x32x32xf32>, vector<8x32x16xf32>, vector<8x32x16xf32> -> vector<8x32x16xf32>
    "tpu.trace_stop"() : () -> ()
    %57 = vector.shape_cast %56 : vector<8x32x16xf32> to vector<256x16xf32>
    %c0_27 = arith.constant 0 : index
    %c16_28 = arith.constant 16 : index
    %58 = vector.load %arg7[%c0_27, %c16_28] : memref<256x64xf32, #tpu.memory_space<vmem>>, vector<256x16xf32>
    tpu.vector_store %arg7[%c0_27, %c16_28], %57 {strides = array<i32>} : memref<256x64xf32, #tpu.memory_space<vmem>>, vector<256x16xf32>,
    %c0_29 = arith.constant 0 : index
    %c32 = arith.constant 32 : index
    %59 = vector.load %arg6[%c0_29, %c32] : memref<256x192xf32, #tpu.memory_space<vmem>>, vector<256x16xf32>
    %60 = vector.shape_cast %59 : vector<256x16xf32> to vector<8x32x16xf32>
    %c0_30 = arith.constant 0 : index
    %c96 = arith.constant 96 : index
    %61 = vector.load %arg6[%c0_30, %c96] : memref<256x192xf32, #tpu.memory_space<vmem>>, vector<256x16xf32>
    %62 = vector.shape_cast %61 : vector<256x16xf32> to vector<8x32x16xf32>
    %c0_31 = arith.constant 0 : index
    %c160 = arith.constant 160 : index
    %63 = vector.load %arg6[%c0_31, %c160] : memref<256x192xf32, #tpu.memory_space<vmem>>, vector<256x16xf32>
    %64 = vector.shape_cast %63 : vector<256x16xf32> to vector<8x32x16xf32>
    "tpu.trace_start"() <{level = 10 : i32, message = "btd,bsd->bts"}> : () -> ()
    %cst_32 = arith.constant dense<0.000000e+00> : vector<8x32x32xf32>
    %65 = tpu.matmul %60, %62, %cst_32 {dimension_numbers = #tpu.dot_dimension_numbers<[2], [2], [1], [1], [0, 0, 0, 1, 1, 1], [0], [0]>} : vector<8x32x16xf32>, vector<8x32x16xf32>, vector<8x32x32xf32> -> vector<8x32x32xf32>
    "tpu.trace_stop"() : () -> ()
    %cst_33 = arith.constant 1.250000e-01 : f32
    %66 = vector.broadcast %cst_33 : f32 to vector<8x32x32xf32>
    %67 = arith.mulf %65, %66 : vector<8x32x32xf32>
    %68 = vector.shape_cast %10 : vector<32x32xf32> to vector<1x32x32xf32>
    %69 = vector.broadcast %68 : vector<1x32x32xf32> to vector<8x32x32xf32>
    %70 = arith.addf %67, %69 : vector<8x32x32xf32>
    %cst_34 = arith.constant dense<0xFF800000> : vector<8x32xf32>
    %71 = vector.multi_reduction <maximumf>, %70, %cst_34 [2] : vector<8x32x32xf32> to vector<8x32xf32>
    %72 = vector.shape_cast %71 : vector<8x32xf32> to vector<8x32x1xf32>
    %73 = vector.broadcast %72 : vector<8x32x1xf32> to vector<8x32x32xf32>
    %74 = arith.subf %70, %73 : vector<8x32x32xf32>
    %75 = math.exp %74 : vector<8x32x32xf32>
    %cst_35 = arith.constant dense<0.000000e+00> : vector<8x32xf32>
    %76 = vector.multi_reduction <add>, %75, %cst_35 [2] : vector<8x32x32xf32> to vector<8x32xf32>
    %77 = vector.shape_cast %76 : vector<8x32xf32> to vector<8x32x1xf32>
    %78 = vector.broadcast %77 : vector<8x32x1xf32> to vector<8x32x32xf32>
    %79 = arith.divf %75, %78 : vector<8x32x32xf32>
    "tpu.trace_start"() <{level = 10 : i32, message = "bts,bsd->btd"}> : () -> ()
    %cst_36 = arith.constant dense<0.000000e+00> : vector<8x32x16xf32>
    %80 = tpu.matmul %79, %64, %cst_36 {dimension_numbers = #tpu.dot_dimension_numbers<[2], [1], [1], [2], [0, 0, 0, 1, 1, 2], [0], [0]>} : vector<8x32x32xf32>, vector<8x32x16xf32>, vector<8x32x16xf32> -> vector<8x32x16xf32>
    "tpu.trace_stop"() : () -> ()
    %81 = vector.shape_cast %80 : vector<8x32x16xf32> to vector<256x16xf32>
    %c0_37 = arith.constant 0 : index
    %c32_38 = arith.constant 32 : index
    %82 = vector.load %arg7[%c0_37, %c32_38] : memref<256x64xf32, #tpu.memory_space<vmem>>, vector<256x16xf32>
    tpu.vector_store %arg7[%c0_37, %c32_38], %81 {strides = array<i32>} : memref<256x64xf32, #tpu.memory_space<vmem>>, vector<256x16xf32>,
    %c0_39 = arith.constant 0 : index
    %c48 = arith.constant 48 : index
    %83 = vector.load %arg6[%c0_39, %c48] : memref<256x192xf32, #tpu.memory_space<vmem>>, vector<256x16xf32>
    %84 = vector.shape_cast %83 : vector<256x16xf32> to vector<8x32x16xf32>
    %c0_40 = arith.constant 0 : index
    %c112 = arith.constant 112 : index
    %85 = vector.load %arg6[%c0_40, %c112] : memref<256x192xf32, #tpu.memory_space<vmem>>, vector<256x16xf32>
    %86 = vector.shape_cast %85 : vector<256x16xf32> to vector<8x32x16xf32>
    %c0_41 = arith.constant 0 : index
    %c176 = arith.constant 176 : index
    %87 = vector.load %arg6[%c0_41, %c176] : memref<256x192xf32, #tpu.memory_space<vmem>>, vector<256x16xf32>
    %88 = vector.shape_cast %87 : vector<256x16xf32> to vector<8x32x16xf32>
    "tpu.trace_start"() <{level = 10 : i32, message = "btd,bsd->bts"}> : () -> ()
    %cst_42 = arith.constant dense<0.000000e+00> : vector<8x32x32xf32>
    %89 = tpu.matmul %84, %86, %cst_42 {dimension_numbers = #tpu.dot_dimension_numbers<[2], [2], [1], [1], [0, 0, 0, 1, 1, 1], [0], [0]>} : vector<8x32x16xf32>, vector<8x32x16xf32>, vector<8x32x32xf32> -> vector<8x32x32xf32>
    "tpu.trace_stop"() : () -> ()
    %cst_43 = arith.constant 1.250000e-01 : f32
    %90 = vector.broadcast %cst_43 : f32 to vector<8x32x32xf32>
    %91 = arith.mulf %89, %90 : vector<8x32x32xf32>
    %92 = vector.shape_cast %10 : vector<32x32xf32> to vector<1x32x32xf32>
    %93 = vector.broadcast %92 : vector<1x32x32xf32> to vector<8x32x32xf32>
    %94 = arith.addf %91, %93 : vector<8x32x32xf32>
    %cst_44 = arith.constant dense<0xFF800000> : vector<8x32xf32>
    %95 = vector.multi_reduction <maximumf>, %94, %cst_44 [2] : vector<8x32x32xf32> to vector<8x32xf32>
    %96 = vector.shape_cast %95 : vector<8x32xf32> to vector<8x32x1xf32>
    %97 = vector.broadcast %96 : vector<8x32x1xf32> to vector<8x32x32xf32>
    %98 = arith.subf %94, %97 : vector<8x32x32xf32>
    %99 = math.exp %98 : vector<8x32x32xf32>
    %cst_45 = arith.constant dense<0.000000e+00> : vector<8x32xf32>
    %100 = vector.multi_reduction <add>, %99, %cst_45 [2] : vector<8x32x32xf32> to vector<8x32xf32>
    %101 = vector.shape_cast %100 : vector<8x32xf32> to vector<8x32x1xf32>
    %102 = vector.broadcast %101 : vector<8x32x1xf32> to vector<8x32x32xf32>
    %103 = arith.divf %99, %102 : vector<8x32x32xf32>
    "tpu.trace_start"() <{level = 10 : i32, message = "bts,bsd->btd"}> : () -> ()
    %cst_46 = arith.constant dense<0.000000e+00> : vector<8x32x16xf32>
    %104 = tpu.matmul %103, %88, %cst_46 {dimension_numbers = #tpu.dot_dimension_numbers<[2], [1], [1], [2], [0, 0, 0, 1, 1, 2], [0], [0]>} : vector<8x32x32xf32>, vector<8x32x16xf32>, vector<8x32x16xf32> -> vector<8x32x16xf32>
    "tpu.trace_stop"() : () -> ()
    %105 = vector.shape_cast %104 : vector<8x32x16xf32> to vector<256x16xf32>
    %c0_47 = arith.constant 0 : index
    %c48_48 = arith.constant 48 : index
    %106 = vector.load %arg7[%c0_47, %c48_48] : memref<256x64xf32, #tpu.memory_space<vmem>>, vector<256x16xf32>
    tpu.vector_store %arg7[%c0_47, %c48_48], %105 {strides = array<i32>} : memref<256x64xf32, #tpu.memory_space<vmem>>, vector<256x16xf32>,
    %c0_49 = arith.constant 0 : index
    %c0_50 = arith.constant 0 : index
    %107 = vector.load %arg7[%c0_49, %c0_50] : memref<256x64xf32, #tpu.memory_space<vmem>>, vector<256x64xf32>
    %c0_51 = arith.constant 0 : index
    %c0_52 = arith.constant 0 : index
    %108 = vector.load %arg3[%c0_51, %c0_52] : memref<64x64xf32, #tpu.memory_space<vmem>>, vector<64x64xf32>
    %cst_53 = arith.constant dense<0.000000e+00> : vector<256x64xf32>
    %109 = tpu.matmul %107, %108, %cst_53 {dimension_numbers = #tpu.dot_dimension_numbers<[1], [0], [0], [1], [0, 0, 1, 1], [], []>} : vector<256x64xf32>, vector<64x64xf32>, vector<256x64xf32> -> vector<256x64xf32>
    %c0_54 = arith.constant 0 : index
    %c0_55 = arith.constant 0 : index
    %110 = vector.load %arg4[%c0_54, %c0_55] : memref<1x64xf32, #tpu.memory_space<vmem>>, vector<1x64xf32>
    %111 = vector.broadcast %110 : vector<1x64xf32> to vector<256x64xf32>
    %112 = arith.addf %109, %111 : vector<256x64xf32>
    %113 = vector.shape_cast %112 : vector<256x64xf32> to vector<8x32x64xf32>
    %c0_56 = arith.constant 0 : index
    %c0_57 = arith.constant 0 : index
    %c0_58 = arith.constant 0 : index
    %114 = vector.load %arg5[%c0_56, %c0_57, %c0_58] : memref<8x32x64xf32, #tpu.memory_space<vmem>>, vector<8x32x64xf32>
    tpu.vector_store %arg5[%c0_56, %c0_57, %c0_58], %113 {strides = array<i32>} : memref<8x32x64xf32, #tpu.memory_space<vmem>>, vector<8x32x64xf32>,
    return
  }
  func.func @transform_0(%arg0: i32) -> (i32, i32, i32) {
    %c0_i32 = arith.constant 0 : i32
    %c0_i32_0 = arith.constant 0 : i32
    %c0_i32_1 = arith.constant 0 : i32
    return %arg0, %c0_i32, %c0_i32_0 : i32, i32, i32
  }
  func.func @transform_1(%arg0: i32) -> (i32, i32) {
    %c0_i32 = arith.constant 0 : i32
    %c0_i32_0 = arith.constant 0 : i32
    %c0_i32_1 = arith.constant 0 : i32
    return %c0_i32, %c0_i32_0 : i32, i32
  }
  func.func @transform_2(%arg0: i32) -> (i32, i32) {
    %c0_i32 = arith.constant 0 : i32
    %c0_i32_0 = arith.constant 0 : i32
    %c0_i32_1 = arith.constant 0 : i32
    return %c0_i32, %c0_i32_0 : i32, i32
  }
  func.func @transform_3(%arg0: i32) -> (i32, i32) {
    %c0_i32 = arith.constant 0 : i32
    %c0_i32_0 = arith.constant 0 : i32
    %c0_i32_1 = arith.constant 0 : i32
    return %c0_i32, %c0_i32_0 : i32, i32
  }
  func.func @transform_4(%arg0: i32) -> (i32, i32, i32) {
    %c0_i32 = arith.constant 0 : i32
    %c0_i32_0 = arith.constant 0 : i32
    %c0_i32_1 = arith.constant 0 : i32
    return %arg0, %c0_i32, %c0_i32_0 : i32, i32, i32
  }
}

</mosaic_0001>

<llo_original>
// kernel: tpu_custom_call.1
$region0: #{tpu_custom_call.1}
  #allocation0 [shape = 'u32[]', space=smem, size = 0x4, offset = 0x4, fixed_abs, tag = 'smem constant byte address 0x4 - core index']
  #allocation1 [shape = 'u32[72,128]{1,0:T(1,128)}', space=vmem, size = 0x9000, scoped, tag = 'internal scratch']
  #allocation2 [shape = 'f32[256,192]{1,0:T(8,128)}', space=vmem, size = 0x40000, scoped, tag = 'scratch operand']
  #allocation3 [shape = 'f32[256,64]{1,0:T(8,128)}', space=vmem, size = 0x20000, scoped, tag = 'scratch operand']
  %s0 = inlined_call_operand.hbm [shape: f32[8,32,64], index: 0, kind: input, shape index: {}]
  %s1 = inlined_call_operand.hbm [shape: f32[64,192], index: 1, kind: input, shape index: {}]
  %s2 = inlined_call_operand.hbm [shape: f32[64,64], index: 2, kind: input, shape index: {}]
  %s3 = inlined_call_operand.vmem [shape: f32[1,64], index: 3, kind: input, shape index: {}]
  %s4 = inlined_call_operand.hbm [shape: f32[8,32,64], index: 4, kind: output, shape index: {}]
  %s5 = sld [smem:[#allocation0]]
  $region38: #{tpu_custom_call.1} parent=0
    _
  %s7 = ssub.s32 1, %s5
  %s8 = scalar_select 0, %s7, %s5
  $region1: #{tpu_custom_call.1} parent=0
    #allocation4 [shape = 'u8[131072]{0}', space=vmem, size = 0x20000, scoped, tag = 'input window, operand 0, single buffered']
    #allocation5 [shape = 's32[1]{0}', space=sflag, size = 0x4, scoped, tag = 'scoped memory for tpu_custom_call.1']
    #allocation6 [shape = 's32[1]{0}', space=sflag, size = 0x4, scoped, tag = 'scoped memory for tpu_custom_call.1']
    #allocation7 [shape = 'u8[65536]{0}', space=vmem, size = 0x10000, scoped, tag = 'input window, operand 1, single buffered']
    #allocation8 [shape = 's32[1]{0}', space=sflag, size = 0x4, scoped, tag = 'scoped memory for tpu_custom_call.1']
    #allocation9 [shape = 'u8[32768]{0}', space=vmem, size = 0x8000, scoped, tag = 'input window, operand 2, single buffered']
    #allocation10 [shape = 'u8[131072]{0}', space=vmem, size = 0x20000, scoped, tag = 'output window, operand 0, single buffered']
    %9 = vsyncpa [#allocation5], 0
    %10 = vsyncpa [#allocation8], 0
    %11 = vsyncpa [#allocation6], 0
    // Predicated region
    $region2: #{tpu_custom_call.1} parent=1 // pred_check
      _
    $region3: #{tpu_custom_call.1} parent=1 // pred_check_branch
      %13 = sbr.rel (0) target = $region5
    $region4: #{tpu_custom_call.1} parent=1 // pred_region
      %15 = vsyncadd [#allocation5], 0
      %s16 = sshll.u32 %s0, 4
      %s17 = int_to_ptr.hbm [resolvable:$true] %s16
      %s18 = sshll.u32 [#allocation4], 4
      %s19 = int_to_ptr.vmem [resolvable:$true] %s18
      %24 = dma.hbm_to_vmem [thread:$0]  %s17, 4096, %s19, [#allocation5], 128, 128, 8
    $region5: #{tpu_custom_call.1} parent=1 // pred_fallthru
      _
    // Predicated region
    $region6: #{tpu_custom_call.1} parent=1 // pred_check
      _
    $region7: #{tpu_custom_call.1} parent=1 // pred_check_branch
      %26 = sbr.rel (0) target = $region9
    $region8: #{tpu_custom_call.1} parent=1 // pred_region
      %28 = vsyncadd [#allocation8], 0
      %s29 = sshll.u32 %s1, 4
      %s30 = int_to_ptr.hbm [resolvable:$true] %s29
      %s31 = sshll.u32 [#allocation7], 4
      %s32 = int_to_ptr.vmem [resolvable:$true] %s31
      %37 = dma.hbm_to_vmem [thread:$0]  %s30, 2048, %s32, [#allocation8], 256, 256, 16
    $region9: #{tpu_custom_call.1} parent=1 // pred_fallthru
      _
    // Predicated region
    $region10: #{tpu_custom_call.1} parent=1 // pred_check
      _
    $region11: #{tpu_custom_call.1} parent=1 // pred_check_branch
      %39 = sbr.rel (0) target = $region13
    $region12: #{tpu_custom_call.1} parent=1 // pred_region
      %41 = vsyncadd [#allocation8], 0
      %s42 = sshll.u32 %s2, 4
      %s43 = int_to_ptr.hbm [resolvable:$true] %s42
      %s44 = sshll.u32 [#allocation9], 4
      %s45 = int_to_ptr.vmem [resolvable:$true] %s44
      %50 = dma.hbm_to_vmem [thread:$0]  %s43, 1024, %s45, [#allocation8], 128, 128, 8
    $region13: #{tpu_custom_call.1} parent=1 // pred_fallthru
      _
    // Predicated region
    $region14: #{tpu_custom_call.1} parent=1 // pred_check
      _
    $region15: #{tpu_custom_call.1} parent=1 // pred_check_branch
      %52 = sbr.rel (0) target = $region17
    $region16: #{tpu_custom_call.1} parent=1 // pred_region
      _
    $region17: #{tpu_custom_call.1} parent=1 // pred_fallthru
      _
    // Predicated region
    $region18: #{tpu_custom_call.1} parent=1 // pred_check
      _
    $region19: #{tpu_custom_call.1} parent=1 // pred_check_branch
      %54 = sbr.rel (0) target = $region21
    $region20: #{tpu_custom_call.1} parent=1 // pred_region
      %56 = dma.done [#allocation5], 4096
    $region21: #{tpu_custom_call.1} parent=1 // pred_fallthru
      _
    // Predicated region
    $region22: #{tpu_custom_call.1} parent=1 // pred_check
      _
    $region23: #{tpu_custom_call.1} parent=1 // pred_check_branch
      %58 = sbr.rel (0) target = $region25
    $region24: #{tpu_custom_call.1} parent=1 // pred_region
      %60 = dma.done [#allocation8], 2048
    $region25: #{tpu_custom_call.1} parent=1 // pred_fallthru
      _
    // Predicated region
    $region26: #{tpu_custom_call.1} parent=1 // pred_check
      _
    $region27: #{tpu_custom_call.1} parent=1 // pred_check_branch
      %62 = sbr.rel (0) target = $region29
    $region28: #{tpu_custom_call.1} parent=1 // pred_region
      %64 = dma.done [#allocation8], 1024
    $region29: #{tpu_custom_call.1} parent=1 // pred_fallthru
      _
    %v65 = vld [vmem:[#allocation4] sm:$0xff]
    %v66 = vld [vmem:[#allocation4 + $0x8] sm:$0xff]
    %v67 = vld [vmem:[#allocation4 + $0x10] sm:$0xff]
    %v68 = vld [vmem:[#allocation4 + $0x18] sm:$0xff]
    %v69 = vld [vmem:[#allocation4 + $0x20] sm:$0xff]
    %v70 = vld [vmem:[#allocation4 + $0x28] sm:$0xff]
    %v71 = vld [vmem:[#allocation4 + $0x30] sm:$0xff]
    %v72 = vld [vmem:[#allocation4 + $0x38] sm:$0xff]
    %v73 = vld [vmem:[#allocation4 + $0x40] sm:$0xff]
    %v74 = vld [vmem:[#allocation4 + $0x48] sm:$0xff]
    %v75 = vld [vmem:[#allocation4 + $0x50] sm:$0xff]
    %v76 = vld [vmem:[#allocation4 + $0x58] sm:$0xff]
    %v77 = vld [vmem:[#allocation4 + $0x60] sm:$0xff]
    %v78 = vld [vmem:[#allocation4 + $0x68] sm:$0xff]
    %v79 = vld [vmem:[#allocation4 + $0x70] sm:$0xff]
    %v80 = vld [vmem:[#allocation4 + $0x78] sm:$0xff]
    %v81 = vld [vmem:[#allocation4 + $0x80] sm:$0xff]
    %v82 = vld [vmem:[#allocation4 + $0x88] sm:$0xff]
    %v83 = vld [vmem:[#allocation4 + $0x90] sm:$0xff]
    %v84 = vld [vmem:[#allocation4 + $0x98] sm:$0xff]
    %v85 = vld [vmem:[#allocation4 + $0xa0] sm:$0xff]
    %v86 = vld [vmem:[#allocation4 + $0xa8] sm:$0xff]
    %v87 = vld [vmem:[#allocation4 + $0xb0] sm:$0xff]
    %v88 = vld [vmem:[#allocation4 + $0xb8] sm:$0xff]
    %v89 = vld [vmem:[#allocation4 + $0xc0] sm:$0xff]
    %v90 = vld [vmem:[#allocation4 + $0xc8] sm:$0xff]
    %v91 = vld [vmem:[#allocation4 + $0xd0] sm:$0xff]
    %v92 = vld [vmem:[#allocation4 + $0xd8] sm:$0xff]
    %v93 = vld [vmem:[#allocation4 + $0xe0] sm:$0xff]
    %v94 = vld [vmem:[#allocation4 + $0xe8] sm:$0xff]
    %v95 = vld [vmem:[#allocation4 + $0xf0] sm:$0xff]
    %v96 = vld [vmem:[#allocation4 + $0xf8] sm:$0xff]
    %v97 = vld [vmem:[#allocation7] sm:$0xff]
    %v98 = vld [vmem:[#allocation7 + $0x8] sm:$0xff]
    %v99 = vld [vmem:[#allocation7 + $0x10] sm:$0xff]
    %v100 = vld [vmem:[#allocation7 + $0x18] sm:$0xff]
    %v101 = vld [vmem:[#allocation7 + $0x20] sm:$0xff]
    %v102 = vld [vmem:[#allocation7 + $0x28] sm:$0xff]
    %v103 = vld [vmem:[#allocation7 + $0x30] sm:$0xff]
    %v104 = vld [vmem:[#allocation7 + $0x38] sm:$0xff]
    %v105 = vld [vmem:[#allocation7 + $0x40] sm:$0xff]
    %v106 = vld [vmem:[#allocation7 + $0x48] sm:$0xff]
    %v107 = vld [vmem:[#allocation7 + $0x50] sm:$0xff]
    %v108 = vld [vmem:[#allocation7 + $0x58] sm:$0xff]
    %v109 = vld [vmem:[#allocation7 + $0x60] sm:$0xff]
    %v110 = vld [vmem:[#allocation7 + $0x68] sm:$0xff]
    %v111 = vld [vmem:[#allocation7 + $0x70] sm:$0xff]
    %v112 = vld [vmem:[#allocation7 + $0x78] sm:$0xff]
    %vm113 = vcmask 523264
    %v115 = vsel %vm113, %v65, 0
    %v118 = vsel %vm113, %v66, 0
    %v121 = vsel %vm113, %v67, 0
    %v124 = vsel %vm113, %v68, 0
    %v127 = vsel %vm113, %v69, 0
    %v130 = vsel %vm113, %v70, 0
    %v133 = vsel %vm113, %v71, 0
    %v136 = vsel %vm113, %v72, 0
    %v139 = vsel %vm113, %v73, 0
    %v142 = vsel %vm113, %v74, 0
    %v145 = vsel %vm113, %v75, 0
    %v148 = vsel %vm113, %v76, 0
    %v151 = vsel %vm113, %v77, 0
    %v154 = vsel %vm113, %v78, 0
    %v157 = vsel %vm113, %v79, 0
    %v160 = vsel %vm113, %v80, 0
    %v163 = vsel %vm113, %v81, 0
    %v166 = vsel %vm113, %v82, 0
    %v169 = vsel %vm113, %v83, 0
    %v172 = vsel %vm113, %v84, 0
    %v175 = vsel %vm113, %v85, 0
    %v178 = vsel %vm113, %v86, 0
    %v181 = vsel %vm113, %v87, 0
    %v184 = vsel %vm113, %v88, 0
    %v187 = vsel %vm113, %v89, 0
    %v190 = vsel %vm113, %v90, 0
    %v193 = vsel %vm113, %v91, 0
    %v196 = vsel %vm113, %v92, 0
    %v199 = vsel %vm113, %v93, 0
    %v202 = vsel %vm113, %v94, 0
    %v205 = vsel %vm113, %v95, 0
    %v208 = vsel %vm113, %v96, 0
    %210 = vmatpush.msra.mxu0 0.0
    %211 = vmatpush.msra.mxu0 0.0
    %212 = vmatpush.msra.mxu0 0.0
    %213 = vmatpush.msra.mxu0 0.0
    %214 = vmatpush.msra.mxu0 0.0
    %215 = vmatpush.msra.mxu0 0.0
    %216 = vmatpush.msra.mxu0 0.0
    %217 = vmatpush.msra.mxu0 0.0
    %218 = vmatpush.msra.mxu0 %v111
    %219 = vmatpush.msra.mxu0 %v109
    %220 = vmatpush.msra.mxu0 %v107
    %221 = vmatpush.msra.mxu0 %v105
    %222 = vmatpush.msra.mxu0 %v103
    %223 = vmatpush.msra.mxu0 %v101
    %224 = vmatpush.msra.mxu0 %v99
    %225 = vmatpush.msra.mxu0 %v97
    %226 = vmatmul.f32.gmra.mxu0 %v115
    %v227 = vpop.f32.mrf.mxu0
    %v228 = vadd.f32 0.0, %v227
    %229 = vmatmul.f32.gmra.mxu0 %v118
    %v230 = vpop.f32.mrf.mxu0
    %v231 = vadd.f32 0.0, %v230
    %232 = vmatmul.f32.gmra.mxu0 %v121
    %v233 = vpop.f32.mrf.mxu0
    %v234 = vadd.f32 0.0, %v233
    %235 = vmatmul.f32.gmra.mxu0 %v124
    %v236 = vpop.f32.mrf.mxu0
    %v237 = vadd.f32 0.0, %v236
    %238 = vmatmul.f32.gmra.mxu0 %v127
    %v239 = vpop.f32.mrf.mxu0
    %v240 = vadd.f32 0.0, %v239
    %241 = vmatmul.f32.gmra.mxu0 %v130
    %v242 = vpop.f32.mrf.mxu0
    %v243 = vadd.f32 0.0, %v242
    %244 = vmatmul.f32.gmra.mxu0 %v133
    %v245 = vpop.f32.mrf.mxu0
    %v246 = vadd.f32 0.0, %v245
    %247 = vmatmul.f32.gmra.mxu0 %v136
    %v248 = vpop.f32.mrf.mxu0
    %v249 = vadd.f32 0.0, %v248
    %250 = vmatmul.f32.gmra.mxu0 %v139
    %v251 = vpop.f32.mrf.mxu0
    %v252 = vadd.f32 0.0, %v251
    %253 = vmatmul.f32.gmra.mxu0 %v142
    %v254 = vpop.f32.mrf.mxu0
    %v255 = vadd.f32 0.0, %v254
    %256 = vmatmul.f32.gmra.mxu0 %v145
    %v257 = vpop.f32.mrf.mxu0
    %v258 = vadd.f32 0.0, %v257
    %259 = vmatmul.f32.gmra.mxu0 %v148
    %v260 = vpop.f32.mrf.mxu0
    %v261 = vadd.f32 0.0, %v260
    %262 = vmatmul.f32.gmra.mxu0 %v151
    %v263 = vpop.f32.mrf.mxu0
    %v264 = vadd.f32 0.0, %v263
    %265 = vmatmul.f32.gmra.mxu0 %v154
    %v266 = vpop.f32.mrf.mxu0
    %v267 = vadd.f32 0.0, %v266
    %268 = vmatmul.f32.gmra.mxu0 %v157
    %v269 = vpop.f32.mrf.mxu0
    %v270 = vadd.f32 0.0, %v269
    %271 = vmatmul.f32.gmra.mxu0 %v160
    %v272 = vpop.f32.mrf.mxu0
    %v273 = vadd.f32 0.0, %v272
    %274 = vmatmul.f32.gmra.mxu0 %v163
    %v275 = vpop.f32.mrf.mxu0
    %v276 = vadd.f32 0.0, %v275
    %277 = vmatmul.f32.gmra.mxu0 %v166
    %v278 = vpop.f32.mrf.mxu0
    %v279 = vadd.f32 0.0, %v278
    %280 = vmatmul.f32.gmra.mxu0 %v169
    %v281 = vpop.f32.mrf.mxu0
    %v282 = vadd.f32 0.0, %v281
    %283 = vmatmul.f32.gmra.mxu0 %v172
    %v284 = vpop.f32.mrf.mxu0
    %v285 = vadd.f32 0.0, %v284
    %286 = vmatmul.f32.gmra.mxu0 %v175
    %v287 = vpop.f32.mrf.mxu0
    %v288 = vadd.f32 0.0, %v287
    %289 = vmatmul.f32.gmra.mxu0 %v178
    %v290 = vpop.f32.mrf.mxu0
    %v291 = vadd.f32 0.0, %v290
    %292 = vmatmul.f32.gmra.mxu0 %v181
    %v293 = vpop.f32.mrf.mxu0
    %v294 = vadd.f32 0.0, %v293
    %295 = vmatmul.f32.gmra.mxu0 %v184
    %v296 = vpop.f32.mrf.mxu0
    %v297 = vadd.f32 0.0, %v296
    %298 = vmatmul.f32.gmra.mxu0 %v187
    %v299 = vpop.f32.mrf.mxu0
    %v300 = vadd.f32 0.0, %v299
    %301 = vmatmul.f32.gmra.mxu0 %v190
    %v302 = vpop.f32.mrf.mxu0
    %v303 = vadd.f32 0.0, %v302
    %304 = vmatmul.f32.gmra.mxu0 %v193
    %v305 = vpop.f32.mrf.mxu0
    %v306 = vadd.f32 0.0, %v305
    %307 = vmatmul.f32.gmra.mxu0 %v196
    %v308 = vpop.f32.mrf.mxu0
    %v309 = vadd.f32 0.0, %v308
    %310 = vmatmul.f32.gmra.mxu0 %v199
    %v311 = vpop.f32.mrf.mxu0
    %v312 = vadd.f32 0.0, %v311
    %313 = vmatmul.f32.gmra.mxu0 %v202
    %v314 = vpop.f32.mrf.mxu0
    %v315 = vadd.f32 0.0, %v314
    %316 = vmatmul.f32.gmra.mxu0 %v205
    %v317 = vpop.f32.mrf.mxu0
    %v318 = vadd.f32 0.0, %v317
    %319 = vmatmul.f32.gmra.mxu0 %v208
    %v320 = vpop.f32.mrf.mxu0
    %v321 = vadd.f32 0.0, %v320
    %322 = vdwg.mxu0
    %323 = vmatpush.msra.mxu0 0.0
    %324 = vmatpush.msra.mxu0 0.0
    %325 = vmatpush.msra.mxu0 0.0
    %326 = vmatpush.msra.mxu0 0.0
    %327 = vmatpush.msra.mxu0 0.0
    %328 = vmatpush.msra.mxu0 0.0
    %329 = vmatpush.msra.mxu0 0.0
    %330 = vmatpush.msra.mxu0 0.0
    %331 = vmatpush.msra.mxu0 %v112
    %332 = vmatpush.msra.mxu0 %v110
    %333 = vmatpush.msra.mxu0 %v108
    %334 = vmatpush.msra.mxu0 %v106
    %335 = vmatpush.msra.mxu0 %v104
    %336 = vmatpush.msra.mxu0 %v102
    %337 = vmatpush.msra.mxu0 %v100
    %338 = vmatpush.msra.mxu0 %v98
    %339 = vmatmul.f32.gmra.mxu0 %v115
    %v340 = vpop.f32.mrf.mxu0
    %v341 = vadd.f32 0.0, %v340
    %342 = vmatmul.f32.gmra.mxu0 %v118
    %v343 = vpop.f32.mrf.mxu0
    %v344 = vadd.f32 0.0, %v343
    %345 = vmatmul.f32.gmra.mxu0 %v121
    %v346 = vpop.f32.mrf.mxu0
    %v347 = vadd.f32 0.0, %v346
    %348 = vmatmul.f32.gmra.mxu0 %v124
    %v349 = vpop.f32.mrf.mxu0
    %v350 = vadd.f32 0.0, %v349
    %351 = vmatmul.f32.gmra.mxu0 %v127
    %v352 = vpop.f32.mrf.mxu0
    %v353 = vadd.f32 0.0, %v352
    %354 = vmatmul.f32.gmra.mxu0 %v130
    %v355 = vpop.f32.mrf.mxu0
    %v356 = vadd.f32 0.0, %v355
    %357 = vmatmul.f32.gmra.mxu0 %v133
    %v358 = vpop.f32.mrf.mxu0
    %v359 = vadd.f32 0.0, %v358
    %360 = vmatmul.f32.gmra.mxu0 %v136
    %v361 = vpop.f32.mrf.mxu0
    %v362 = vadd.f32 0.0, %v361
    %363 = vmatmul.f32.gmra.mxu0 %v139
    %v364 = vpop.f32.mrf.mxu0
    %v365 = vadd.f32 0.0, %v364
    %366 = vmatmul.f32.gmra.mxu0 %v142
    %v367 = vpop.f32.mrf.mxu0
    %v368 = vadd.f32 0.0, %v367
    %369 = vmatmul.f32.gmra.mxu0 %v145
    %v370 = vpop.f32.mrf.mxu0
    %v371 = vadd.f32 0.0, %v370
    %372 = vmatmul.f32.gmra.mxu0 %v148
    %v373 = vpop.f32.mrf.mxu0
    %v374 = vadd.f32 0.0, %v373
    %375 = vmatmul.f32.gmra.mxu0 %v151
    %v376 = vpop.f32.mrf.mxu0
    %v377 = vadd.f32 0.0, %v376
    %378 = vmatmul.f32.gmra.mxu0 %v154
    %v379 = vpop.f32.mrf.mxu0
    %v380 = vadd.f32 0.0, %v379
    %381 = vmatmul.f32.gmra.mxu0 %v157
    %v382 = vpop.f32.mrf.mxu0
    %v383 = vadd.f32 0.0, %v382
    %384 = vmatmul.f32.gmra.mxu0 %v160
    %v385 = vpop.f32.mrf.mxu0
    %v386 = vadd.f32 0.0, %v385
    %387 = vmatmul.f32.gmra.mxu0 %v163
    %v388 = vpop.f32.mrf.mxu0
    %v389 = vadd.f32 0.0, %v388
    %390 = vmatmul.f32.gmra.mxu0 %v166
    %v391 = vpop.f32.mrf.mxu0
    %v392 = vadd.f32 0.0, %v391
    %393 = vmatmul.f32.gmra.mxu0 %v169
    %v394 = vpop.f32.mrf.mxu0
    %v395 = vadd.f32 0.0, %v394
    %396 = vmatmul.f32.gmra.mxu0 %v172
    %v397 = vpop.f32.mrf.mxu0
    %v398 = vadd.f32 0.0, %v397
    %399 = vmatmul.f32.gmra.mxu0 %v175
    %v400 = vpop.f32.mrf.mxu0
    %v401 = vadd.f32 0.0, %v400
    %402 = vmatmul.f32.gmra.mxu0 %v178
    %v403 = vpop.f32.mrf.mxu0
    %v404 = vadd.f32 0.0, %v403
    %405 = vmatmul.f32.gmra.mxu0 %v181
    %v406 = vpop.f32.mrf.mxu0
    %v407 = vadd.f32 0.0, %v406
    %408 = vmatmul.f32.gmra.mxu0 %v184
    %v409 = vpop.f32.mrf.mxu0
    %v410 = vadd.f32 0.0, %v409
    %411 = vmatmul.f32.gmra.mxu0 %v187
    %v412 = vpop.f32.mrf.mxu0
    %v413 = vadd.f32 0.0, %v412
    %414 = vmatmul.f32.gmra.mxu0 %v190
    %v415 = vpop.f32.mrf.mxu0
    %v416 = vadd.f32 0.0, %v415
    %417 = vmatmul.f32.gmra.mxu0 %v193
    %v418 = vpop.f32.mrf.mxu0
    %v419 = vadd.f32 0.0, %v418
    %420 = vmatmul.f32.gmra.mxu0 %v196
    %v421 = vpop.f32.mrf.mxu0
    %v422 = vadd.f32 0.0, %v421
    %423 = vmatmul.f32.gmra.mxu0 %v199
    %v424 = vpop.f32.mrf.mxu0
    %v425 = vadd.f32 0.0, %v424
    %426 = vmatmul.f32.gmra.mxu0 %v202
    %v427 = vpop.f32.mrf.mxu0
    %v428 = vadd.f32 0.0, %v427
    %429 = vmatmul.f32.gmra.mxu0 %v205
    %v430 = vpop.f32.mrf.mxu0
    %v431 = vadd.f32 0.0, %v430
    %432 = vmatmul.f32.gmra.mxu0 %v208
    %v433 = vpop.f32.mrf.mxu0
    %v434 = vadd.f32 0.0, %v433
    %435 = vdwg.mxu0
    %436 = vst [vmem:[#allocation2] sm:$0xff] %v228
    %437 = vst.msk [vmem:[#allocation2 + $0x8] sm:$0xff] %vm113, %v341
    %438 = vst [vmem:[#allocation2 + $0x10] sm:$0xff] %v231
    %439 = vst.msk [vmem:[#allocation2 + $0x18] sm:$0xff] %vm113, %v344
    %440 = vst [vmem:[#allocation2 + $0x20] sm:$0xff] %v234
    %441 = vst.msk [vmem:[#allocation2 + $0x28] sm:$0xff] %vm113, %v347
    %442 = vst [vmem:[#allocation2 + $0x30] sm:$0xff] %v237
    %443 = vst.msk [vmem:[#allocation2 + $0x38] sm:$0xff] %vm113, %v350
    %444 = vst [vmem:[#allocation2 + $0x40] sm:$0xff] %v240
    %445 = vst.msk [vmem:[#allocation2 + $0x48] sm:$0xff] %vm113, %v353
    %446 = vst [vmem:[#allocation2 + $0x50] sm:$0xff] %v243
    %447 = vst.msk [vmem:[#allocation2 + $0x58] sm:$0xff] %vm113, %v356
    %448 = vst [vmem:[#allocation2 + $0x60] sm:$0xff] %v246
    %449 = vst.msk [vmem:[#allocation2 + $0x68] sm:$0xff] %vm113, %v359
    %450 = vst [vmem:[#allocation2 + $0x70] sm:$0xff] %v249
    %451 = vst.msk [vmem:[#allocation2 + $0x78] sm:$0xff] %vm113, %v362
    %452 = vst [vmem:[#allocation2 + $0x80] sm:$0xff] %v252
    %453 = vst.msk [vmem:[#allocation2 + $0x88] sm:$0xff] %vm113, %v365
    %454 = vst [vmem:[#allocation2 + $0x90] sm:$0xff] %v255
    %455 = vst.msk [vmem:[#allocation2 + $0x98] sm:$0xff] %vm113, %v368
    %456 = vst [vmem:[#allocation2 + $0xa0] sm:$0xff] %v258
    %457 = vst.msk [vmem:[#allocation2 + $0xa8] sm:$0xff] %vm113, %v371
    %458 = vst [vmem:[#allocation2 + $0xb0] sm:$0xff] %v261
    %459 = vst.msk [vmem:[#allocation2 + $0xb8] sm:$0xff] %vm113, %v374
    %460 = vst [vmem:[#allocation2 + $0xc0] sm:$0xff] %v264
    %461 = vst.msk [vmem:[#allocation2 + $0xc8] sm:$0xff] %vm113, %v377
    %462 = vst [vmem:[#allocation2 + $0xd0] sm:$0xff] %v267
    %463 = vst.msk [vmem:[#allocation2 + $0xd8] sm:$0xff] %vm113, %v380
    %464 = vst [vmem:[#allocation2 + $0xe0] sm:$0xff] %v270
    %465 = vst.msk [vmem:[#allocation2 + $0xe8] sm:$0xff] %vm113, %v383
    %466 = vst [vmem:[#allocation2 + $0xf0] sm:$0xff] %v273
    %467 = vst.msk [vmem:[#allocation2 + $0xf8] sm:$0xff] %vm113, %v386
    %468 = vst [vmem:[#allocation2 + $0x100] sm:$0xff] %v276
    %469 = vst.msk [vmem:[#allocation2 + $0x108] sm:$0xff] %vm113, %v389
    %470 = vst [vmem:[#allocation2 + $0x110] sm:$0xff] %v279
    %471 = vst.msk [vmem:[#allocation2 + $0x118] sm:$0xff] %vm113, %v392
    %472 = vst [vmem:[#allocation2 + $0x120] sm:$0xff] %v282
    %473 = vst.msk [vmem:[#allocation2 + $0x128] sm:$0xff] %vm113, %v395
    %474 = vst [vmem:[#allocation2 + $0x130] sm:$0xff] %v285
    %475 = vst.msk [vmem:[#allocation2 + $0x138] sm:$0xff] %vm113, %v398
    %476 = vst [vmem:[#allocation2 + $0x140] sm:$0xff] %v288
    %477 = vst.msk [vmem:[#allocation2 + $0x148] sm:$0xff] %vm113, %v401
    %478 = vst [vmem:[#allocation2 + $0x150] sm:$0xff] %v291
    %479 = vst.msk [vmem:[#allocation2 + $0x158] sm:$0xff] %vm113, %v404
    %480 = vst [vmem:[#allocation2 + $0x160] sm:$0xff] %v294
    %481 = vst.msk [vmem:[#allocation2 + $0x168] sm:$0xff] %vm113, %v407
    %482 = vst [vmem:[#allocation2 + $0x170] sm:$0xff] %v297
    %483 = vst.msk [vmem:[#allocation2 + $0x178] sm:$0xff] %vm113, %v410
    %484 = vst [vmem:[#allocation2 + $0x180] sm:$0xff] %v300
    %485 = vst.msk [vmem:[#allocation2 + $0x188] sm:$0xff] %vm113, %v413
    %486 = vst [vmem:[#allocation2 + $0x190] sm:$0xff] %v303
    %487 = vst.msk [vmem:[#allocation2 + $0x198] sm:$0xff] %vm113, %v416
    %488 = vst [vmem:[#allocation2 + $0x1a0] sm:$0xff] %v306
    %489 = vst.msk [vmem:[#allocation2 + $0x1a8] sm:$0xff] %vm113, %v419
    %490 = vst [vmem:[#allocation2 + $0x1b0] sm:$0xff] %v309
    %491 = vst.msk [vmem:[#allocation2 + $0x1b8] sm:$0xff] %vm113, %v422
    %492 = vst [vmem:[#allocation2 + $0x1c0] sm:$0xff] %v312
    %493 = vst.msk [vmem:[#allocation2 + $0x1c8] sm:$0xff] %vm113, %v425
    %494 = vst [vmem:[#allocation2 + $0x1d0] sm:$0xff] %v315
    %495 = vst.msk [vmem:[#allocation2 + $0x1d8] sm:$0xff] %vm113, %v428
    %496 = vst [vmem:[#allocation2 + $0x1e0] sm:$0xff] %v318
    %497 = vst.msk [vmem:[#allocation2 + $0x1e8] sm:$0xff] %vm113, %v431
    %498 = vst [vmem:[#allocation2 + $0x1f0] sm:$0xff] %v321
    %499 = vst.msk [vmem:[#allocation2 + $0x1f8] sm:$0xff] %vm113, %v434
    %v500 = vlaneseq
    %v501 = vshrl.u32 %v500, 7
    %v502 = vadd.s32 %v501, 8
    %v503 = vadd.s32 %v501, 16
    %v504 = vadd.s32 %v501, 24
    %v505 = vlaneseq
    %v506 = vand.u32 %v505, 127
    %vm507 = vcmp.ge.s32.totalorder %v501, %v506
    %vm508 = vcmp.ge.s32.totalorder %v502, %v506
    %vm509 = vcmp.ge.s32.totalorder %v503, %v506
    %vm510 = vcmp.ge.s32.totalorder %v504, %v506
    %v511 = vsel %vm507, 0.0, -1e+30
    %v512 = vsel %vm508, 0.0, -1e+30
    %v513 = vsel %vm509, 0.0, -1e+30
    %v514 = vsel %vm510, 0.0, -1e+30
    %v515 = vld [vmem:[#allocation2] sm:$0xff]
    %v516 = vld [vmem:[#allocation2 + $0x10] sm:$0xff]
    %v517 = vld [vmem:[#allocation2 + $0x20] sm:$0xff]
    %v518 = vld [vmem:[#allocation2 + $0x30] sm:$0xff]
    %v519 = vld [vmem:[#allocation2 + $0x40] sm:$0xff]
    %v520 = vld [vmem:[#allocation2 + $0x50] sm:$0xff]
    %v521 = vld [vmem:[#allocation2 + $0x60] sm:$0xff]
    %v522 = vld [vmem:[#allocation2 + $0x70] sm:$0xff]
    %v523 = vld [vmem:[#allocation2 + $0x80] sm:$0xff]
    %v524 = vld [vmem:[#allocation2 + $0x90] sm:$0xff]
    %v525 = vld [vmem:[#allocation2 + $0xa0] sm:$0xff]
    %v526 = vld [vmem:[#allocation2 + $0xb0] sm:$0xff]
    %v527 = vld [vmem:[#allocation2 + $0xc0] sm:$0xff]
    %v528 = vld [vmem:[#allocation2 + $0xd0] sm:$0xff]
    %v529 = vld [vmem:[#allocation2 + $0xe0] sm:$0xff]
    %v530 = vld [vmem:[#allocation2 + $0xf0] sm:$0xff]
    %v531 = vld [vmem:[#allocation2 + $0x100] sm:$0xff]
    %v532 = vld [vmem:[#allocation2 + $0x110] sm:$0xff]
    %v533 = vld [vmem:[#allocation2 + $0x120] sm:$0xff]
    %v534 = vld [vmem:[#allocation2 + $0x130] sm:$0xff]
    %v535 = vld [vmem:[#allocation2 + $0x140] sm:$0xff]
    %v536 = vld [vmem:[#allocation2 + $0x150] sm:$0xff]
    %v537 = vld [vmem:[#allocation2 + $0x160] sm:$0xff]
    %v538 = vld [vmem:[#allocation2 + $0x170] sm:$0xff]
    %v539 = vld [vmem:[#allocation2 + $0x180] sm:$0xff]
    %v540 = vld [vmem:[#allocation2 + $0x190] sm:$0xff]
    %v541 = vld [vmem:[#allocation2 + $0x1a0] sm:$0xff]
    %v542 = vld [vmem:[#allocation2 + $0x1b0] sm:$0xff]
    %v543 = vld [vmem:[#allocation2 + $0x1c0] sm:$0xff]
    %v544 = vld [vmem:[#allocation2 + $0x1d0] sm:$0xff]
    %v545 = vld [vmem:[#allocation2 + $0x1e0] sm:$0xff]
    %v546 = vld [vmem:[#allocation2 + $0x1f0] sm:$0xff]
    %v547 = vld [vmem:[#allocation2 + $0x8] sm:$0xff]
    %v548 = vld [vmem:[#allocation2 + $0x18] sm:$0xff]
    %v549 = vld [vmem:[#allocation2 + $0x28] sm:$0xff]
    %v550 = vld [vmem:[#allocation2 + $0x38] sm:$0xff]
    %v551 = vld [vmem:[#allocation2 + $0x48] sm:$0xff]
    %v552 = vld [vmem:[#allocation2 + $0x58] sm:$0xff]
    %v553 = vld [vmem:[#allocation2 + $0x68] sm:$0xff]
    %v554 = vld [vmem:[#allocation2 + $0x78] sm:$0xff]
    %v555 = vld [vmem:[#allocation2 + $0x88] sm:$0xff]
    %v556 = vld [vmem:[#allocation2 + $0x98] sm:$0xff]
    %v557 = vld [vmem:[#allocation2 + $0xa8] sm:$0xff]
    %v558 = vld [vmem:[#allocation2 + $0xb8] sm:$0xff]
    %v559 = vld [vmem:[#allocation2 + $0xc8] sm:$0xff]
    %v560 = vld [vmem:[#allocation2 + $0xd8] sm:$0xff]
    %v561 = vld [vmem:[#allocation2 + $0xe8] sm:$0xff]
    %v562 = vld [vmem:[#allocation2 + $0xf8] sm:$0xff]
    %v563 = vld [vmem:[#allocation2 + $0x108] sm:$0xff]
    %v564 = vld [vmem:[#allocation2 + $0x118] sm:$0xff]
    %v565 = vld [vmem:[#allocation2 + $0x128] sm:$0xff]
    %v566 = vld [vmem:[#allocation2 + $0x138] sm:$0xff]
    %v567 = vld [vmem:[#allocation2 + $0x148] sm:$0xff]
    %v568 = vld [vmem:[#allocation2 + $0x158] sm:$0xff]
    %v569 = vld [vmem:[#allocation2 + $0x168] sm:$0xff]
    %v570 = vld [vmem:[#allocation2 + $0x178] sm:$0xff]
    %v571 = vld [vmem:[#allocation2 + $0x188] sm:$0xff]
    %v572 = vld [vmem:[#allocation2 + $0x198] sm:$0xff]
    %v573 = vld [vmem:[#allocation2 + $0x1a8] sm:$0xff]
    %v574 = vld [vmem:[#allocation2 + $0x1b8] sm:$0xff]
    %v575 = vld [vmem:[#allocation2 + $0x1c8] sm:$0xff]
    %v576 = vld [vmem:[#allocation2 + $0x1d8] sm:$0xff]
    %v577 = vld [vmem:[#allocation2 + $0x1e8] sm:$0xff]
    %v578 = vld [vmem:[#allocation2 + $0x1f8] sm:$0xff]
    %583 = vrot.lane.b32.xlu0 %v515, 64
    %v584 = vpop.permute.xlu0 %583
    %585 = vrot.lane.b32.xlu0 %v516, 64
    %v586 = vpop.permute.xlu0 %585
    %587 = vrot.lane.b32.xlu0 %v517, 64
    %v588 = vpop.permute.xlu0 %587
    %589 = vrot.lane.b32.xlu0 %v518, 64
    %v590 = vpop.permute.xlu0 %589
    %vm591 = vcmask 130048
    %v592 = vsel %vm591, %v515, 0
    %v594 = vsel %vm591, %v516, 0
    %v596 = vsel %vm591, %v517, 0
    %v598 = vsel %vm591, %v518, 0
    %v600 = vsel %vm591, %v584, 0
    %v602 = vsel %vm591, %v586, 0
    %v604 = vsel %vm591, %v588, 0
    %v606 = vsel %vm591, %v590, 0
    %608 = vmatpush.xpose.msra.mxu0 0.0
    %609 = vmatpush.xpose.msra.mxu0 0.0
    %610 = vmatpush.xpose.msra.mxu0 0.0
    %611 = vmatpush.xpose.msra.mxu0 0.0
    %612 = vmatpush.xpose.msra.mxu0 0.0
    %613 = vmatpush.xpose.msra.mxu0 0.0
    %614 = vmatpush.xpose.msra.mxu0 0.0
    %615 = vmatpush.xpose.msra.mxu0 0.0
    %616 = vmatpush.xpose.msra.mxu0 0.0
    %617 = vmatpush.xpose.msra.mxu0 0.0
    %618 = vmatpush.xpose.msra.mxu0 0.0
    %619 = vmatpush.xpose.msra.mxu0 0.0
    %620 = vmatpush.xpose.msra.mxu0 %v606
    %621 = vmatpush.xpose.msra.mxu0 %v604
    %622 = vmatpush.xpose.msra.mxu0 %v602
    %623 = vmatpush.xpose.msra.mxu0 %v600
    %624 = vmatmul.f32.gmra.mxu0 %v592
    %v625 = vpop.f32.mrf.mxu0
    %v626 = vadd.f32 0.0, %v625
    %627 = vmatmul.f32.gmra.mxu0 %v594
    %v628 = vpop.f32.mrf.mxu0
    %v629 = vadd.f32 0.0, %v628
    %630 = vmatmul.f32.gmra.mxu0 %v596
    %v631 = vpop.f32.mrf.mxu0
    %v632 = vadd.f32 0.0, %v631
    %633 = vmatmul.f32.gmra.mxu0 %v598
    %v634 = vpop.f32.mrf.mxu0
    %v635 = vadd.f32 0.0, %v634
    %636 = vdwg.mxu0
    %641 = vrot.lane.b32.xlu0 %v519, 64
    %v642 = vpop.permute.xlu0 %641
    %643 = vrot.lane.b32.xlu0 %v520, 64
    %v644 = vpop.permute.xlu0 %643
    %645 = vrot.lane.b32.xlu0 %v521, 64
    %v646 = vpop.permute.xlu0 %645
    %647 = vrot.lane.b32.xlu0 %v522, 64
    %v648 = vpop.permute.xlu0 %647
    %v649 = vsel %vm591, %v519, 0
    %v651 = vsel %vm591, %v520, 0
    %v653 = vsel %vm591, %v521, 0
    %v655 = vsel %vm591, %v522, 0
    %v657 = vsel %vm591, %v642, 0
    %v659 = vsel %vm591, %v644, 0
    %v661 = vsel %vm591, %v646, 0
    %v663 = vsel %vm591, %v648, 0
    %665 = vmatpush.xpose.msra.mxu0 0.0
    %666 = vmatpush.xpose.msra.mxu0 0.0
    %667 = vmatpush.xpose.msra.mxu0 0.0
    %668 = vmatpush.xpose.msra.mxu0 0.0
    %669 = vmatpush.xpose.msra.mxu0 0.0
    %670 = vmatpush.xpose.msra.mxu0 0.0
    %671 = vmatpush.xpose.msra.mxu0 0.0
    %672 = vmatpush.xpose.msra.mxu0 0.0
    %673 = vmatpush.xpose.msra.mxu0 0.0
    %674 = vmatpush.xpose.msra.mxu0 0.0
    %675 = vmatpush.xpose.msra.mxu0 0.0
    %676 = vmatpush.xpose.msra.mxu0 0.0
    %677 = vmatpush.xpose.msra.mxu0 %v663
    %678 = vmatpush.xpose.msra.mxu0 %v661
    %679 = vmatpush.xpose.msra.mxu0 %v659
    %680 = vmatpush.xpose.msra.mxu0 %v657
    %681 = vmatmul.f32.gmra.mxu0 %v649
    %v682 = vpop.f32.mrf.mxu0
    %v683 = vadd.f32 0.0, %v682
    %684 = vmatmul.f32.gmra.mxu0 %v651
    %v685 = vpop.f32.mrf.mxu0
    %v686 = vadd.f32 0.0, %v685
    %687 = vmatmul.f32.gmra.mxu0 %v653
    %v688 = vpop.f32.mrf.mxu0
    %v689 = vadd.f32 0.0, %v688
    %690 = vmatmul.f32.gmra.mxu0 %v655
    %v691 = vpop.f32.mrf.mxu0
    %v692 = vadd.f32 0.0, %v691
    %693 = vdwg.mxu0
    %698 = vrot.lane.b32.xlu0 %v523, 64
    %v699 = vpop.permute.xlu0 %698
    %700 = vrot.lane.b32.xlu0 %v524, 64
    %v701 = vpop.permute.xlu0 %700
    %702 = vrot.lane.b32.xlu0 %v525, 64
    %v703 = vpop.permute.xlu0 %702
    %704 = vrot.lane.b32.xlu0 %v526, 64
    %v705 = vpop.permute.xlu0 %704
    %v706 = vsel %vm591, %v523, 0
    %v708 = vsel %vm591, %v524, 0
    %v710 = vsel %vm591, %v525, 0
    %v712 = vsel %vm591, %v526, 0
    %v714 = vsel %vm591, %v699, 0
    %v716 = vsel %vm591, %v701, 0
    %v718 = vsel %vm591, %v703, 0
    %v720 = vsel %vm591, %v705, 0
    %722 = vmatpush.xpose.msra.mxu0 0.0
    %723 = vmatpush.xpose.msra.mxu0 0.0
    %724 = vmatpush.xpose.msra.mxu0 0.0
    %725 = vmatpush.xpose.msra.mxu0 0.0
    %726 = vmatpush.xpose.msra.mxu0 0.0
    %727 = vmatpush.xpose.msra.mxu0 0.0
    %728 = vmatpush.xpose.msra.mxu0 0.0
    %729 = vmatpush.xpose.msra.mxu0 0.0
    %730 = vmatpush.xpose.msra.mxu0 0.0
    %731 = vmatpush.xpose.msra.mxu0 0.0
    %732 = vmatpush.xpose.msra.mxu0 0.0
    %733 = vmatpush.xpose.msra.mxu0 0.0
    %734 = vmatpush.xpose.msra.mxu0 %v720
    %735 = vmatpush.xpose.msra.mxu0 %v718
    %736 = vmatpush.xpose.msra.mxu0 %v716
    %737 = vmatpush.xpose.msra.mxu0 %v714
    %738 = vmatmul.f32.gmra.mxu0 %v706
    %v739 = vpop.f32.mrf.mxu0
    %v740 = vadd.f32 0.0, %v739
    %741 = vmatmul.f32.gmra.mxu0 %v708
    %v742 = vpop.f32.mrf.mxu0
    %v743 = vadd.f32 0.0, %v742
    %744 = vmatmul.f32.gmra.mxu0 %v710
    %v745 = vpop.f32.mrf.mxu0
    %v746 = vadd.f32 0.0, %v745
    %747 = vmatmul.f32.gmra.mxu0 %v712
    %v748 = vpop.f32.mrf.mxu0
    %v749 = vadd.f32 0.0, %v748
    %750 = vdwg.mxu0
    %755 = vrot.lane.b32.xlu0 %v527, 64
    %v756 = vpop.permute.xlu0 %755
    %757 = vrot.lane.b32.xlu0 %v528, 64
    %v758 = vpop.permute.xlu0 %757
    %759 = vrot.lane.b32.xlu0 %v529, 64
    %v760 = vpop.permute.xlu0 %759
    %761 = vrot.lane.b32.xlu0 %v530, 64
    %v762 = vpop.permute.xlu0 %761
    %v763 = vsel %vm591, %v527, 0
    %v765 = vsel %vm591, %v528, 0
    %v767 = vsel %vm591, %v529, 0
    %v769 = vsel %vm591, %v530, 0
    %v771 = vsel %vm591, %v756, 0
    %v773 = vsel %vm591, %v758, 0
    %v775 = vsel %vm591, %v760, 0
    %v777 = vsel %vm591, %v762, 0
    %779 = vmatpush.xpose.msra.mxu0 0.0
    %780 = vmatpush.xpose.msra.mxu0 0.0
    %781 = vmatpush.xpose.msra.mxu0 0.0
    %782 = vmatpush.xpose.msra.mxu0 0.0
    %783 = vmatpush.xpose.msra.mxu0 0.0
    %784 = vmatpush.xpose.msra.mxu0 0.0
    %785 = vmatpush.xpose.msra.mxu0 0.0
    %786 = vmatpush.xpose.msra.mxu0 0.0
    %787 = vmatpush.xpose.msra.mxu0 0.0
    %788 = vmatpush.xpose.msra.mxu0 0.0
    %789 = vmatpush.xpose.msra.mxu0 0.0
    %790 = vmatpush.xpose.msra.mxu0 0.0
    %791 = vmatpush.xpose.msra.mxu0 %v777
    %792 = vmatpush.xpose.msra.mxu0 %v775
    %793 = vmatpush.xpose.msra.mxu0 %v773
    %794 = vmatpush.xpose.msra.mxu0 %v771
    %795 = vmatmul.f32.gmra.mxu0 %v763
    %v796 = vpop.f32.mrf.mxu0
    %v797 = vadd.f32 0.0, %v796
    %798 = vmatmul.f32.gmra.mxu0 %v765
    %v799 = vpop.f32.mrf.mxu0
    %v800 = vadd.f32 0.0, %v799
    %801 = vmatmul.f32.gmra.mxu0 %v767
    %v802 = vpop.f32.mrf.mxu0
    %v803 = vadd.f32 0.0, %v802
    %804 = vmatmul.f32.gmra.mxu0 %v769
    %v805 = vpop.f32.mrf.mxu0
    %v806 = vadd.f32 0.0, %v805
    %807 = vdwg.mxu0
    %812 = vrot.lane.b32.xlu0 %v531, 64
    %v813 = vpop.permute.xlu0 %812
    %814 = vrot.lane.b32.xlu0 %v532, 64
    %v815 = vpop.permute.xlu0 %814
    %816 = vrot.lane.b32.xlu0 %v533, 64
    %v817 = vpop.permute.xlu0 %816
    %818 = vrot.lane.b32.xlu0 %v534, 64
    %v819 = vpop.permute.xlu0 %818
    %v820 = vsel %vm591, %v531, 0
    %v822 = vsel %vm591, %v532, 0
    %v824 = vsel %vm591, %v533, 0
    %v826 = vsel %vm591, %v534, 0
    %v828 = vsel %vm591, %v813, 0
    %v830 = vsel %vm591, %v815, 0
    %v832 = vsel %vm591, %v817, 0
    %v834 = vsel %vm591, %v819, 0
    %836 = vmatpush.xpose.msra.mxu0 0.0
    %837 = vmatpush.xpose.msra.mxu0 0.0
    %838 = vmatpush.xpose.msra.mxu0 0.0
    %839 = vmatpush.xpose.msra.mxu0 0.0
    %840 = vmatpush.xpose.msra.mxu0 0.0
    %841 = vmatpush.xpose.msra.mxu0 0.0
    %842 = vmatpush.xpose.msra.mxu0 0.0
    %843 = vmatpush.xpose.msra.mxu0 0.0
    %844 = vmatpush.xpose.msra.mxu0 0.0
    %845 = vmatpush.xpose.msra.mxu0 0.0
    %846 = vmatpush.xpose.msra.mxu0 0.0
    %847 = vmatpush.xpose.msra.mxu0 0.0
    %848 = vmatpush.xpose.msra.mxu0 %v834
    %849 = vmatpush.xpose.msra.mxu0 %v832
    %850 = vmatpush.xpose.msra.mxu0 %v830
    %851 = vmatpush.xpose.msra.mxu0 %v828
    %852 = vmatmul.f32.gmra.mxu0 %v820
    %v853 = vpop.f32.mrf.mxu0
    %v854 = vadd.f32 0.0, %v853
    %855 = vmatmul.f32.gmra.mxu0 %v822
    %v856 = vpop.f32.mrf.mxu0
    %v857 = vadd.f32 0.0, %v856
    %858 = vmatmul.f32.gmra.mxu0 %v824
    %v859 = vpop.f32.mrf.mxu0
    %v860 = vadd.f32 0.0, %v859
    %861 = vmatmul.f32.gmra.mxu0 %v826
    %v862 = vpop.f32.mrf.mxu0
    %v863 = vadd.f32 0.0, %v862
    %864 = vdwg.mxu0
    %869 = vrot.lane.b32.xlu0 %v535, 64
    %v870 = vpop.permute.xlu0 %869
    %871 = vrot.lane.b32.xlu0 %v536, 64
    %v872 = vpop.permute.xlu0 %871
    %873 = vrot.lane.b32.xlu0 %v537, 64
    %v874 = vpop.permute.xlu0 %873
    %875 = vrot.lane.b32.xlu0 %v538, 64
    %v876 = vpop.permute.xlu0 %875
    %v877 = vsel %vm591, %v535, 0
    %v879 = vsel %vm591, %v536, 0
    %v881 = vsel %vm591, %v537, 0
    %v883 = vsel %vm591, %v538, 0
    %v885 = vsel %vm591, %v870, 0
    %v887 = vsel %vm591, %v872, 0
    %v889 = vsel %vm591, %v874, 0
    %v891 = vsel %vm591, %v876, 0
    %893 = vmatpush.xpose.msra.mxu0 0.0
    %894 = vmatpush.xpose.msra.mxu0 0.0
    %895 = vmatpush.xpose.msra.mxu0 0.0
    %896 = vmatpush.xpose.msra.mxu0 0.0
    %897 = vmatpush.xpose.msra.mxu0 0.0
    %898 = vmatpush.xpose.msra.mxu0 0.0
    %899 = vmatpush.xpose.msra.mxu0 0.0
    %900 = vmatpush.xpose.msra.mxu0 0.0
    %901 = vmatpush.xpose.msra.mxu0 0.0
    %902 = vmatpush.xpose.msra.mxu0 0.0
    %903 = vmatpush.xpose.msra.mxu0 0.0
    %904 = vmatpush.xpose.msra.mxu0 0.0
    %905 = vmatpush.xpose.msra.mxu0 %v891
    %906 = vmatpush.xpose.msra.mxu0 %v889
    %907 = vmatpush.xpose.msra.mxu0 %v887
    %908 = vmatpush.xpose.msra.mxu0 %v885
    %909 = vmatmul.f32.gmra.mxu0 %v877
    %v910 = vpop.f32.mrf.mxu0
    %v911 = vadd.f32 0.0, %v910
    %912 = vmatmul.f32.gmra.mxu0 %v879
    %v913 = vpop.f32.mrf.mxu0
    %v914 = vadd.f32 0.0, %v913
    %915 = vmatmul.f32.gmra.mxu0 %v881
    %v916 = vpop.f32.mrf.mxu0
    %v917 = vadd.f32 0.0, %v916
    %918 = vmatmul.f32.gmra.mxu0 %v883
    %v919 = vpop.f32.mrf.mxu0
    %v920 = vadd.f32 0.0, %v919
    %921 = vdwg.mxu0
    %926 = vrot.lane.b32.xlu0 %v539, 64
    %v927 = vpop.permute.xlu0 %926
    %928 = vrot.lane.b32.xlu0 %v540, 64
    %v929 = vpop.permute.xlu0 %928
    %930 = vrot.lane.b32.xlu0 %v541, 64
    %v931 = vpop.permute.xlu0 %930
    %932 = vrot.lane.b32.xlu0 %v542, 64
    %v933 = vpop.permute.xlu0 %932
    %v934 = vsel %vm591, %v539, 0
    %v936 = vsel %vm591, %v540, 0
    %v938 = vsel %vm591, %v541, 0
    %v940 = vsel %vm591, %v542, 0
    %v942 = vsel %vm591, %v927, 0
    %v944 = vsel %vm591, %v929, 0
    %v946 = vsel %vm591, %v931, 0
    %v948 = vsel %vm591, %v933, 0
    %950 = vmatpush.xpose.msra.mxu0 0.0
    %951 = vmatpush.xpose.msra.mxu0 0.0
    %952 = vmatpush.xpose.msra.mxu0 0.0
    %953 = vmatpush.xpose.msra.mxu0 0.0
    %954 = vmatpush.xpose.msra.mxu0 0.0
    %955 = vmatpush.xpose.msra.mxu0 0.0
    %956 = vmatpush.xpose.msra.mxu0 0.0
    %957 = vmatpush.xpose.msra.mxu0 0.0
    %958 = vmatpush.xpose.msra.mxu0 0.0
    %959 = vmatpush.xpose.msra.mxu0 0.0
    %960 = vmatpush.xpose.msra.mxu0 0.0
    %961 = vmatpush.xpose.msra.mxu0 0.0
    %962 = vmatpush.xpose.msra.mxu0 %v948
    %963 = vmatpush.xpose.msra.mxu0 %v946
    %964 = vmatpush.xpose.msra.mxu0 %v944
    %965 = vmatpush.xpose.msra.mxu0 %v942
    %966 = vmatmul.f32.gmra.mxu0 %v934
    %v967 = vpop.f32.mrf.mxu0
    %v968 = vadd.f32 0.0, %v967
    %969 = vmatmul.f32.gmra.mxu0 %v936
    %v970 = vpop.f32.mrf.mxu0
    %v971 = vadd.f32 0.0, %v970
    %972 = vmatmul.f32.gmra.mxu0 %v938
    %v973 = vpop.f32.mrf.mxu0
    %v974 = vadd.f32 0.0, %v973
    %975 = vmatmul.f32.gmra.mxu0 %v940
    %v976 = vpop.f32.mrf.mxu0
    %v977 = vadd.f32 0.0, %v976
    %978 = vdwg.mxu0
    %983 = vrot.lane.b32.xlu0 %v543, 64
    %v984 = vpop.permute.xlu0 %983
    %985 = vrot.lane.b32.xlu0 %v544, 64
    %v986 = vpop.permute.xlu0 %985
    %987 = vrot.lane.b32.xlu0 %v545, 64
    %v988 = vpop.permute.xlu0 %987
    %989 = vrot.lane.b32.xlu0 %v546, 64
    %v990 = vpop.permute.xlu0 %989
    %v991 = vsel %vm591, %v543, 0
    %v993 = vsel %vm591, %v544, 0
    %v995 = vsel %vm591, %v545, 0
    %v997 = vsel %vm591, %v546, 0
    %v999 = vsel %vm591, %v984, 0
    %v1001 = vsel %vm591, %v986, 0
    %v1003 = vsel %vm591, %v988, 0
    %v1005 = vsel %vm591, %v990, 0
    %1007 = vmatpush.xpose.msra.mxu0 0.0
    %1008 = vmatpush.xpose.msra.mxu0 0.0
    %1009 = vmatpush.xpose.msra.mxu0 0.0
    %1010 = vmatpush.xpose.msra.mxu0 0.0
    %1011 = vmatpush.xpose.msra.mxu0 0.0
    %1012 = vmatpush.xpose.msra.mxu0 0.0
    %1013 = vmatpush.xpose.msra.mxu0 0.0
    %1014 = vmatpush.xpose.msra.mxu0 0.0
    %1015 = vmatpush.xpose.msra.mxu0 0.0
    %1016 = vmatpush.xpose.msra.mxu0 0.0
    %1017 = vmatpush.xpose.msra.mxu0 0.0
    %1018 = vmatpush.xpose.msra.mxu0 0.0
    %1019 = vmatpush.xpose.msra.mxu0 %v1005
    %1020 = vmatpush.xpose.msra.mxu0 %v1003
    %1021 = vmatpush.xpose.msra.mxu0 %v1001
    %1022 = vmatpush.xpose.msra.mxu0 %v999
    %1023 = vmatmul.f32.gmra.mxu0 %v991
    %v1024 = vpop.f32.mrf.mxu0
    %v1025 = vadd.f32 0.0, %v1024
    %1026 = vmatmul.f32.gmra.mxu0 %v993
    %v1027 = vpop.f32.mrf.mxu0
    %v1028 = vadd.f32 0.0, %v1027
    %1029 = vmatmul.f32.gmra.mxu0 %v995
    %v1030 = vpop.f32.mrf.mxu0
    %v1031 = vadd.f32 0.0, %v1030
    %1032 = vmatmul.f32.gmra.mxu0 %v997
    %v1033 = vpop.f32.mrf.mxu0
    %v1034 = vadd.f32 0.0, %v1033
    %1035 = vdwg.mxu0
    %v1036 = vmul.f32 %v626, 0.125
    %v1037 = vmul.f32 %v629, 0.125
    %v1038 = vmul.f32 %v632, 0.125
    %v1039 = vmul.f32 %v635, 0.125
    %v1040 = vmul.f32 %v683, 0.125
    %v1041 = vmul.f32 %v686, 0.125
    %v1042 = vmul.f32 %v689, 0.125
    %v1043 = vmul.f32 %v692, 0.125
    %v1044 = vmul.f32 %v740, 0.125
    %v1045 = vmul.f32 %v743, 0.125
    %v1046 = vmul.f32 %v746, 0.125
    %v1047 = vmul.f32 %v749, 0.125
    %v1048 = vmul.f32 %v797, 0.125
    %v1049 = vmul.f32 %v800, 0.125
    %v1050 = vmul.f32 %v803, 0.125
    %v1051 = vmul.f32 %v806, 0.125
    %v1052 = vmul.f32 %v854, 0.125
    %v1053 = vmul.f32 %v857, 0.125
    %v1054 = vmul.f32 %v860, 0.125
    %v1055 = vmul.f32 %v863, 0.125
    %v1056 = vmul.f32 %v911, 0.125
    %v1057 = vmul.f32 %v914, 0.125
    %v1058 = vmul.f32 %v917, 0.125
    %v1059 = vmul.f32 %v920, 0.125
    %v1060 = vmul.f32 %v968, 0.125
    %v1061 = vmul.f32 %v971, 0.125
    %v1062 = vmul.f32 %v974, 0.125
    %v1063 = vmul.f32 %v977, 0.125
    %v1064 = vmul.f32 %v1025, 0.125
    %v1065 = vmul.f32 %v1028, 0.125
    %v1066 = vmul.f32 %v1031, 0.125
    %v1067 = vmul.f32 %v1034, 0.125
    %v1068 = vadd.f32 %v1036, %v511
    %v1069 = vadd.f32 %v1037, %v512
    %v1070 = vadd.f32 %v1038, %v513
    %v1071 = vadd.f32 %v1039, %v514
    %v1072 = vadd.f32 %v1040, %v511
    %v1073 = vadd.f32 %v1041, %v512
    %v1074 = vadd.f32 %v1042, %v513
    %v1075 = vadd.f32 %v1043, %v514
    %v1076 = vadd.f32 %v1044, %v511
    %v1077 = vadd.f32 %v1045, %v512
    %v1078 = vadd.f32 %v1046, %v513
    %v1079 = vadd.f32 %v1047, %v514
    %v1080 = vadd.f32 %v1048, %v511
    %v1081 = vadd.f32 %v1049, %v512
    %v1082 = vadd.f32 %v1050, %v513
    %v1083 = vadd.f32 %v1051, %v514
    %v1084 = vadd.f32 %v1052, %v511
    %v1085 = vadd.f32 %v1053, %v512
    %v1086 = vadd.f32 %v1054, %v513
    %v1087 = vadd.f32 %v1055, %v514
    %v1088 = vadd.f32 %v1056, %v511
    %v1089 = vadd.f32 %v1057, %v512
    %v1090 = vadd.f32 %v1058, %v513
    %v1091 = vadd.f32 %v1059, %v514
    %v1092 = vadd.f32 %v1060, %v511
    %v1093 = vadd.f32 %v1061, %v512
    %v1094 = vadd.f32 %v1062, %v513
    %v1095 = vadd.f32 %v1063, %v514
    %v1096 = vadd.f32 %v1064, %v511
    %v1097 = vadd.f32 %v1065, %v512
    %v1098 = vadd.f32 %v1066, %v513
    %v1099 = vadd.f32 %v1067, %v514
    %vm1100 = vcmask 261120
    %v1101 = vsel %vm1100, %v1068, -inf
    %1102 = vmax.xlane.f32.xlu0 %v1101
    %v1103 = vpop.xlane.xlu0 %1102
    %v1104 = vsel %vm1100, %v1069, -inf
    %1105 = vmax.xlane.f32.xlu0 %v1104
    %v1106 = vpop.xlane.xlu0 %1105
    %v1107 = vsel %vm1100, %v1070, -inf
    %1108 = vmax.xlane.f32.xlu0 %v1107
    %v1109 = vpop.xlane.xlu0 %1108
    %v1110 = vsel %vm1100, %v1071, -inf
    %1111 = vmax.xlane.f32.xlu0 %v1110
    %v1112 = vpop.xlane.xlu0 %1111
    %v1113 = vsel %vm1100, %v1072, -inf
    %1114 = vmax.xlane.f32.xlu0 %v1113
    %v1115 = vpop.xlane.xlu0 %1114
    %v1116 = vsel %vm1100, %v1073, -inf
    %1117 = vmax.xlane.f32.xlu0 %v1116
    %v1118 = vpop.xlane.xlu0 %1117
    %v1119 = vsel %vm1100, %v1074, -inf
    %1120 = vmax.xlane.f32.xlu0 %v1119
    %v1121 = vpop.xlane.xlu0 %1120
    %v1122 = vsel %vm1100, %v1075, -inf
    %1123 = vmax.xlane.f32.xlu0 %v1122
    %v1124 = vpop.xlane.xlu0 %1123
    %v1125 = vsel %vm1100, %v1076, -inf
    %1126 = vmax.xlane.f32.xlu0 %v1125
    %v1127 = vpop.xlane.xlu0 %1126
    %v1128 = vsel %vm1100, %v1077, -inf
    %1129 = vmax.xlane.f32.xlu0 %v1128
    %v1130 = vpop.xlane.xlu0 %1129
    %v1131 = vsel %vm1100, %v1078, -inf
    %1132 = vmax.xlane.f32.xlu0 %v1131
    %v1133 = vpop.xlane.xlu0 %1132
    %v1134 = vsel %vm1100, %v1079, -inf
    %1135 = vmax.xlane.f32.xlu0 %v1134
    %v1136 = vpop.xlane.xlu0 %1135
    %v1137 = vsel %vm1100, %v1080, -inf
    %1138 = vmax.xlane.f32.xlu0 %v1137
    %v1139 = vpop.xlane.xlu0 %1138
    %v1140 = vsel %vm1100, %v1081, -inf
    %1141 = vmax.xlane.f32.xlu0 %v1140
    %v1142 = vpop.xlane.xlu0 %1141
    %v1143 = vsel %vm1100, %v1082, -inf
    %1144 = vmax.xlane.f32.xlu0 %v1143
    %v1145 = vpop.xlane.xlu0 %1144
    %v1146 = vsel %vm1100, %v1083, -inf
    %1147 = vmax.xlane.f32.xlu0 %v1146
    %v1148 = vpop.xlane.xlu0 %1147
    %v1149 = vsel %vm1100, %v1084, -inf
    %1150 = vmax.xlane.f32.xlu0 %v1149
    %v1151 = vpop.xlane.xlu0 %1150
    %v1152 = vsel %vm1100, %v1085, -inf
    %1153 = vmax.xlane.f32.xlu0 %v1152
    %v1154 = vpop.xlane.xlu0 %1153
    %v1155 = vsel %vm1100, %v1086, -inf
    %1156 = vmax.xlane.f32.xlu0 %v1155
    %v1157 = vpop.xlane.xlu0 %1156
    %v1158 = vsel %vm1100, %v1087, -inf
    %1159 = vmax.xlane.f32.xlu0 %v1158
    %v1160 = vpop.xlane.xlu0 %1159
    %v1161 = vsel %vm1100, %v1088, -inf
    %1162 = vmax.xlane.f32.xlu0 %v1161
    %v1163 = vpop.xlane.xlu0 %1162
    %v1164 = vsel %vm1100, %v1089, -inf
    %1165 = vmax.xlane.f32.xlu0 %v1164
    %v1166 = vpop.xlane.xlu0 %1165
    %v1167 = vsel %vm1100, %v1090, -inf
    %1168 = vmax.xlane.f32.xlu0 %v1167
    %v1169 = vpop.xlane.xlu0 %1168
    %v1170 = vsel %vm1100, %v1091, -inf
    %1171 = vmax.xlane.f32.xlu0 %v1170
    %v1172 = vpop.xlane.xlu0 %1171
    %v1173 = vsel %vm1100, %v1092, -inf
    %1174 = vmax.xlane.f32.xlu0 %v1173
    %v1175 = vpop.xlane.xlu0 %1174
    %v1176 = vsel %vm1100, %v1093, -inf
    %1177 = vmax.xlane.f32.xlu0 %v1176
    %v1178 = vpop.xlane.xlu0 %1177
    %v1179 = vsel %vm1100, %v1094, -inf
    %1180 = vmax.xlane.f32.xlu0 %v1179
    %v1181 = vpop.xlane.xlu0 %1180
    %v1182 = vsel %vm1100, %v1095, -inf
    %1183 = vmax.xlane.f32.xlu0 %v1182
    %v1184 = vpop.xlane.xlu0 %1183
    %v1185 = vsel %vm1100, %v1096, -inf
    %1186 = vmax.xlane.f32.xlu0 %v1185
    %v1187 = vpop.xlane.xlu0 %1186
    %v1188 = vsel %vm1100, %v1097, -inf
    %1189 = vmax.xlane.f32.xlu0 %v1188
    %v1190 = vpop.xlane.xlu0 %1189
    %v1191 = vsel %vm1100, %v1098, -inf
    %1192 = vmax.xlane.f32.xlu0 %v1191
    %v1193 = vpop.xlane.xlu0 %1192
    %v1194 = vsel %vm1100, %v1099, -inf
    %1195 = vmax.xlane.f32.xlu0 %v1194
    %v1196 = vpop.xlane.xlu0 %1195
    %v1197 = vsub.f32 %v1068, %v1103
    %v1198 = vsub.f32 %v1069, %v1106
    %v1199 = vsub.f32 %v1070, %v1109
    %v1200 = vsub.f32 %v1071, %v1112
    %v1201 = vsub.f32 %v1072, %v1115
    %v1202 = vsub.f32 %v1073, %v1118
    %v1203 = vsub.f32 %v1074, %v1121
    %v1204 = vsub.f32 %v1075, %v1124
    %v1205 = vsub.f32 %v1076, %v1127
    %v1206 = vsub.f32 %v1077, %v1130
    %v1207 = vsub.f32 %v1078, %v1133
    %v1208 = vsub.f32 %v1079, %v1136
    %v1209 = vsub.f32 %v1080, %v1139
    %v1210 = vsub.f32 %v1081, %v1142
    %v1211 = vsub.f32 %v1082, %v1145
    %v1212 = vsub.f32 %v1083, %v1148
    %v1213 = vsub.f32 %v1084, %v1151
    %v1214 = vsub.f32 %v1085, %v1154
    %v1215 = vsub.f32 %v1086, %v1157
    %v1216 = vsub.f32 %v1087, %v1160
    %v1217 = vsub.f32 %v1088, %v1163
    %v1218 = vsub.f32 %v1089, %v1166
    %v1219 = vsub.f32 %v1090, %v1169
    %v1220 = vsub.f32 %v1091, %v1172
    %v1221 = vsub.f32 %v1092, %v1175
    %v1222 = vsub.f32 %v1093, %v1178
    %v1223 = vsub.f32 %v1094, %v1181
    %v1224 = vsub.f32 %v1095, %v1184
    %v1225 = vsub.f32 %v1096, %v1187
    %v1226 = vsub.f32 %v1097, %v1190
    %v1227 = vsub.f32 %v1098, %v1193
    %v1228 = vsub.f32 %v1099, %v1196
    %v1229 = vmul.f32 %v1197, 1.442695
    %v1230 = vpow.pop %v1229
    %v1231 = vmul.f32 %v1198, 1.442695
    %v1232 = vpow.pop %v1231
    %v1233 = vmul.f32 %v1199, 1.442695
    %v1234 = vpow.pop %v1233
    %v1235 = vmul.f32 %v1200, 1.442695
    %v1236 = vpow.pop %v1235
    %v1237 = vmul.f32 %v1201, 1.442695
    %v1238 = vpow.pop %v1237
    %v1239 = vmul.f32 %v1202, 1.442695
    %v1240 = vpow.pop %v1239
    %v1241 = vmul.f32 %v1203, 1.442695
    %v1242 = vpow.pop %v1241
    %v1243 = vmul.f32 %v1204, 1.442695
    %v1244 = vpow.pop %v1243
    %v1245 = vmul.f32 %v1205, 1.442695
    %v1246 = vpow.pop %v1245
    %v1247 = vmul.f32 %v1206, 1.442695
    %v1248 = vpow.pop %v1247
    %v1249 = vmul.f32 %v1207, 1.442695
    %v1250 = vpow.pop %v1249
    %v1251 = vmul.f32 %v1208, 1.442695
    %v1252 = vpow.pop %v1251
    %v1253 = vmul.f32 %v1209, 1.442695
    %v1254 = vpow.pop %v1253
    %v1255 = vmul.f32 %v1210, 1.442695
    %v1256 = vpow.pop %v1255
    %v1257 = vmul.f32 %v1211, 1.442695
    %v1258 = vpow.pop %v1257
    %v1259 = vmul.f32 %v1212, 1.442695
    %v1260 = vpow.pop %v1259
    %v1261 = vmul.f32 %v1213, 1.442695
    %v1262 = vpow.pop %v1261
    %v1263 = vmul.f32 %v1214, 1.442695
    %v1264 = vpow.pop %v1263
    %v1265 = vmul.f32 %v1215, 1.442695
    %v1266 = vpow.pop %v1265
    %v1267 = vmul.f32 %v1216, 1.442695
    %v1268 = vpow.pop %v1267
    %v1269 = vmul.f32 %v1217, 1.442695
    %v1270 = vpow.pop %v1269
    %v1271 = vmul.f32 %v1218, 1.442695
    %v1272 = vpow.pop %v1271
    %v1273 = vmul.f32 %v1219, 1.442695
    %v1274 = vpow.pop %v1273
    %v1275 = vmul.f32 %v1220, 1.442695
    %v1276 = vpow.pop %v1275
    %v1277 = vmul.f32 %v1221, 1.442695
    %v1278 = vpow.pop %v1277
    %v1279 = vmul.f32 %v1222, 1.442695
    %v1280 = vpow.pop %v1279
    %v1281 = vmul.f32 %v1223, 1.442695
    %v1282 = vpow.pop %v1281
    %v1283 = vmul.f32 %v1224, 1.442695
    %v1284 = vpow.pop %v1283
    %v1285 = vmul.f32 %v1225, 1.442695
    %v1286 = vpow.pop %v1285
    %v1287 = vmul.f32 %v1226, 1.442695
    %v1288 = vpow.pop %v1287
    %v1289 = vmul.f32 %v1227, 1.442695
    %v1290 = vpow.pop %v1289
    %v1291 = vmul.f32 %v1228, 1.442695
    %v1292 = vpow.pop %v1291
    %v1293 = vsel %vm1100, %v1230, 0.0
    %1294 = vadd.xlane.f32.xlu0 %v1293
    %v1295 = vpop.xlane.xlu0 %1294
    %v1296 = vsel %vm1100, %v1232, 0.0
    %1297 = vadd.xlane.f32.xlu0 %v1296
    %v1298 = vpop.xlane.xlu0 %1297
    %v1299 = vsel %vm1100, %v1234, 0.0
    %1300 = vadd.xlane.f32.xlu0 %v1299
    %v1301 = vpop.xlane.xlu0 %1300
    %v1302 = vsel %vm1100, %v1236, 0.0
    %1303 = vadd.xlane.f32.xlu0 %v1302
    %v1304 = vpop.xlane.xlu0 %1303
    %v1305 = vsel %vm1100, %v1238, 0.0
    %1306 = vadd.xlane.f32.xlu0 %v1305
    %v1307 = vpop.xlane.xlu0 %1306
    %v1308 = vsel %vm1100, %v1240, 0.0
    %1309 = vadd.xlane.f32.xlu0 %v1308
    %v1310 = vpop.xlane.xlu0 %1309
    %v1311 = vsel %vm1100, %v1242, 0.0
    %1312 = vadd.xlane.f32.xlu0 %v1311
    %v1313 = vpop.xlane.xlu0 %1312
    %v1314 = vsel %vm1100, %v1244, 0.0
    %1315 = vadd.xlane.f32.xlu0 %v1314
    %v1316 = vpop.xlane.xlu0 %1315
    %v1317 = vsel %vm1100, %v1246, 0.0
    %1318 = vadd.xlane.f32.xlu0 %v1317
    %v1319 = vpop.xlane.xlu0 %1318
    %v1320 = vsel %vm1100, %v1248, 0.0
    %1321 = vadd.xlane.f32.xlu0 %v1320
    %v1322 = vpop.xlane.xlu0 %1321
    %v1323 = vsel %vm1100, %v1250, 0.0
    %1324 = vadd.xlane.f32.xlu0 %v1323
    %v1325 = vpop.xlane.xlu0 %1324
    %v1326 = vsel %vm1100, %v1252, 0.0
    %1327 = vadd.xlane.f32.xlu0 %v1326
    %v1328 = vpop.xlane.xlu0 %1327
    %v1329 = vsel %vm1100, %v1254, 0.0
    %1330 = vadd.xlane.f32.xlu0 %v1329
    %v1331 = vpop.xlane.xlu0 %1330
    %v1332 = vsel %vm1100, %v1256, 0.0
    %1333 = vadd.xlane.f32.xlu0 %v1332
    %v1334 = vpop.xlane.xlu0 %1333
    %v1335 = vsel %vm1100, %v1258, 0.0
    %1336 = vadd.xlane.f32.xlu0 %v1335
    %v1337 = vpop.xlane.xlu0 %1336
    %v1338 = vsel %vm1100, %v1260, 0.0
    %1339 = vadd.xlane.f32.xlu0 %v1338
    %v1340 = vpop.xlane.xlu0 %1339
    %v1341 = vsel %vm1100, %v1262, 0.0
    %1342 = vadd.xlane.f32.xlu0 %v1341
    %v1343 = vpop.xlane.xlu0 %1342
    %v1344 = vsel %vm1100, %v1264, 0.0
    %1345 = vadd.xlane.f32.xlu0 %v1344
    %v1346 = vpop.xlane.xlu0 %1345
    %v1347 = vsel %vm1100, %v1266, 0.0
    %1348 = vadd.xlane.f32.xlu0 %v1347
    %v1349 = vpop.xlane.xlu0 %1348
    %v1350 = vsel %vm1100, %v1268, 0.0
    %1351 = vadd.xlane.f32.xlu0 %v1350
    %v1352 = vpop.xlane.xlu0 %1351
    %v1353 = vsel %vm1100, %v1270, 0.0
    %1354 = vadd.xlane.f32.xlu0 %v1353
    %v1355 = vpop.xlane.xlu0 %1354
    %v1356 = vsel %vm1100, %v1272, 0.0
    %1357 = vadd.xlane.f32.xlu0 %v1356
    %v1358 = vpop.xlane.xlu0 %1357
    %v1359 = vsel %vm1100, %v1274, 0.0
    %1360 = vadd.xlane.f32.xlu0 %v1359
    %v1361 = vpop.xlane.xlu0 %1360
    %v1362 = vsel %vm1100, %v1276, 0.0
    %1363 = vadd.xlane.f32.xlu0 %v1362
    %v1364 = vpop.xlane.xlu0 %1363
    %v1365 = vsel %vm1100, %v1278, 0.0
    %1366 = vadd.xlane.f32.xlu0 %v1365
    %v1367 = vpop.xlane.xlu0 %1366
    %v1368 = vsel %vm1100, %v1280, 0.0
    %1369 = vadd.xlane.f32.xlu0 %v1368
    %v1370 = vpop.xlane.xlu0 %1369
    %v1371 = vsel %vm1100, %v1282, 0.0
    %1372 = vadd.xlane.f32.xlu0 %v1371
    %v1373 = vpop.xlane.xlu0 %1372
    %v1374 = vsel %vm1100, %v1284, 0.0
    %1375 = vadd.xlane.f32.xlu0 %v1374
    %v1376 = vpop.xlane.xlu0 %1375
    %v1377 = vsel %vm1100, %v1286, 0.0
    %1378 = vadd.xlane.f32.xlu0 %v1377
    %v1379 = vpop.xlane.xlu0 %1378
    %v1380 = vsel %vm1100, %v1288, 0.0
    %1381 = vadd.xlane.f32.xlu0 %v1380
    %v1382 = vpop.xlane.xlu0 %1381
    %v1383 = vsel %vm1100, %v1290, 0.0
    %1384 = vadd.xlane.f32.xlu0 %v1383
    %v1385 = vpop.xlane.xlu0 %1384
    %v1386 = vsel %vm1100, %v1292, 0.0
    %1387 = vadd.xlane.f32.xlu0 %v1386
    %v1388 = vpop.xlane.xlu0 %1387
    %v1389 = vrcp.pop %v1295
    %v1390 = vmul.f32 %v1295, %v1389
    %v1391 = vsub.f32 1.0, %v1390
    %v1392 = vmul.f32 %v1389, %v1391
    %v1393 = vadd.f32 %v1389, %v1392
    %vm1394 = vweird.f32 %v1295
    %vm1395 = vweird.f32 %v1389
    %vm1396 = vmor %vm1394, %vm1395
    %v1397 = vsel %vm1396, %v1389, %v1393
    %v1398 = vand.u32 2147483647, %v1295
    %vm1399 = vcmp.eq.f32.partialorder %v1398, 8.507059e+37
    %v1400 = vand.u32 %v1295, 2147483648
    %v1401 = vor.u32 1.1754944e-38, %v1400
    %v1402 = vsel %vm1399, %v1401, %v1397
    %v1403 = vmul.f32 %v1230, %v1402
    %v1404 = vrcp.pop %v1298
    %v1405 = vmul.f32 %v1298, %v1404
    %v1406 = vsub.f32 1.0, %v1405
    %v1407 = vmul.f32 %v1404, %v1406
    %v1408 = vadd.f32 %v1404, %v1407
    %vm1409 = vweird.f32 %v1298
    %vm1410 = vweird.f32 %v1404
    %vm1411 = vmor %vm1409, %vm1410
    %v1412 = vsel %vm1411, %v1404, %v1408
    %v1413 = vand.u32 2147483647, %v1298
    %vm1414 = vcmp.eq.f32.partialorder %v1413, 8.507059e+37
    %v1415 = vand.u32 %v1298, 2147483648
    %v1416 = vor.u32 1.1754944e-38, %v1415
    %v1417 = vsel %vm1414, %v1416, %v1412
    %v1418 = vmul.f32 %v1232, %v1417
    %v1419 = vrcp.pop %v1301
    %v1420 = vmul.f32 %v1301, %v1419
    %v1421 = vsub.f32 1.0, %v1420
    %v1422 = vmul.f32 %v1419, %v1421
    %v1423 = vadd.f32 %v1419, %v1422
    %vm1424 = vweird.f32 %v1301
    %vm1425 = vweird.f32 %v1419
    %vm1426 = vmor %vm1424, %vm1425
    %v1427 = vsel %vm1426, %v1419, %v1423
    %v1428 = vand.u32 2147483647, %v1301
    %vm1429 = vcmp.eq.f32.partialorder %v1428, 8.507059e+37
    %v1430 = vand.u32 %v1301, 2147483648
    %v1431 = vor.u32 1.1754944e-38, %v1430
    %v1432 = vsel %vm1429, %v1431, %v1427
    %v1433 = vmul.f32 %v1234, %v1432
    %v1434 = vrcp.pop %v1304
    %v1435 = vmul.f32 %v1304, %v1434
    %v1436 = vsub.f32 1.0, %v1435
    %v1437 = vmul.f32 %v1434, %v1436
    %v1438 = vadd.f32 %v1434, %v1437
    %vm1439 = vweird.f32 %v1304
    %vm1440 = vweird.f32 %v1434
    %vm1441 = vmor %vm1439, %vm1440
    %v1442 = vsel %vm1441, %v1434, %v1438
    %v1443 = vand.u32 2147483647, %v1304
    %vm1444 = vcmp.eq.f32.partialorder %v1443, 8.507059e+37
    %v1445 = vand.u32 %v1304, 2147483648
    %v1446 = vor.u32 1.1754944e-38, %v1445
    %v1447 = vsel %vm1444, %v1446, %v1442
    %v1448 = vmul.f32 %v1236, %v1447
    %v1449 = vrcp.pop %v1307
    %v1450 = vmul.f32 %v1307, %v1449
    %v1451 = vsub.f32 1.0, %v1450
    %v1452 = vmul.f32 %v1449, %v1451
    %v1453 = vadd.f32 %v1449, %v1452
    %vm1454 = vweird.f32 %v1307
    %vm1455 = vweird.f32 %v1449
    %vm1456 = vmor %vm1454, %vm1455
    %v1457 = vsel %vm1456, %v1449, %v1453
    %v1458 = vand.u32 2147483647, %v1307
    %vm1459 = vcmp.eq.f32.partialorder %v1458, 8.507059e+37
    %v1460 = vand.u32 %v1307, 2147483648
    %v1461 = vor.u32 1.1754944e-38, %v1460
    %v1462 = vsel %vm1459, %v1461, %v1457
    %v1463 = vmul.f32 %v1238, %v1462
    %v1464 = vrcp.pop %v1310
    %v1465 = vmul.f32 %v1310, %v1464
    %v1466 = vsub.f32 1.0, %v1465
    %v1467 = vmul.f32 %v1464, %v1466
    %v1468 = vadd.f32 %v1464, %v1467
    %vm1469 = vweird.f32 %v1310
    %vm1470 = vweird.f32 %v1464
    %vm1471 = vmor %vm1469, %vm1470
    %v1472 = vsel %vm1471, %v1464, %v1468
    %v1473 = vand.u32 2147483647, %v1310
    %vm1474 = vcmp.eq.f32.partialorder %v1473, 8.507059e+37
    %v1475 = vand.u32 %v1310, 2147483648
    %v1476 = vor.u32 1.1754944e-38, %v1475
    %v1477 = vsel %vm1474, %v1476, %v1472
    %v1478 = vmul.f32 %v1240, %v1477
    %v1479 = vrcp.pop %v1313
    %v1480 = vmul.f32 %v1313, %v1479
    %v1481 = vsub.f32 1.0, %v1480
    %v1482 = vmul.f32 %v1479, %v1481
    %v1483 = vadd.f32 %v1479, %v1482
    %vm1484 = vweird.f32 %v1313
    %vm1485 = vweird.f32 %v1479
    %vm1486 = vmor %vm1484, %vm1485
    %v1487 = vsel %vm1486, %v1479, %v1483
    %v1488 = vand.u32 2147483647, %v1313
    %vm1489 = vcmp.eq.f32.partialorder %v1488, 8.507059e+37
    %v1490 = vand.u32 %v1313, 2147483648
    %v1491 = vor.u32 1.1754944e-38, %v1490
    %v1492 = vsel %vm1489, %v1491, %v1487
    %v1493 = vmul.f32 %v1242, %v1492
    %v1494 = vrcp.pop %v1316
    %v1495 = vmul.f32 %v1316, %v1494
    %v1496 = vsub.f32 1.0, %v1495
    %v1497 = vmul.f32 %v1494, %v1496
    %v1498 = vadd.f32 %v1494, %v1497
    %vm1499 = vweird.f32 %v1316
    %vm1500 = vweird.f32 %v1494
    %vm1501 = vmor %vm1499, %vm1500
    %v1502 = vsel %vm1501, %v1494, %v1498
    %v1503 = vand.u32 2147483647, %v1316
    %vm1504 = vcmp.eq.f32.partialorder %v1503, 8.507059e+37
    %v1505 = vand.u32 %v1316, 2147483648
    %v1506 = vor.u32 1.1754944e-38, %v1505
    %v1507 = vsel %vm1504, %v1506, %v1502
    %v1508 = vmul.f32 %v1244, %v1507
    %v1509 = vrcp.pop %v1319
    %v1510 = vmul.f32 %v1319, %v1509
    %v1511 = vsub.f32 1.0, %v1510
    %v1512 = vmul.f32 %v1509, %v1511
    %v1513 = vadd.f32 %v1509, %v1512
    %vm1514 = vweird.f32 %v1319
    %vm1515 = vweird.f32 %v1509
    %vm1516 = vmor %vm1514, %vm1515
    %v1517 = vsel %vm1516, %v1509, %v1513
    %v1518 = vand.u32 2147483647, %v1319
    %vm1519 = vcmp.eq.f32.partialorder %v1518, 8.507059e+37
    %v1520 = vand.u32 %v1319, 2147483648
    %v1521 = vor.u32 1.1754944e-38, %v1520
    %v1522 = vsel %vm1519, %v1521, %v1517
    %v1523 = vmul.f32 %v1246, %v1522
    %v1524 = vrcp.pop %v1322
    %v1525 = vmul.f32 %v1322, %v1524
    %v1526 = vsub.f32 1.0, %v1525
    %v1527 = vmul.f32 %v1524, %v1526
    %v1528 = vadd.f32 %v1524, %v1527
    %vm1529 = vweird.f32 %v1322
    %vm1530 = vweird.f32 %v1524
    %vm1531 = vmor %vm1529, %vm1530
    %v1532 = vsel %vm1531, %v1524, %v1528
    %v1533 = vand.u32 2147483647, %v1322
    %vm1534 = vcmp.eq.f32.partialorder %v1533, 8.507059e+37
    %v1535 = vand.u32 %v1322, 2147483648
    %v1536 = vor.u32 1.1754944e-38, %v1535
    %v1537 = vsel %vm1534, %v1536, %v1532
    %v1538 = vmul.f32 %v1248, %v1537
    %v1539 = vrcp.pop %v1325
    %v1540 = vmul.f32 %v1325, %v1539
    %v1541 = vsub.f32 1.0, %v1540
    %v1542 = vmul.f32 %v1539, %v1541
    %v1543 = vadd.f32 %v1539, %v1542
    %vm1544 = vweird.f32 %v1325
    %vm1545 = vweird.f32 %v1539
    %vm1546 = vmor %vm1544, %vm1545
    %v1547 = vsel %vm1546, %v1539, %v1543
    %v1548 = vand.u32 2147483647, %v1325
    %vm1549 = vcmp.eq.f32.partialorder %v1548, 8.507059e+37
    %v1550 = vand.u32 %v1325, 2147483648
    %v1551 = vor.u32 1.1754944e-38, %v1550
    %v1552 = vsel %vm1549, %v1551, %v1547
    %v1553 = vmul.f32 %v1250, %v1552
    %v1554 = vrcp.pop %v1328
    %v1555 = vmul.f32 %v1328, %v1554
    %v1556 = vsub.f32 1.0, %v1555
    %v1557 = vmul.f32 %v1554, %v1556
    %v1558 = vadd.f32 %v1554, %v1557
    %vm1559 = vweird.f32 %v1328
    %vm1560 = vweird.f32 %v1554
    %vm1561 = vmor %vm1559, %vm1560
    %v1562 = vsel %vm1561, %v1554, %v1558
    %v1563 = vand.u32 2147483647, %v1328
    %vm1564 = vcmp.eq.f32.partialorder %v1563, 8.507059e+37
    %v1565 = vand.u32 %v1328, 2147483648
    %v1566 = vor.u32 1.1754944e-38, %v1565
    %v1567 = vsel %vm1564, %v1566, %v1562
    %v1568 = vmul.f32 %v1252, %v1567
    %v1569 = vrcp.pop %v1331
    %v1570 = vmul.f32 %v1331, %v1569
    %v1571 = vsub.f32 1.0, %v1570
    %v1572 = vmul.f32 %v1569, %v1571
    %v1573 = vadd.f32 %v1569, %v1572
    %vm1574 = vweird.f32 %v1331
    %vm1575 = vweird.f32 %v1569
    %vm1576 = vmor %vm1574, %vm1575
    %v1577 = vsel %vm1576, %v1569, %v1573
    %v1578 = vand.u32 2147483647, %v1331
    %vm1579 = vcmp.eq.f32.partialorder %v1578, 8.507059e+37
    %v1580 = vand.u32 %v1331, 2147483648
    %v1581 = vor.u32 1.1754944e-38, %v1580
    %v1582 = vsel %vm1579, %v1581, %v1577
    %v1583 = vmul.f32 %v1254, %v1582
    %v1584 = vrcp.pop %v1334
    %v1585 = vmul.f32 %v1334, %v1584
    %v1586 = vsub.f32 1.0, %v1585
    %v1587 = vmul.f32 %v1584, %v1586
    %v1588 = vadd.f32 %v1584, %v1587
    %vm1589 = vweird.f32 %v1334
    %vm1590 = vweird.f32 %v1584
    %vm1591 = vmor %vm1589, %vm1590
    %v1592 = vsel %vm1591, %v1584, %v1588
    %v1593 = vand.u32 2147483647, %v1334
    %vm1594 = vcmp.eq.f32.partialorder %v1593, 8.507059e+37
    %v1595 = vand.u32 %v1334, 2147483648
    %v1596 = vor.u32 1.1754944e-38, %v1595
    %v1597 = vsel %vm1594, %v1596, %v1592
    %v1598 = vmul.f32 %v1256, %v1597
    %v1599 = vrcp.pop %v1337
    %v1600 = vmul.f32 %v1337, %v1599
    %v1601 = vsub.f32 1.0, %v1600
    %v1602 = vmul.f32 %v1599, %v1601
    %v1603 = vadd.f32 %v1599, %v1602
    %vm1604 = vweird.f32 %v1337
    %vm1605 = vweird.f32 %v1599
    %vm1606 = vmor %vm1604, %vm1605
    %v1607 = vsel %vm1606, %v1599, %v1603
    %v1608 = vand.u32 2147483647, %v1337
    %vm1609 = vcmp.eq.f32.partialorder %v1608, 8.507059e+37
    %v1610 = vand.u32 %v1337, 2147483648
    %v1611 = vor.u32 1.1754944e-38, %v1610
    %v1612 = vsel %vm1609, %v1611, %v1607
    %v1613 = vmul.f32 %v1258, %v1612
    %v1614 = vrcp.pop %v1340
    %v1615 = vmul.f32 %v1340, %v1614
    %v1616 = vsub.f32 1.0, %v1615
    %v1617 = vmul.f32 %v1614, %v1616
    %v1618 = vadd.f32 %v1614, %v1617
    %vm1619 = vweird.f32 %v1340
    %vm1620 = vweird.f32 %v1614
    %vm1621 = vmor %vm1619, %vm1620
    %v1622 = vsel %vm1621, %v1614, %v1618
    %v1623 = vand.u32 2147483647, %v1340
    %vm1624 = vcmp.eq.f32.partialorder %v1623, 8.507059e+37
    %v1625 = vand.u32 %v1340, 2147483648
    %v1626 = vor.u32 1.1754944e-38, %v1625
    %v1627 = vsel %vm1624, %v1626, %v1622
    %v1628 = vmul.f32 %v1260, %v1627
    %v1629 = vrcp.pop %v1343
    %v1630 = vmul.f32 %v1343, %v1629
    %v1631 = vsub.f32 1.0, %v1630
    %v1632 = vmul.f32 %v1629, %v1631
    %v1633 = vadd.f32 %v1629, %v1632
    %vm1634 = vweird.f32 %v1343
    %vm1635 = vweird.f32 %v1629
    %vm1636 = vmor %vm1634, %vm1635
    %v1637 = vsel %vm1636, %v1629, %v1633
    %v1638 = vand.u32 2147483647, %v1343
    %vm1639 = vcmp.eq.f32.partialorder %v1638, 8.507059e+37
    %v1640 = vand.u32 %v1343, 2147483648
    %v1641 = vor.u32 1.1754944e-38, %v1640
    %v1642 = vsel %vm1639, %v1641, %v1637
    %v1643 = vmul.f32 %v1262, %v1642
    %v1644 = vrcp.pop %v1346
    %v1645 = vmul.f32 %v1346, %v1644
    %v1646 = vsub.f32 1.0, %v1645
    %v1647 = vmul.f32 %v1644, %v1646
    %v1648 = vadd.f32 %v1644, %v1647
    %vm1649 = vweird.f32 %v1346
    %vm1650 = vweird.f32 %v1644
    %vm1651 = vmor %vm1649, %vm1650
    %v1652 = vsel %vm1651, %v1644, %v1648
    %v1653 = vand.u32 2147483647, %v1346
    %vm1654 = vcmp.eq.f32.partialorder %v1653, 8.507059e+37
    %v1655 = vand.u32 %v1346, 2147483648
    %v1656 = vor.u32 1.1754944e-38, %v1655
    %v1657 = vsel %vm1654, %v1656, %v1652
    %v1658 = vmul.f32 %v1264, %v1657
    %v1659 = vrcp.pop %v1349
    %v1660 = vmul.f32 %v1349, %v1659
    %v1661 = vsub.f32 1.0, %v1660
    %v1662 = vmul.f32 %v1659, %v1661
    %v1663 = vadd.f32 %v1659, %v1662
    %vm1664 = vweird.f32 %v1349
    %vm1665 = vweird.f32 %v1659
    %vm1666 = vmor %vm1664, %vm1665
    %v1667 = vsel %vm1666, %v1659, %v1663
    %v1668 = vand.u32 2147483647, %v1349
    %vm1669 = vcmp.eq.f32.partialorder %v1668, 8.507059e+37
    %v1670 = vand.u32 %v1349, 2147483648
    %v1671 = vor.u32 1.1754944e-38, %v1670
    %v1672 = vsel %vm1669, %v1671, %v1667
    %v1673 = vmul.f32 %v1266, %v1672
    %v1674 = vrcp.pop %v1352
    %v1675 = vmul.f32 %v1352, %v1674
    %v1676 = vsub.f32 1.0, %v1675
    %v1677 = vmul.f32 %v1674, %v1676
    %v1678 = vadd.f32 %v1674, %v1677
    %vm1679 = vweird.f32 %v1352
    %vm1680 = vweird.f32 %v1674
    %vm1681 = vmor %vm1679, %vm1680
    %v1682 = vsel %vm1681, %v1674, %v1678
    %v1683 = vand.u32 2147483647, %v1352
    %vm1684 = vcmp.eq.f32.partialorder %v1683, 8.507059e+37
    %v1685 = vand.u32 %v1352, 2147483648
    %v1686 = vor.u32 1.1754944e-38, %v1685
    %v1687 = vsel %vm1684, %v1686, %v1682
    %v1688 = vmul.f32 %v1268, %v1687
    %v1689 = vrcp.pop %v1355
    %v1690 = vmul.f32 %v1355, %v1689
    %v1691 = vsub.f32 1.0, %v1690
    %v1692 = vmul.f32 %v1689, %v1691
    %v1693 = vadd.f32 %v1689, %v1692
    %vm1694 = vweird.f32 %v1355
    %vm1695 = vweird.f32 %v1689
    %vm1696 = vmor %vm1694, %vm1695
    %v1697 = vsel %vm1696, %v1689, %v1693
    %v1698 = vand.u32 2147483647, %v1355
    %vm1699 = vcmp.eq.f32.partialorder %v1698, 8.507059e+37
    %v1700 = vand.u32 %v1355, 2147483648
    %v1701 = vor.u32 1.1754944e-38, %v1700
    %v1702 = vsel %vm1699, %v1701, %v1697
    %v1703 = vmul.f32 %v1270, %v1702
    %v1704 = vrcp.pop %v1358
    %v1705 = vmul.f32 %v1358, %v1704
    %v1706 = vsub.f32 1.0, %v1705
    %v1707 = vmul.f32 %v1704, %v1706
    %v1708 = vadd.f32 %v1704, %v1707
    %vm1709 = vweird.f32 %v1358
    %vm1710 = vweird.f32 %v1704
    %vm1711 = vmor %vm1709, %vm1710
    %v1712 = vsel %vm1711, %v1704, %v1708
    %v1713 = vand.u32 2147483647, %v1358
    %vm1714 = vcmp.eq.f32.partialorder %v1713, 8.507059e+37
    %v1715 = vand.u32 %v1358, 2147483648
    %v1716 = vor.u32 1.1754944e-38, %v1715
    %v1717 = vsel %vm1714, %v1716, %v1712
    %v1718 = vmul.f32 %v1272, %v1717
    %v1719 = vrcp.pop %v1361
    %v1720 = vmul.f32 %v1361, %v1719
    %v1721 = vsub.f32 1.0, %v1720
    %v1722 = vmul.f32 %v1719, %v1721
    %v1723 = vadd.f32 %v1719, %v1722
    %vm1724 = vweird.f32 %v1361
    %vm1725 = vweird.f32 %v1719
    %vm1726 = vmor %vm1724, %vm1725
    %v1727 = vsel %vm1726, %v1719, %v1723
    %v1728 = vand.u32 2147483647, %v1361
    %vm1729 = vcmp.eq.f32.partialorder %v1728, 8.507059e+37
    %v1730 = vand.u32 %v1361, 2147483648
    %v1731 = vor.u32 1.1754944e-38, %v1730
    %v1732 = vsel %vm1729, %v1731, %v1727
    %v1733 = vmul.f32 %v1274, %v1732
    %v1734 = vrcp.pop %v1364
    %v1735 = vmul.f32 %v1364, %v1734
    %v1736 = vsub.f32 1.0, %v1735
    %v1737 = vmul.f32 %v1734, %v1736
    %v1738 = vadd.f32 %v1734, %v1737
    %vm1739 = vweird.f32 %v1364
    %vm1740 = vweird.f32 %v1734
    %vm1741 = vmor %vm1739, %vm1740
    %v1742 = vsel %vm1741, %v1734, %v1738
    %v1743 = vand.u32 2147483647, %v1364
    %vm1744 = vcmp.eq.f32.partialorder %v1743, 8.507059e+37
    %v1745 = vand.u32 %v1364, 2147483648
    %v1746 = vor.u32 1.1754944e-38, %v1745
    %v1747 = vsel %vm1744, %v1746, %v1742
    %v1748 = vmul.f32 %v1276, %v1747
    %v1749 = vrcp.pop %v1367
    %v1750 = vmul.f32 %v1367, %v1749
    %v1751 = vsub.f32 1.0, %v1750
    %v1752 = vmul.f32 %v1749, %v1751
    %v1753 = vadd.f32 %v1749, %v1752
    %vm1754 = vweird.f32 %v1367
    %vm1755 = vweird.f32 %v1749
    %vm1756 = vmor %vm1754, %vm1755
    %v1757 = vsel %vm1756, %v1749, %v1753
    %v1758 = vand.u32 2147483647, %v1367
    %vm1759 = vcmp.eq.f32.partialorder %v1758, 8.507059e+37
    %v1760 = vand.u32 %v1367, 2147483648
    %v1761 = vor.u32 1.1754944e-38, %v1760
    %v1762 = vsel %vm1759, %v1761, %v1757
    %v1763 = vmul.f32 %v1278, %v1762
    %v1764 = vrcp.pop %v1370
    %v1765 = vmul.f32 %v1370, %v1764
    %v1766 = vsub.f32 1.0, %v1765
    %v1767 = vmul.f32 %v1764, %v1766
    %v1768 = vadd.f32 %v1764, %v1767
    %vm1769 = vweird.f32 %v1370
    %vm1770 = vweird.f32 %v1764
    %vm1771 = vmor %vm1769, %vm1770
    %v1772 = vsel %vm1771, %v1764, %v1768
    %v1773 = vand.u32 2147483647, %v1370
    %vm1774 = vcmp.eq.f32.partialorder %v1773, 8.507059e+37
    %v1775 = vand.u32 %v1370, 2147483648
    %v1776 = vor.u32 1.1754944e-38, %v1775
    %v1777 = vsel %vm1774, %v1776, %v1772
    %v1778 = vmul.f32 %v1280, %v1777
    %v1779 = vrcp.pop %v1373
    %v1780 = vmul.f32 %v1373, %v1779
    %v1781 = vsub.f32 1.0, %v1780
    %v1782 = vmul.f32 %v1779, %v1781
    %v1783 = vadd.f32 %v1779, %v1782
    %vm1784 = vweird.f32 %v1373
    %vm1785 = vweird.f32 %v1779
    %vm1786 = vmor %vm1784, %vm1785
    %v1787 = vsel %vm1786, %v1779, %v1783
    %v1788 = vand.u32 2147483647, %v1373
    %vm1789 = vcmp.eq.f32.partialorder %v1788, 8.507059e+37
    %v1790 = vand.u32 %v1373, 2147483648
    %v1791 = vor.u32 1.1754944e-38, %v1790
    %v1792 = vsel %vm1789, %v1791, %v1787
    %v1793 = vmul.f32 %v1282, %v1792
    %v1794 = vrcp.pop %v1376
    %v1795 = vmul.f32 %v1376, %v1794
    %v1796 = vsub.f32 1.0, %v1795
    %v1797 = vmul.f32 %v1794, %v1796
    %v1798 = vadd.f32 %v1794, %v1797
    %vm1799 = vweird.f32 %v1376
    %vm1800 = vweird.f32 %v1794
    %vm1801 = vmor %vm1799, %vm1800
    %v1802 = vsel %vm1801, %v1794, %v1798
    %v1803 = vand.u32 2147483647, %v1376
    %vm1804 = vcmp.eq.f32.partialorder %v1803, 8.507059e+37
    %v1805 = vand.u32 %v1376, 2147483648
    %v1806 = vor.u32 1.1754944e-38, %v1805
    %v1807 = vsel %vm1804, %v1806, %v1802
    %v1808 = vmul.f32 %v1284, %v1807
    %v1809 = vrcp.pop %v1379
    %v1810 = vmul.f32 %v1379, %v1809
    %v1811 = vsub.f32 1.0, %v1810
    %v1812 = vmul.f32 %v1809, %v1811
    %v1813 = vadd.f32 %v1809, %v1812
    %vm1814 = vweird.f32 %v1379
    %vm1815 = vweird.f32 %v1809
    %vm1816 = vmor %vm1814, %vm1815
    %v1817 = vsel %vm1816, %v1809, %v1813
    %v1818 = vand.u32 2147483647, %v1379
    %vm1819 = vcmp.eq.f32.partialorder %v1818, 8.507059e+37
    %v1820 = vand.u32 %v1379, 2147483648
    %v1821 = vor.u32 1.1754944e-38, %v1820
    %v1822 = vsel %vm1819, %v1821, %v1817
    %v1823 = vmul.f32 %v1286, %v1822
    %v1824 = vrcp.pop %v1382
    %v1825 = vmul.f32 %v1382, %v1824
    %v1826 = vsub.f32 1.0, %v1825
    %v1827 = vmul.f32 %v1824, %v1826
    %v1828 = vadd.f32 %v1824, %v1827
    %vm1829 = vweird.f32 %v1382
    %vm1830 = vweird.f32 %v1824
    %vm1831 = vmor %vm1829, %vm1830
    %v1832 = vsel %vm1831, %v1824, %v1828
    %v1833 = vand.u32 2147483647, %v1382
    %vm1834 = vcmp.eq.f32.partialorder %v1833, 8.507059e+37
    %v1835 = vand.u32 %v1382, 2147483648
    %v1836 = vor.u32 1.1754944e-38, %v1835
    %v1837 = vsel %vm1834, %v1836, %v1832
    %v1838 = vmul.f32 %v1288, %v1837
    %v1839 = vrcp.pop %v1385
    %v1840 = vmul.f32 %v1385, %v1839
    %v1841 = vsub.f32 1.0, %v1840
    %v1842 = vmul.f32 %v1839, %v1841
    %v1843 = vadd.f32 %v1839, %v1842
    %vm1844 = vweird.f32 %v1385
    %vm1845 = vweird.f32 %v1839
    %vm1846 = vmor %vm1844, %vm1845
    %v1847 = vsel %vm1846, %v1839, %v1843
    %v1848 = vand.u32 2147483647, %v1385
    %vm1849 = vcmp.eq.f32.partialorder %v1848, 8.507059e+37
    %v1850 = vand.u32 %v1385, 2147483648
    %v1851 = vor.u32 1.1754944e-38, %v1850
    %v1852 = vsel %vm1849, %v1851, %v1847
    %v1853 = vmul.f32 %v1290, %v1852
    %v1854 = vrcp.pop %v1388
    %v1855 = vmul.f32 %v1388, %v1854
    %v1856 = vsub.f32 1.0, %v1855
    %v1857 = vmul.f32 %v1854, %v1856
    %v1858 = vadd.f32 %v1854, %v1857
    %vm1859 = vweird.f32 %v1388
    %vm1860 = vweird.f32 %v1854
    %vm1861 = vmor %vm1859, %vm1860
    %v1862 = vsel %vm1861, %v1854, %v1858
    %v1863 = vand.u32 2147483647, %v1388
    %vm1864 = vcmp.eq.f32.partialorder %v1863, 8.507059e+37
    %v1865 = vand.u32 %v1388, 2147483648
    %v1866 = vor.u32 1.1754944e-38, %v1865
    %v1867 = vsel %vm1864, %v1866, %v1862
    %v1868 = vmul.f32 %v1292, %v1867
    %v1870 = vsel %vm1100, %v1403, 0
    %v1873 = vsel %vm1100, %v1418, 0
    %v1876 = vsel %vm1100, %v1433, 0
    %v1879 = vsel %vm1100, %v1448, 0
    %1881 = vmatpush.msra.mxu0 0.0
    %1882 = vmatpush.msra.mxu0 0.0
    %1883 = vmatpush.msra.mxu0 0.0
    %1884 = vmatpush.msra.mxu0 0.0
    %1885 = vmatpush.msra.mxu0 0.0
    %1886 = vmatpush.msra.mxu0 0.0
    %1887 = vmatpush.msra.mxu0 0.0
    %1888 = vmatpush.msra.mxu0 0.0
    %1889 = vmatpush.msra.mxu0 0.0
    %1890 = vmatpush.msra.mxu0 0.0
    %1891 = vmatpush.msra.mxu0 0.0
    %1892 = vmatpush.msra.mxu0 0.0
    %1893 = vmatpush.msra.mxu0 %v550
    %1894 = vmatpush.msra.mxu0 %v549
    %1895 = vmatpush.msra.mxu0 %v548
    %1896 = vmatpush.msra.mxu0 %v547
    %1897 = vmatmul.f32.gmra.mxu0 %v1870
    %v1898 = vpop.f32.mrf.mxu0
    %v1899 = vadd.f32 0.0, %v1898
    %1900 = vmatmul.f32.gmra.mxu0 %v1873
    %v1901 = vpop.f32.mrf.mxu0
    %v1902 = vadd.f32 0.0, %v1901
    %1903 = vmatmul.f32.gmra.mxu0 %v1876
    %v1904 = vpop.f32.mrf.mxu0
    %v1905 = vadd.f32 0.0, %v1904
    %1906 = vmatmul.f32.gmra.mxu0 %v1879
    %v1907 = vpop.f32.mrf.mxu0
    %v1908 = vadd.f32 0.0, %v1907
    %1909 = vdwg.mxu0
    %v1911 = vsel %vm1100, %v1463, 0
    %v1914 = vsel %vm1100, %v1478, 0
    %v1917 = vsel %vm1100, %v1493, 0
    %v1920 = vsel %vm1100, %v1508, 0
    %1922 = vmatpush.msra.mxu0 0.0
    %1923 = vmatpush.msra.mxu0 0.0
    %1924 = vmatpush.msra.mxu0 0.0
    %1925 = vmatpush.msra.mxu0 0.0
    %1926 = vmatpush.msra.mxu0 0.0
    %1927 = vmatpush.msra.mxu0 0.0
    %1928 = vmatpush.msra.mxu0 0.0
    %1929 = vmatpush.msra.mxu0 0.0
    %1930 = vmatpush.msra.mxu0 0.0
    %1931 = vmatpush.msra.mxu0 0.0
    %1932 = vmatpush.msra.mxu0 0.0
    %1933 = vmatpush.msra.mxu0 0.0
    %1934 = vmatpush.msra.mxu0 %v554
    %1935 = vmatpush.msra.mxu0 %v553
    %1936 = vmatpush.msra.mxu0 %v552
    %1937 = vmatpush.msra.mxu0 %v551
    %1938 = vmatmul.f32.gmra.mxu0 %v1911
    %v1939 = vpop.f32.mrf.mxu0
    %v1940 = vadd.f32 0.0, %v1939
    %1941 = vmatmul.f32.gmra.mxu0 %v1914
    %v1942 = vpop.f32.mrf.mxu0
    %v1943 = vadd.f32 0.0, %v1942
    %1944 = vmatmul.f32.gmra.mxu0 %v1917
    %v1945 = vpop.f32.mrf.mxu0
    %v1946 = vadd.f32 0.0, %v1945
    %1947 = vmatmul.f32.gmra.mxu0 %v1920
    %v1948 = vpop.f32.mrf.mxu0
    %v1949 = vadd.f32 0.0, %v1948
    %1950 = vdwg.mxu0
    %v1952 = vsel %vm1100, %v1523, 0
    %v1955 = vsel %vm1100, %v1538, 0
    %v1958 = vsel %vm1100, %v1553, 0
    %v1961 = vsel %vm1100, %v1568, 0
    %1963 = vmatpush.msra.mxu0 0.0
    %1964 = vmatpush.msra.mxu0 0.0
    %1965 = vmatpush.msra.mxu0 0.0
    %1966 = vmatpush.msra.mxu0 0.0
    %1967 = vmatpush.msra.mxu0 0.0
    %1968 = vmatpush.msra.mxu0 0.0
    %1969 = vmatpush.msra.mxu0 0.0
    %1970 = vmatpush.msra.mxu0 0.0
    %1971 = vmatpush.msra.mxu0 0.0
    %1972 = vmatpush.msra.mxu0 0.0
    %1973 = vmatpush.msra.mxu0 0.0
    %1974 = vmatpush.msra.mxu0 0.0
    %1975 = vmatpush.msra.mxu0 %v558
    %1976 = vmatpush.msra.mxu0 %v557
    %1977 = vmatpush.msra.mxu0 %v556
    %1978 = vmatpush.msra.mxu0 %v555
    %1979 = vmatmul.f32.gmra.mxu0 %v1952
    %v1980 = vpop.f32.mrf.mxu0
    %v1981 = vadd.f32 0.0, %v1980
    %1982 = vmatmul.f32.gmra.mxu0 %v1955
    %v1983 = vpop.f32.mrf.mxu0
    %v1984 = vadd.f32 0.0, %v1983
    %1985 = vmatmul.f32.gmra.mxu0 %v1958
    %v1986 = vpop.f32.mrf.mxu0
    %v1987 = vadd.f32 0.0, %v1986
    %1988 = vmatmul.f32.gmra.mxu0 %v1961
    %v1989 = vpop.f32.mrf.mxu0
    %v1990 = vadd.f32 0.0, %v1989
    %1991 = vdwg.mxu0
    %v1993 = vsel %vm1100, %v1583, 0
    %v1996 = vsel %vm1100, %v1598, 0
    %v1999 = vsel %vm1100, %v1613, 0
    %v2002 = vsel %vm1100, %v1628, 0
    %2004 = vmatpush.msra.mxu0 0.0
    %2005 = vmatpush.msra.mxu0 0.0
    %2006 = vmatpush.msra.mxu0 0.0
    %2007 = vmatpush.msra.mxu0 0.0
    %2008 = vmatpush.msra.mxu0 0.0
    %2009 = vmatpush.msra.mxu0 0.0
    %2010 = vmatpush.msra.mxu0 0.0
    %2011 = vmatpush.msra.mxu0 0.0
    %2012 = vmatpush.msra.mxu0 0.0
    %2013 = vmatpush.msra.mxu0 0.0
    %2014 = vmatpush.msra.mxu0 0.0
    %2015 = vmatpush.msra.mxu0 0.0
    %2016 = vmatpush.msra.mxu0 %v562
    %2017 = vmatpush.msra.mxu0 %v561
    %2018 = vmatpush.msra.mxu0 %v560
    %2019 = vmatpush.msra.mxu0 %v559
    %2020 = vmatmul.f32.gmra.mxu0 %v1993
    %v2021 = vpop.f32.mrf.mxu0
    %v2022 = vadd.f32 0.0, %v2021
    %2023 = vmatmul.f32.gmra.mxu0 %v1996
    %v2024 = vpop.f32.mrf.mxu0
    %v2025 = vadd.f32 0.0, %v2024
    %2026 = vmatmul.f32.gmra.mxu0 %v1999
    %v2027 = vpop.f32.mrf.mxu0
    %v2028 = vadd.f32 0.0, %v2027
    %2029 = vmatmul.f32.gmra.mxu0 %v2002
    %v2030 = vpop.f32.mrf.mxu0
    %v2031 = vadd.f32 0.0, %v2030
    %2032 = vdwg.mxu0
    %v2034 = vsel %vm1100, %v1643, 0
    %v2037 = vsel %vm1100, %v1658, 0
    %v2040 = vsel %vm1100, %v1673, 0
    %v2043 = vsel %vm1100, %v1688, 0
    %2045 = vmatpush.msra.mxu0 0.0
    %2046 = vmatpush.msra.mxu0 0.0
    %2047 = vmatpush.msra.mxu0 0.0
    %2048 = vmatpush.msra.mxu0 0.0
    %2049 = vmatpush.msra.mxu0 0.0
    %2050 = vmatpush.msra.mxu0 0.0
    %2051 = vmatpush.msra.mxu0 0.0
    %2052 = vmatpush.msra.mxu0 0.0
    %2053 = vmatpush.msra.mxu0 0.0
    %2054 = vmatpush.msra.mxu0 0.0
    %2055 = vmatpush.msra.mxu0 0.0
    %2056 = vmatpush.msra.mxu0 0.0
    %2057 = vmatpush.msra.mxu0 %v566
    %2058 = vmatpush.msra.mxu0 %v565
    %2059 = vmatpush.msra.mxu0 %v564
    %2060 = vmatpush.msra.mxu0 %v563
    %2061 = vmatmul.f32.gmra.mxu0 %v2034
    %v2062 = vpop.f32.mrf.mxu0
    %v2063 = vadd.f32 0.0, %v2062
    %2064 = vmatmul.f32.gmra.mxu0 %v2037
    %v2065 = vpop.f32.mrf.mxu0
    %v2066 = vadd.f32 0.0, %v2065
    %2067 = vmatmul.f32.gmra.mxu0 %v2040
    %v2068 = vpop.f32.mrf.mxu0
    %v2069 = vadd.f32 0.0, %v2068
    %2070 = vmatmul.f32.gmra.mxu0 %v2043
    %v2071 = vpop.f32.mrf.mxu0
    %v2072 = vadd.f32 0.0, %v2071
    %2073 = vdwg.mxu0
    %v2075 = vsel %vm1100, %v1703, 0
    %v2078 = vsel %vm1100, %v1718, 0
    %v2081 = vsel %vm1100, %v1733, 0
    %v2084 = vsel %vm1100, %v1748, 0
    %2086 = vmatpush.msra.mxu0 0.0
    %2087 = vmatpush.msra.mxu0 0.0
    %2088 = vmatpush.msra.mxu0 0.0
    %2089 = vmatpush.msra.mxu0 0.0
    %2090 = vmatpush.msra.mxu0 0.0
    %2091 = vmatpush.msra.mxu0 0.0
    %2092 = vmatpush.msra.mxu0 0.0
    %2093 = vmatpush.msra.mxu0 0.0
    %2094 = vmatpush.msra.mxu0 0.0
    %2095 = vmatpush.msra.mxu0 0.0
    %2096 = vmatpush.msra.mxu0 0.0
    %2097 = vmatpush.msra.mxu0 0.0
    %2098 = vmatpush.msra.mxu0 %v570
    %2099 = vmatpush.msra.mxu0 %v569
    %2100 = vmatpush.msra.mxu0 %v568
    %2101 = vmatpush.msra.mxu0 %v567
    %2102 = vmatmul.f32.gmra.mxu0 %v2075
    %v2103 = vpop.f32.mrf.mxu0
    %v2104 = vadd.f32 0.0, %v2103
    %2105 = vmatmul.f32.gmra.mxu0 %v2078
    %v2106 = vpop.f32.mrf.mxu0
    %v2107 = vadd.f32 0.0, %v2106
    %2108 = vmatmul.f32.gmra.mxu0 %v2081
    %v2109 = vpop.f32.mrf.mxu0
    %v2110 = vadd.f32 0.0, %v2109
    %2111 = vmatmul.f32.gmra.mxu0 %v2084
    %v2112 = vpop.f32.mrf.mxu0
    %v2113 = vadd.f32 0.0, %v2112
    %2114 = vdwg.mxu0
    %v2116 = vsel %vm1100, %v1763, 0
    %v2119 = vsel %vm1100, %v1778, 0
    %v2122 = vsel %vm1100, %v1793, 0
    %v2125 = vsel %vm1100, %v1808, 0
    %2127 = vmatpush.msra.mxu0 0.0
    %2128 = vmatpush.msra.mxu0 0.0
    %2129 = vmatpush.msra.mxu0 0.0
    %2130 = vmatpush.msra.mxu0 0.0
    %2131 = vmatpush.msra.mxu0 0.0
    %2132 = vmatpush.msra.mxu0 0.0
    %2133 = vmatpush.msra.mxu0 0.0
    %2134 = vmatpush.msra.mxu0 0.0
    %2135 = vmatpush.msra.mxu0 0.0
    %2136 = vmatpush.msra.mxu0 0.0
    %2137 = vmatpush.msra.mxu0 0.0
    %2138 = vmatpush.msra.mxu0 0.0
    %2139 = vmatpush.msra.mxu0 %v574
    %2140 = vmatpush.msra.mxu0 %v573
    %2141 = vmatpush.msra.mxu0 %v572
    %2142 = vmatpush.msra.mxu0 %v571
    %2143 = vmatmul.f32.gmra.mxu0 %v2116
    %v2144 = vpop.f32.mrf.mxu0
    %v2145 = vadd.f32 0.0, %v2144
    %2146 = vmatmul.f32.gmra.mxu0 %v2119
    %v2147 = vpop.f32.mrf.mxu0
    %v2148 = vadd.f32 0.0, %v2147
    %2149 = vmatmul.f32.gmra.mxu0 %v2122
    %v2150 = vpop.f32.mrf.mxu0
    %v2151 = vadd.f32 0.0, %v2150
    %2152 = vmatmul.f32.gmra.mxu0 %v2125
    %v2153 = vpop.f32.mrf.mxu0
    %v2154 = vadd.f32 0.0, %v2153
    %2155 = vdwg.mxu0
    %v2157 = vsel %vm1100, %v1823, 0
    %v2160 = vsel %vm1100, %v1838, 0
    %v2163 = vsel %vm1100, %v1853, 0
    %v2166 = vsel %vm1100, %v1868, 0
    %2168 = vmatpush.msra.mxu0 0.0
    %2169 = vmatpush.msra.mxu0 0.0
    %2170 = vmatpush.msra.mxu0 0.0
    %2171 = vmatpush.msra.mxu0 0.0
    %2172 = vmatpush.msra.mxu0 0.0
    %2173 = vmatpush.msra.mxu0 0.0
    %2174 = vmatpush.msra.mxu0 0.0
    %2175 = vmatpush.msra.mxu0 0.0
    %2176 = vmatpush.msra.mxu0 0.0
    %2177 = vmatpush.msra.mxu0 0.0
    %2178 = vmatpush.msra.mxu0 0.0
    %2179 = vmatpush.msra.mxu0 0.0
    %2180 = vmatpush.msra.mxu0 %v578
    %2181 = vmatpush.msra.mxu0 %v577
    %2182 = vmatpush.msra.mxu0 %v576
    %2183 = vmatpush.msra.mxu0 %v575
    %2184 = vmatmul.f32.gmra.mxu0 %v2157
    %v2185 = vpop.f32.mrf.mxu0
    %v2186 = vadd.f32 0.0, %v2185
    %2187 = vmatmul.f32.gmra.mxu0 %v2160
    %v2188 = vpop.f32.mrf.mxu0
    %v2189 = vadd.f32 0.0, %v2188
    %2190 = vmatmul.f32.gmra.mxu0 %v2163
    %v2191 = vpop.f32.mrf.mxu0
    %v2192 = vadd.f32 0.0, %v2191
    %2193 = vmatmul.f32.gmra.mxu0 %v2166
    %v2194 = vpop.f32.mrf.mxu0
    %v2195 = vadd.f32 0.0, %v2194
    %2196 = vdwg.mxu0
    %2197 = vst.msk [vmem:[#allocation3] sm:$0xff] %vm591, %v1899
    %2198 = vst.msk [vmem:[#allocation3 + $0x8] sm:$0xff] %vm591, %v1902
    %2199 = vst.msk [vmem:[#allocation3 + $0x10] sm:$0xff] %vm591, %v1905
    %2200 = vst.msk [vmem:[#allocation3 + $0x18] sm:$0xff] %vm591, %v1908
    %2201 = vst.msk [vmem:[#allocation3 + $0x20] sm:$0xff] %vm591, %v1940
    %2202 = vst.msk [vmem:[#allocation3 + $0x28] sm:$0xff] %vm591, %v1943
    %2203 = vst.msk [vmem:[#allocation3 + $0x30] sm:$0xff] %vm591, %v1946
    %2204 = vst.msk [vmem:[#allocation3 + $0x38] sm:$0xff] %vm591, %v1949
    %2205 = vst.msk [vmem:[#allocation3 + $0x40] sm:$0xff] %vm591, %v1981
    %2206 = vst.msk [vmem:[#allocation3 + $0x48] sm:$0xff] %vm591, %v1984
    %2207 = vst.msk [vmem:[#allocation3 + $0x50] sm:$0xff] %vm591, %v1987
    %2208 = vst.msk [vmem:[#allocation3 + $0x58] sm:$0xff] %vm591, %v1990
    %2209 = vst.msk [vmem:[#allocation3 + $0x60] sm:$0xff] %vm591, %v2022
    %2210 = vst.msk [vmem:[#allocation3 + $0x68] sm:$0xff] %vm591, %v2025
    %2211 = vst.msk [vmem:[#allocation3 + $0x70] sm:$0xff] %vm591, %v2028
    %2212 = vst.msk [vmem:[#allocation3 + $0x78] sm:$0xff] %vm591, %v2031
    %2213 = vst.msk [vmem:[#allocation3 + $0x80] sm:$0xff] %vm591, %v2063
    %2214 = vst.msk [vmem:[#allocation3 + $0x88] sm:$0xff] %vm591, %v2066
    %2215 = vst.msk [vmem:[#allocation3 + $0x90] sm:$0xff] %vm591, %v2069
    %2216 = vst.msk [vmem:[#allocation3 + $0x98] sm:$0xff] %vm591, %v2072
    %2217 = vst.msk [vmem:[#allocation3 + $0xa0] sm:$0xff] %vm591, %v2104
    %2218 = vst.msk [vmem:[#allocation3 + $0xa8] sm:$0xff] %vm591, %v2107
    %2219 = vst.msk [vmem:[#allocation3 + $0xb0] sm:$0xff] %vm591, %v2110
    %2220 = vst.msk [vmem:[#allocation3 + $0xb8] sm:$0xff] %vm591, %v2113
    %2221 = vst.msk [vmem:[#allocation3 + $0xc0] sm:$0xff] %vm591, %v2145
    %2222 = vst.msk [vmem:[#allocation3 + $0xc8] sm:$0xff] %vm591, %v2148
    %2223 = vst.msk [vmem:[#allocation3 + $0xd0] sm:$0xff] %vm591, %v2151
    %2224 = vst.msk [vmem:[#allocation3 + $0xd8] sm:$0xff] %vm591, %v2154
    %2225 = vst.msk [vmem:[#allocation3 + $0xe0] sm:$0xff] %vm591, %v2186
    %2226 = vst.msk [vmem:[#allocation3 + $0xe8] sm:$0xff] %vm591, %v2189
    %2227 = vst.msk [vmem:[#allocation3 + $0xf0] sm:$0xff] %vm591, %v2192
    %2228 = vst.msk [vmem:[#allocation3 + $0xf8] sm:$0xff] %vm591, %v2195
    %v2229 = vld [vmem:[#allocation2] sm:$0xff]
    %v2230 = vld [vmem:[#allocation2 + $0x10] sm:$0xff]
    %v2231 = vld [vmem:[#allocation2 + $0x20] sm:$0xff]
    %v2232 = vld [vmem:[#allocation2 + $0x30] sm:$0xff]
    %v2233 = vld [vmem:[#allocation2 + $0x40] sm:$0xff]
    %v2234 = vld [vmem:[#allocation2 + $0x50] sm:$0xff]
    %v2235 = vld [vmem:[#allocation2 + $0x60] sm:$0xff]
    %v2236 = vld [vmem:[#allocation2 + $0x70] sm:$0xff]
    %v2237 = vld [vmem:[#allocation2 + $0x80] sm:$0xff]
    %v2238 = vld [vmem:[#allocation2 + $0x90] sm:$0xff]
    %v2239 = vld [vmem:[#allocation2 + $0xa0] sm:$0xff]
    %v2240 = vld [vmem:[#allocation2 + $0xb0] sm:$0xff]
    %v2241 = vld [vmem:[#allocation2 + $0xc0] sm:$0xff]
    %v2242 = vld [vmem:[#allocation2 + $0xd0] sm:$0xff]
    %v2243 = vld [vmem:[#allocation2 + $0xe0] sm:$0xff]
    %v2244 = vld [vmem:[#allocation2 + $0xf0] sm:$0xff]
    %v2245 = vld [vmem:[#allocation2 + $0x100] sm:$0xff]
    %v2246 = vld [vmem:[#allocation2 + $0x110] sm:$0xff]
    %v2247 = vld [vmem:[#allocation2 + $0x120] sm:$0xff]
    %v2248 = vld [vmem:[#allocation2 + $0x130] sm:$0xff]
    %v2249 = vld [vmem:[#allocation2 + $0x140] sm:$0xff]
    %v2250 = vld [vmem:[#allocation2 + $0x150] sm:$0xff]
    %v2251 = vld [vmem:[#allocation2 + $0x160] sm:$0xff]
    %v2252 = vld [vmem:[#allocation2 + $0x170] sm:$0xff]
    %v2253 = vld [vmem:[#allocation2 + $0x180] sm:$0xff]
    %v2254 = vld [vmem:[#allocation2 + $0x190] sm:$0xff]
    %v2255 = vld [vmem:[#allocation2 + $0x1a0] sm:$0xff]
    %v2256 = vld [vmem:[#allocation2 + $0x1b0] sm:$0xff]
    %v2257 = vld [vmem:[#allocation2 + $0x1c0] sm:$0xff]
    %v2258 = vld [vmem:[#allocation2 + $0x1d0] sm:$0xff]
    %v2259 = vld [vmem:[#allocation2 + $0x1e0] sm:$0xff]
    %v2260 = vld [vmem:[#allocation2 + $0x1f0] sm:$0xff]
    %v2261 = vld [vmem:[#allocation2 + $0x8] sm:$0xff]
    %v2262 = vld [vmem:[#allocation2 + $0x18] sm:$0xff]
    %v2263 = vld [vmem:[#allocation2 + $0x28] sm:$0xff]
    %v2264 = vld [vmem:[#allocation2 + $0x38] sm:$0xff]
    %v2265 = vld [vmem:[#allocation2 + $0x48] sm:$0xff]
    %v2266 = vld [vmem:[#allocation2 + $0x58] sm:$0xff]
    %v2267 = vld [vmem:[#allocation2 + $0x68] sm:$0xff]
    %v2268 = vld [vmem:[#allocation2 + $0x78] sm:$0xff]
    %v2269 = vld [vmem:[#allocation2 + $0x88] sm:$0xff]
    %v2270 = vld [vmem:[#allocation2 + $0x98] sm:$0xff]
    %v2271 = vld [vmem:[#allocation2 + $0xa8] sm:$0xff]
    %v2272 = vld [vmem:[#allocation2 + $0xb8] sm:$0xff]
    %v2273 = vld [vmem:[#allocation2 + $0xc8] sm:$0xff]
    %v2274 = vld [vmem:[#allocation2 + $0xd8] sm:$0xff]
    %v2275 = vld [vmem:[#allocation2 + $0xe8] sm:$0xff]
    %v2276 = vld [vmem:[#allocation2 + $0xf8] sm:$0xff]
    %v2277 = vld [vmem:[#allocation2 + $0x108] sm:$0xff]
    %v2278 = vld [vmem:[#allocation2 + $0x118] sm:$0xff]
    %v2279 = vld [vmem:[#allocation2 + $0x128] sm:$0xff]
    %v2280 = vld [vmem:[#allocation2 + $0x138] sm:$0xff]
    %v2281 = vld [vmem:[#allocation2 + $0x148] sm:$0xff]
    %v2282 = vld [vmem:[#allocation2 + $0x158] sm:$0xff]
    %v2283 = vld [vmem:[#allocation2 + $0x168] sm:$0xff]
    %v2284 = vld [vmem:[#allocation2 + $0x178] sm:$0xff]
    %v2285 = vld [vmem:[#allocation2 + $0x188] sm:$0xff]
    %v2286 = vld [vmem:[#allocation2 + $0x198] sm:$0xff]
    %v2287 = vld [vmem:[#allocation2 + $0x1a8] sm:$0xff]
    %v2288 = vld [vmem:[#allocation2 + $0x1b8] sm:$0xff]
    %v2289 = vld [vmem:[#allocation2 + $0x1c8] sm:$0xff]
    %v2290 = vld [vmem:[#allocation2 + $0x1d8] sm:$0xff]
    %v2291 = vld [vmem:[#allocation2 + $0x1e8] sm:$0xff]
    %v2292 = vld [vmem:[#allocation2 + $0x1f8] sm:$0xff]
    %2297 = vrot.lane.b32.xlu0 %v2229, 112
    %v2298 = vpop.permute.xlu0 %2297
    %2299 = vrot.lane.b32.xlu0 %v2230, 112
    %v2300 = vpop.permute.xlu0 %2299
    %2301 = vrot.lane.b32.xlu0 %v2231, 112
    %v2302 = vpop.permute.xlu0 %2301
    %2303 = vrot.lane.b32.xlu0 %v2232, 112
    %v2304 = vpop.permute.xlu0 %2303
    %2305 = vrot.lane.b32.xlu0 %v2229, 48
    %v2306 = vpop.permute.xlu0 %2305
    %2307 = vrot.lane.b32.xlu0 %v2230, 48
    %v2308 = vpop.permute.xlu0 %2307
    %2309 = vrot.lane.b32.xlu0 %v2231, 48
    %v2310 = vpop.permute.xlu0 %2309
    %2311 = vrot.lane.b32.xlu0 %v2232, 48
    %v2312 = vpop.permute.xlu0 %2311
    %v2313 = vsel %vm591, %v2298, 0
    %v2315 = vsel %vm591, %v2300, 0
    %v2317 = vsel %vm591, %v2302, 0
    %v2319 = vsel %vm591, %v2304, 0
    %v2321 = vsel %vm591, %v2306, 0
    %v2323 = vsel %vm591, %v2308, 0
    %v2325 = vsel %vm591, %v2310, 0
    %v2327 = vsel %vm591, %v2312, 0
    %2329 = vmatpush.xpose.msra.mxu0 0.0
    %2330 = vmatpush.xpose.msra.mxu0 0.0
    %2331 = vmatpush.xpose.msra.mxu0 0.0
    %2332 = vmatpush.xpose.msra.mxu0 0.0
    %2333 = vmatpush.xpose.msra.mxu0 0.0
    %2334 = vmatpush.xpose.msra.mxu0 0.0
    %2335 = vmatpush.xpose.msra.mxu0 0.0
    %2336 = vmatpush.xpose.msra.mxu0 0.0
    %2337 = vmatpush.xpose.msra.mxu0 0.0
    %2338 = vmatpush.xpose.msra.mxu0 0.0
    %2339 = vmatpush.xpose.msra.mxu0 0.0
    %2340 = vmatpush.xpose.msra.mxu0 0.0
    %2341 = vmatpush.xpose.msra.mxu0 %v2327
    %2342 = vmatpush.xpose.msra.mxu0 %v2325
    %2343 = vmatpush.xpose.msra.mxu0 %v2323
    %2344 = vmatpush.xpose.msra.mxu0 %v2321
    %2345 = vmatmul.f32.gmra.mxu0 %v2313
    %v2346 = vpop.f32.mrf.mxu0
    %v2347 = vadd.f32 0.0, %v2346
    %2348 = vmatmul.f32.gmra.mxu0 %v2315
    %v2349 = vpop.f32.mrf.mxu0
    %v2350 = vadd.f32 0.0, %v2349
    %2351 = vmatmul.f32.gmra.mxu0 %v2317
    %v2352 = vpop.f32.mrf.mxu0
    %v2353 = vadd.f32 0.0, %v2352
    %2354 = vmatmul.f32.gmra.mxu0 %v2319
    %v2355 = vpop.f32.mrf.mxu0
    %v2356 = vadd.f32 0.0, %v2355
    %2357 = vdwg.mxu0
    %2362 = vrot.lane.b32.xlu0 %v2233, 112
    %v2363 = vpop.permute.xlu0 %2362
    %2364 = vrot.lane.b32.xlu0 %v2234, 112
    %v2365 = vpop.permute.xlu0 %2364
    %2366 = vrot.lane.b32.xlu0 %v2235, 112
    %v2367 = vpop.permute.xlu0 %2366
    %2368 = vrot.lane.b32.xlu0 %v2236, 112
    %v2369 = vpop.permute.xlu0 %2368
    %2370 = vrot.lane.b32.xlu0 %v2233, 48
    %v2371 = vpop.permute.xlu0 %2370
    %2372 = vrot.lane.b32.xlu0 %v2234, 48
    %v2373 = vpop.permute.xlu0 %2372
    %2374 = vrot.lane.b32.xlu0 %v2235, 48
    %v2375 = vpop.permute.xlu0 %2374
    %2376 = vrot.lane.b32.xlu0 %v2236, 48
    %v2377 = vpop.permute.xlu0 %2376
    %v2378 = vsel %vm591, %v2363, 0
    %v2380 = vsel %vm591, %v2365, 0
    %v2382 = vsel %vm591, %v2367, 0
    %v2384 = vsel %vm591, %v2369, 0
    %v2386 = vsel %vm591, %v2371, 0
    %v2388 = vsel %vm591, %v2373, 0
    %v2390 = vsel %vm591, %v2375, 0
    %v2392 = vsel %vm591, %v2377, 0
    %2394 = vmatpush.xpose.msra.mxu0 0.0
    %2395 = vmatpush.xpose.msra.mxu0 0.0
    %2396 = vmatpush.xpose.msra.mxu0 0.0
    %2397 = vmatpush.xpose.msra.mxu0 0.0
    %2398 = vmatpush.xpose.msra.mxu0 0.0
    %2399 = vmatpush.xpose.msra.mxu0 0.0
    %2400 = vmatpush.xpose.msra.mxu0 0.0
    %2401 = vmatpush.xpose.msra.mxu0 0.0
    %2402 = vmatpush.xpose.msra.mxu0 0.0
    %2403 = vmatpush.xpose.msra.mxu0 0.0
    %2404 = vmatpush.xpose.msra.mxu0 0.0
    %2405 = vmatpush.xpose.msra.mxu0 0.0
    %2406 = vmatpush.xpose.msra.mxu0 %v2392
    %2407 = vmatpush.xpose.msra.mxu0 %v2390
    %2408 = vmatpush.xpose.msra.mxu0 %v2388
    %2409 = vmatpush.xpose.msra.mxu0 %v2386
    %2410 = vmatmul.f32.gmra.mxu0 %v2378
    %v2411 = vpop.f32.mrf.mxu0
    %v2412 = vadd.f32 0.0, %v2411
    %2413 = vmatmul.f32.gmra.mxu0 %v2380
    %v2414 = vpop.f32.mrf.mxu0
    %v2415 = vadd.f32 0.0, %v2414
    %2416 = vmatmul.f32.gmra.mxu0 %v2382
    %v2417 = vpop.f32.mrf.mxu0
    %v2418 = vadd.f32 0.0, %v2417
    %2419 = vmatmul.f32.gmra.mxu0 %v2384
    %v2420 = vpop.f32.mrf.mxu0
    %v2421 = vadd.f32 0.0, %v2420
    %2422 = vdwg.mxu0
    %2427 = vrot.lane.b32.xlu0 %v2237, 112
    %v2428 = vpop.permute.xlu0 %2427
    %2429 = vrot.lane.b32.xlu0 %v2238, 112
    %v2430 = vpop.permute.xlu0 %2429
    %2431 = vrot.lane.b32.xlu0 %v2239, 112
    %v2432 = vpop.permute.xlu0 %2431
    %2433 = vrot.lane.b32.xlu0 %v2240, 112
    %v2434 = vpop.permute.xlu0 %2433
    %2435 = vrot.lane.b32.xlu0 %v2237, 48
    %v2436 = vpop.permute.xlu0 %2435
    %2437 = vrot.lane.b32.xlu0 %v2238, 48
    %v2438 = vpop.permute.xlu0 %2437
    %2439 = vrot.lane.b32.xlu0 %v2239, 48
    %v2440 = vpop.permute.xlu0 %2439
    %2441 = vrot.lane.b32.xlu0 %v2240, 48
    %v2442 = vpop.permute.xlu0 %2441
    %v2443 = vsel %vm591, %v2428, 0
    %v2445 = vsel %vm591, %v2430, 0
    %v2447 = vsel %vm591, %v2432, 0
    %v2449 = vsel %vm591, %v2434, 0
    %v2451 = vsel %vm591, %v2436, 0
    %v2453 = vsel %vm591, %v2438, 0
    %v2455 = vsel %vm591, %v2440, 0
    %v2457 = vsel %vm591, %v2442, 0
    %2459 = vmatpush.xpose.msra.mxu0 0.0
    %2460 = vmatpush.xpose.msra.mxu0 0.0
    %2461 = vmatpush.xpose.msra.mxu0 0.0
    %2462 = vmatpush.xpose.msra.mxu0 0.0
    %2463 = vmatpush.xpose.msra.mxu0 0.0
    %2464 = vmatpush.xpose.msra.mxu0 0.0
    %2465 = vmatpush.xpose.msra.mxu0 0.0
    %2466 = vmatpush.xpose.msra.mxu0 0.0
    %2467 = vmatpush.xpose.msra.mxu0 0.0
    %2468 = vmatpush.xpose.msra.mxu0 0.0
    %2469 = vmatpush.xpose.msra.mxu0 0.0
    %2470 = vmatpush.xpose.msra.mxu0 0.0
    %2471 = vmatpush.xpose.msra.mxu0 %v2457
    %2472 = vmatpush.xpose.msra.mxu0 %v2455
    %2473 = vmatpush.xpose.msra.mxu0 %v2453
    %2474 = vmatpush.xpose.msra.mxu0 %v2451
    %2475 = vmatmul.f32.gmra.mxu0 %v2443
    %v2476 = vpop.f32.mrf.mxu0
    %v2477 = vadd.f32 0.0, %v2476
    %2478 = vmatmul.f32.gmra.mxu0 %v2445
    %v2479 = vpop.f32.mrf.mxu0
    %v2480 = vadd.f32 0.0, %v2479
    %2481 = vmatmul.f32.gmra.mxu0 %v2447
    %v2482 = vpop.f32.mrf.mxu0
    %v2483 = vadd.f32 0.0, %v2482
    %2484 = vmatmul.f32.gmra.mxu0 %v2449
    %v2485 = vpop.f32.mrf.mxu0
    %v2486 = vadd.f32 0.0, %v2485
    %2487 = vdwg.mxu0
    %2492 = vrot.lane.b32.xlu0 %v2241, 112
    %v2493 = vpop.permute.xlu0 %2492
    %2494 = vrot.lane.b32.xlu0 %v2242, 112
    %v2495 = vpop.permute.xlu0 %2494
    %2496 = vrot.lane.b32.xlu0 %v2243, 112
    %v2497 = vpop.permute.xlu0 %2496
    %2498 = vrot.lane.b32.xlu0 %v2244, 112
    %v2499 = vpop.permute.xlu0 %2498
    %2500 = vrot.lane.b32.xlu0 %v2241, 48
    %v2501 = vpop.permute.xlu0 %2500
    %2502 = vrot.lane.b32.xlu0 %v2242, 48
    %v2503 = vpop.permute.xlu0 %2502
    %2504 = vrot.lane.b32.xlu0 %v2243, 48
    %v2505 = vpop.permute.xlu0 %2504
    %2506 = vrot.lane.b32.xlu0 %v2244, 48
    %v2507 = vpop.permute.xlu0 %2506
    %v2508 = vsel %vm591, %v2493, 0
    %v2510 = vsel %vm591, %v2495, 0
    %v2512 = vsel %vm591, %v2497, 0
    %v2514 = vsel %vm591, %v2499, 0
    %v2516 = vsel %vm591, %v2501, 0
    %v2518 = vsel %vm591, %v2503, 0
    %v2520 = vsel %vm591, %v2505, 0
    %v2522 = vsel %vm591, %v2507, 0
    %2524 = vmatpush.xpose.msra.mxu0 0.0
    %2525 = vmatpush.xpose.msra.mxu0 0.0
    %2526 = vmatpush.xpose.msra.mxu0 0.0
    %2527 = vmatpush.xpose.msra.mxu0 0.0
    %2528 = vmatpush.xpose.msra.mxu0 0.0
    %2529 = vmatpush.xpose.msra.mxu0 0.0
    %2530 = vmatpush.xpose.msra.mxu0 0.0
    %2531 = vmatpush.xpose.msra.mxu0 0.0
    %2532 = vmatpush.xpose.msra.mxu0 0.0
    %2533 = vmatpush.xpose.msra.mxu0 0.0
    %2534 = vmatpush.xpose.msra.mxu0 0.0
    %2535 = vmatpush.xpose.msra.mxu0 0.0
    %2536 = vmatpush.xpose.msra.mxu0 %v2522
    %2537 = vmatpush.xpose.msra.mxu0 %v2520
    %2538 = vmatpush.xpose.msra.mxu0 %v2518
    %2539 = vmatpush.xpose.msra.mxu0 %v2516
    %2540 = vmatmul.f32.gmra.mxu0 %v2508
    %v2541 = vpop.f32.mrf.mxu0
    %v2542 = vadd.f32 0.0, %v2541
    %2543 = vmatmul.f32.gmra.mxu0 %v2510
    %v2544 = vpop.f32.mrf.mxu0
    %v2545 = vadd.f32 0.0, %v2544
    %2546 = vmatmul.f32.gmra.mxu0 %v2512
    %v2547 = vpop.f32.mrf.mxu0
    %v2548 = vadd.f32 0.0, %v2547
    %2549 = vmatmul.f32.gmra.mxu0 %v2514
    %v2550 = vpop.f32.mrf.mxu0
    %v2551 = vadd.f32 0.0, %v2550
    %2552 = vdwg.mxu0
    %2557 = vrot.lane.b32.xlu0 %v2245, 112
    %v2558 = vpop.permute.xlu0 %2557
    %2559 = vrot.lane.b32.xlu0 %v2246, 112
    %v2560 = vpop.permute.xlu0 %2559
    %2561 = vrot.lane.b32.xlu0 %v2247, 112
    %v2562 = vpop.permute.xlu0 %2561
    %2563 = vrot.lane.b32.xlu0 %v2248, 112
    %v2564 = vpop.permute.xlu0 %2563
    %2565 = vrot.lane.b32.xlu0 %v2245, 48
    %v2566 = vpop.permute.xlu0 %2565
    %2567 = vrot.lane.b32.xlu0 %v2246, 48
    %v2568 = vpop.permute.xlu0 %2567
    %2569 = vrot.lane.b32.xlu0 %v2247, 48
    %v2570 = vpop.permute.xlu0 %2569
    %2571 = vrot.lane.b32.xlu0 %v2248, 48
    %v2572 = vpop.permute.xlu0 %2571
    %v2573 = vsel %vm591, %v2558, 0
    %v2575 = vsel %vm591, %v2560, 0
    %v2577 = vsel %vm591, %v2562, 0
    %v2579 = vsel %vm591, %v2564, 0
    %v2581 = vsel %vm591, %v2566, 0
    %v2583 = vsel %vm591, %v2568, 0
    %v2585 = vsel %vm591, %v2570, 0
    %v2587 = vsel %vm591, %v2572, 0
    %2589 = vmatpush.xpose.msra.mxu0 0.0
    %2590 = vmatpush.xpose.msra.mxu0 0.0
    %2591 = vmatpush.xpose.msra.mxu0 0.0
    %2592 = vmatpush.xpose.msra.mxu0 0.0
    %2593 = vmatpush.xpose.msra.mxu0 0.0
    %2594 = vmatpush.xpose.msra.mxu0 0.0
    %2595 = vmatpush.xpose.msra.mxu0 0.0
    %2596 = vmatpush.xpose.msra.mxu0 0.0
    %2597 = vmatpush.xpose.msra.mxu0 0.0
    %2598 = vmatpush.xpose.msra.mxu0 0.0
    %2599 = vmatpush.xpose.msra.mxu0 0.0
    %2600 = vmatpush.xpose.msra.mxu0 0.0
    %2601 = vmatpush.xpose.msra.mxu0 %v2587
    %2602 = vmatpush.xpose.msra.mxu0 %v2585
    %2603 = vmatpush.xpose.msra.mxu0 %v2583
    %2604 = vmatpush.xpose.msra.mxu0 %v2581
    %2605 = vmatmul.f32.gmra.mxu0 %v2573
    %v2606 = vpop.f32.mrf.mxu0
    %v2607 = vadd.f32 0.0, %v2606
    %2608 = vmatmul.f32.gmra.mxu0 %v2575
    %v2609 = vpop.f32.mrf.mxu0
    %v2610 = vadd.f32 0.0, %v2609
    %2611 = vmatmul.f32.gmra.mxu0 %v2577
    %v2612 = vpop.f32.mrf.mxu0
    %v2613 = vadd.f32 0.0, %v2612
    %2614 = vmatmul.f32.gmra.mxu0 %v2579
    %v2615 = vpop.f32.mrf.mxu0
    %v2616 = vadd.f32 0.0, %v2615
    %2617 = vdwg.mxu0
    %2622 = vrot.lane.b32.xlu0 %v2249, 112
    %v2623 = vpop.permute.xlu0 %2622
    %2624 = vrot.lane.b32.xlu0 %v2250, 112
    %v2625 = vpop.permute.xlu0 %2624
    %2626 = vrot.lane.b32.xlu0 %v2251, 112
    %v2627 = vpop.permute.xlu0 %2626
    %2628 = vrot.lane.b32.xlu0 %v2252, 112
    %v2629 = vpop.permute.xlu0 %2628
    %2630 = vrot.lane.b32.xlu0 %v2249, 48
    %v2631 = vpop.permute.xlu0 %2630
    %2632 = vrot.lane.b32.xlu0 %v2250, 48
    %v2633 = vpop.permute.xlu0 %2632
    %2634 = vrot.lane.b32.xlu0 %v2251, 48
    %v2635 = vpop.permute.xlu0 %2634
    %2636 = vrot.lane.b32.xlu0 %v2252, 48
    %v2637 = vpop.permute.xlu0 %2636
    %v2638 = vsel %vm591, %v2623, 0
    %v2640 = vsel %vm591, %v2625, 0
    %v2642 = vsel %vm591, %v2627, 0
    %v2644 = vsel %vm591, %v2629, 0
    %v2646 = vsel %vm591, %v2631, 0
    %v2648 = vsel %vm591, %v2633, 0
    %v2650 = vsel %vm591, %v2635, 0
    %v2652 = vsel %vm591, %v2637, 0
    %2654 = vmatpush.xpose.msra.mxu0 0.0
    %2655 = vmatpush.xpose.msra.mxu0 0.0
    %2656 = vmatpush.xpose.msra.mxu0 0.0
    %2657 = vmatpush.xpose.msra.mxu0 0.0
    %2658 = vmatpush.xpose.msra.mxu0 0.0
    %2659 = vmatpush.xpose.msra.mxu0 0.0
    %2660 = vmatpush.xpose.msra.mxu0 0.0
    %2661 = vmatpush.xpose.msra.mxu0 0.0
    %2662 = vmatpush.xpose.msra.mxu0 0.0
    %2663 = vmatpush.xpose.msra.mxu0 0.0
    %2664 = vmatpush.xpose.msra.mxu0 0.0
    %2665 = vmatpush.xpose.msra.mxu0 0.0
    %2666 = vmatpush.xpose.msra.mxu0 %v2652
    %2667 = vmatpush.xpose.msra.mxu0 %v2650
    %2668 = vmatpush.xpose.msra.mxu0 %v2648
    %2669 = vmatpush.xpose.msra.mxu0 %v2646
    %2670 = vmatmul.f32.gmra.mxu0 %v2638
    %v2671 = vpop.f32.mrf.mxu0
    %v2672 = vadd.f32 0.0, %v2671
    %2673 = vmatmul.f32.gmra.mxu0 %v2640
    %v2674 = vpop.f32.mrf.mxu0
    %v2675 = vadd.f32 0.0, %v2674
    %2676 = vmatmul.f32.gmra.mxu0 %v2642
    %v2677 = vpop.f32.mrf.mxu0
    %v2678 = vadd.f32 0.0, %v2677
    %2679 = vmatmul.f32.gmra.mxu0 %v2644
    %v2680 = vpop.f32.mrf.mxu0
    %v2681 = vadd.f32 0.0, %v2680
    %2682 = vdwg.mxu0
    %2687 = vrot.lane.b32.xlu0 %v2253, 112
    %v2688 = vpop.permute.xlu0 %2687
    %2689 = vrot.lane.b32.xlu0 %v2254, 112
    %v2690 = vpop.permute.xlu0 %2689
    %2691 = vrot.lane.b32.xlu0 %v2255, 112
    %v2692 = vpop.permute.xlu0 %2691
    %2693 = vrot.lane.b32.xlu0 %v2256, 112
    %v2694 = vpop.permute.xlu0 %2693
    %2695 = vrot.lane.b32.xlu0 %v2253, 48
    %v2696 = vpop.permute.xlu0 %2695
    %2697 = vrot.lane.b32.xlu0 %v2254, 48
    %v2698 = vpop.permute.xlu0 %2697
    %2699 = vrot.lane.b32.xlu0 %v2255, 48
    %v2700 = vpop.permute.xlu0 %2699
    %2701 = vrot.lane.b32.xlu0 %v2256, 48
    %v2702 = vpop.permute.xlu0 %2701
    %v2703 = vsel %vm591, %v2688, 0
    %v2705 = vsel %vm591, %v2690, 0
    %v2707 = vsel %vm591, %v2692, 0
    %v2709 = vsel %vm591, %v2694, 0
    %v2711 = vsel %vm591, %v2696, 0
    %v2713 = vsel %vm591, %v2698, 0
    %v2715 = vsel %vm591, %v2700, 0
    %v2717 = vsel %vm591, %v2702, 0
    %2719 = vmatpush.xpose.msra.mxu0 0.0
    %2720 = vmatpush.xpose.msra.mxu0 0.0
    %2721 = vmatpush.xpose.msra.mxu0 0.0
    %2722 = vmatpush.xpose.msra.mxu0 0.0
    %2723 = vmatpush.xpose.msra.mxu0 0.0
    %2724 = vmatpush.xpose.msra.mxu0 0.0
    %2725 = vmatpush.xpose.msra.mxu0 0.0
    %2726 = vmatpush.xpose.msra.mxu0 0.0
    %2727 = vmatpush.xpose.msra.mxu0 0.0
    %2728 = vmatpush.xpose.msra.mxu0 0.0
    %2729 = vmatpush.xpose.msra.mxu0 0.0
    %2730 = vmatpush.xpose.msra.mxu0 0.0
    %2731 = vmatpush.xpose.msra.mxu0 %v2717
    %2732 = vmatpush.xpose.msra.mxu0 %v2715
    %2733 = vmatpush.xpose.msra.mxu0 %v2713
    %2734 = vmatpush.xpose.msra.mxu0 %v2711
    %2735 = vmatmul.f32.gmra.mxu0 %v2703
    %v2736 = vpop.f32.mrf.mxu0
    %v2737 = vadd.f32 0.0, %v2736
    %2738 = vmatmul.f32.gmra.mxu0 %v2705
    %v2739 = vpop.f32.mrf.mxu0
    %v2740 = vadd.f32 0.0, %v2739
    %2741 = vmatmul.f32.gmra.mxu0 %v2707
    %v2742 = vpop.f32.mrf.mxu0
    %v2743 = vadd.f32 0.0, %v2742
    %2744 = vmatmul.f32.gmra.mxu0 %v2709
    %v2745 = vpop.f32.mrf.mxu0
    %v2746 = vadd.f32 0.0, %v2745
    %2747 = vdwg.mxu0
    %2752 = vrot.lane.b32.xlu0 %v2257, 112
    %v2753 = vpop.permute.xlu0 %2752
    %2754 = vrot.lane.b32.xlu0 %v2258, 112
    %v2755 = vpop.permute.xlu0 %2754
    %2756 = vrot.lane.b32.xlu0 %v2259, 112
    %v2757 = vpop.permute.xlu0 %2756
    %2758 = vrot.lane.b32.xlu0 %v2260, 112
    %v2759 = vpop.permute.xlu0 %2758
    %2760 = vrot.lane.b32.xlu0 %v2257, 48
    %v2761 = vpop.permute.xlu0 %2760
    %2762 = vrot.lane.b32.xlu0 %v2258, 48
    %v2763 = vpop.permute.xlu0 %2762
    %2764 = vrot.lane.b32.xlu0 %v2259, 48
    %v2765 = vpop.permute.xlu0 %2764
    %2766 = vrot.lane.b32.xlu0 %v2260, 48
    %v2767 = vpop.permute.xlu0 %2766
    %v2768 = vsel %vm591, %v2753, 0
    %v2770 = vsel %vm591, %v2755, 0
    %v2772 = vsel %vm591, %v2757, 0
    %v2774 = vsel %vm591, %v2759, 0
    %v2776 = vsel %vm591, %v2761, 0
    %v2778 = vsel %vm591, %v2763, 0
    %v2780 = vsel %vm591, %v2765, 0
    %v2782 = vsel %vm591, %v2767, 0
    %2784 = vmatpush.xpose.msra.mxu0 0.0
    %2785 = vmatpush.xpose.msra.mxu0 0.0
    %2786 = vmatpush.xpose.msra.mxu0 0.0
    %2787 = vmatpush.xpose.msra.mxu0 0.0
    %2788 = vmatpush.xpose.msra.mxu0 0.0
    %2789 = vmatpush.xpose.msra.mxu0 0.0
    %2790 = vmatpush.xpose.msra.mxu0 0.0
    %2791 = vmatpush.xpose.msra.mxu0 0.0
    %2792 = vmatpush.xpose.msra.mxu0 0.0
    %2793 = vmatpush.xpose.msra.mxu0 0.0
    %2794 = vmatpush.xpose.msra.mxu0 0.0
    %2795 = vmatpush.xpose.msra.mxu0 0.0
    %2796 = vmatpush.xpose.msra.mxu0 %v2782
    %2797 = vmatpush.xpose.msra.mxu0 %v2780
    %2798 = vmatpush.xpose.msra.mxu0 %v2778
    %2799 = vmatpush.xpose.msra.mxu0 %v2776
    %2800 = vmatmul.f32.gmra.mxu0 %v2768
    %v2801 = vpop.f32.mrf.mxu0
    %v2802 = vadd.f32 0.0, %v2801
    %2803 = vmatmul.f32.gmra.mxu0 %v2770
    %v2804 = vpop.f32.mrf.mxu0
    %v2805 = vadd.f32 0.0, %v2804
    %2806 = vmatmul.f32.gmra.mxu0 %v2772
    %v2807 = vpop.f32.mrf.mxu0
    %v2808 = vadd.f32 0.0, %v2807
    %2809 = vmatmul.f32.gmra.mxu0 %v2774
    %v2810 = vpop.f32.mrf.mxu0
    %v2811 = vadd.f32 0.0, %v2810
    %2812 = vdwg.mxu0
    %v2813 = vmul.f32 %v2347, 0.125
    %v2814 = vmul.f32 %v2350, 0.125
    %v2815 = vmul.f32 %v2353, 0.125
    %v2816 = vmul.f32 %v2356, 0.125
    %v2817 = vmul.f32 %v2412, 0.125
    %v2818 = vmul.f32 %v2415, 0.125
    %v2819 = vmul.f32 %v2418, 0.125
    %v2820 = vmul.f32 %v2421, 0.125
    %v2821 = vmul.f32 %v2477, 0.125
    %v2822 = vmul.f32 %v2480, 0.125
    %v2823 = vmul.f32 %v2483, 0.125
    %v2824 = vmul.f32 %v2486, 0.125
    %v2825 = vmul.f32 %v2542, 0.125
    %v2826 = vmul.f32 %v2545, 0.125
    %v2827 = vmul.f32 %v2548, 0.125
    %v2828 = vmul.f32 %v2551, 0.125
    %v2829 = vmul.f32 %v2607, 0.125
    %v2830 = vmul.f32 %v2610, 0.125
    %v2831 = vmul.f32 %v2613, 0.125
    %v2832 = vmul.f32 %v2616, 0.125
    %v2833 = vmul.f32 %v2672, 0.125
    %v2834 = vmul.f32 %v2675, 0.125
    %v2835 = vmul.f32 %v2678, 0.125
    %v2836 = vmul.f32 %v2681, 0.125
    %v2837 = vmul.f32 %v2737, 0.125
    %v2838 = vmul.f32 %v2740, 0.125
    %v2839 = vmul.f32 %v2743, 0.125
    %v2840 = vmul.f32 %v2746, 0.125
    %v2841 = vmul.f32 %v2802, 0.125
    %v2842 = vmul.f32 %v2805, 0.125
    %v2843 = vmul.f32 %v2808, 0.125
    %v2844 = vmul.f32 %v2811, 0.125
    %v2845 = vadd.f32 %v2813, %v511
    %v2846 = vadd.f32 %v2814, %v512
    %v2847 = vadd.f32 %v2815, %v513
    %v2848 = vadd.f32 %v2816, %v514
    %v2849 = vadd.f32 %v2817, %v511
    %v2850 = vadd.f32 %v2818, %v512
    %v2851 = vadd.f32 %v2819, %v513
    %v2852 = vadd.f32 %v2820, %v514
    %v2853 = vadd.f32 %v2821, %v511
    %v2854 = vadd.f32 %v2822, %v512
    %v2855 = vadd.f32 %v2823, %v513
    %v2856 = vadd.f32 %v2824, %v514
    %v2857 = vadd.f32 %v2825, %v511
    %v2858 = vadd.f32 %v2826, %v512
    %v2859 = vadd.f32 %v2827, %v513
    %v2860 = vadd.f32 %v2828, %v514
    %v2861 = vadd.f32 %v2829, %v511
    %v2862 = vadd.f32 %v2830, %v512
    %v2863 = vadd.f32 %v2831, %v513
    %v2864 = vadd.f32 %v2832, %v514
    %v2865 = vadd.f32 %v2833, %v511
    %v2866 = vadd.f32 %v2834, %v512
    %v2867 = vadd.f32 %v2835, %v513
    %v2868 = vadd.f32 %v2836, %v514
    %v2869 = vadd.f32 %v2837, %v511
    %v2870 = vadd.f32 %v2838, %v512
    %v2871 = vadd.f32 %v2839, %v513
    %v2872 = vadd.f32 %v2840, %v514
    %v2873 = vadd.f32 %v2841, %v511
    %v2874 = vadd.f32 %v2842, %v512
    %v2875 = vadd.f32 %v2843, %v513
    %v2876 = vadd.f32 %v2844, %v514
    %v2877 = vsel %vm1100, %v2845, -inf
    %2878 = vmax.xlane.f32.xlu0 %v2877
    %v2879 = vpop.xlane.xlu0 %2878
    %v2880 = vsel %vm1100, %v2846, -inf
    %2881 = vmax.xlane.f32.xlu0 %v2880
    %v2882 = vpop.xlane.xlu0 %2881
    %v2883 = vsel %vm1100, %v2847, -inf
    %2884 = vmax.xlane.f32.xlu0 %v2883
    %v2885 = vpop.xlane.xlu0 %2884
    %v2886 = vsel %vm1100, %v2848, -inf
    %2887 = vmax.xlane.f32.xlu0 %v2886
    %v2888 = vpop.xlane.xlu0 %2887
    %v2889 = vsel %vm1100, %v2849, -inf
    %2890 = vmax.xlane.f32.xlu0 %v2889
    %v2891 = vpop.xlane.xlu0 %2890
    %v2892 = vsel %vm1100, %v2850, -inf
    %2893 = vmax.xlane.f32.xlu0 %v2892
    %v2894 = vpop.xlane.xlu0 %2893
    %v2895 = vsel %vm1100, %v2851, -inf
    %2896 = vmax.xlane.f32.xlu0 %v2895
    %v2897 = vpop.xlane.xlu0 %2896
    %v2898 = vsel %vm1100, %v2852, -inf
    %2899 = vmax.xlane.f32.xlu0 %v2898
    %v2900 = vpop.xlane.xlu0 %2899
    %v2901 = vsel %vm1100, %v2853, -inf
    %2902 = vmax.xlane.f32.xlu0 %v2901
    %v2903 = vpop.xlane.xlu0 %2902
    %v2904 = vsel %vm1100, %v2854, -inf
    %2905 = vmax.xlane.f32.xlu0 %v2904
    %v2906 = vpop.xlane.xlu0 %2905
    %v2907 = vsel %vm1100, %v2855, -inf
    %2908 = vmax.xlane.f32.xlu0 %v2907
    %v2909 = vpop.xlane.xlu0 %2908
    %v2910 = vsel %vm1100, %v2856, -inf
    %2911 = vmax.xlane.f32.xlu0 %v2910
    %v2912 = vpop.xlane.xlu0 %2911
    %v2913 = vsel %vm1100, %v2857, -inf
    %2914 = vmax.xlane.f32.xlu0 %v2913
    %v2915 = vpop.xlane.xlu0 %2914
    %v2916 = vsel %vm1100, %v2858, -inf
    %2917 = vmax.xlane.f32.xlu0 %v2916
    %v2918 = vpop.xlane.xlu0 %2917
    %v2919 = vsel %vm1100, %v2859, -inf
    %2920 = vmax.xlane.f32.xlu0 %v2919
    %v2921 = vpop.xlane.xlu0 %2920
    %v2922 = vsel %vm1100, %v2860, -inf
    %2923 = vmax.xlane.f32.xlu0 %v2922
    %v2924 = vpop.xlane.xlu0 %2923
    %v2925 = vsel %vm1100, %v2861, -inf
    %2926 = vmax.xlane.f32.xlu0 %v2925
    %v2927 = vpop.xlane.xlu0 %2926
    %v2928 = vsel %vm1100, %v2862, -inf
    %2929 = vmax.xlane.f32.xlu0 %v2928
    %v2930 = vpop.xlane.xlu0 %2929
    %v2931 = vsel %vm1100, %v2863, -inf
    %2932 = vmax.xlane.f32.xlu0 %v2931
    %v2933 = vpop.xlane.xlu0 %2932
    %v2934 = vsel %vm1100, %v2864, -inf
    %2935 = vmax.xlane.f32.xlu0 %v2934
    %v2936 = vpop.xlane.xlu0 %2935
    %v2937 = vsel %vm1100, %v2865, -inf
    %2938 = vmax.xlane.f32.xlu0 %v2937
    %v2939 = vpop.xlane.xlu0 %2938
    %v2940 = vsel %vm1100, %v2866, -inf
    %2941 = vmax.xlane.f32.xlu0 %v2940
    %v2942 = vpop.xlane.xlu0 %2941
    %v2943 = vsel %vm1100, %v2867, -inf
    %2944 = vmax.xlane.f32.xlu0 %v2943
    %v2945 = vpop.xlane.xlu0 %2944
    %v2946 = vsel %vm1100, %v2868, -inf
    %2947 = vmax.xlane.f32.xlu0 %v2946
    %v2948 = vpop.xlane.xlu0 %2947
    %v2949 = vsel %vm1100, %v2869, -inf
    %2950 = vmax.xlane.f32.xlu0 %v2949
    %v2951 = vpop.xlane.xlu0 %2950
    %v2952 = vsel %vm1100, %v2870, -inf
    %2953 = vmax.xlane.f32.xlu0 %v2952
    %v2954 = vpop.xlane.xlu0 %2953
    %v2955 = vsel %vm1100, %v2871, -inf
    %2956 = vmax.xlane.f32.xlu0 %v2955
    %v2957 = vpop.xlane.xlu0 %2956
    %v2958 = vsel %vm1100, %v2872, -inf
    %2959 = vmax.xlane.f32.xlu0 %v2958
    %v2960 = vpop.xlane.xlu0 %2959
    %v2961 = vsel %vm1100, %v2873, -inf
    %2962 = vmax.xlane.f32.xlu0 %v2961
    %v2963 = vpop.xlane.xlu0 %2962
    %v2964 = vsel %vm1100, %v2874, -inf
    %2965 = vmax.xlane.f32.xlu0 %v2964
    %v2966 = vpop.xlane.xlu0 %2965
    %v2967 = vsel %vm1100, %v2875, -inf
    %2968 = vmax.xlane.f32.xlu0 %v2967
    %v2969 = vpop.xlane.xlu0 %2968
    %v2970 = vsel %vm1100, %v2876, -inf
    %2971 = vmax.xlane.f32.xlu0 %v2970
    %v2972 = vpop.xlane.xlu0 %2971
    %v2973 = vsub.f32 %v2845, %v2879
    %v2974 = vsub.f32 %v2846, %v2882
    %v2975 = vsub.f32 %v2847, %v2885
    %v2976 = vsub.f32 %v2848, %v2888
    %v2977 = vsub.f32 %v2849, %v2891
    %v2978 = vsub.f32 %v2850, %v2894
    %v2979 = vsub.f32 %v2851, %v2897
    %v2980 = vsub.f32 %v2852, %v2900
    %v2981 = vsub.f32 %v2853, %v2903
    %v2982 = vsub.f32 %v2854, %v2906
    %v2983 = vsub.f32 %v2855, %v2909
    %v2984 = vsub.f32 %v2856, %v2912
    %v2985 = vsub.f32 %v2857, %v2915
    %v2986 = vsub.f32 %v2858, %v2918
    %v2987 = vsub.f32 %v2859, %v2921
    %v2988 = vsub.f32 %v2860, %v2924
    %v2989 = vsub.f32 %v2861, %v2927
    %v2990 = vsub.f32 %v2862, %v2930
    %v2991 = vsub.f32 %v2863, %v2933
    %v2992 = vsub.f32 %v2864, %v2936
    %v2993 = vsub.f32 %v2865, %v2939
    %v2994 = vsub.f32 %v2866, %v2942
    %v2995 = vsub.f32 %v2867, %v2945
    %v2996 = vsub.f32 %v2868, %v2948
    %v2997 = vsub.f32 %v2869, %v2951
    %v2998 = vsub.f32 %v2870, %v2954
    %v2999 = vsub.f32 %v2871, %v2957
    %v3000 = vsub.f32 %v2872, %v2960
    %v3001 = vsub.f32 %v2873, %v2963
    %v3002 = vsub.f32 %v2874, %v2966
    %v3003 = vsub.f32 %v2875, %v2969
    %v3004 = vsub.f32 %v2876, %v2972
    %v3005 = vmul.f32 %v2973, 1.442695
    %v3006 = vpow.pop %v3005
    %v3007 = vmul.f32 %v2974, 1.442695
    %v3008 = vpow.pop %v3007
    %v3009 = vmul.f32 %v2975, 1.442695
    %v3010 = vpow.pop %v3009
    %v3011 = vmul.f32 %v2976, 1.442695
    %v3012 = vpow.pop %v3011
    %v3013 = vmul.f32 %v2977, 1.442695
    %v3014 = vpow.pop %v3013
    %v3015 = vmul.f32 %v2978, 1.442695
    %v3016 = vpow.pop %v3015
    %v3017 = vmul.f32 %v2979, 1.442695
    %v3018 = vpow.pop %v3017
    %v3019 = vmul.f32 %v2980, 1.442695
    %v3020 = vpow.pop %v3019
    %v3021 = vmul.f32 %v2981, 1.442695
    %v3022 = vpow.pop %v3021
    %v3023 = vmul.f32 %v2982, 1.442695
    %v3024 = vpow.pop %v3023
    %v3025 = vmul.f32 %v2983, 1.442695
    %v3026 = vpow.pop %v3025
    %v3027 = vmul.f32 %v2984, 1.442695
    %v3028 = vpow.pop %v3027
    %v3029 = vmul.f32 %v2985, 1.442695
    %v3030 = vpow.pop %v3029
    %v3031 = vmul.f32 %v2986, 1.442695
    %v3032 = vpow.pop %v3031
    %v3033 = vmul.f32 %v2987, 1.442695
    %v3034 = vpow.pop %v3033
    %v3035 = vmul.f32 %v2988, 1.442695
    %v3036 = vpow.pop %v3035
    %v3037 = vmul.f32 %v2989, 1.442695
    %v3038 = vpow.pop %v3037
    %v3039 = vmul.f32 %v2990, 1.442695
    %v3040 = vpow.pop %v3039
    %v3041 = vmul.f32 %v2991, 1.442695
    %v3042 = vpow.pop %v3041
    %v3043 = vmul.f32 %v2992, 1.442695
    %v3044 = vpow.pop %v3043
    %v3045 = vmul.f32 %v2993, 1.442695
    %v3046 = vpow.pop %v3045
    %v3047 = vmul.f32 %v2994, 1.442695
    %v3048 = vpow.pop %v3047
    %v3049 = vmul.f32 %v2995, 1.442695
    %v3050 = vpow.pop %v3049
    %v3051 = vmul.f32 %v2996, 1.442695
    %v3052 = vpow.pop %v3051
    %v3053 = vmul.f32 %v2997, 1.442695
    %v3054 = vpow.pop %v3053
    %v3055 = vmul.f32 %v2998, 1.442695
    %v3056 = vpow.pop %v3055
    %v3057 = vmul.f32 %v2999, 1.442695
    %v3058 = vpow.pop %v3057
    %v3059 = vmul.f32 %v3000, 1.442695
    %v3060 = vpow.pop %v3059
    %v3061 = vmul.f32 %v3001, 1.442695
    %v3062 = vpow.pop %v3061
    %v3063 = vmul.f32 %v3002, 1.442695
    %v3064 = vpow.pop %v3063
    %v3065 = vmul.f32 %v3003, 1.442695
    %v3066 = vpow.pop %v3065
    %v3067 = vmul.f32 %v3004, 1.442695
    %v3068 = vpow.pop %v3067
    %v3069 = vsel %vm1100, %v3006, 0.0
    %3070 = vadd.xlane.f32.xlu0 %v3069
    %v3071 = vpop.xlane.xlu0 %3070
    %v3072 = vsel %vm1100, %v3008, 0.0
    %3073 = vadd.xlane.f32.xlu0 %v3072
    %v3074 = vpop.xlane.xlu0 %3073
    %v3075 = vsel %vm1100, %v3010, 0.0
    %3076 = vadd.xlane.f32.xlu0 %v3075
    %v3077 = vpop.xlane.xlu0 %3076
    %v3078 = vsel %vm1100, %v3012, 0.0
    %3079 = vadd.xlane.f32.xlu0 %v3078
    %v3080 = vpop.xlane.xlu0 %3079
    %v3081 = vsel %vm1100, %v3014, 0.0
    %3082 = vadd.xlane.f32.xlu0 %v3081
    %v3083 = vpop.xlane.xlu0 %3082
    %v3084 = vsel %vm1100, %v3016, 0.0
    %3085 = vadd.xlane.f32.xlu0 %v3084
    %v3086 = vpop.xlane.xlu0 %3085
    %v3087 = vsel %vm1100, %v3018, 0.0
    %3088 = vadd.xlane.f32.xlu0 %v3087
    %v3089 = vpop.xlane.xlu0 %3088
    %v3090 = vsel %vm1100, %v3020, 0.0
    %3091 = vadd.xlane.f32.xlu0 %v3090
    %v3092 = vpop.xlane.xlu0 %3091
    %v3093 = vsel %vm1100, %v3022, 0.0
    %3094 = vadd.xlane.f32.xlu0 %v3093
    %v3095 = vpop.xlane.xlu0 %3094
    %v3096 = vsel %vm1100, %v3024, 0.0
    %3097 = vadd.xlane.f32.xlu0 %v3096
    %v3098 = vpop.xlane.xlu0 %3097
    %v3099 = vsel %vm1100, %v3026, 0.0
    %3100 = vadd.xlane.f32.xlu0 %v3099
    %v3101 = vpop.xlane.xlu0 %3100
    %v3102 = vsel %vm1100, %v3028, 0.0
    %3103 = vadd.xlane.f32.xlu0 %v3102
    %v3104 = vpop.xlane.xlu0 %3103
    %v3105 = vsel %vm1100, %v3030, 0.0
    %3106 = vadd.xlane.f32.xlu0 %v3105
    %v3107 = vpop.xlane.xlu0 %3106
    %v3108 = vsel %vm1100, %v3032, 0.0
    %3109 = vadd.xlane.f32.xlu0 %v3108
    %v3110 = vpop.xlane.xlu0 %3109
    %v3111 = vsel %vm1100, %v3034, 0.0
    %3112 = vadd.xlane.f32.xlu0 %v3111
    %v3113 = vpop.xlane.xlu0 %3112
    %v3114 = vsel %vm1100, %v3036, 0.0
    %3115 = vadd.xlane.f32.xlu0 %v3114
    %v3116 = vpop.xlane.xlu0 %3115
    %v3117 = vsel %vm1100, %v3038, 0.0
    %3118 = vadd.xlane.f32.xlu0 %v3117
    %v3119 = vpop.xlane.xlu0 %3118
    %v3120 = vsel %vm1100, %v3040, 0.0
    %3121 = vadd.xlane.f32.xlu0 %v3120
    %v3122 = vpop.xlane.xlu0 %3121
    %v3123 = vsel %vm1100, %v3042, 0.0
    %3124 = vadd.xlane.f32.xlu0 %v3123
    %v3125 = vpop.xlane.xlu0 %3124
    %v3126 = vsel %vm1100, %v3044, 0.0
    %3127 = vadd.xlane.f32.xlu0 %v3126
    %v3128 = vpop.xlane.xlu0 %3127
    %v3129 = vsel %vm1100, %v3046, 0.0
    %3130 = vadd.xlane.f32.xlu0 %v3129
    %v3131 = vpop.xlane.xlu0 %3130
    %v3132 = vsel %vm1100, %v3048, 0.0
    %3133 = vadd.xlane.f32.xlu0 %v3132
    %v3134 = vpop.xlane.xlu0 %3133
    %v3135 = vsel %vm1100, %v3050, 0.0
    %3136 = vadd.xlane.f32.xlu0 %v3135
    %v3137 = vpop.xlane.xlu0 %3136
    %v3138 = vsel %vm1100, %v3052, 0.0
    %3139 = vadd.xlane.f32.xlu0 %v3138
    %v3140 = vpop.xlane.xlu0 %3139
    %v3141 = vsel %vm1100, %v3054, 0.0
    %3142 = vadd.xlane.f32.xlu0 %v3141
    %v3143 = vpop.xlane.xlu0 %3142
    %v3144 = vsel %vm1100, %v3056, 0.0
    %3145 = vadd.xlane.f32.xlu0 %v3144
    %v3146 = vpop.xlane.xlu0 %3145
    %v3147 = vsel %vm1100, %v3058, 0.0
    %3148 = vadd.xlane.f32.xlu0 %v3147
    %v3149 = vpop.xlane.xlu0 %3148
    %v3150 = vsel %vm1100, %v3060, 0.0
    %3151 = vadd.xlane.f32.xlu0 %v3150
    %v3152 = vpop.xlane.xlu0 %3151
    %v3153 = vsel %vm1100, %v3062, 0.0
    %3154 = vadd.xlane.f32.xlu0 %v3153
    %v3155 = vpop.xlane.xlu0 %3154
    %v3156 = vsel %vm1100, %v3064, 0.0
    %3157 = vadd.xlane.f32.xlu0 %v3156
    %v3158 = vpop.xlane.xlu0 %3157
    %v3159 = vsel %vm1100, %v3066, 0.0
    %3160 = vadd.xlane.f32.xlu0 %v3159
    %v3161 = vpop.xlane.xlu0 %3160
    %v3162 = vsel %vm1100, %v3068, 0.0
    %3163 = vadd.xlane.f32.xlu0 %v3162
    %v3164 = vpop.xlane.xlu0 %3163
    %v3165 = vrcp.pop %v3071
    %v3166 = vmul.f32 %v3071, %v3165
    %v3167 = vsub.f32 1.0, %v3166
    %v3168 = vmul.f32 %v3165, %v3167
    %v3169 = vadd.f32 %v3165, %v3168
    %vm3170 = vweird.f32 %v3071
    %vm3171 = vweird.f32 %v3165
    %vm3172 = vmor %vm3170, %vm3171
    %v3173 = vsel %vm3172, %v3165, %v3169
    %v3174 = vand.u32 2147483647, %v3071
    %vm3175 = vcmp.eq.f32.partialorder %v3174, 8.507059e+37
    %v3176 = vand.u32 %v3071, 2147483648
    %v3177 = vor.u32 1.1754944e-38, %v3176
    %v3178 = vsel %vm3175, %v3177, %v3173
    %v3179 = vmul.f32 %v3006, %v3178
    %v3180 = vrcp.pop %v3074
    %v3181 = vmul.f32 %v3074, %v3180
    %v3182 = vsub.f32 1.0, %v3181
    %v3183 = vmul.f32 %v3180, %v3182
    %v3184 = vadd.f32 %v3180, %v3183
    %vm3185 = vweird.f32 %v3074
    %vm3186 = vweird.f32 %v3180
    %vm3187 = vmor %vm3185, %vm3186
    %v3188 = vsel %vm3187, %v3180, %v3184
    %v3189 = vand.u32 2147483647, %v3074
    %vm3190 = vcmp.eq.f32.partialorder %v3189, 8.507059e+37
    %v3191 = vand.u32 %v3074, 2147483648
    %v3192 = vor.u32 1.1754944e-38, %v3191
    %v3193 = vsel %vm3190, %v3192, %v3188
    %v3194 = vmul.f32 %v3008, %v3193
    %v3195 = vrcp.pop %v3077
    %v3196 = vmul.f32 %v3077, %v3195
    %v3197 = vsub.f32 1.0, %v3196
    %v3198 = vmul.f32 %v3195, %v3197
    %v3199 = vadd.f32 %v3195, %v3198
    %vm3200 = vweird.f32 %v3077
    %vm3201 = vweird.f32 %v3195
    %vm3202 = vmor %vm3200, %vm3201
    %v3203 = vsel %vm3202, %v3195, %v3199
    %v3204 = vand.u32 2147483647, %v3077
    %vm3205 = vcmp.eq.f32.partialorder %v3204, 8.507059e+37
    %v3206 = vand.u32 %v3077, 2147483648
    %v3207 = vor.u32 1.1754944e-38, %v3206
    %v3208 = vsel %vm3205, %v3207, %v3203
    %v3209 = vmul.f32 %v3010, %v3208
    %v3210 = vrcp.pop %v3080
    %v3211 = vmul.f32 %v3080, %v3210
    %v3212 = vsub.f32 1.0, %v3211
    %v3213 = vmul.f32 %v3210, %v3212
    %v3214 = vadd.f32 %v3210, %v3213
    %vm3215 = vweird.f32 %v3080
    %vm3216 = vweird.f32 %v3210
    %vm3217 = vmor %vm3215, %vm3216
    %v3218 = vsel %vm3217, %v3210, %v3214
    %v3219 = vand.u32 2147483647, %v3080
    %vm3220 = vcmp.eq.f32.partialorder %v3219, 8.507059e+37
    %v3221 = vand.u32 %v3080, 2147483648
    %v3222 = vor.u32 1.1754944e-38, %v3221
    %v3223 = vsel %vm3220, %v3222, %v3218
    %v3224 = vmul.f32 %v3012, %v3223
    %v3225 = vrcp.pop %v3083
    %v3226 = vmul.f32 %v3083, %v3225
    %v3227 = vsub.f32 1.0, %v3226
    %v3228 = vmul.f32 %v3225, %v3227
    %v3229 = vadd.f32 %v3225, %v3228
    %vm3230 = vweird.f32 %v3083
    %vm3231 = vweird.f32 %v3225
    %vm3232 = vmor %vm3230, %vm3231
    %v3233 = vsel %vm3232, %v3225, %v3229
    %v3234 = vand.u32 2147483647, %v3083
    %vm3235 = vcmp.eq.f32.partialorder %v3234, 8.507059e+37
    %v3236 = vand.u32 %v3083, 2147483648
    %v3237 = vor.u32 1.1754944e-38, %v3236
    %v3238 = vsel %vm3235, %v3237, %v3233
    %v3239 = vmul.f32 %v3014, %v3238
    %v3240 = vrcp.pop %v3086
    %v3241 = vmul.f32 %v3086, %v3240
    %v3242 = vsub.f32 1.0, %v3241
    %v3243 = vmul.f32 %v3240, %v3242
    %v3244 = vadd.f32 %v3240, %v3243
    %vm3245 = vweird.f32 %v3086
    %vm3246 = vweird.f32 %v3240
    %vm3247 = vmor %vm3245, %vm3246
    %v3248 = vsel %vm3247, %v3240, %v3244
    %v3249 = vand.u32 2147483647, %v3086
    %vm3250 = vcmp.eq.f32.partialorder %v3249, 8.507059e+37
    %v3251 = vand.u32 %v3086, 2147483648
    %v3252 = vor.u32 1.1754944e-38, %v3251
    %v3253 = vsel %vm3250, %v3252, %v3248
    %v3254 = vmul.f32 %v3016, %v3253
    %v3255 = vrcp.pop %v3089
    %v3256 = vmul.f32 %v3089, %v3255
    %v3257 = vsub.f32 1.0, %v3256
    %v3258 = vmul.f32 %v3255, %v3257
    %v3259 = vadd.f32 %v3255, %v3258
    %vm3260 = vweird.f32 %v3089
    %vm3261 = vweird.f32 %v3255
    %vm3262 = vmor %vm3260, %vm3261
    %v3263 = vsel %vm3262, %v3255, %v3259
    %v3264 = vand.u32 2147483647, %v3089
    %vm3265 = vcmp.eq.f32.partialorder %v3264, 8.507059e+37
    %v3266 = vand.u32 %v3089, 2147483648
    %v3267 = vor.u32 1.1754944e-38, %v3266
    %v3268 = vsel %vm3265, %v3267, %v3263
    %v3269 = vmul.f32 %v3018, %v3268
    %v3270 = vrcp.pop %v3092
    %v3271 = vmul.f32 %v3092, %v3270
    %v3272 = vsub.f32 1.0, %v3271
    %v3273 = vmul.f32 %v3270, %v3272
    %v3274 = vadd.f32 %v3270, %v3273
    %vm3275 = vweird.f32 %v3092
    %vm3276 = vweird.f32 %v3270
    %vm3277 = vmor %vm3275, %vm3276
    %v3278 = vsel %vm3277, %v3270, %v3274
    %v3279 = vand.u32 2147483647, %v3092
    %vm3280 = vcmp.eq.f32.partialorder %v3279, 8.507059e+37
    %v3281 = vand.u32 %v3092, 2147483648
    %v3282 = vor.u32 1.1754944e-38, %v3281
    %v3283 = vsel %vm3280, %v3282, %v3278
    %v3284 = vmul.f32 %v3020, %v3283
    %v3285 = vrcp.pop %v3095
    %v3286 = vmul.f32 %v3095, %v3285
    %v3287 = vsub.f32 1.0, %v3286
    %v3288 = vmul.f32 %v3285, %v3287
    %v3289 = vadd.f32 %v3285, %v3288
    %vm3290 = vweird.f32 %v3095
    %vm3291 = vweird.f32 %v3285
    %vm3292 = vmor %vm3290, %vm3291
    %v3293 = vsel %vm3292, %v3285, %v3289
    %v3294 = vand.u32 2147483647, %v3095
    %vm3295 = vcmp.eq.f32.partialorder %v3294, 8.507059e+37
    %v3296 = vand.u32 %v3095, 2147483648
    %v3297 = vor.u32 1.1754944e-38, %v3296
    %v3298 = vsel %vm3295, %v3297, %v3293
    %v3299 = vmul.f32 %v3022, %v3298
    %v3300 = vrcp.pop %v3098
    %v3301 = vmul.f32 %v3098, %v3300
    %v3302 = vsub.f32 1.0, %v3301
    %v3303 = vmul.f32 %v3300, %v3302
    %v3304 = vadd.f32 %v3300, %v3303
    %vm3305 = vweird.f32 %v3098
    %vm3306 = vweird.f32 %v3300
    %vm3307 = vmor %vm3305, %vm3306
    %v3308 = vsel %vm3307, %v3300, %v3304
    %v3309 = vand.u32 2147483647, %v3098
    %vm3310 = vcmp.eq.f32.partialorder %v3309, 8.507059e+37
    %v3311 = vand.u32 %v3098, 2147483648
    %v3312 = vor.u32 1.1754944e-38, %v3311
    %v3313 = vsel %vm3310, %v3312, %v3308
    %v3314 = vmul.f32 %v3024, %v3313
    %v3315 = vrcp.pop %v3101
    %v3316 = vmul.f32 %v3101, %v3315
    %v3317 = vsub.f32 1.0, %v3316
    %v3318 = vmul.f32 %v3315, %v3317
    %v3319 = vadd.f32 %v3315, %v3318
    %vm3320 = vweird.f32 %v3101
    %vm3321 = vweird.f32 %v3315
    %vm3322 = vmor %vm3320, %vm3321
    %v3323 = vsel %vm3322, %v3315, %v3319
    %v3324 = vand.u32 2147483647, %v3101
    %vm3325 = vcmp.eq.f32.partialorder %v3324, 8.507059e+37
    %v3326 = vand.u32 %v3101, 2147483648
    %v3327 = vor.u32 1.1754944e-38, %v3326
    %v3328 = vsel %vm3325, %v3327, %v3323
    %v3329 = vmul.f32 %v3026, %v3328
    %v3330 = vrcp.pop %v3104
    %v3331 = vmul.f32 %v3104, %v3330
    %v3332 = vsub.f32 1.0, %v3331
    %v3333 = vmul.f32 %v3330, %v3332
    %v3334 = vadd.f32 %v3330, %v3333
    %vm3335 = vweird.f32 %v3104
    %vm3336 = vweird.f32 %v3330
    %vm3337 = vmor %vm3335, %vm3336
    %v3338 = vsel %vm3337, %v3330, %v3334
    %v3339 = vand.u32 2147483647, %v3104
    %vm3340 = vcmp.eq.f32.partialorder %v3339, 8.507059e+37
    %v3341 = vand.u32 %v3104, 2147483648
    %v3342 = vor.u32 1.1754944e-38, %v3341
    %v3343 = vsel %vm3340, %v3342, %v3338
    %v3344 = vmul.f32 %v3028, %v3343
    %v3345 = vrcp.pop %v3107
    %v3346 = vmul.f32 %v3107, %v3345
    %v3347 = vsub.f32 1.0, %v3346
    %v3348 = vmul.f32 %v3345, %v3347
    %v3349 = vadd.f32 %v3345, %v3348
    %vm3350 = vweird.f32 %v3107
    %vm3351 = vweird.f32 %v3345
    %vm3352 = vmor %vm3350, %vm3351
    %v3353 = vsel %vm3352, %v3345, %v3349
    %v3354 = vand.u32 2147483647, %v3107
    %vm3355 = vcmp.eq.f32.partialorder %v3354, 8.507059e+37
    %v3356 = vand.u32 %v3107, 2147483648
    %v3357 = vor.u32 1.1754944e-38, %v3356
    %v3358 = vsel %vm3355, %v3357, %v3353
    %v3359 = vmul.f32 %v3030, %v3358
    %v3360 = vrcp.pop %v3110
    %v3361 = vmul.f32 %v3110, %v3360
    %v3362 = vsub.f32 1.0, %v3361
    %v3363 = vmul.f32 %v3360, %v3362
    %v3364 = vadd.f32 %v3360, %v3363
    %vm3365 = vweird.f32 %v3110
    %vm3366 = vweird.f32 %v3360
    %vm3367 = vmor %vm3365, %vm3366
    %v3368 = vsel %vm3367, %v3360, %v3364
    %v3369 = vand.u32 2147483647, %v3110
    %vm3370 = vcmp.eq.f32.partialorder %v3369, 8.507059e+37
    %v3371 = vand.u32 %v3110, 2147483648
    %v3372 = vor.u32 1.1754944e-38, %v3371
    %v3373 = vsel %vm3370, %v3372, %v3368
    %v3374 = vmul.f32 %v3032, %v3373
    %v3375 = vrcp.pop %v3113
    %v3376 = vmul.f32 %v3113, %v3375
    %v3377 = vsub.f32 1.0, %v3376
    %v3378 = vmul.f32 %v3375, %v3377
    %v3379 = vadd.f32 %v3375, %v3378
    %vm3380 = vweird.f32 %v3113
    %vm3381 = vweird.f32 %v3375
    %vm3382 = vmor %vm3380, %vm3381
    %v3383 = vsel %vm3382, %v3375, %v3379
    %v3384 = vand.u32 2147483647, %v3113
    %vm3385 = vcmp.eq.f32.partialorder %v3384, 8.507059e+37
    %v3386 = vand.u32 %v3113, 2147483648
    %v3387 = vor.u32 1.1754944e-38, %v3386
    %v3388 = vsel %vm3385, %v3387, %v3383
    %v3389 = vmul.f32 %v3034, %v3388
    %v3390 = vrcp.pop %v3116
    %v3391 = vmul.f32 %v3116, %v3390
    %v3392 = vsub.f32 1.0, %v3391
    %v3393 = vmul.f32 %v3390, %v3392
    %v3394 = vadd.f32 %v3390, %v3393
    %vm3395 = vweird.f32 %v3116
    %vm3396 = vweird.f32 %v3390
    %vm3397 = vmor %vm3395, %vm3396
    %v3398 = vsel %vm3397, %v3390, %v3394
    %v3399 = vand.u32 2147483647, %v3116
    %vm3400 = vcmp.eq.f32.partialorder %v3399, 8.507059e+37
    %v3401 = vand.u32 %v3116, 2147483648
    %v3402 = vor.u32 1.1754944e-38, %v3401
    %v3403 = vsel %vm3400, %v3402, %v3398
    %v3404 = vmul.f32 %v3036, %v3403
    %v3405 = vrcp.pop %v3119
    %v3406 = vmul.f32 %v3119, %v3405
    %v3407 = vsub.f32 1.0, %v3406
    %v3408 = vmul.f32 %v3405, %v3407
    %v3409 = vadd.f32 %v3405, %v3408
    %vm3410 = vweird.f32 %v3119
    %vm3411 = vweird.f32 %v3405
    %vm3412 = vmor %vm3410, %vm3411
    %v3413 = vsel %vm3412, %v3405, %v3409
    %v3414 = vand.u32 2147483647, %v3119
    %vm3415 = vcmp.eq.f32.partialorder %v3414, 8.507059e+37
    %v3416 = vand.u32 %v3119, 2147483648
    %v3417 = vor.u32 1.1754944e-38, %v3416
    %v3418 = vsel %vm3415, %v3417, %v3413
    %v3419 = vmul.f32 %v3038, %v3418
    %v3420 = vrcp.pop %v3122
    %v3421 = vmul.f32 %v3122, %v3420
    %v3422 = vsub.f32 1.0, %v3421
    %v3423 = vmul.f32 %v3420, %v3422
    %v3424 = vadd.f32 %v3420, %v3423
    %vm3425 = vweird.f32 %v3122
    %vm3426 = vweird.f32 %v3420
    %vm3427 = vmor %vm3425, %vm3426
    %v3428 = vsel %vm3427, %v3420, %v3424
    %v3429 = vand.u32 2147483647, %v3122
    %vm3430 = vcmp.eq.f32.partialorder %v3429, 8.507059e+37
    %v3431 = vand.u32 %v3122, 2147483648
    %v3432 = vor.u32 1.1754944e-38, %v3431
    %v3433 = vsel %vm3430, %v3432, %v3428
    %v3434 = vmul.f32 %v3040, %v3433
    %v3435 = vrcp.pop %v3125
    %v3436 = vmul.f32 %v3125, %v3435
    %v3437 = vsub.f32 1.0, %v3436
    %v3438 = vmul.f32 %v3435, %v3437
    %v3439 = vadd.f32 %v3435, %v3438
    %vm3440 = vweird.f32 %v3125
    %vm3441 = vweird.f32 %v3435
    %vm3442 = vmor %vm3440, %vm3441
    %v3443 = vsel %vm3442, %v3435, %v3439
    %v3444 = vand.u32 2147483647, %v3125
    %vm3445 = vcmp.eq.f32.partialorder %v3444, 8.507059e+37
    %v3446 = vand.u32 %v3125, 2147483648
    %v3447 = vor.u32 1.1754944e-38, %v3446
    %v3448 = vsel %vm3445, %v3447, %v3443
    %v3449 = vmul.f32 %v3042, %v3448
    %v3450 = vrcp.pop %v3128
    %v3451 = vmul.f32 %v3128, %v3450
    %v3452 = vsub.f32 1.0, %v3451
    %v3453 = vmul.f32 %v3450, %v3452
    %v3454 = vadd.f32 %v3450, %v3453
    %vm3455 = vweird.f32 %v3128
    %vm3456 = vweird.f32 %v3450
    %vm3457 = vmor %vm3455, %vm3456
    %v3458 = vsel %vm3457, %v3450, %v3454
    %v3459 = vand.u32 2147483647, %v3128
    %vm3460 = vcmp.eq.f32.partialorder %v3459, 8.507059e+37
    %v3461 = vand.u32 %v3128, 2147483648
    %v3462 = vor.u32 1.1754944e-38, %v3461
    %v3463 = vsel %vm3460, %v3462, %v3458
    %v3464 = vmul.f32 %v3044, %v3463
    %v3465 = vrcp.pop %v3131
    %v3466 = vmul.f32 %v3131, %v3465
    %v3467 = vsub.f32 1.0, %v3466
    %v3468 = vmul.f32 %v3465, %v3467
    %v3469 = vadd.f32 %v3465, %v3468
    %vm3470 = vweird.f32 %v3131
    %vm3471 = vweird.f32 %v3465
    %vm3472 = vmor %vm3470, %vm3471
    %v3473 = vsel %vm3472, %v3465, %v3469
    %v3474 = vand.u32 2147483647, %v3131
    %vm3475 = vcmp.eq.f32.partialorder %v3474, 8.507059e+37
    %v3476 = vand.u32 %v3131, 2147483648
    %v3477 = vor.u32 1.1754944e-38, %v3476
    %v3478 = vsel %vm3475, %v3477, %v3473
    %v3479 = vmul.f32 %v3046, %v3478
    %v3480 = vrcp.pop %v3134
    %v3481 = vmul.f32 %v3134, %v3480
    %v3482 = vsub.f32 1.0, %v3481
    %v3483 = vmul.f32 %v3480, %v3482
    %v3484 = vadd.f32 %v3480, %v3483
    %vm3485 = vweird.f32 %v3134
    %vm3486 = vweird.f32 %v3480
    %vm3487 = vmor %vm3485, %vm3486
    %v3488 = vsel %vm3487, %v3480, %v3484
    %v3489 = vand.u32 2147483647, %v3134
    %vm3490 = vcmp.eq.f32.partialorder %v3489, 8.507059e+37
    %v3491 = vand.u32 %v3134, 2147483648
    %v3492 = vor.u32 1.1754944e-38, %v3491
    %v3493 = vsel %vm3490, %v3492, %v3488
    %v3494 = vmul.f32 %v3048, %v3493
    %v3495 = vrcp.pop %v3137
    %v3496 = vmul.f32 %v3137, %v3495
    %v3497 = vsub.f32 1.0, %v3496
    %v3498 = vmul.f32 %v3495, %v3497
    %v3499 = vadd.f32 %v3495, %v3498
    %vm3500 = vweird.f32 %v3137
    %vm3501 = vweird.f32 %v3495
    %vm3502 = vmor %vm3500, %vm3501
    %v3503 = vsel %vm3502, %v3495, %v3499
    %v3504 = vand.u32 2147483647, %v3137
    %vm3505 = vcmp.eq.f32.partialorder %v3504, 8.507059e+37
    %v3506 = vand.u32 %v3137, 2147483648
    %v3507 = vor.u32 1.1754944e-38, %v3506
    %v3508 = vsel %vm3505, %v3507, %v3503
    %v3509 = vmul.f32 %v3050, %v3508
    %v3510 = vrcp.pop %v3140
    %v3511 = vmul.f32 %v3140, %v3510
    %v3512 = vsub.f32 1.0, %v3511
    %v3513 = vmul.f32 %v3510, %v3512
    %v3514 = vadd.f32 %v3510, %v3513
    %vm3515 = vweird.f32 %v3140
    %vm3516 = vweird.f32 %v3510
    %vm3517 = vmor %vm3515, %vm3516
    %v3518 = vsel %vm3517, %v3510, %v3514
    %v3519 = vand.u32 2147483647, %v3140
    %vm3520 = vcmp.eq.f32.partialorder %v3519, 8.507059e+37
    %v3521 = vand.u32 %v3140, 2147483648
    %v3522 = vor.u32 1.1754944e-38, %v3521
    %v3523 = vsel %vm3520, %v3522, %v3518
    %v3524 = vmul.f32 %v3052, %v3523
    %v3525 = vrcp.pop %v3143
    %v3526 = vmul.f32 %v3143, %v3525
    %v3527 = vsub.f32 1.0, %v3526
    %v3528 = vmul.f32 %v3525, %v3527
    %v3529 = vadd.f32 %v3525, %v3528
    %vm3530 = vweird.f32 %v3143
    %vm3531 = vweird.f32 %v3525
    %vm3532 = vmor %vm3530, %vm3531
    %v3533 = vsel %vm3532, %v3525, %v3529
    %v3534 = vand.u32 2147483647, %v3143
    %vm3535 = vcmp.eq.f32.partialorder %v3534, 8.507059e+37
    %v3536 = vand.u32 %v3143, 2147483648
    %v3537 = vor.u32 1.1754944e-38, %v3536
    %v3538 = vsel %vm3535, %v3537, %v3533
    %v3539 = vmul.f32 %v3054, %v3538
    %v3540 = vrcp.pop %v3146
    %v3541 = vmul.f32 %v3146, %v3540
    %v3542 = vsub.f32 1.0, %v3541
    %v3543 = vmul.f32 %v3540, %v3542
    %v3544 = vadd.f32 %v3540, %v3543
    %vm3545 = vweird.f32 %v3146
    %vm3546 = vweird.f32 %v3540
    %vm3547 = vmor %vm3545, %vm3546
    %v3548 = vsel %vm3547, %v3540, %v3544
    %v3549 = vand.u32 2147483647, %v3146
    %vm3550 = vcmp.eq.f32.partialorder %v3549, 8.507059e+37
    %v3551 = vand.u32 %v3146, 2147483648
    %v3552 = vor.u32 1.1754944e-38, %v3551
    %v3553 = vsel %vm3550, %v3552, %v3548
    %v3554 = vmul.f32 %v3056, %v3553
    %v3555 = vrcp.pop %v3149
    %v3556 = vmul.f32 %v3149, %v3555
    %v3557 = vsub.f32 1.0, %v3556
    %v3558 = vmul.f32 %v3555, %v3557
    %v3559 = vadd.f32 %v3555, %v3558
    %vm3560 = vweird.f32 %v3149
    %vm3561 = vweird.f32 %v3555
    %vm3562 = vmor %vm3560, %vm3561
    %v3563 = vsel %vm3562, %v3555, %v3559
    %v3564 = vand.u32 2147483647, %v3149
    %vm3565 = vcmp.eq.f32.partialorder %v3564, 8.507059e+37
    %v3566 = vand.u32 %v3149, 2147483648
    %v3567 = vor.u32 1.1754944e-38, %v3566
    %v3568 = vsel %vm3565, %v3567, %v3563
    %v3569 = vmul.f32 %v3058, %v3568
    %v3570 = vrcp.pop %v3152
    %v3571 = vmul.f32 %v3152, %v3570
    %v3572 = vsub.f32 1.0, %v3571
    %v3573 = vmul.f32 %v3570, %v3572
    %v3574 = vadd.f32 %v3570, %v3573
    %vm3575 = vweird.f32 %v3152
    %vm3576 = vweird.f32 %v3570
    %vm3577 = vmor %vm3575, %vm3576
    %v3578 = vsel %vm3577, %v3570, %v3574
    %v3579 = vand.u32 2147483647, %v3152
    %vm3580 = vcmp.eq.f32.partialorder %v3579, 8.507059e+37
    %v3581 = vand.u32 %v3152, 2147483648
    %v3582 = vor.u32 1.1754944e-38, %v3581
    %v3583 = vsel %vm3580, %v3582, %v3578
    %v3584 = vmul.f32 %v3060, %v3583
    %v3585 = vrcp.pop %v3155
    %v3586 = vmul.f32 %v3155, %v3585
    %v3587 = vsub.f32 1.0, %v3586
    %v3588 = vmul.f32 %v3585, %v3587
    %v3589 = vadd.f32 %v3585, %v3588
    %vm3590 = vweird.f32 %v3155
    %vm3591 = vweird.f32 %v3585
    %vm3592 = vmor %vm3590, %vm3591
    %v3593 = vsel %vm3592, %v3585, %v3589
    %v3594 = vand.u32 2147483647, %v3155
    %vm3595 = vcmp.eq.f32.partialorder %v3594, 8.507059e+37
    %v3596 = vand.u32 %v3155, 2147483648
    %v3597 = vor.u32 1.1754944e-38, %v3596
    %v3598 = vsel %vm3595, %v3597, %v3593
    %v3599 = vmul.f32 %v3062, %v3598
    %v3600 = vrcp.pop %v3158
    %v3601 = vmul.f32 %v3158, %v3600
    %v3602 = vsub.f32 1.0, %v3601
    %v3603 = vmul.f32 %v3600, %v3602
    %v3604 = vadd.f32 %v3600, %v3603
    %vm3605 = vweird.f32 %v3158
    %vm3606 = vweird.f32 %v3600
    %vm3607 = vmor %vm3605, %vm3606
    %v3608 = vsel %vm3607, %v3600, %v3604
    %v3609 = vand.u32 2147483647, %v3158
    %vm3610 = vcmp.eq.f32.partialorder %v3609, 8.507059e+37
    %v3611 = vand.u32 %v3158, 2147483648
    %v3612 = vor.u32 1.1754944e-38, %v3611
    %v3613 = vsel %vm3610, %v3612, %v3608
    %v3614 = vmul.f32 %v3064, %v3613
    %v3615 = vrcp.pop %v3161
    %v3616 = vmul.f32 %v3161, %v3615
    %v3617 = vsub.f32 1.0, %v3616
    %v3618 = vmul.f32 %v3615, %v3617
    %v3619 = vadd.f32 %v3615, %v3618
    %vm3620 = vweird.f32 %v3161
    %vm3621 = vweird.f32 %v3615
    %vm3622 = vmor %vm3620, %vm3621
    %v3623 = vsel %vm3622, %v3615, %v3619
    %v3624 = vand.u32 2147483647, %v3161
    %vm3625 = vcmp.eq.f32.partialorder %v3624, 8.507059e+37
    %v3626 = vand.u32 %v3161, 2147483648
    %v3627 = vor.u32 1.1754944e-38, %v3626
    %v3628 = vsel %vm3625, %v3627, %v3623
    %v3629 = vmul.f32 %v3066, %v3628
    %v3630 = vrcp.pop %v3164
    %v3631 = vmul.f32 %v3164, %v3630
    %v3632 = vsub.f32 1.0, %v3631
    %v3633 = vmul.f32 %v3630, %v3632
    %v3634 = vadd.f32 %v3630, %v3633
    %vm3635 = vweird.f32 %v3164
    %vm3636 = vweird.f32 %v3630
    %vm3637 = vmor %vm3635, %vm3636
    %v3638 = vsel %vm3637, %v3630, %v3634
    %v3639 = vand.u32 2147483647, %v3164
    %vm3640 = vcmp.eq.f32.partialorder %v3639, 8.507059e+37
    %v3641 = vand.u32 %v3164, 2147483648
    %v3642 = vor.u32 1.1754944e-38, %v3641
    %v3643 = vsel %vm3640, %v3642, %v3638
    %v3644 = vmul.f32 %v3068, %v3643
    %3649 = vrot.lane.b32.xlu0 %v2261, 112
    %v3650 = vpop.permute.xlu0 %3649
    %3651 = vrot.lane.b32.xlu0 %v2262, 112
    %v3652 = vpop.permute.xlu0 %3651
    %3653 = vrot.lane.b32.xlu0 %v2263, 112
    %v3654 = vpop.permute.xlu0 %3653
    %3655 = vrot.lane.b32.xlu0 %v2264, 112
    %v3656 = vpop.permute.xlu0 %3655
    %v3662 = vsel %vm1100, %v3179, 0
    %v3665 = vsel %vm1100, %v3194, 0
    %v3668 = vsel %vm1100, %v3209, 0
    %v3671 = vsel %vm1100, %v3224, 0
    %3673 = vmatpush.msra.mxu0 0.0
    %3674 = vmatpush.msra.mxu0 0.0
    %3675 = vmatpush.msra.mxu0 0.0
    %3676 = vmatpush.msra.mxu0 0.0
    %3677 = vmatpush.msra.mxu0 0.0
    %3678 = vmatpush.msra.mxu0 0.0
    %3679 = vmatpush.msra.mxu0 0.0
    %3680 = vmatpush.msra.mxu0 0.0
    %3681 = vmatpush.msra.mxu0 0.0
    %3682 = vmatpush.msra.mxu0 0.0
    %3683 = vmatpush.msra.mxu0 0.0
    %3684 = vmatpush.msra.mxu0 0.0
    %3685 = vmatpush.msra.mxu0 %v3656
    %3686 = vmatpush.msra.mxu0 %v3654
    %3687 = vmatpush.msra.mxu0 %v3652
    %3688 = vmatpush.msra.mxu0 %v3650
    %3689 = vmatmul.f32.gmra.mxu0 %v3662
    %v3690 = vpop.f32.mrf.mxu0
    %v3691 = vadd.f32 0.0, %v3690
    %3692 = vmatmul.f32.gmra.mxu0 %v3665
    %v3693 = vpop.f32.mrf.mxu0
    %v3694 = vadd.f32 0.0, %v3693
    %3695 = vmatmul.f32.gmra.mxu0 %v3668
    %v3696 = vpop.f32.mrf.mxu0
    %v3697 = vadd.f32 0.0, %v3696
    %3698 = vmatmul.f32.gmra.mxu0 %v3671
    %v3699 = vpop.f32.mrf.mxu0
    %v3700 = vadd.f32 0.0, %v3699
    %3701 = vdwg.mxu0
    %3706 = vrot.lane.b32.xlu0 %v2265, 112
    %v3707 = vpop.permute.xlu0 %3706
    %3708 = vrot.lane.b32.xlu0 %v2266, 112
    %v3709 = vpop.permute.xlu0 %3708
    %3710 = vrot.lane.b32.xlu0 %v2267, 112
    %v3711 = vpop.permute.xlu0 %3710
    %3712 = vrot.lane.b32.xlu0 %v2268, 112
    %v3713 = vpop.permute.xlu0 %3712
    %v3719 = vsel %vm1100, %v3239, 0
    %v3722 = vsel %vm1100, %v3254, 0
    %v3725 = vsel %vm1100, %v3269, 0
    %v3728 = vsel %vm1100, %v3284, 0
    %3730 = vmatpush.msra.mxu0 0.0
    %3731 = vmatpush.msra.mxu0 0.0
    %3732 = vmatpush.msra.mxu0 0.0
    %3733 = vmatpush.msra.mxu0 0.0
    %3734 = vmatpush.msra.mxu0 0.0
    %3735 = vmatpush.msra.mxu0 0.0
    %3736 = vmatpush.msra.mxu0 0.0
    %3737 = vmatpush.msra.mxu0 0.0
    %3738 = vmatpush.msra.mxu0 0.0
    %3739 = vmatpush.msra.mxu0 0.0
    %3740 = vmatpush.msra.mxu0 0.0
    %3741 = vmatpush.msra.mxu0 0.0
    %3742 = vmatpush.msra.mxu0 %v3713
    %3743 = vmatpush.msra.mxu0 %v3711
    %3744 = vmatpush.msra.mxu0 %v3709
    %3745 = vmatpush.msra.mxu0 %v3707
    %3746 = vmatmul.f32.gmra.mxu0 %v3719
    %v3747 = vpop.f32.mrf.mxu0
    %v3748 = vadd.f32 0.0, %v3747
    %3749 = vmatmul.f32.gmra.mxu0 %v3722
    %v3750 = vpop.f32.mrf.mxu0
    %v3751 = vadd.f32 0.0, %v3750
    %3752 = vmatmul.f32.gmra.mxu0 %v3725
    %v3753 = vpop.f32.mrf.mxu0
    %v3754 = vadd.f32 0.0, %v3753
    %3755 = vmatmul.f32.gmra.mxu0 %v3728
    %v3756 = vpop.f32.mrf.mxu0
    %v3757 = vadd.f32 0.0, %v3756
    %3758 = vdwg.mxu0
    %3763 = vrot.lane.b32.xlu0 %v2269, 112
    %v3764 = vpop.permute.xlu0 %3763
    %3765 = vrot.lane.b32.xlu0 %v2270, 112
    %v3766 = vpop.permute.xlu0 %3765
    %3767 = vrot.lane.b32.xlu0 %v2271, 112
    %v3768 = vpop.permute.xlu0 %3767
    %3769 = vrot.lane.b32.xlu0 %v2272, 112
    %v3770 = vpop.permute.xlu0 %3769
    %v3776 = vsel %vm1100, %v3299, 0
    %v3779 = vsel %vm1100, %v3314, 0
    %v3782 = vsel %vm1100, %v3329, 0
    %v3785 = vsel %vm1100, %v3344, 0
    %3787 = vmatpush.msra.mxu0 0.0
    %3788 = vmatpush.msra.mxu0 0.0
    %3789 = vmatpush.msra.mxu0 0.0
    %3790 = vmatpush.msra.mxu0 0.0
    %3791 = vmatpush.msra.mxu0 0.0
    %3792 = vmatpush.msra.mxu0 0.0
    %3793 = vmatpush.msra.mxu0 0.0
    %3794 = vmatpush.msra.mxu0 0.0
    %3795 = vmatpush.msra.mxu0 0.0
    %3796 = vmatpush.msra.mxu0 0.0
    %3797 = vmatpush.msra.mxu0 0.0
    %3798 = vmatpush.msra.mxu0 0.0
    %3799 = vmatpush.msra.mxu0 %v3770
    %3800 = vmatpush.msra.mxu0 %v3768
    %3801 = vmatpush.msra.mxu0 %v3766
    %3802 = vmatpush.msra.mxu0 %v3764
    %3803 = vmatmul.f32.gmra.mxu0 %v3776
    %v3804 = vpop.f32.mrf.mxu0
    %v3805 = vadd.f32 0.0, %v3804
    %3806 = vmatmul.f32.gmra.mxu0 %v3779
    %v3807 = vpop.f32.mrf.mxu0
    %v3808 = vadd.f32 0.0, %v3807
    %3809 = vmatmul.f32.gmra.mxu0 %v3782
    %v3810 = vpop.f32.mrf.mxu0
    %v3811 = vadd.f32 0.0, %v3810
    %3812 = vmatmul.f32.gmra.mxu0 %v3785
    %v3813 = vpop.f32.mrf.mxu0
    %v3814 = vadd.f32 0.0, %v3813
    %3815 = vdwg.mxu0
    %3820 = vrot.lane.b32.xlu0 %v2273, 112
    %v3821 = vpop.permute.xlu0 %3820
    %3822 = vrot.lane.b32.xlu0 %v2274, 112
    %v3823 = vpop.permute.xlu0 %3822
    %3824 = vrot.lane.b32.xlu0 %v2275, 112
    %v3825 = vpop.permute.xlu0 %3824
    %3826 = vrot.lane.b32.xlu0 %v2276, 112
    %v3827 = vpop.permute.xlu0 %3826
    %v3833 = vsel %vm1100, %v3359, 0
    %v3836 = vsel %vm1100, %v3374, 0
    %v3839 = vsel %vm1100, %v3389, 0
    %v3842 = vsel %vm1100, %v3404, 0
    %3844 = vmatpush.msra.mxu0 0.0
    %3845 = vmatpush.msra.mxu0 0.0
    %3846 = vmatpush.msra.mxu0 0.0
    %3847 = vmatpush.msra.mxu0 0.0
    %3848 = vmatpush.msra.mxu0 0.0
    %3849 = vmatpush.msra.mxu0 0.0
    %3850 = vmatpush.msra.mxu0 0.0
    %3851 = vmatpush.msra.mxu0 0.0
    %3852 = vmatpush.msra.mxu0 0.0
    %3853 = vmatpush.msra.mxu0 0.0
    %3854 = vmatpush.msra.mxu0 0.0
    %3855 = vmatpush.msra.mxu0 0.0
    %3856 = vmatpush.msra.mxu0 %v3827
    %3857 = vmatpush.msra.mxu0 %v3825
    %3858 = vmatpush.msra.mxu0 %v3823
    %3859 = vmatpush.msra.mxu0 %v3821
    %3860 = vmatmul.f32.gmra.mxu0 %v3833
    %v3861 = vpop.f32.mrf.mxu0
    %v3862 = vadd.f32 0.0, %v3861
    %3863 = vmatmul.f32.gmra.mxu0 %v3836
    %v3864 = vpop.f32.mrf.mxu0
    %v3865 = vadd.f32 0.0, %v3864
    %3866 = vmatmul.f32.gmra.mxu0 %v3839
    %v3867 = vpop.f32.mrf.mxu0
    %v3868 = vadd.f32 0.0, %v3867
    %3869 = vmatmul.f32.gmra.mxu0 %v3842
    %v3870 = vpop.f32.mrf.mxu0
    %v3871 = vadd.f32 0.0, %v3870
    %3872 = vdwg.mxu0
    %3877 = vrot.lane.b32.xlu0 %v2277, 112
    %v3878 = vpop.permute.xlu0 %3877
    %3879 = vrot.lane.b32.xlu0 %v2278, 112
    %v3880 = vpop.permute.xlu0 %3879
    %3881 = vrot.lane.b32.xlu0 %v2279, 112
    %v3882 = vpop.permute.xlu0 %3881
    %3883 = vrot.lane.b32.xlu0 %v2280, 112
    %v3884 = vpop.permute.xlu0 %3883
    %v3890 = vsel %vm1100, %v3419, 0
    %v3893 = vsel %vm1100, %v3434, 0
    %v3896 = vsel %vm1100, %v3449, 0
    %v3899 = vsel %vm1100, %v3464, 0
    %3901 = vmatpush.msra.mxu0 0.0
    %3902 = vmatpush.msra.mxu0 0.0
    %3903 = vmatpush.msra.mxu0 0.0
    %3904 = vmatpush.msra.mxu0 0.0
    %3905 = vmatpush.msra.mxu0 0.0
    %3906 = vmatpush.msra.mxu0 0.0
    %3907 = vmatpush.msra.mxu0 0.0
    %3908 = vmatpush.msra.mxu0 0.0
    %3909 = vmatpush.msra.mxu0 0.0
    %3910 = vmatpush.msra.mxu0 0.0
    %3911 = vmatpush.msra.mxu0 0.0
    %3912 = vmatpush.msra.mxu0 0.0
    %3913 = vmatpush.msra.mxu0 %v3884
    %3914 = vmatpush.msra.mxu0 %v3882
    %3915 = vmatpush.msra.mxu0 %v3880
    %3916 = vmatpush.msra.mxu0 %v3878
    %3917 = vmatmul.f32.gmra.mxu0 %v3890
    %v3918 = vpop.f32.mrf.mxu0
    %v3919 = vadd.f32 0.0, %v3918
    %3920 = vmatmul.f32.gmra.mxu0 %v3893
    %v3921 = vpop.f32.mrf.mxu0
    %v3922 = vadd.f32 0.0, %v3921
    %3923 = vmatmul.f32.gmra.mxu0 %v3896
    %v3924 = vpop.f32.mrf.mxu0
    %v3925 = vadd.f32 0.0, %v3924
    %3926 = vmatmul.f32.gmra.mxu0 %v3899
    %v3927 = vpop.f32.mrf.mxu0
    %v3928 = vadd.f32 0.0, %v3927
    %3929 = vdwg.mxu0
    %3934 = vrot.lane.b32.xlu0 %v2281, 112
    %v3935 = vpop.permute.xlu0 %3934
    %3936 = vrot.lane.b32.xlu0 %v2282, 112
    %v3937 = vpop.permute.xlu0 %3936
    %3938 = vrot.lane.b32.xlu0 %v2283, 112
    %v3939 = vpop.permute.xlu0 %3938
    %3940 = vrot.lane.b32.xlu0 %v2284, 112
    %v3941 = vpop.permute.xlu0 %3940
    %v3947 = vsel %vm1100, %v3479, 0
    %v3950 = vsel %vm1100, %v3494, 0
    %v3953 = vsel %vm1100, %v3509, 0
    %v3956 = vsel %vm1100, %v3524, 0
    %3958 = vmatpush.msra.mxu0 0.0
    %3959 = vmatpush.msra.mxu0 0.0
    %3960 = vmatpush.msra.mxu0 0.0
    %3961 = vmatpush.msra.mxu0 0.0
    %3962 = vmatpush.msra.mxu0 0.0
    %3963 = vmatpush.msra.mxu0 0.0
    %3964 = vmatpush.msra.mxu0 0.0
    %3965 = vmatpush.msra.mxu0 0.0
    %3966 = vmatpush.msra.mxu0 0.0
    %3967 = vmatpush.msra.mxu0 0.0
    %3968 = vmatpush.msra.mxu0 0.0
    %3969 = vmatpush.msra.mxu0 0.0
    %3970 = vmatpush.msra.mxu0 %v3941
    %3971 = vmatpush.msra.mxu0 %v3939
    %3972 = vmatpush.msra.mxu0 %v3937
    %3973 = vmatpush.msra.mxu0 %v3935
    %3974 = vmatmul.f32.gmra.mxu0 %v3947
    %v3975 = vpop.f32.mrf.mxu0
    %v3976 = vadd.f32 0.0, %v3975
    %3977 = vmatmul.f32.gmra.mxu0 %v3950
    %v3978 = vpop.f32.mrf.mxu0
    %v3979 = vadd.f32 0.0, %v3978
    %3980 = vmatmul.f32.gmra.mxu0 %v3953
    %v3981 = vpop.f32.mrf.mxu0
    %v3982 = vadd.f32 0.0, %v3981
    %3983 = vmatmul.f32.gmra.mxu0 %v3956
    %v3984 = vpop.f32.mrf.mxu0
    %v3985 = vadd.f32 0.0, %v3984
    %3986 = vdwg.mxu0
    %3991 = vrot.lane.b32.xlu0 %v2285, 112
    %v3992 = vpop.permute.xlu0 %3991
    %3993 = vrot.lane.b32.xlu0 %v2286, 112
    %v3994 = vpop.permute.xlu0 %3993
    %3995 = vrot.lane.b32.xlu0 %v2287, 112
    %v3996 = vpop.permute.xlu0 %3995
    %3997 = vrot.lane.b32.xlu0 %v2288, 112
    %v3998 = vpop.permute.xlu0 %3997
    %v4004 = vsel %vm1100, %v3539, 0
    %v4007 = vsel %vm1100, %v3554, 0
    %v4010 = vsel %vm1100, %v3569, 0
    %v4013 = vsel %vm1100, %v3584, 0
    %4015 = vmatpush.msra.mxu0 0.0
    %4016 = vmatpush.msra.mxu0 0.0
    %4017 = vmatpush.msra.mxu0 0.0
    %4018 = vmatpush.msra.mxu0 0.0
    %4019 = vmatpush.msra.mxu0 0.0
    %4020 = vmatpush.msra.mxu0 0.0
    %4021 = vmatpush.msra.mxu0 0.0
    %4022 = vmatpush.msra.mxu0 0.0
    %4023 = vmatpush.msra.mxu0 0.0
    %4024 = vmatpush.msra.mxu0 0.0
    %4025 = vmatpush.msra.mxu0 0.0
    %4026 = vmatpush.msra.mxu0 0.0
    %4027 = vmatpush.msra.mxu0 %v3998
    %4028 = vmatpush.msra.mxu0 %v3996
    %4029 = vmatpush.msra.mxu0 %v3994
    %4030 = vmatpush.msra.mxu0 %v3992
    %4031 = vmatmul.f32.gmra.mxu0 %v4004
    %v4032 = vpop.f32.mrf.mxu0
    %v4033 = vadd.f32 0.0, %v4032
    %4034 = vmatmul.f32.gmra.mxu0 %v4007
    %v4035 = vpop.f32.mrf.mxu0
    %v4036 = vadd.f32 0.0, %v4035
    %4037 = vmatmul.f32.gmra.mxu0 %v4010
    %v4038 = vpop.f32.mrf.mxu0
    %v4039 = vadd.f32 0.0, %v4038
    %4040 = vmatmul.f32.gmra.mxu0 %v4013
    %v4041 = vpop.f32.mrf.mxu0
    %v4042 = vadd.f32 0.0, %v4041
    %4043 = vdwg.mxu0
    %4048 = vrot.lane.b32.xlu0 %v2289, 112
    %v4049 = vpop.permute.xlu0 %4048
    %4050 = vrot.lane.b32.xlu0 %v2290, 112
    %v4051 = vpop.permute.xlu0 %4050
    %4052 = vrot.lane.b32.xlu0 %v2291, 112
    %v4053 = vpop.permute.xlu0 %4052
    %4054 = vrot.lane.b32.xlu0 %v2292, 112
    %v4055 = vpop.permute.xlu0 %4054
    %v4061 = vsel %vm1100, %v3599, 0
    %v4064 = vsel %vm1100, %v3614, 0
    %v4067 = vsel %vm1100, %v3629, 0
    %v4070 = vsel %vm1100, %v3644, 0
    %4072 = vmatpush.msra.mxu0 0.0
    %4073 = vmatpush.msra.mxu0 0.0
    %4074 = vmatpush.msra.mxu0 0.0
    %4075 = vmatpush.msra.mxu0 0.0
    %4076 = vmatpush.msra.mxu0 0.0
    %4077 = vmatpush.msra.mxu0 0.0
    %4078 = vmatpush.msra.mxu0 0.0
    %4079 = vmatpush.msra.mxu0 0.0
    %4080 = vmatpush.msra.mxu0 0.0
    %4081 = vmatpush.msra.mxu0 0.0
    %4082 = vmatpush.msra.mxu0 0.0
    %4083 = vmatpush.msra.mxu0 0.0
    %4084 = vmatpush.msra.mxu0 %v4055
    %4085 = vmatpush.msra.mxu0 %v4053
    %4086 = vmatpush.msra.mxu0 %v4051
    %4087 = vmatpush.msra.mxu0 %v4049
    %4088 = vmatmul.f32.gmra.mxu0 %v4061
    %v4089 = vpop.f32.mrf.mxu0
    %v4090 = vadd.f32 0.0, %v4089
    %4091 = vmatmul.f32.gmra.mxu0 %v4064
    %v4092 = vpop.f32.mrf.mxu0
    %v4093 = vadd.f32 0.0, %v4092
    %4094 = vmatmul.f32.gmra.mxu0 %v4067
    %v4095 = vpop.f32.mrf.mxu0
    %v4096 = vadd.f32 0.0, %v4095
    %4097 = vmatmul.f32.gmra.mxu0 %v4070
    %v4098 = vpop.f32.mrf.mxu0
    %v4099 = vadd.f32 0.0, %v4098
    %4100 = vdwg.mxu0
    %4133 = vrot.lane.b32.xlu0 %v3691, 16
    %v4134 = vpop.permute.xlu0 %4133
    %4135 = vrot.lane.b32.xlu0 %v3694, 16
    %v4136 = vpop.permute.xlu0 %4135
    %4137 = vrot.lane.b32.xlu0 %v3697, 16
    %v4138 = vpop.permute.xlu0 %4137
    %4139 = vrot.lane.b32.xlu0 %v3700, 16
    %v4140 = vpop.permute.xlu0 %4139
    %4141 = vrot.lane.b32.xlu0 %v3748, 16
    %v4142 = vpop.permute.xlu0 %4141
    %4143 = vrot.lane.b32.xlu0 %v3751, 16
    %v4144 = vpop.permute.xlu0 %4143
    %4145 = vrot.lane.b32.xlu0 %v3754, 16
    %v4146 = vpop.permute.xlu0 %4145
    %4147 = vrot.lane.b32.xlu0 %v3757, 16
    %v4148 = vpop.permute.xlu0 %4147
    %4149 = vrot.lane.b32.xlu0 %v3805, 16
    %v4150 = vpop.permute.xlu0 %4149
    %4151 = vrot.lane.b32.xlu0 %v3808, 16
    %v4152 = vpop.permute.xlu0 %4151
    %4153 = vrot.lane.b32.xlu0 %v3811, 16
    %v4154 = vpop.permute.xlu0 %4153
    %4155 = vrot.lane.b32.xlu0 %v3814, 16
    %v4156 = vpop.permute.xlu0 %4155
    %4157 = vrot.lane.b32.xlu0 %v3862, 16
    %v4158 = vpop.permute.xlu0 %4157
    %4159 = vrot.lane.b32.xlu0 %v3865, 16
    %v4160 = vpop.permute.xlu0 %4159
    %4161 = vrot.lane.b32.xlu0 %v3868, 16
    %v4162 = vpop.permute.xlu0 %4161
    %4163 = vrot.lane.b32.xlu0 %v3871, 16
    %v4164 = vpop.permute.xlu0 %4163
    %4165 = vrot.lane.b32.xlu0 %v3919, 16
    %v4166 = vpop.permute.xlu0 %4165
    %4167 = vrot.lane.b32.xlu0 %v3922, 16
    %v4168 = vpop.permute.xlu0 %4167
    %4169 = vrot.lane.b32.xlu0 %v3925, 16
    %v4170 = vpop.permute.xlu0 %4169
    %4171 = vrot.lane.b32.xlu0 %v3928, 16
    %v4172 = vpop.permute.xlu0 %4171
    %4173 = vrot.lane.b32.xlu0 %v3976, 16
    %v4174 = vpop.permute.xlu0 %4173
    %4175 = vrot.lane.b32.xlu0 %v3979, 16
    %v4176 = vpop.permute.xlu0 %4175
    %4177 = vrot.lane.b32.xlu0 %v3982, 16
    %v4178 = vpop.permute.xlu0 %4177
    %4179 = vrot.lane.b32.xlu0 %v3985, 16
    %v4180 = vpop.permute.xlu0 %4179
    %4181 = vrot.lane.b32.xlu0 %v4033, 16
    %v4182 = vpop.permute.xlu0 %4181
    %4183 = vrot.lane.b32.xlu0 %v4036, 16
    %v4184 = vpop.permute.xlu0 %4183
    %4185 = vrot.lane.b32.xlu0 %v4039, 16
    %v4186 = vpop.permute.xlu0 %4185
    %4187 = vrot.lane.b32.xlu0 %v4042, 16
    %v4188 = vpop.permute.xlu0 %4187
    %4189 = vrot.lane.b32.xlu0 %v4090, 16
    %v4190 = vpop.permute.xlu0 %4189
    %4191 = vrot.lane.b32.xlu0 %v4093, 16
    %v4192 = vpop.permute.xlu0 %4191
    %4193 = vrot.lane.b32.xlu0 %v4096, 16
    %v4194 = vpop.permute.xlu0 %4193
    %4195 = vrot.lane.b32.xlu0 %v4099, 16
    %v4196 = vpop.permute.xlu0 %4195
    %vm4229 = vcmask 261248
    %4230 = vst.msk [vmem:[#allocation3] sm:$0xff] %vm4229, %v4134
    %4231 = vst.msk [vmem:[#allocation3 + $0x8] sm:$0xff] %vm4229, %v4136
    %4232 = vst.msk [vmem:[#allocation3 + $0x10] sm:$0xff] %vm4229, %v4138
    %4233 = vst.msk [vmem:[#allocation3 + $0x18] sm:$0xff] %vm4229, %v4140
    %4234 = vst.msk [vmem:[#allocation3 + $0x20] sm:$0xff] %vm4229, %v4142
    %4235 = vst.msk [vmem:[#allocation3 + $0x28] sm:$0xff] %vm4229, %v4144
    %4236 = vst.msk [vmem:[#allocation3 + $0x30] sm:$0xff] %vm4229, %v4146
    %4237 = vst.msk [vmem:[#allocation3 + $0x38] sm:$0xff] %vm4229, %v4148
    %4238 = vst.msk [vmem:[#allocation3 + $0x40] sm:$0xff] %vm4229, %v4150
    %4239 = vst.msk [vmem:[#allocation3 + $0x48] sm:$0xff] %vm4229, %v4152
    %4240 = vst.msk [vmem:[#allocation3 + $0x50] sm:$0xff] %vm4229, %v4154
    %4241 = vst.msk [vmem:[#allocation3 + $0x58] sm:$0xff] %vm4229, %v4156
    %4242 = vst.msk [vmem:[#allocation3 + $0x60] sm:$0xff] %vm4229, %v4158
    %4243 = vst.msk [vmem:[#allocation3 + $0x68] sm:$0xff] %vm4229, %v4160
    %4244 = vst.msk [vmem:[#allocation3 + $0x70] sm:$0xff] %vm4229, %v4162
    %4245 = vst.msk [vmem:[#allocation3 + $0x78] sm:$0xff] %vm4229, %v4164
    %4246 = vst.msk [vmem:[#allocation3 + $0x80] sm:$0xff] %vm4229, %v4166
    %4247 = vst.msk [vmem:[#allocation3 + $0x88] sm:$0xff] %vm4229, %v4168
    %4248 = vst.msk [vmem:[#allocation3 + $0x90] sm:$0xff] %vm4229, %v4170
    %4249 = vst.msk [vmem:[#allocation3 + $0x98] sm:$0xff] %vm4229, %v4172
    %4250 = vst.msk [vmem:[#allocation3 + $0xa0] sm:$0xff] %vm4229, %v4174
    %4251 = vst.msk [vmem:[#allocation3 + $0xa8] sm:$0xff] %vm4229, %v4176
    %4252 = vst.msk [vmem:[#allocation3 + $0xb0] sm:$0xff] %vm4229, %v4178
    %4253 = vst.msk [vmem:[#allocation3 + $0xb8] sm:$0xff] %vm4229, %v4180
    %4254 = vst.msk [vmem:[#allocation3 + $0xc0] sm:$0xff] %vm4229, %v4182
    %4255 = vst.msk [vmem:[#allocation3 + $0xc8] sm:$0xff] %vm4229, %v4184
    %4256 = vst.msk [vmem:[#allocation3 + $0xd0] sm:$0xff] %vm4229, %v4186
    %4257 = vst.msk [vmem:[#allocation3 + $0xd8] sm:$0xff] %vm4229, %v4188
    %4258 = vst.msk [vmem:[#allocation3 + $0xe0] sm:$0xff] %vm4229, %v4190
    %4259 = vst.msk [vmem:[#allocation3 + $0xe8] sm:$0xff] %vm4229, %v4192
    %4260 = vst.msk [vmem:[#allocation3 + $0xf0] sm:$0xff] %vm4229, %v4194
    %4261 = vst.msk [vmem:[#allocation3 + $0xf8] sm:$0xff] %vm4229, %v4196
    %v4262 = vld [vmem:[#allocation2] sm:$0xff]
    %v4263 = vld [vmem:[#allocation2 + $0x10] sm:$0xff]
    %v4264 = vld [vmem:[#allocation2 + $0x20] sm:$0xff]
    %v4265 = vld [vmem:[#allocation2 + $0x30] sm:$0xff]
    %v4266 = vld [vmem:[#allocation2 + $0x40] sm:$0xff]
    %v4267 = vld [vmem:[#allocation2 + $0x50] sm:$0xff]
    %v4268 = vld [vmem:[#allocation2 + $0x60] sm:$0xff]
    %v4269 = vld [vmem:[#allocation2 + $0x70] sm:$0xff]
    %v4270 = vld [vmem:[#allocation2 + $0x80] sm:$0xff]
    %v4271 = vld [vmem:[#allocation2 + $0x90] sm:$0xff]
    %v4272 = vld [vmem:[#allocation2 + $0xa0] sm:$0xff]
    %v4273 = vld [vmem:[#allocation2 + $0xb0] sm:$0xff]
    %v4274 = vld [vmem:[#allocation2 + $0xc0] sm:$0xff]
    %v4275 = vld [vmem:[#allocation2 + $0xd0] sm:$0xff]
    %v4276 = vld [vmem:[#allocation2 + $0xe0] sm:$0xff]
    %v4277 = vld [vmem:[#allocation2 + $0xf0] sm:$0xff]
    %v4278 = vld [vmem:[#allocation2 + $0x100] sm:$0xff]
    %v4279 = vld [vmem:[#allocation2 + $0x110] sm:$0xff]
    %v4280 = vld [vmem:[#allocation2 + $0x120] sm:$0xff]
    %v4281 = vld [vmem:[#allocation2 + $0x130] sm:$0xff]
    %v4282 = vld [vmem:[#allocation2 + $0x140] sm:$0xff]
    %v4283 = vld [vmem:[#allocation2 + $0x150] sm:$0xff]
    %v4284 = vld [vmem:[#allocation2 + $0x160] sm:$0xff]
    %v4285 = vld [vmem:[#allocation2 + $0x170] sm:$0xff]
    %v4286 = vld [vmem:[#allocation2 + $0x180] sm:$0xff]
    %v4287 = vld [vmem:[#allocation2 + $0x190] sm:$0xff]
    %v4288 = vld [vmem:[#allocation2 + $0x1a0] sm:$0xff]
    %v4289 = vld [vmem:[#allocation2 + $0x1b0] sm:$0xff]
    %v4290 = vld [vmem:[#allocation2 + $0x1c0] sm:$0xff]
    %v4291 = vld [vmem:[#allocation2 + $0x1d0] sm:$0xff]
    %v4292 = vld [vmem:[#allocation2 + $0x1e0] sm:$0xff]
    %v4293 = vld [vmem:[#allocation2 + $0x1f0] sm:$0xff]
    %v4294 = vld [vmem:[#allocation2 + $0x8] sm:$0xff]
    %v4295 = vld [vmem:[#allocation2 + $0x18] sm:$0xff]
    %v4296 = vld [vmem:[#allocation2 + $0x28] sm:$0xff]
    %v4297 = vld [vmem:[#allocation2 + $0x38] sm:$0xff]
    %v4298 = vld [vmem:[#allocation2 + $0x48] sm:$0xff]
    %v4299 = vld [vmem:[#allocation2 + $0x58] sm:$0xff]
    %v4300 = vld [vmem:[#allocation2 + $0x68] sm:$0xff]
    %v4301 = vld [vmem:[#allocation2 + $0x78] sm:$0xff]
    %v4302 = vld [vmem:[#allocation2 + $0x88] sm:$0xff]
    %v4303 = vld [vmem:[#allocation2 + $0x98] sm:$0xff]
    %v4304 = vld [vmem:[#allocation2 + $0xa8] sm:$0xff]
    %v4305 = vld [vmem:[#allocation2 + $0xb8] sm:$0xff]
    %v4306 = vld [vmem:[#allocation2 + $0xc8] sm:$0xff]
    %v4307 = vld [vmem:[#allocation2 + $0xd8] sm:$0xff]
    %v4308 = vld [vmem:[#allocation2 + $0xe8] sm:$0xff]
    %v4309 = vld [vmem:[#allocation2 + $0xf8] sm:$0xff]
    %v4310 = vld [vmem:[#allocation2 + $0x108] sm:$0xff]
    %v4311 = vld [vmem:[#allocation2 + $0x118] sm:$0xff]
    %v4312 = vld [vmem:[#allocation2 + $0x128] sm:$0xff]
    %v4313 = vld [vmem:[#allocation2 + $0x138] sm:$0xff]
    %v4314 = vld [vmem:[#allocation2 + $0x148] sm:$0xff]
    %v4315 = vld [vmem:[#allocation2 + $0x158] sm:$0xff]
    %v4316 = vld [vmem:[#allocation2 + $0x168] sm:$0xff]
    %v4317 = vld [vmem:[#allocation2 + $0x178] sm:$0xff]
    %v4318 = vld [vmem:[#allocation2 + $0x188] sm:$0xff]
    %v4319 = vld [vmem:[#allocation2 + $0x198] sm:$0xff]
    %v4320 = vld [vmem:[#allocation2 + $0x1a8] sm:$0xff]
    %v4321 = vld [vmem:[#allocation2 + $0x1b8] sm:$0xff]
    %v4322 = vld [vmem:[#allocation2 + $0x1c8] sm:$0xff]
    %v4323 = vld [vmem:[#allocation2 + $0x1d8] sm:$0xff]
    %v4324 = vld [vmem:[#allocation2 + $0x1e8] sm:$0xff]
    %v4325 = vld [vmem:[#allocation2 + $0x1f8] sm:$0xff]
    %4330 = vrot.lane.b32.xlu0 %v4262, 96
    %v4331 = vpop.permute.xlu0 %4330
    %4332 = vrot.lane.b32.xlu0 %v4263, 96
    %v4333 = vpop.permute.xlu0 %4332
    %4334 = vrot.lane.b32.xlu0 %v4264, 96
    %v4335 = vpop.permute.xlu0 %4334
    %4336 = vrot.lane.b32.xlu0 %v4265, 96
    %v4337 = vpop.permute.xlu0 %4336
    %4338 = vrot.lane.b32.xlu0 %v4262, 32
    %v4339 = vpop.permute.xlu0 %4338
    %4340 = vrot.lane.b32.xlu0 %v4263, 32
    %v4341 = vpop.permute.xlu0 %4340
    %4342 = vrot.lane.b32.xlu0 %v4264, 32
    %v4343 = vpop.permute.xlu0 %4342
    %4344 = vrot.lane.b32.xlu0 %v4265, 32
    %v4345 = vpop.permute.xlu0 %4344
    %v4346 = vsel %vm591, %v4331, 0
    %v4348 = vsel %vm591, %v4333, 0
    %v4350 = vsel %vm591, %v4335, 0
    %v4352 = vsel %vm591, %v4337, 0
    %v4354 = vsel %vm591, %v4339, 0
    %v4356 = vsel %vm591, %v4341, 0
    %v4358 = vsel %vm591, %v4343, 0
    %v4360 = vsel %vm591, %v4345, 0
    %4362 = vmatpush.xpose.msra.mxu0 0.0
    %4363 = vmatpush.xpose.msra.mxu0 0.0
    %4364 = vmatpush.xpose.msra.mxu0 0.0
    %4365 = vmatpush.xpose.msra.mxu0 0.0
    %4366 = vmatpush.xpose.msra.mxu0 0.0
    %4367 = vmatpush.xpose.msra.mxu0 0.0
    %4368 = vmatpush.xpose.msra.mxu0 0.0
    %4369 = vmatpush.xpose.msra.mxu0 0.0
    %4370 = vmatpush.xpose.msra.mxu0 0.0
    %4371 = vmatpush.xpose.msra.mxu0 0.0
    %4372 = vmatpush.xpose.msra.mxu0 0.0
    %4373 = vmatpush.xpose.msra.mxu0 0.0
    %4374 = vmatpush.xpose.msra.mxu0 %v4360
    %4375 = vmatpush.xpose.msra.mxu0 %v4358
    %4376 = vmatpush.xpose.msra.mxu0 %v4356
    %4377 = vmatpush.xpose.msra.mxu0 %v4354
    %4378 = vmatmul.f32.gmra.mxu0 %v4346
    %v4379 = vpop.f32.mrf.mxu0
    %v4380 = vadd.f32 0.0, %v4379
    %4381 = vmatmul.f32.gmra.mxu0 %v4348
    %v4382 = vpop.f32.mrf.mxu0
    %v4383 = vadd.f32 0.0, %v4382
    %4384 = vmatmul.f32.gmra.mxu0 %v4350
    %v4385 = vpop.f32.mrf.mxu0
    %v4386 = vadd.f32 0.0, %v4385
    %4387 = vmatmul.f32.gmra.mxu0 %v4352
    %v4388 = vpop.f32.mrf.mxu0
    %v4389 = vadd.f32 0.0, %v4388
    %4390 = vdwg.mxu0
    %4395 = vrot.lane.b32.xlu0 %v4266, 96
    %v4396 = vpop.permute.xlu0 %4395
    %4397 = vrot.lane.b32.xlu0 %v4267, 96
    %v4398 = vpop.permute.xlu0 %4397
    %4399 = vrot.lane.b32.xlu0 %v4268, 96
    %v4400 = vpop.permute.xlu0 %4399
    %4401 = vrot.lane.b32.xlu0 %v4269, 96
    %v4402 = vpop.permute.xlu0 %4401
    %4403 = vrot.lane.b32.xlu0 %v4266, 32
    %v4404 = vpop.permute.xlu0 %4403
    %4405 = vrot.lane.b32.xlu0 %v4267, 32
    %v4406 = vpop.permute.xlu0 %4405
    %4407 = vrot.lane.b32.xlu0 %v4268, 32
    %v4408 = vpop.permute.xlu0 %4407
    %4409 = vrot.lane.b32.xlu0 %v4269, 32
    %v4410 = vpop.permute.xlu0 %4409
    %v4411 = vsel %vm591, %v4396, 0
    %v4413 = vsel %vm591, %v4398, 0
    %v4415 = vsel %vm591, %v4400, 0
    %v4417 = vsel %vm591, %v4402, 0
    %v4419 = vsel %vm591, %v4404, 0
    %v4421 = vsel %vm591, %v4406, 0
    %v4423 = vsel %vm591, %v4408, 0
    %v4425 = vsel %vm591, %v4410, 0
    %4427 = vmatpush.xpose.msra.mxu0 0.0
    %4428 = vmatpush.xpose.msra.mxu0 0.0
    %4429 = vmatpush.xpose.msra.mxu0 0.0
    %4430 = vmatpush.xpose.msra.mxu0 0.0
    %4431 = vmatpush.xpose.msra.mxu0 0.0
    %4432 = vmatpush.xpose.msra.mxu0 0.0
    %4433 = vmatpush.xpose.msra.mxu0 0.0
    %4434 = vmatpush.xpose.msra.mxu0 0.0
    %4435 = vmatpush.xpose.msra.mxu0 0.0
    %4436 = vmatpush.xpose.msra.mxu0 0.0
    %4437 = vmatpush.xpose.msra.mxu0 0.0
    %4438 = vmatpush.xpose.msra.mxu0 0.0
    %4439 = vmatpush.xpose.msra.mxu0 %v4425
    %4440 = vmatpush.xpose.msra.mxu0 %v4423
    %4441 = vmatpush.xpose.msra.mxu0 %v4421
    %4442 = vmatpush.xpose.msra.mxu0 %v4419
    %4443 = vmatmul.f32.gmra.mxu0 %v4411
    %v4444 = vpop.f32.mrf.mxu0
    %v4445 = vadd.f32 0.0, %v4444
    %4446 = vmatmul.f32.gmra.mxu0 %v4413
    %v4447 = vpop.f32.mrf.mxu0
    %v4448 = vadd.f32 0.0, %v4447
    %4449 = vmatmul.f32.gmra.mxu0 %v4415
    %v4450 = vpop.f32.mrf.mxu0
    %v4451 = vadd.f32 0.0, %v4450
    %4452 = vmatmul.f32.gmra.mxu0 %v4417
    %v4453 = vpop.f32.mrf.mxu0
    %v4454 = vadd.f32 0.0, %v4453
    %4455 = vdwg.mxu0
    %4460 = vrot.lane.b32.xlu0 %v4270, 96
    %v4461 = vpop.permute.xlu0 %4460
    %4462 = vrot.lane.b32.xlu0 %v4271, 96
    %v4463 = vpop.permute.xlu0 %4462
    %4464 = vrot.lane.b32.xlu0 %v4272, 96
    %v4465 = vpop.permute.xlu0 %4464
    %4466 = vrot.lane.b32.xlu0 %v4273, 96
    %v4467 = vpop.permute.xlu0 %4466
    %4468 = vrot.lane.b32.xlu0 %v4270, 32
    %v4469 = vpop.permute.xlu0 %4468
    %4470 = vrot.lane.b32.xlu0 %v4271, 32
    %v4471 = vpop.permute.xlu0 %4470
    %4472 = vrot.lane.b32.xlu0 %v4272, 32
    %v4473 = vpop.permute.xlu0 %4472
    %4474 = vrot.lane.b32.xlu0 %v4273, 32
    %v4475 = vpop.permute.xlu0 %4474
    %v4476 = vsel %vm591, %v4461, 0
    %v4478 = vsel %vm591, %v4463, 0
    %v4480 = vsel %vm591, %v4465, 0
    %v4482 = vsel %vm591, %v4467, 0
    %v4484 = vsel %vm591, %v4469, 0
    %v4486 = vsel %vm591, %v4471, 0
    %v4488 = vsel %vm591, %v4473, 0
    %v4490 = vsel %vm591, %v4475, 0
    %4492 = vmatpush.xpose.msra.mxu0 0.0
    %4493 = vmatpush.xpose.msra.mxu0 0.0
    %4494 = vmatpush.xpose.msra.mxu0 0.0
    %4495 = vmatpush.xpose.msra.mxu0 0.0
    %4496 = vmatpush.xpose.msra.mxu0 0.0
    %4497 = vmatpush.xpose.msra.mxu0 0.0
    %4498 = vmatpush.xpose.msra.mxu0 0.0
    %4499 = vmatpush.xpose.msra.mxu0 0.0
    %4500 = vmatpush.xpose.msra.mxu0 0.0
    %4501 = vmatpush.xpose.msra.mxu0 0.0
    %4502 = vmatpush.xpose.msra.mxu0 0.0
    %4503 = vmatpush.xpose.msra.mxu0 0.0
    %4504 = vmatpush.xpose.msra.mxu0 %v4490
    %4505 = vmatpush.xpose.msra.mxu0 %v4488
    %4506 = vmatpush.xpose.msra.mxu0 %v4486
    %4507 = vmatpush.xpose.msra.mxu0 %v4484
    %4508 = vmatmul.f32.gmra.mxu0 %v4476
    %v4509 = vpop.f32.mrf.mxu0
    %v4510 = vadd.f32 0.0, %v4509
    %4511 = vmatmul.f32.gmra.mxu0 %v4478
    %v4512 = vpop.f32.mrf.mxu0
    %v4513 = vadd.f32 0.0, %v4512
    %4514 = vmatmul.f32.gmra.mxu0 %v4480
    %v4515 = vpop.f32.mrf.mxu0
    %v4516 = vadd.f32 0.0, %v4515
    %4517 = vmatmul.f32.gmra.mxu0 %v4482
    %v4518 = vpop.f32.mrf.mxu0
    %v4519 = vadd.f32 0.0, %v4518
    %4520 = vdwg.mxu0
    %4525 = vrot.lane.b32.xlu0 %v4274, 96
    %v4526 = vpop.permute.xlu0 %4525
    %4527 = vrot.lane.b32.xlu0 %v4275, 96
    %v4528 = vpop.permute.xlu0 %4527
    %4529 = vrot.lane.b32.xlu0 %v4276, 96
    %v4530 = vpop.permute.xlu0 %4529
    %4531 = vrot.lane.b32.xlu0 %v4277, 96
    %v4532 = vpop.permute.xlu0 %4531
    %4533 = vrot.lane.b32.xlu0 %v4274, 32
    %v4534 = vpop.permute.xlu0 %4533
    %4535 = vrot.lane.b32.xlu0 %v4275, 32
    %v4536 = vpop.permute.xlu0 %4535
    %4537 = vrot.lane.b32.xlu0 %v4276, 32
    %v4538 = vpop.permute.xlu0 %4537
    %4539 = vrot.lane.b32.xlu0 %v4277, 32
    %v4540 = vpop.permute.xlu0 %4539
    %v4541 = vsel %vm591, %v4526, 0
    %v4543 = vsel %vm591, %v4528, 0
    %v4545 = vsel %vm591, %v4530, 0
    %v4547 = vsel %vm591, %v4532, 0
    %v4549 = vsel %vm591, %v4534, 0
    %v4551 = vsel %vm591, %v4536, 0
    %v4553 = vsel %vm591, %v4538, 0
    %v4555 = vsel %vm591, %v4540, 0
    %4557 = vmatpush.xpose.msra.mxu0 0.0
    %4558 = vmatpush.xpose.msra.mxu0 0.0
    %4559 = vmatpush.xpose.msra.mxu0 0.0
    %4560 = vmatpush.xpose.msra.mxu0 0.0
    %4561 = vmatpush.xpose.msra.mxu0 0.0
    %4562 = vmatpush.xpose.msra.mxu0 0.0
    %4563 = vmatpush.xpose.msra.mxu0 0.0
    %4564 = vmatpush.xpose.msra.mxu0 0.0
    %4565 = vmatpush.xpose.msra.mxu0 0.0
    %4566 = vmatpush.xpose.msra.mxu0 0.0
    %4567 = vmatpush.xpose.msra.mxu0 0.0
    %4568 = vmatpush.xpose.msra.mxu0 0.0
    %4569 = vmatpush.xpose.msra.mxu0 %v4555
    %4570 = vmatpush.xpose.msra.mxu0 %v4553
    %4571 = vmatpush.xpose.msra.mxu0 %v4551
    %4572 = vmatpush.xpose.msra.mxu0 %v4549
    %4573 = vmatmul.f32.gmra.mxu0 %v4541
    %v4574 = vpop.f32.mrf.mxu0
    %v4575 = vadd.f32 0.0, %v4574
    %4576 = vmatmul.f32.gmra.mxu0 %v4543
    %v4577 = vpop.f32.mrf.mxu0
    %v4578 = vadd.f32 0.0, %v4577
    %4579 = vmatmul.f32.gmra.mxu0 %v4545
    %v4580 = vpop.f32.mrf.mxu0
    %v4581 = vadd.f32 0.0, %v4580
    %4582 = vmatmul.f32.gmra.mxu0 %v4547
    %v4583 = vpop.f32.mrf.mxu0
    %v4584 = vadd.f32 0.0, %v4583
    %4585 = vdwg.mxu0
    %4590 = vrot.lane.b32.xlu0 %v4278, 96
    %v4591 = vpop.permute.xlu0 %4590
    %4592 = vrot.lane.b32.xlu0 %v4279, 96
    %v4593 = vpop.permute.xlu0 %4592
    %4594 = vrot.lane.b32.xlu0 %v4280, 96
    %v4595 = vpop.permute.xlu0 %4594
    %4596 = vrot.lane.b32.xlu0 %v4281, 96
    %v4597 = vpop.permute.xlu0 %4596
    %4598 = vrot.lane.b32.xlu0 %v4278, 32
    %v4599 = vpop.permute.xlu0 %4598
    %4600 = vrot.lane.b32.xlu0 %v4279, 32
    %v4601 = vpop.permute.xlu0 %4600
    %4602 = vrot.lane.b32.xlu0 %v4280, 32
    %v4603 = vpop.permute.xlu0 %4602
    %4604 = vrot.lane.b32.xlu0 %v4281, 32
    %v4605 = vpop.permute.xlu0 %4604
    %v4606 = vsel %vm591, %v4591, 0
    %v4608 = vsel %vm591, %v4593, 0
    %v4610 = vsel %vm591, %v4595, 0
    %v4612 = vsel %vm591, %v4597, 0
    %v4614 = vsel %vm591, %v4599, 0
    %v4616 = vsel %vm591, %v4601, 0
    %v4618 = vsel %vm591, %v4603, 0
    %v4620 = vsel %vm591, %v4605, 0
    %4622 = vmatpush.xpose.msra.mxu0 0.0
    %4623 = vmatpush.xpose.msra.mxu0 0.0
    %4624 = vmatpush.xpose.msra.mxu0 0.0
    %4625 = vmatpush.xpose.msra.mxu0 0.0
    %4626 = vmatpush.xpose.msra.mxu0 0.0
    %4627 = vmatpush.xpose.msra.mxu0 0.0
    %4628 = vmatpush.xpose.msra.mxu0 0.0
    %4629 = vmatpush.xpose.msra.mxu0 0.0
    %4630 = vmatpush.xpose.msra.mxu0 0.0
    %4631 = vmatpush.xpose.msra.mxu0 0.0
    %4632 = vmatpush.xpose.msra.mxu0 0.0
    %4633 = vmatpush.xpose.msra.mxu0 0.0
    %4634 = vmatpush.xpose.msra.mxu0 %v4620
    %4635 = vmatpush.xpose.msra.mxu0 %v4618
    %4636 = vmatpush.xpose.msra.mxu0 %v4616
    %4637 = vmatpush.xpose.msra.mxu0 %v4614
    %4638 = vmatmul.f32.gmra.mxu0 %v4606
    %v4639 = vpop.f32.mrf.mxu0
    %v4640 = vadd.f32 0.0, %v4639
    %4641 = vmatmul.f32.gmra.mxu0 %v4608
    %v4642 = vpop.f32.mrf.mxu0
    %v4643 = vadd.f32 0.0, %v4642
    %4644 = vmatmul.f32.gmra.mxu0 %v4610
    %v4645 = vpop.f32.mrf.mxu0
    %v4646 = vadd.f32 0.0, %v4645
    %4647 = vmatmul.f32.gmra.mxu0 %v4612
    %v4648 = vpop.f32.mrf.mxu0
    %v4649 = vadd.f32 0.0, %v4648
    %4650 = vdwg.mxu0
    %4655 = vrot.lane.b32.xlu0 %v4282, 96
    %v4656 = vpop.permute.xlu0 %4655
    %4657 = vrot.lane.b32.xlu0 %v4283, 96
    %v4658 = vpop.permute.xlu0 %4657
    %4659 = vrot.lane.b32.xlu0 %v4284, 96
    %v4660 = vpop.permute.xlu0 %4659
    %4661 = vrot.lane.b32.xlu0 %v4285, 96
    %v4662 = vpop.permute.xlu0 %4661
    %4663 = vrot.lane.b32.xlu0 %v4282, 32
    %v4664 = vpop.permute.xlu0 %4663
    %4665 = vrot.lane.b32.xlu0 %v4283, 32
    %v4666 = vpop.permute.xlu0 %4665
    %4667 = vrot.lane.b32.xlu0 %v4284, 32
    %v4668 = vpop.permute.xlu0 %4667
    %4669 = vrot.lane.b32.xlu0 %v4285, 32
    %v4670 = vpop.permute.xlu0 %4669
    %v4671 = vsel %vm591, %v4656, 0
    %v4673 = vsel %vm591, %v4658, 0
    %v4675 = vsel %vm591, %v4660, 0
    %v4677 = vsel %vm591, %v4662, 0
    %v4679 = vsel %vm591, %v4664, 0
    %v4681 = vsel %vm591, %v4666, 0
    %v4683 = vsel %vm591, %v4668, 0
    %v4685 = vsel %vm591, %v4670, 0
    %4687 = vmatpush.xpose.msra.mxu0 0.0
    %4688 = vmatpush.xpose.msra.mxu0 0.0
    %4689 = vmatpush.xpose.msra.mxu0 0.0
    %4690 = vmatpush.xpose.msra.mxu0 0.0
    %4691 = vmatpush.xpose.msra.mxu0 0.0
    %4692 = vmatpush.xpose.msra.mxu0 0.0
    %4693 = vmatpush.xpose.msra.mxu0 0.0
    %4694 = vmatpush.xpose.msra.mxu0 0.0
    %4695 = vmatpush.xpose.msra.mxu0 0.0
    %4696 = vmatpush.xpose.msra.mxu0 0.0
    %4697 = vmatpush.xpose.msra.mxu0 0.0
    %4698 = vmatpush.xpose.msra.mxu0 0.0
    %4699 = vmatpush.xpose.msra.mxu0 %v4685
    %4700 = vmatpush.xpose.msra.mxu0 %v4683
    %4701 = vmatpush.xpose.msra.mxu0 %v4681
    %4702 = vmatpush.xpose.msra.mxu0 %v4679
    %4703 = vmatmul.f32.gmra.mxu0 %v4671
    %v4704 = vpop.f32.mrf.mxu0
    %v4705 = vadd.f32 0.0, %v4704
    %4706 = vmatmul.f32.gmra.mxu0 %v4673
    %v4707 = vpop.f32.mrf.mxu0
    %v4708 = vadd.f32 0.0, %v4707
    %4709 = vmatmul.f32.gmra.mxu0 %v4675
    %v4710 = vpop.f32.mrf.mxu0
    %v4711 = vadd.f32 0.0, %v4710
    %4712 = vmatmul.f32.gmra.mxu0 %v4677
    %v4713 = vpop.f32.mrf.mxu0
    %v4714 = vadd.f32 0.0, %v4713
    %4715 = vdwg.mxu0
    %4720 = vrot.lane.b32.xlu0 %v4286, 96
    %v4721 = vpop.permute.xlu0 %4720
    %4722 = vrot.lane.b32.xlu0 %v4287, 96
    %v4723 = vpop.permute.xlu0 %4722
    %4724 = vrot.lane.b32.xlu0 %v4288, 96
    %v4725 = vpop.permute.xlu0 %4724
    %4726 = vrot.lane.b32.xlu0 %v4289, 96
    %v4727 = vpop.permute.xlu0 %4726
    %4728 = vrot.lane.b32.xlu0 %v4286, 32
    %v4729 = vpop.permute.xlu0 %4728
    %4730 = vrot.lane.b32.xlu0 %v4287, 32
    %v4731 = vpop.permute.xlu0 %4730
    %4732 = vrot.lane.b32.xlu0 %v4288, 32
    %v4733 = vpop.permute.xlu0 %4732
    %4734 = vrot.lane.b32.xlu0 %v4289, 32
    %v4735 = vpop.permute.xlu0 %4734
    %v4736 = vsel %vm591, %v4721, 0
    %v4738 = vsel %vm591, %v4723, 0
    %v4740 = vsel %vm591, %v4725, 0
    %v4742 = vsel %vm591, %v4727, 0
    %v4744 = vsel %vm591, %v4729, 0
    %v4746 = vsel %vm591, %v4731, 0
    %v4748 = vsel %vm591, %v4733, 0
    %v4750 = vsel %vm591, %v4735, 0
    %4752 = vmatpush.xpose.msra.mxu0 0.0
    %4753 = vmatpush.xpose.msra.mxu0 0.0
    %4754 = vmatpush.xpose.msra.mxu0 0.0
    %4755 = vmatpush.xpose.msra.mxu0 0.0
    %4756 = vmatpush.xpose.msra.mxu0 0.0
    %4757 = vmatpush.xpose.msra.mxu0 0.0
    %4758 = vmatpush.xpose.msra.mxu0 0.0
    %4759 = vmatpush.xpose.msra.mxu0 0.0
    %4760 = vmatpush.xpose.msra.mxu0 0.0
    %4761 = vmatpush.xpose.msra.mxu0 0.0
    %4762 = vmatpush.xpose.msra.mxu0 0.0
    %4763 = vmatpush.xpose.msra.mxu0 0.0
    %4764 = vmatpush.xpose.msra.mxu0 %v4750
    %4765 = vmatpush.xpose.msra.mxu0 %v4748
    %4766 = vmatpush.xpose.msra.mxu0 %v4746
    %4767 = vmatpush.xpose.msra.mxu0 %v4744
    %4768 = vmatmul.f32.gmra.mxu0 %v4736
    %v4769 = vpop.f32.mrf.mxu0
    %v4770 = vadd.f32 0.0, %v4769
    %4771 = vmatmul.f32.gmra.mxu0 %v4738
    %v4772 = vpop.f32.mrf.mxu0
    %v4773 = vadd.f32 0.0, %v4772
    %4774 = vmatmul.f32.gmra.mxu0 %v4740
    %v4775 = vpop.f32.mrf.mxu0
    %v4776 = vadd.f32 0.0, %v4775
    %4777 = vmatmul.f32.gmra.mxu0 %v4742
    %v4778 = vpop.f32.mrf.mxu0
    %v4779 = vadd.f32 0.0, %v4778
    %4780 = vdwg.mxu0
    %4785 = vrot.lane.b32.xlu0 %v4290, 96
    %v4786 = vpop.permute.xlu0 %4785
    %4787 = vrot.lane.b32.xlu0 %v4291, 96
    %v4788 = vpop.permute.xlu0 %4787
    %4789 = vrot.lane.b32.xlu0 %v4292, 96
    %v4790 = vpop.permute.xlu0 %4789
    %4791 = vrot.lane.b32.xlu0 %v4293, 96
    %v4792 = vpop.permute.xlu0 %4791
    %4793 = vrot.lane.b32.xlu0 %v4290, 32
    %v4794 = vpop.permute.xlu0 %4793
    %4795 = vrot.lane.b32.xlu0 %v4291, 32
    %v4796 = vpop.permute.xlu0 %4795
    %4797 = vrot.lane.b32.xlu0 %v4292, 32
    %v4798 = vpop.permute.xlu0 %4797
    %4799 = vrot.lane.b32.xlu0 %v4293, 32
    %v4800 = vpop.permute.xlu0 %4799
    %v4801 = vsel %vm591, %v4786, 0
    %v4803 = vsel %vm591, %v4788, 0
    %v4805 = vsel %vm591, %v4790, 0
    %v4807 = vsel %vm591, %v4792, 0
    %v4809 = vsel %vm591, %v4794, 0
    %v4811 = vsel %vm591, %v4796, 0
    %v4813 = vsel %vm591, %v4798, 0
    %v4815 = vsel %vm591, %v4800, 0
    %4817 = vmatpush.xpose.msra.mxu0 0.0
    %4818 = vmatpush.xpose.msra.mxu0 0.0
    %4819 = vmatpush.xpose.msra.mxu0 0.0
    %4820 = vmatpush.xpose.msra.mxu0 0.0
    %4821 = vmatpush.xpose.msra.mxu0 0.0
    %4822 = vmatpush.xpose.msra.mxu0 0.0
    %4823 = vmatpush.xpose.msra.mxu0 0.0
    %4824 = vmatpush.xpose.msra.mxu0 0.0
    %4825 = vmatpush.xpose.msra.mxu0 0.0
    %4826 = vmatpush.xpose.msra.mxu0 0.0
    %4827 = vmatpush.xpose.msra.mxu0 0.0
    %4828 = vmatpush.xpose.msra.mxu0 0.0
    %4829 = vmatpush.xpose.msra.mxu0 %v4815
    %4830 = vmatpush.xpose.msra.mxu0 %v4813
    %4831 = vmatpush.xpose.msra.mxu0 %v4811
    %4832 = vmatpush.xpose.msra.mxu0 %v4809
    %4833 = vmatmul.f32.gmra.mxu0 %v4801
    %v4834 = vpop.f32.mrf.mxu0
    %v4835 = vadd.f32 0.0, %v4834
    %4836 = vmatmul.f32.gmra.mxu0 %v4803
    %v4837 = vpop.f32.mrf.mxu0
    %v4838 = vadd.f32 0.0, %v4837
    %4839 = vmatmul.f32.gmra.mxu0 %v4805
    %v4840 = vpop.f32.mrf.mxu0
    %v4841 = vadd.f32 0.0, %v4840
    %4842 = vmatmul.f32.gmra.mxu0 %v4807
    %v4843 = vpop.f32.mrf.mxu0
    %v4844 = vadd.f32 0.0, %v4843
    %4845 = vdwg.mxu0
    %v4846 = vmul.f32 %v4380, 0.125
    %v4847 = vmul.f32 %v4383, 0.125
    %v4848 = vmul.f32 %v4386, 0.125
    %v4849 = vmul.f32 %v4389, 0.125
    %v4850 = vmul.f32 %v4445, 0.125
    %v4851 = vmul.f32 %v4448, 0.125
    %v4852 = vmul.f32 %v4451, 0.125
    %v4853 = vmul.f32 %v4454, 0.125
    %v4854 = vmul.f32 %v4510, 0.125
    %v4855 = vmul.f32 %v4513, 0.125
    %v4856 = vmul.f32 %v4516, 0.125
    %v4857 = vmul.f32 %v4519, 0.125
    %v4858 = vmul.f32 %v4575, 0.125
    %v4859 = vmul.f32 %v4578, 0.125
    %v4860 = vmul.f32 %v4581, 0.125
    %v4861 = vmul.f32 %v4584, 0.125
    %v4862 = vmul.f32 %v4640, 0.125
    %v4863 = vmul.f32 %v4643, 0.125
    %v4864 = vmul.f32 %v4646, 0.125
    %v4865 = vmul.f32 %v4649, 0.125
    %v4866 = vmul.f32 %v4705, 0.125
    %v4867 = vmul.f32 %v4708, 0.125
    %v4868 = vmul.f32 %v4711, 0.125
    %v4869 = vmul.f32 %v4714, 0.125
    %v4870 = vmul.f32 %v4770, 0.125
    %v4871 = vmul.f32 %v4773, 0.125
    %v4872 = vmul.f32 %v4776, 0.125
    %v4873 = vmul.f32 %v4779, 0.125
    %v4874 = vmul.f32 %v4835, 0.125
    %v4875 = vmul.f32 %v4838, 0.125
    %v4876 = vmul.f32 %v4841, 0.125
    %v4877 = vmul.f32 %v4844, 0.125
    %v4878 = vadd.f32 %v4846, %v511
    %v4879 = vadd.f32 %v4847, %v512
    %v4880 = vadd.f32 %v4848, %v513
    %v4881 = vadd.f32 %v4849, %v514
    %v4882 = vadd.f32 %v4850, %v511
    %v4883 = vadd.f32 %v4851, %v512
    %v4884 = vadd.f32 %v4852, %v513
    %v4885 = vadd.f32 %v4853, %v514
    %v4886 = vadd.f32 %v4854, %v511
    %v4887 = vadd.f32 %v4855, %v512
    %v4888 = vadd.f32 %v4856, %v513
    %v4889 = vadd.f32 %v4857, %v514
    %v4890 = vadd.f32 %v4858, %v511
    %v4891 = vadd.f32 %v4859, %v512
    %v4892 = vadd.f32 %v4860, %v513
    %v4893 = vadd.f32 %v4861, %v514
    %v4894 = vadd.f32 %v4862, %v511
    %v4895 = vadd.f32 %v4863, %v512
    %v4896 = vadd.f32 %v4864, %v513
    %v4897 = vadd.f32 %v4865, %v514
    %v4898 = vadd.f32 %v4866, %v511
    %v4899 = vadd.f32 %v4867, %v512
    %v4900 = vadd.f32 %v4868, %v513
    %v4901 = vadd.f32 %v4869, %v514
    %v4902 = vadd.f32 %v4870, %v511
    %v4903 = vadd.f32 %v4871, %v512
    %v4904 = vadd.f32 %v4872, %v513
    %v4905 = vadd.f32 %v4873, %v514
    %v4906 = vadd.f32 %v4874, %v511
    %v4907 = vadd.f32 %v4875, %v512
    %v4908 = vadd.f32 %v4876, %v513
    %v4909 = vadd.f32 %v4877, %v514
    %v4910 = vsel %vm1100, %v4878, -inf
    %4911 = vmax.xlane.f32.xlu0 %v4910
    %v4912 = vpop.xlane.xlu0 %4911
    %v4913 = vsel %vm1100, %v4879, -inf
    %4914 = vmax.xlane.f32.xlu0 %v4913
    %v4915 = vpop.xlane.xlu0 %4914
    %v4916 = vsel %vm1100, %v4880, -inf
    %4917 = vmax.xlane.f32.xlu0 %v4916
    %v4918 = vpop.xlane.xlu0 %4917
    %v4919 = vsel %vm1100, %v4881, -inf
    %4920 = vmax.xlane.f32.xlu0 %v4919
    %v4921 = vpop.xlane.xlu0 %4920
    %v4922 = vsel %vm1100, %v4882, -inf
    %4923 = vmax.xlane.f32.xlu0 %v4922
    %v4924 = vpop.xlane.xlu0 %4923
    %v4925 = vsel %vm1100, %v4883, -inf
    %4926 = vmax.xlane.f32.xlu0 %v4925
    %v4927 = vpop.xlane.xlu0 %4926
    %v4928 = vsel %vm1100, %v4884, -inf
    %4929 = vmax.xlane.f32.xlu0 %v4928
    %v4930 = vpop.xlane.xlu0 %4929
    %v4931 = vsel %vm1100, %v4885, -inf
    %4932 = vmax.xlane.f32.xlu0 %v4931
    %v4933 = vpop.xlane.xlu0 %4932
    %v4934 = vsel %vm1100, %v4886, -inf
    %4935 = vmax.xlane.f32.xlu0 %v4934
    %v4936 = vpop.xlane.xlu0 %4935
    %v4937 = vsel %vm1100, %v4887, -inf
    %4938 = vmax.xlane.f32.xlu0 %v4937
    %v4939 = vpop.xlane.xlu0 %4938
    %v4940 = vsel %vm1100, %v4888, -inf
    %4941 = vmax.xlane.f32.xlu0 %v4940
    %v4942 = vpop.xlane.xlu0 %4941
    %v4943 = vsel %vm1100, %v4889, -inf
    %4944 = vmax.xlane.f32.xlu0 %v4943
    %v4945 = vpop.xlane.xlu0 %4944
    %v4946 = vsel %vm1100, %v4890, -inf
    %4947 = vmax.xlane.f32.xlu0 %v4946
    %v4948 = vpop.xlane.xlu0 %4947
    %v4949 = vsel %vm1100, %v4891, -inf
    %4950 = vmax.xlane.f32.xlu0 %v4949
    %v4951 = vpop.xlane.xlu0 %4950
    %v4952 = vsel %vm1100, %v4892, -inf
    %4953 = vmax.xlane.f32.xlu0 %v4952
    %v4954 = vpop.xlane.xlu0 %4953
    %v4955 = vsel %vm1100, %v4893, -inf
    %4956 = vmax.xlane.f32.xlu0 %v4955
    %v4957 = vpop.xlane.xlu0 %4956
    %v4958 = vsel %vm1100, %v4894, -inf
    %4959 = vmax.xlane.f32.xlu0 %v4958
    %v4960 = vpop.xlane.xlu0 %4959
    %v4961 = vsel %vm1100, %v4895, -inf
    %4962 = vmax.xlane.f32.xlu0 %v4961
    %v4963 = vpop.xlane.xlu0 %4962
    %v4964 = vsel %vm1100, %v4896, -inf
    %4965 = vmax.xlane.f32.xlu0 %v4964
    %v4966 = vpop.xlane.xlu0 %4965
    %v4967 = vsel %vm1100, %v4897, -inf
    %4968 = vmax.xlane.f32.xlu0 %v4967
    %v4969 = vpop.xlane.xlu0 %4968
    %v4970 = vsel %vm1100, %v4898, -inf
    %4971 = vmax.xlane.f32.xlu0 %v4970
    %v4972 = vpop.xlane.xlu0 %4971
    %v4973 = vsel %vm1100, %v4899, -inf
    %4974 = vmax.xlane.f32.xlu0 %v4973
    %v4975 = vpop.xlane.xlu0 %4974
    %v4976 = vsel %vm1100, %v4900, -inf
    %4977 = vmax.xlane.f32.xlu0 %v4976
    %v4978 = vpop.xlane.xlu0 %4977
    %v4979 = vsel %vm1100, %v4901, -inf
    %4980 = vmax.xlane.f32.xlu0 %v4979
    %v4981 = vpop.xlane.xlu0 %4980
    %v4982 = vsel %vm1100, %v4902, -inf
    %4983 = vmax.xlane.f32.xlu0 %v4982
    %v4984 = vpop.xlane.xlu0 %4983
    %v4985 = vsel %vm1100, %v4903, -inf
    %4986 = vmax.xlane.f32.xlu0 %v4985
    %v4987 = vpop.xlane.xlu0 %4986
    %v4988 = vsel %vm1100, %v4904, -inf
    %4989 = vmax.xlane.f32.xlu0 %v4988
    %v4990 = vpop.xlane.xlu0 %4989
    %v4991 = vsel %vm1100, %v4905, -inf
    %4992 = vmax.xlane.f32.xlu0 %v4991
    %v4993 = vpop.xlane.xlu0 %4992
    %v4994 = vsel %vm1100, %v4906, -inf
    %4995 = vmax.xlane.f32.xlu0 %v4994
    %v4996 = vpop.xlane.xlu0 %4995
    %v4997 = vsel %vm1100, %v4907, -inf
    %4998 = vmax.xlane.f32.xlu0 %v4997
    %v4999 = vpop.xlane.xlu0 %4998
    %v5000 = vsel %vm1100, %v4908, -inf
    %5001 = vmax.xlane.f32.xlu0 %v5000
    %v5002 = vpop.xlane.xlu0 %5001
    %v5003 = vsel %vm1100, %v4909, -inf
    %5004 = vmax.xlane.f32.xlu0 %v5003
    %v5005 = vpop.xlane.xlu0 %5004
    %v5006 = vsub.f32 %v4878, %v4912
    %v5007 = vsub.f32 %v4879, %v4915
    %v5008 = vsub.f32 %v4880, %v4918
    %v5009 = vsub.f32 %v4881, %v4921
    %v5010 = vsub.f32 %v4882, %v4924
    %v5011 = vsub.f32 %v4883, %v4927
    %v5012 = vsub.f32 %v4884, %v4930
    %v5013 = vsub.f32 %v4885, %v4933
    %v5014 = vsub.f32 %v4886, %v4936
    %v5015 = vsub.f32 %v4887, %v4939
    %v5016 = vsub.f32 %v4888, %v4942
    %v5017 = vsub.f32 %v4889, %v4945
    %v5018 = vsub.f32 %v4890, %v4948
    %v5019 = vsub.f32 %v4891, %v4951
    %v5020 = vsub.f32 %v4892, %v4954
    %v5021 = vsub.f32 %v4893, %v4957
    %v5022 = vsub.f32 %v4894, %v4960
    %v5023 = vsub.f32 %v4895, %v4963
    %v5024 = vsub.f32 %v4896, %v4966
    %v5025 = vsub.f32 %v4897, %v4969
    %v5026 = vsub.f32 %v4898, %v4972
    %v5027 = vsub.f32 %v4899, %v4975
    %v5028 = vsub.f32 %v4900, %v4978
    %v5029 = vsub.f32 %v4901, %v4981
    %v5030 = vsub.f32 %v4902, %v4984
    %v5031 = vsub.f32 %v4903, %v4987
    %v5032 = vsub.f32 %v4904, %v4990
    %v5033 = vsub.f32 %v4905, %v4993
    %v5034 = vsub.f32 %v4906, %v4996
    %v5035 = vsub.f32 %v4907, %v4999
    %v5036 = vsub.f32 %v4908, %v5002
    %v5037 = vsub.f32 %v4909, %v5005
    %v5038 = vmul.f32 %v5006, 1.442695
    %v5039 = vpow.pop %v5038
    %v5040 = vmul.f32 %v5007, 1.442695
    %v5041 = vpow.pop %v5040
    %v5042 = vmul.f32 %v5008, 1.442695
    %v5043 = vpow.pop %v5042
    %v5044 = vmul.f32 %v5009, 1.442695
    %v5045 = vpow.pop %v5044
    %v5046 = vmul.f32 %v5010, 1.442695
    %v5047 = vpow.pop %v5046
    %v5048 = vmul.f32 %v5011, 1.442695
    %v5049 = vpow.pop %v5048
    %v5050 = vmul.f32 %v5012, 1.442695
    %v5051 = vpow.pop %v5050
    %v5052 = vmul.f32 %v5013, 1.442695
    %v5053 = vpow.pop %v5052
    %v5054 = vmul.f32 %v5014, 1.442695
    %v5055 = vpow.pop %v5054
    %v5056 = vmul.f32 %v5015, 1.442695
    %v5057 = vpow.pop %v5056
    %v5058 = vmul.f32 %v5016, 1.442695
    %v5059 = vpow.pop %v5058
    %v5060 = vmul.f32 %v5017, 1.442695
    %v5061 = vpow.pop %v5060
    %v5062 = vmul.f32 %v5018, 1.442695
    %v5063 = vpow.pop %v5062
    %v5064 = vmul.f32 %v5019, 1.442695
    %v5065 = vpow.pop %v5064
    %v5066 = vmul.f32 %v5020, 1.442695
    %v5067 = vpow.pop %v5066
    %v5068 = vmul.f32 %v5021, 1.442695
    %v5069 = vpow.pop %v5068
    %v5070 = vmul.f32 %v5022, 1.442695
    %v5071 = vpow.pop %v5070
    %v5072 = vmul.f32 %v5023, 1.442695
    %v5073 = vpow.pop %v5072
    %v5074 = vmul.f32 %v5024, 1.442695
    %v5075 = vpow.pop %v5074
    %v5076 = vmul.f32 %v5025, 1.442695
    %v5077 = vpow.pop %v5076
    %v5078 = vmul.f32 %v5026, 1.442695
    %v5079 = vpow.pop %v5078
    %v5080 = vmul.f32 %v5027, 1.442695
    %v5081 = vpow.pop %v5080
    %v5082 = vmul.f32 %v5028, 1.442695
    %v5083 = vpow.pop %v5082
    %v5084 = vmul.f32 %v5029, 1.442695
    %v5085 = vpow.pop %v5084
    %v5086 = vmul.f32 %v5030, 1.442695
    %v5087 = vpow.pop %v5086
    %v5088 = vmul.f32 %v5031, 1.442695
    %v5089 = vpow.pop %v5088
    %v5090 = vmul.f32 %v5032, 1.442695
    %v5091 = vpow.pop %v5090
    %v5092 = vmul.f32 %v5033, 1.442695
    %v5093 = vpow.pop %v5092
    %v5094 = vmul.f32 %v5034, 1.442695
    %v5095 = vpow.pop %v5094
    %v5096 = vmul.f32 %v5035, 1.442695
    %v5097 = vpow.pop %v5096
    %v5098 = vmul.f32 %v5036, 1.442695
    %v5099 = vpow.pop %v5098
    %v5100 = vmul.f32 %v5037, 1.442695
    %v5101 = vpow.pop %v5100
    %v5102 = vsel %vm1100, %v5039, 0.0
    %5103 = vadd.xlane.f32.xlu0 %v5102
    %v5104 = vpop.xlane.xlu0 %5103
    %v5105 = vsel %vm1100, %v5041, 0.0
    %5106 = vadd.xlane.f32.xlu0 %v5105
    %v5107 = vpop.xlane.xlu0 %5106
    %v5108 = vsel %vm1100, %v5043, 0.0
    %5109 = vadd.xlane.f32.xlu0 %v5108
    %v5110 = vpop.xlane.xlu0 %5109
    %v5111 = vsel %vm1100, %v5045, 0.0
    %5112 = vadd.xlane.f32.xlu0 %v5111
    %v5113 = vpop.xlane.xlu0 %5112
    %v5114 = vsel %vm1100, %v5047, 0.0
    %5115 = vadd.xlane.f32.xlu0 %v5114
    %v5116 = vpop.xlane.xlu0 %5115
    %v5117 = vsel %vm1100, %v5049, 0.0
    %5118 = vadd.xlane.f32.xlu0 %v5117
    %v5119 = vpop.xlane.xlu0 %5118
    %v5120 = vsel %vm1100, %v5051, 0.0
    %5121 = vadd.xlane.f32.xlu0 %v5120
    %v5122 = vpop.xlane.xlu0 %5121
    %v5123 = vsel %vm1100, %v5053, 0.0
    %5124 = vadd.xlane.f32.xlu0 %v5123
    %v5125 = vpop.xlane.xlu0 %5124
    %v5126 = vsel %vm1100, %v5055, 0.0
    %5127 = vadd.xlane.f32.xlu0 %v5126
    %v5128 = vpop.xlane.xlu0 %5127
    %v5129 = vsel %vm1100, %v5057, 0.0
    %5130 = vadd.xlane.f32.xlu0 %v5129
    %v5131 = vpop.xlane.xlu0 %5130
    %v5132 = vsel %vm1100, %v5059, 0.0
    %5133 = vadd.xlane.f32.xlu0 %v5132
    %v5134 = vpop.xlane.xlu0 %5133
    %v5135 = vsel %vm1100, %v5061, 0.0
    %5136 = vadd.xlane.f32.xlu0 %v5135
    %v5137 = vpop.xlane.xlu0 %5136
    %v5138 = vsel %vm1100, %v5063, 0.0
    %5139 = vadd.xlane.f32.xlu0 %v5138
    %v5140 = vpop.xlane.xlu0 %5139
    %v5141 = vsel %vm1100, %v5065, 0.0
    %5142 = vadd.xlane.f32.xlu0 %v5141
    %v5143 = vpop.xlane.xlu0 %5142
    %v5144 = vsel %vm1100, %v5067, 0.0
    %5145 = vadd.xlane.f32.xlu0 %v5144
    %v5146 = vpop.xlane.xlu0 %5145
    %v5147 = vsel %vm1100, %v5069, 0.0
    %5148 = vadd.xlane.f32.xlu0 %v5147
    %v5149 = vpop.xlane.xlu0 %5148
    %v5150 = vsel %vm1100, %v5071, 0.0
    %5151 = vadd.xlane.f32.xlu0 %v5150
    %v5152 = vpop.xlane.xlu0 %5151
    %v5153 = vsel %vm1100, %v5073, 0.0
    %5154 = vadd.xlane.f32.xlu0 %v5153
    %v5155 = vpop.xlane.xlu0 %5154
    %v5156 = vsel %vm1100, %v5075, 0.0
    %5157 = vadd.xlane.f32.xlu0 %v5156
    %v5158 = vpop.xlane.xlu0 %5157
    %v5159 = vsel %vm1100, %v5077, 0.0
    %5160 = vadd.xlane.f32.xlu0 %v5159
    %v5161 = vpop.xlane.xlu0 %5160
    %v5162 = vsel %vm1100, %v5079, 0.0
    %5163 = vadd.xlane.f32.xlu0 %v5162
    %v5164 = vpop.xlane.xlu0 %5163
    %v5165 = vsel %vm1100, %v5081, 0.0
    %5166 = vadd.xlane.f32.xlu0 %v5165
    %v5167 = vpop.xlane.xlu0 %5166
    %v5168 = vsel %vm1100, %v5083, 0.0
    %5169 = vadd.xlane.f32.xlu0 %v5168
    %v5170 = vpop.xlane.xlu0 %5169
    %v5171 = vsel %vm1100, %v5085, 0.0
    %5172 = vadd.xlane.f32.xlu0 %v5171
    %v5173 = vpop.xlane.xlu0 %5172
    %v5174 = vsel %vm1100, %v5087, 0.0
    %5175 = vadd.xlane.f32.xlu0 %v5174
    %v5176 = vpop.xlane.xlu0 %5175
    %v5177 = vsel %vm1100, %v5089, 0.0
    %5178 = vadd.xlane.f32.xlu0 %v5177
    %v5179 = vpop.xlane.xlu0 %5178
    %v5180 = vsel %vm1100, %v5091, 0.0
    %5181 = vadd.xlane.f32.xlu0 %v5180
    %v5182 = vpop.xlane.xlu0 %5181
    %v5183 = vsel %vm1100, %v5093, 0.0
    %5184 = vadd.xlane.f32.xlu0 %v5183
    %v5185 = vpop.xlane.xlu0 %5184
    %v5186 = vsel %vm1100, %v5095, 0.0
    %5187 = vadd.xlane.f32.xlu0 %v5186
    %v5188 = vpop.xlane.xlu0 %5187
    %v5189 = vsel %vm1100, %v5097, 0.0
    %5190 = vadd.xlane.f32.xlu0 %v5189
    %v5191 = vpop.xlane.xlu0 %5190
    %v5192 = vsel %vm1100, %v5099, 0.0
    %5193 = vadd.xlane.f32.xlu0 %v5192
    %v5194 = vpop.xlane.xlu0 %5193
    %v5195 = vsel %vm1100, %v5101, 0.0
    %5196 = vadd.xlane.f32.xlu0 %v5195
    %v5197 = vpop.xlane.xlu0 %5196
    %v5198 = vrcp.pop %v5104
    %v5199 = vmul.f32 %v5104, %v5198
    %v5200 = vsub.f32 1.0, %v5199
    %v5201 = vmul.f32 %v5198, %v5200
    %v5202 = vadd.f32 %v5198, %v5201
    %vm5203 = vweird.f32 %v5104
    %vm5204 = vweird.f32 %v5198
    %vm5205 = vmor %vm5203, %vm5204
    %v5206 = vsel %vm5205, %v5198, %v5202
    %v5207 = vand.u32 2147483647, %v5104
    %vm5208 = vcmp.eq.f32.partialorder %v5207, 8.507059e+37
    %v5209 = vand.u32 %v5104, 2147483648
    %v5210 = vor.u32 1.1754944e-38, %v5209
    %v5211 = vsel %vm5208, %v5210, %v5206
    %v5212 = vmul.f32 %v5039, %v5211
    %v5213 = vrcp.pop %v5107
    %v5214 = vmul.f32 %v5107, %v5213
    %v5215 = vsub.f32 1.0, %v5214
    %v5216 = vmul.f32 %v5213, %v5215
    %v5217 = vadd.f32 %v5213, %v5216
    %vm5218 = vweird.f32 %v5107
    %vm5219 = vweird.f32 %v5213
    %vm5220 = vmor %vm5218, %vm5219
    %v5221 = vsel %vm5220, %v5213, %v5217
    %v5222 = vand.u32 2147483647, %v5107
    %vm5223 = vcmp.eq.f32.partialorder %v5222, 8.507059e+37
    %v5224 = vand.u32 %v5107, 2147483648
    %v5225 = vor.u32 1.1754944e-38, %v5224
    %v5226 = vsel %vm5223, %v5225, %v5221
    %v5227 = vmul.f32 %v5041, %v5226
    %v5228 = vrcp.pop %v5110
    %v5229 = vmul.f32 %v5110, %v5228
    %v5230 = vsub.f32 1.0, %v5229
    %v5231 = vmul.f32 %v5228, %v5230
    %v5232 = vadd.f32 %v5228, %v5231
    %vm5233 = vweird.f32 %v5110
    %vm5234 = vweird.f32 %v5228
    %vm5235 = vmor %vm5233, %vm5234
    %v5236 = vsel %vm5235, %v5228, %v5232
    %v5237 = vand.u32 2147483647, %v5110
    %vm5238 = vcmp.eq.f32.partialorder %v5237, 8.507059e+37
    %v5239 = vand.u32 %v5110, 2147483648
    %v5240 = vor.u32 1.1754944e-38, %v5239
    %v5241 = vsel %vm5238, %v5240, %v5236
    %v5242 = vmul.f32 %v5043, %v5241
    %v5243 = vrcp.pop %v5113
    %v5244 = vmul.f32 %v5113, %v5243
    %v5245 = vsub.f32 1.0, %v5244
    %v5246 = vmul.f32 %v5243, %v5245
    %v5247 = vadd.f32 %v5243, %v5246
    %vm5248 = vweird.f32 %v5113
    %vm5249 = vweird.f32 %v5243
    %vm5250 = vmor %vm5248, %vm5249
    %v5251 = vsel %vm5250, %v5243, %v5247
    %v5252 = vand.u32 2147483647, %v5113
    %vm5253 = vcmp.eq.f32.partialorder %v5252, 8.507059e+37
    %v5254 = vand.u32 %v5113, 2147483648
    %v5255 = vor.u32 1.1754944e-38, %v5254
    %v5256 = vsel %vm5253, %v5255, %v5251
    %v5257 = vmul.f32 %v5045, %v5256
    %v5258 = vrcp.pop %v5116
    %v5259 = vmul.f32 %v5116, %v5258
    %v5260 = vsub.f32 1.0, %v5259
    %v5261 = vmul.f32 %v5258, %v5260
    %v5262 = vadd.f32 %v5258, %v5261
    %vm5263 = vweird.f32 %v5116
    %vm5264 = vweird.f32 %v5258
    %vm5265 = vmor %vm5263, %vm5264
    %v5266 = vsel %vm5265, %v5258, %v5262
    %v5267 = vand.u32 2147483647, %v5116
    %vm5268 = vcmp.eq.f32.partialorder %v5267, 8.507059e+37
    %v5269 = vand.u32 %v5116, 2147483648
    %v5270 = vor.u32 1.1754944e-38, %v5269
    %v5271 = vsel %vm5268, %v5270, %v5266
    %v5272 = vmul.f32 %v5047, %v5271
    %v5273 = vrcp.pop %v5119
    %v5274 = vmul.f32 %v5119, %v5273
    %v5275 = vsub.f32 1.0, %v5274
    %v5276 = vmul.f32 %v5273, %v5275
    %v5277 = vadd.f32 %v5273, %v5276
    %vm5278 = vweird.f32 %v5119
    %vm5279 = vweird.f32 %v5273
    %vm5280 = vmor %vm5278, %vm5279
    %v5281 = vsel %vm5280, %v5273, %v5277
    %v5282 = vand.u32 2147483647, %v5119
    %vm5283 = vcmp.eq.f32.partialorder %v5282, 8.507059e+37
    %v5284 = vand.u32 %v5119, 2147483648
    %v5285 = vor.u32 1.1754944e-38, %v5284
    %v5286 = vsel %vm5283, %v5285, %v5281
    %v5287 = vmul.f32 %v5049, %v5286
    %v5288 = vrcp.pop %v5122
    %v5289 = vmul.f32 %v5122, %v5288
    %v5290 = vsub.f32 1.0, %v5289
    %v5291 = vmul.f32 %v5288, %v5290
    %v5292 = vadd.f32 %v5288, %v5291
    %vm5293 = vweird.f32 %v5122
    %vm5294 = vweird.f32 %v5288
    %vm5295 = vmor %vm5293, %vm5294
    %v5296 = vsel %vm5295, %v5288, %v5292
    %v5297 = vand.u32 2147483647, %v5122
    %vm5298 = vcmp.eq.f32.partialorder %v5297, 8.507059e+37
    %v5299 = vand.u32 %v5122, 2147483648
    %v5300 = vor.u32 1.1754944e-38, %v5299
    %v5301 = vsel %vm5298, %v5300, %v5296
    %v5302 = vmul.f32 %v5051, %v5301
    %v5303 = vrcp.pop %v5125
    %v5304 = vmul.f32 %v5125, %v5303
    %v5305 = vsub.f32 1.0, %v5304
    %v5306 = vmul.f32 %v5303, %v5305
    %v5307 = vadd.f32 %v5303, %v5306
    %vm5308 = vweird.f32 %v5125
    %vm5309 = vweird.f32 %v5303
    %vm5310 = vmor %vm5308, %vm5309
    %v5311 = vsel %vm5310, %v5303, %v5307
    %v5312 = vand.u32 2147483647, %v5125
    %vm5313 = vcmp.eq.f32.partialorder %v5312, 8.507059e+37
    %v5314 = vand.u32 %v5125, 2147483648
    %v5315 = vor.u32 1.1754944e-38, %v5314
    %v5316 = vsel %vm5313, %v5315, %v5311
    %v5317 = vmul.f32 %v5053, %v5316
    %v5318 = vrcp.pop %v5128
    %v5319 = vmul.f32 %v5128, %v5318
    %v5320 = vsub.f32 1.0, %v5319
    %v5321 = vmul.f32 %v5318, %v5320
    %v5322 = vadd.f32 %v5318, %v5321
    %vm5323 = vweird.f32 %v5128
    %vm5324 = vweird.f32 %v5318
    %vm5325 = vmor %vm5323, %vm5324
    %v5326 = vsel %vm5325, %v5318, %v5322
    %v5327 = vand.u32 2147483647, %v5128
    %vm5328 = vcmp.eq.f32.partialorder %v5327, 8.507059e+37
    %v5329 = vand.u32 %v5128, 2147483648
    %v5330 = vor.u32 1.1754944e-38, %v5329
    %v5331 = vsel %vm5328, %v5330, %v5326
    %v5332 = vmul.f32 %v5055, %v5331
    %v5333 = vrcp.pop %v5131
    %v5334 = vmul.f32 %v5131, %v5333
    %v5335 = vsub.f32 1.0, %v5334
    %v5336 = vmul.f32 %v5333, %v5335
    %v5337 = vadd.f32 %v5333, %v5336
    %vm5338 = vweird.f32 %v5131
    %vm5339 = vweird.f32 %v5333
    %vm5340 = vmor %vm5338, %vm5339
    %v5341 = vsel %vm5340, %v5333, %v5337
    %v5342 = vand.u32 2147483647, %v5131
    %vm5343 = vcmp.eq.f32.partialorder %v5342, 8.507059e+37
    %v5344 = vand.u32 %v5131, 2147483648
    %v5345 = vor.u32 1.1754944e-38, %v5344
    %v5346 = vsel %vm5343, %v5345, %v5341
    %v5347 = vmul.f32 %v5057, %v5346
    %v5348 = vrcp.pop %v5134
    %v5349 = vmul.f32 %v5134, %v5348
    %v5350 = vsub.f32 1.0, %v5349
    %v5351 = vmul.f32 %v5348, %v5350
    %v5352 = vadd.f32 %v5348, %v5351
    %vm5353 = vweird.f32 %v5134
    %vm5354 = vweird.f32 %v5348
    %vm5355 = vmor %vm5353, %vm5354
    %v5356 = vsel %vm5355, %v5348, %v5352
    %v5357 = vand.u32 2147483647, %v5134
    %vm5358 = vcmp.eq.f32.partialorder %v5357, 8.507059e+37
    %v5359 = vand.u32 %v5134, 2147483648
    %v5360 = vor.u32 1.1754944e-38, %v5359
    %v5361 = vsel %vm5358, %v5360, %v5356
    %v5362 = vmul.f32 %v5059, %v5361
    %v5363 = vrcp.pop %v5137
    %v5364 = vmul.f32 %v5137, %v5363
    %v5365 = vsub.f32 1.0, %v5364
    %v5366 = vmul.f32 %v5363, %v5365
    %v5367 = vadd.f32 %v5363, %v5366
    %vm5368 = vweird.f32 %v5137
    %vm5369 = vweird.f32 %v5363
    %vm5370 = vmor %vm5368, %vm5369
    %v5371 = vsel %vm5370, %v5363, %v5367
    %v5372 = vand.u32 2147483647, %v5137
    %vm5373 = vcmp.eq.f32.partialorder %v5372, 8.507059e+37
    %v5374 = vand.u32 %v5137, 2147483648
    %v5375 = vor.u32 1.1754944e-38, %v5374
    %v5376 = vsel %vm5373, %v5375, %v5371
    %v5377 = vmul.f32 %v5061, %v5376
    %v5378 = vrcp.pop %v5140
    %v5379 = vmul.f32 %v5140, %v5378
    %v5380 = vsub.f32 1.0, %v5379
    %v5381 = vmul.f32 %v5378, %v5380
    %v5382 = vadd.f32 %v5378, %v5381
    %vm5383 = vweird.f32 %v5140
    %vm5384 = vweird.f32 %v5378
    %vm5385 = vmor %vm5383, %vm5384
    %v5386 = vsel %vm5385, %v5378, %v5382
    %v5387 = vand.u32 2147483647, %v5140
    %vm5388 = vcmp.eq.f32.partialorder %v5387, 8.507059e+37
    %v5389 = vand.u32 %v5140, 2147483648
    %v5390 = vor.u32 1.1754944e-38, %v5389
    %v5391 = vsel %vm5388, %v5390, %v5386
    %v5392 = vmul.f32 %v5063, %v5391
    %v5393 = vrcp.pop %v5143
    %v5394 = vmul.f32 %v5143, %v5393
    %v5395 = vsub.f32 1.0, %v5394
    %v5396 = vmul.f32 %v5393, %v5395
    %v5397 = vadd.f32 %v5393, %v5396
    %vm5398 = vweird.f32 %v5143
    %vm5399 = vweird.f32 %v5393
    %vm5400 = vmor %vm5398, %vm5399
    %v5401 = vsel %vm5400, %v5393, %v5397
    %v5402 = vand.u32 2147483647, %v5143
    %vm5403 = vcmp.eq.f32.partialorder %v5402, 8.507059e+37
    %v5404 = vand.u32 %v5143, 2147483648
    %v5405 = vor.u32 1.1754944e-38, %v5404
    %v5406 = vsel %vm5403, %v5405, %v5401
    %v5407 = vmul.f32 %v5065, %v5406
    %v5408 = vrcp.pop %v5146
    %v5409 = vmul.f32 %v5146, %v5408
    %v5410 = vsub.f32 1.0, %v5409
    %v5411 = vmul.f32 %v5408, %v5410
    %v5412 = vadd.f32 %v5408, %v5411
    %vm5413 = vweird.f32 %v5146
    %vm5414 = vweird.f32 %v5408
    %vm5415 = vmor %vm5413, %vm5414
    %v5416 = vsel %vm5415, %v5408, %v5412
    %v5417 = vand.u32 2147483647, %v5146
    %vm5418 = vcmp.eq.f32.partialorder %v5417, 8.507059e+37
    %v5419 = vand.u32 %v5146, 2147483648
    %v5420 = vor.u32 1.1754944e-38, %v5419
    %v5421 = vsel %vm5418, %v5420, %v5416
    %v5422 = vmul.f32 %v5067, %v5421
    %v5423 = vrcp.pop %v5149
    %v5424 = vmul.f32 %v5149, %v5423
    %v5425 = vsub.f32 1.0, %v5424
    %v5426 = vmul.f32 %v5423, %v5425
    %v5427 = vadd.f32 %v5423, %v5426
    %vm5428 = vweird.f32 %v5149
    %vm5429 = vweird.f32 %v5423
    %vm5430 = vmor %vm5428, %vm5429
    %v5431 = vsel %vm5430, %v5423, %v5427
    %v5432 = vand.u32 2147483647, %v5149
    %vm5433 = vcmp.eq.f32.partialorder %v5432, 8.507059e+37
    %v5434 = vand.u32 %v5149, 2147483648
    %v5435 = vor.u32 1.1754944e-38, %v5434
    %v5436 = vsel %vm5433, %v5435, %v5431
    %v5437 = vmul.f32 %v5069, %v5436
    %v5438 = vrcp.pop %v5152
    %v5439 = vmul.f32 %v5152, %v5438
    %v5440 = vsub.f32 1.0, %v5439
    %v5441 = vmul.f32 %v5438, %v5440
    %v5442 = vadd.f32 %v5438, %v5441
    %vm5443 = vweird.f32 %v5152
    %vm5444 = vweird.f32 %v5438
    %vm5445 = vmor %vm5443, %vm5444
    %v5446 = vsel %vm5445, %v5438, %v5442
    %v5447 = vand.u32 2147483647, %v5152
    %vm5448 = vcmp.eq.f32.partialorder %v5447, 8.507059e+37
    %v5449 = vand.u32 %v5152, 2147483648
    %v5450 = vor.u32 1.1754944e-38, %v5449
    %v5451 = vsel %vm5448, %v5450, %v5446
    %v5452 = vmul.f32 %v5071, %v5451
    %v5453 = vrcp.pop %v5155
    %v5454 = vmul.f32 %v5155, %v5453
    %v5455 = vsub.f32 1.0, %v5454
    %v5456 = vmul.f32 %v5453, %v5455
    %v5457 = vadd.f32 %v5453, %v5456
    %vm5458 = vweird.f32 %v5155
    %vm5459 = vweird.f32 %v5453
    %vm5460 = vmor %vm5458, %vm5459
    %v5461 = vsel %vm5460, %v5453, %v5457
    %v5462 = vand.u32 2147483647, %v5155
    %vm5463 = vcmp.eq.f32.partialorder %v5462, 8.507059e+37
    %v5464 = vand.u32 %v5155, 2147483648
    %v5465 = vor.u32 1.1754944e-38, %v5464
    %v5466 = vsel %vm5463, %v5465, %v5461
    %v5467 = vmul.f32 %v5073, %v5466
    %v5468 = vrcp.pop %v5158
    %v5469 = vmul.f32 %v5158, %v5468
    %v5470 = vsub.f32 1.0, %v5469
    %v5471 = vmul.f32 %v5468, %v5470
    %v5472 = vadd.f32 %v5468, %v5471
    %vm5473 = vweird.f32 %v5158
    %vm5474 = vweird.f32 %v5468
    %vm5475 = vmor %vm5473, %vm5474
    %v5476 = vsel %vm5475, %v5468, %v5472
    %v5477 = vand.u32 2147483647, %v5158
    %vm5478 = vcmp.eq.f32.partialorder %v5477, 8.507059e+37
    %v5479 = vand.u32 %v5158, 2147483648
    %v5480 = vor.u32 1.1754944e-38, %v5479
    %v5481 = vsel %vm5478, %v5480, %v5476
    %v5482 = vmul.f32 %v5075, %v5481
    %v5483 = vrcp.pop %v5161
    %v5484 = vmul.f32 %v5161, %v5483
    %v5485 = vsub.f32 1.0, %v5484
    %v5486 = vmul.f32 %v5483, %v5485
    %v5487 = vadd.f32 %v5483, %v5486
    %vm5488 = vweird.f32 %v5161
    %vm5489 = vweird.f32 %v5483
    %vm5490 = vmor %vm5488, %vm5489
    %v5491 = vsel %vm5490, %v5483, %v5487
    %v5492 = vand.u32 2147483647, %v5161
    %vm5493 = vcmp.eq.f32.partialorder %v5492, 8.507059e+37
    %v5494 = vand.u32 %v5161, 2147483648
    %v5495 = vor.u32 1.1754944e-38, %v5494
    %v5496 = vsel %vm5493, %v5495, %v5491
    %v5497 = vmul.f32 %v5077, %v5496
    %v5498 = vrcp.pop %v5164
    %v5499 = vmul.f32 %v5164, %v5498
    %v5500 = vsub.f32 1.0, %v5499
    %v5501 = vmul.f32 %v5498, %v5500
    %v5502 = vadd.f32 %v5498, %v5501
    %vm5503 = vweird.f32 %v5164
    %vm5504 = vweird.f32 %v5498
    %vm5505 = vmor %vm5503, %vm5504
    %v5506 = vsel %vm5505, %v5498, %v5502
    %v5507 = vand.u32 2147483647, %v5164
    %vm5508 = vcmp.eq.f32.partialorder %v5507, 8.507059e+37
    %v5509 = vand.u32 %v5164, 2147483648
    %v5510 = vor.u32 1.1754944e-38, %v5509
    %v5511 = vsel %vm5508, %v5510, %v5506
    %v5512 = vmul.f32 %v5079, %v5511
    %v5513 = vrcp.pop %v5167
    %v5514 = vmul.f32 %v5167, %v5513
    %v5515 = vsub.f32 1.0, %v5514
    %v5516 = vmul.f32 %v5513, %v5515
    %v5517 = vadd.f32 %v5513, %v5516
    %vm5518 = vweird.f32 %v5167
    %vm5519 = vweird.f32 %v5513
    %vm5520 = vmor %vm5518, %vm5519
    %v5521 = vsel %vm5520, %v5513, %v5517
    %v5522 = vand.u32 2147483647, %v5167
    %vm5523 = vcmp.eq.f32.partialorder %v5522, 8.507059e+37
    %v5524 = vand.u32 %v5167, 2147483648
    %v5525 = vor.u32 1.1754944e-38, %v5524
    %v5526 = vsel %vm5523, %v5525, %v5521
    %v5527 = vmul.f32 %v5081, %v5526
    %v5528 = vrcp.pop %v5170
    %v5529 = vmul.f32 %v5170, %v5528
    %v5530 = vsub.f32 1.0, %v5529
    %v5531 = vmul.f32 %v5528, %v5530
    %v5532 = vadd.f32 %v5528, %v5531
    %vm5533 = vweird.f32 %v5170
    %vm5534 = vweird.f32 %v5528
    %vm5535 = vmor %vm5533, %vm5534
    %v5536 = vsel %vm5535, %v5528, %v5532
    %v5537 = vand.u32 2147483647, %v5170
    %vm5538 = vcmp.eq.f32.partialorder %v5537, 8.507059e+37
    %v5539 = vand.u32 %v5170, 2147483648
    %v5540 = vor.u32 1.1754944e-38, %v5539
    %v5541 = vsel %vm5538, %v5540, %v5536
    %v5542 = vmul.f32 %v5083, %v5541
    %v5543 = vrcp.pop %v5173
    %v5544 = vmul.f32 %v5173, %v5543
    %v5545 = vsub.f32 1.0, %v5544
    %v5546 = vmul.f32 %v5543, %v5545
    %v5547 = vadd.f32 %v5543, %v5546
    %vm5548 = vweird.f32 %v5173
    %vm5549 = vweird.f32 %v5543
    %vm5550 = vmor %vm5548, %vm5549
    %v5551 = vsel %vm5550, %v5543, %v5547
    %v5552 = vand.u32 2147483647, %v5173
    %vm5553 = vcmp.eq.f32.partialorder %v5552, 8.507059e+37
    %v5554 = vand.u32 %v5173, 2147483648
    %v5555 = vor.u32 1.1754944e-38, %v5554
    %v5556 = vsel %vm5553, %v5555, %v5551
    %v5557 = vmul.f32 %v5085, %v5556
    %v5558 = vrcp.pop %v5176
    %v5559 = vmul.f32 %v5176, %v5558
    %v5560 = vsub.f32 1.0, %v5559
    %v5561 = vmul.f32 %v5558, %v5560
    %v5562 = vadd.f32 %v5558, %v5561
    %vm5563 = vweird.f32 %v5176
    %vm5564 = vweird.f32 %v5558
    %vm5565 = vmor %vm5563, %vm5564
    %v5566 = vsel %vm5565, %v5558, %v5562
    %v5567 = vand.u32 2147483647, %v5176
    %vm5568 = vcmp.eq.f32.partialorder %v5567, 8.507059e+37
    %v5569 = vand.u32 %v5176, 2147483648
    %v5570 = vor.u32 1.1754944e-38, %v5569
    %v5571 = vsel %vm5568, %v5570, %v5566
    %v5572 = vmul.f32 %v5087, %v5571
    %v5573 = vrcp.pop %v5179
    %v5574 = vmul.f32 %v5179, %v5573
    %v5575 = vsub.f32 1.0, %v5574
    %v5576 = vmul.f32 %v5573, %v5575
    %v5577 = vadd.f32 %v5573, %v5576
    %vm5578 = vweird.f32 %v5179
    %vm5579 = vweird.f32 %v5573
    %vm5580 = vmor %vm5578, %vm5579
    %v5581 = vsel %vm5580, %v5573, %v5577
    %v5582 = vand.u32 2147483647, %v5179
    %vm5583 = vcmp.eq.f32.partialorder %v5582, 8.507059e+37
    %v5584 = vand.u32 %v5179, 2147483648
    %v5585 = vor.u32 1.1754944e-38, %v5584
    %v5586 = vsel %vm5583, %v5585, %v5581
    %v5587 = vmul.f32 %v5089, %v5586
    %v5588 = vrcp.pop %v5182
    %v5589 = vmul.f32 %v5182, %v5588
    %v5590 = vsub.f32 1.0, %v5589
    %v5591 = vmul.f32 %v5588, %v5590
    %v5592 = vadd.f32 %v5588, %v5591
    %vm5593 = vweird.f32 %v5182
    %vm5594 = vweird.f32 %v5588
    %vm5595 = vmor %vm5593, %vm5594
    %v5596 = vsel %vm5595, %v5588, %v5592
    %v5597 = vand.u32 2147483647, %v5182
    %vm5598 = vcmp.eq.f32.partialorder %v5597, 8.507059e+37
    %v5599 = vand.u32 %v5182, 2147483648
    %v5600 = vor.u32 1.1754944e-38, %v5599
    %v5601 = vsel %vm5598, %v5600, %v5596
    %v5602 = vmul.f32 %v5091, %v5601
    %v5603 = vrcp.pop %v5185
    %v5604 = vmul.f32 %v5185, %v5603
    %v5605 = vsub.f32 1.0, %v5604
    %v5606 = vmul.f32 %v5603, %v5605
    %v5607 = vadd.f32 %v5603, %v5606
    %vm5608 = vweird.f32 %v5185
    %vm5609 = vweird.f32 %v5603
    %vm5610 = vmor %vm5608, %vm5609
    %v5611 = vsel %vm5610, %v5603, %v5607
    %v5612 = vand.u32 2147483647, %v5185
    %vm5613 = vcmp.eq.f32.partialorder %v5612, 8.507059e+37
    %v5614 = vand.u32 %v5185, 2147483648
    %v5615 = vor.u32 1.1754944e-38, %v5614
    %v5616 = vsel %vm5613, %v5615, %v5611
    %v5617 = vmul.f32 %v5093, %v5616
    %v5618 = vrcp.pop %v5188
    %v5619 = vmul.f32 %v5188, %v5618
    %v5620 = vsub.f32 1.0, %v5619
    %v5621 = vmul.f32 %v5618, %v5620
    %v5622 = vadd.f32 %v5618, %v5621
    %vm5623 = vweird.f32 %v5188
    %vm5624 = vweird.f32 %v5618
    %vm5625 = vmor %vm5623, %vm5624
    %v5626 = vsel %vm5625, %v5618, %v5622
    %v5627 = vand.u32 2147483647, %v5188
    %vm5628 = vcmp.eq.f32.partialorder %v5627, 8.507059e+37
    %v5629 = vand.u32 %v5188, 2147483648
    %v5630 = vor.u32 1.1754944e-38, %v5629
    %v5631 = vsel %vm5628, %v5630, %v5626
    %v5632 = vmul.f32 %v5095, %v5631
    %v5633 = vrcp.pop %v5191
    %v5634 = vmul.f32 %v5191, %v5633
    %v5635 = vsub.f32 1.0, %v5634
    %v5636 = vmul.f32 %v5633, %v5635
    %v5637 = vadd.f32 %v5633, %v5636
    %vm5638 = vweird.f32 %v5191
    %vm5639 = vweird.f32 %v5633
    %vm5640 = vmor %vm5638, %vm5639
    %v5641 = vsel %vm5640, %v5633, %v5637
    %v5642 = vand.u32 2147483647, %v5191
    %vm5643 = vcmp.eq.f32.partialorder %v5642, 8.507059e+37
    %v5644 = vand.u32 %v5191, 2147483648
    %v5645 = vor.u32 1.1754944e-38, %v5644
    %v5646 = vsel %vm5643, %v5645, %v5641
    %v5647 = vmul.f32 %v5097, %v5646
    %v5648 = vrcp.pop %v5194
    %v5649 = vmul.f32 %v5194, %v5648
    %v5650 = vsub.f32 1.0, %v5649
    %v5651 = vmul.f32 %v5648, %v5650
    %v5652 = vadd.f32 %v5648, %v5651
    %vm5653 = vweird.f32 %v5194
    %vm5654 = vweird.f32 %v5648
    %vm5655 = vmor %vm5653, %vm5654
    %v5656 = vsel %vm5655, %v5648, %v5652
    %v5657 = vand.u32 2147483647, %v5194
    %vm5658 = vcmp.eq.f32.partialorder %v5657, 8.507059e+37
    %v5659 = vand.u32 %v5194, 2147483648
    %v5660 = vor.u32 1.1754944e-38, %v5659
    %v5661 = vsel %vm5658, %v5660, %v5656
    %v5662 = vmul.f32 %v5099, %v5661
    %v5663 = vrcp.pop %v5197
    %v5664 = vmul.f32 %v5197, %v5663
    %v5665 = vsub.f32 1.0, %v5664
    %v5666 = vmul.f32 %v5663, %v5665
    %v5667 = vadd.f32 %v5663, %v5666
    %vm5668 = vweird.f32 %v5197
    %vm5669 = vweird.f32 %v5663
    %vm5670 = vmor %vm5668, %vm5669
    %v5671 = vsel %vm5670, %v5663, %v5667
    %v5672 = vand.u32 2147483647, %v5197
    %vm5673 = vcmp.eq.f32.partialorder %v5672, 8.507059e+37
    %v5674 = vand.u32 %v5197, 2147483648
    %v5675 = vor.u32 1.1754944e-38, %v5674
    %v5676 = vsel %vm5673, %v5675, %v5671
    %v5677 = vmul.f32 %v5101, %v5676
    %5682 = vrot.lane.b32.xlu0 %v4294, 96
    %v5683 = vpop.permute.xlu0 %5682
    %5684 = vrot.lane.b32.xlu0 %v4295, 96
    %v5685 = vpop.permute.xlu0 %5684
    %5686 = vrot.lane.b32.xlu0 %v4296, 96
    %v5687 = vpop.permute.xlu0 %5686
    %5688 = vrot.lane.b32.xlu0 %v4297, 96
    %v5689 = vpop.permute.xlu0 %5688
    %v5695 = vsel %vm1100, %v5212, 0
    %v5698 = vsel %vm1100, %v5227, 0
    %v5701 = vsel %vm1100, %v5242, 0
    %v5704 = vsel %vm1100, %v5257, 0
    %5706 = vmatpush.msra.mxu0 0.0
    %5707 = vmatpush.msra.mxu0 0.0
    %5708 = vmatpush.msra.mxu0 0.0
    %5709 = vmatpush.msra.mxu0 0.0
    %5710 = vmatpush.msra.mxu0 0.0
    %5711 = vmatpush.msra.mxu0 0.0
    %5712 = vmatpush.msra.mxu0 0.0
    %5713 = vmatpush.msra.mxu0 0.0
    %5714 = vmatpush.msra.mxu0 0.0
    %5715 = vmatpush.msra.mxu0 0.0
    %5716 = vmatpush.msra.mxu0 0.0
    %5717 = vmatpush.msra.mxu0 0.0
    %5718 = vmatpush.msra.mxu0 %v5689
    %5719 = vmatpush.msra.mxu0 %v5687
    %5720 = vmatpush.msra.mxu0 %v5685
    %5721 = vmatpush.msra.mxu0 %v5683
    %5722 = vmatmul.f32.gmra.mxu0 %v5695
    %v5723 = vpop.f32.mrf.mxu0
    %v5724 = vadd.f32 0.0, %v5723
    %5725 = vmatmul.f32.gmra.mxu0 %v5698
    %v5726 = vpop.f32.mrf.mxu0
    %v5727 = vadd.f32 0.0, %v5726
    %5728 = vmatmul.f32.gmra.mxu0 %v5701
    %v5729 = vpop.f32.mrf.mxu0
    %v5730 = vadd.f32 0.0, %v5729
    %5731 = vmatmul.f32.gmra.mxu0 %v5704
    %v5732 = vpop.f32.mrf.mxu0
    %v5733 = vadd.f32 0.0, %v5732
    %5734 = vdwg.mxu0
    %5739 = vrot.lane.b32.xlu0 %v4298, 96
    %v5740 = vpop.permute.xlu0 %5739
    %5741 = vrot.lane.b32.xlu0 %v4299, 96
    %v5742 = vpop.permute.xlu0 %5741
    %5743 = vrot.lane.b32.xlu0 %v4300, 96
    %v5744 = vpop.permute.xlu0 %5743
    %5745 = vrot.lane.b32.xlu0 %v4301, 96
    %v5746 = vpop.permute.xlu0 %5745
    %v5752 = vsel %vm1100, %v5272, 0
    %v5755 = vsel %vm1100, %v5287, 0
    %v5758 = vsel %vm1100, %v5302, 0
    %v5761 = vsel %vm1100, %v5317, 0
    %5763 = vmatpush.msra.mxu0 0.0
    %5764 = vmatpush.msra.mxu0 0.0
    %5765 = vmatpush.msra.mxu0 0.0
    %5766 = vmatpush.msra.mxu0 0.0
    %5767 = vmatpush.msra.mxu0 0.0
    %5768 = vmatpush.msra.mxu0 0.0
    %5769 = vmatpush.msra.mxu0 0.0
    %5770 = vmatpush.msra.mxu0 0.0
    %5771 = vmatpush.msra.mxu0 0.0
    %5772 = vmatpush.msra.mxu0 0.0
    %5773 = vmatpush.msra.mxu0 0.0
    %5774 = vmatpush.msra.mxu0 0.0
    %5775 = vmatpush.msra.mxu0 %v5746
    %5776 = vmatpush.msra.mxu0 %v5744
    %5777 = vmatpush.msra.mxu0 %v5742
    %5778 = vmatpush.msra.mxu0 %v5740
    %5779 = vmatmul.f32.gmra.mxu0 %v5752
    %v5780 = vpop.f32.mrf.mxu0
    %v5781 = vadd.f32 0.0, %v5780
    %5782 = vmatmul.f32.gmra.mxu0 %v5755
    %v5783 = vpop.f32.mrf.mxu0
    %v5784 = vadd.f32 0.0, %v5783
    %5785 = vmatmul.f32.gmra.mxu0 %v5758
    %v5786 = vpop.f32.mrf.mxu0
    %v5787 = vadd.f32 0.0, %v5786
    %5788 = vmatmul.f32.gmra.mxu0 %v5761
    %v5789 = vpop.f32.mrf.mxu0
    %v5790 = vadd.f32 0.0, %v5789
    %5791 = vdwg.mxu0
    %5796 = vrot.lane.b32.xlu0 %v4302, 96
    %v5797 = vpop.permute.xlu0 %5796
    %5798 = vrot.lane.b32.xlu0 %v4303, 96
    %v5799 = vpop.permute.xlu0 %5798
    %5800 = vrot.lane.b32.xlu0 %v4304, 96
    %v5801 = vpop.permute.xlu0 %5800
    %5802 = vrot.lane.b32.xlu0 %v4305, 96
    %v5803 = vpop.permute.xlu0 %5802
    %v5809 = vsel %vm1100, %v5332, 0
    %v5812 = vsel %vm1100, %v5347, 0
    %v5815 = vsel %vm1100, %v5362, 0
    %v5818 = vsel %vm1100, %v5377, 0
    %5820 = vmatpush.msra.mxu0 0.0
    %5821 = vmatpush.msra.mxu0 0.0
    %5822 = vmatpush.msra.mxu0 0.0
    %5823 = vmatpush.msra.mxu0 0.0
    %5824 = vmatpush.msra.mxu0 0.0
    %5825 = vmatpush.msra.mxu0 0.0
    %5826 = vmatpush.msra.mxu0 0.0
    %5827 = vmatpush.msra.mxu0 0.0
    %5828 = vmatpush.msra.mxu0 0.0
    %5829 = vmatpush.msra.mxu0 0.0
    %5830 = vmatpush.msra.mxu0 0.0
    %5831 = vmatpush.msra.mxu0 0.0
    %5832 = vmatpush.msra.mxu0 %v5803
    %5833 = vmatpush.msra.mxu0 %v5801
    %5834 = vmatpush.msra.mxu0 %v5799
    %5835 = vmatpush.msra.mxu0 %v5797
    %5836 = vmatmul.f32.gmra.mxu0 %v5809
    %v5837 = vpop.f32.mrf.mxu0
    %v5838 = vadd.f32 0.0, %v5837
    %5839 = vmatmul.f32.gmra.mxu0 %v5812
    %v5840 = vpop.f32.mrf.mxu0
    %v5841 = vadd.f32 0.0, %v5840
    %5842 = vmatmul.f32.gmra.mxu0 %v5815
    %v5843 = vpop.f32.mrf.mxu0
    %v5844 = vadd.f32 0.0, %v5843
    %5845 = vmatmul.f32.gmra.mxu0 %v5818
    %v5846 = vpop.f32.mrf.mxu0
    %v5847 = vadd.f32 0.0, %v5846
    %5848 = vdwg.mxu0
    %5853 = vrot.lane.b32.xlu0 %v4306, 96
    %v5854 = vpop.permute.xlu0 %5853
    %5855 = vrot.lane.b32.xlu0 %v4307, 96
    %v5856 = vpop.permute.xlu0 %5855
    %5857 = vrot.lane.b32.xlu0 %v4308, 96
    %v5858 = vpop.permute.xlu0 %5857
    %5859 = vrot.lane.b32.xlu0 %v4309, 96
    %v5860 = vpop.permute.xlu0 %5859
    %v5866 = vsel %vm1100, %v5392, 0
    %v5869 = vsel %vm1100, %v5407, 0
    %v5872 = vsel %vm1100, %v5422, 0
    %v5875 = vsel %vm1100, %v5437, 0
    %5877 = vmatpush.msra.mxu0 0.0
    %5878 = vmatpush.msra.mxu0 0.0
    %5879 = vmatpush.msra.mxu0 0.0
    %5880 = vmatpush.msra.mxu0 0.0
    %5881 = vmatpush.msra.mxu0 0.0
    %5882 = vmatpush.msra.mxu0 0.0
    %5883 = vmatpush.msra.mxu0 0.0
    %5884 = vmatpush.msra.mxu0 0.0
    %5885 = vmatpush.msra.mxu0 0.0
    %5886 = vmatpush.msra.mxu0 0.0
    %5887 = vmatpush.msra.mxu0 0.0
    %5888 = vmatpush.msra.mxu0 0.0
    %5889 = vmatpush.msra.mxu0 %v5860
    %5890 = vmatpush.msra.mxu0 %v5858
    %5891 = vmatpush.msra.mxu0 %v5856
    %5892 = vmatpush.msra.mxu0 %v5854
    %5893 = vmatmul.f32.gmra.mxu0 %v5866
    %v5894 = vpop.f32.mrf.mxu0
    %v5895 = vadd.f32 0.0, %v5894
    %5896 = vmatmul.f32.gmra.mxu0 %v5869
    %v5897 = vpop.f32.mrf.mxu0
    %v5898 = vadd.f32 0.0, %v5897
    %5899 = vmatmul.f32.gmra.mxu0 %v5872
    %v5900 = vpop.f32.mrf.mxu0
    %v5901 = vadd.f32 0.0, %v5900
    %5902 = vmatmul.f32.gmra.mxu0 %v5875
    %v5903 = vpop.f32.mrf.mxu0
    %v5904 = vadd.f32 0.0, %v5903
    %5905 = vdwg.mxu0
    %5910 = vrot.lane.b32.xlu0 %v4310, 96
    %v5911 = vpop.permute.xlu0 %5910
    %5912 = vrot.lane.b32.xlu0 %v4311, 96
    %v5913 = vpop.permute.xlu0 %5912
    %5914 = vrot.lane.b32.xlu0 %v4312, 96
    %v5915 = vpop.permute.xlu0 %5914
    %5916 = vrot.lane.b32.xlu0 %v4313, 96
    %v5917 = vpop.permute.xlu0 %5916
    %v5923 = vsel %vm1100, %v5452, 0
    %v5926 = vsel %vm1100, %v5467, 0
    %v5929 = vsel %vm1100, %v5482, 0
    %v5932 = vsel %vm1100, %v5497, 0
    %5934 = vmatpush.msra.mxu0 0.0
    %5935 = vmatpush.msra.mxu0 0.0
    %5936 = vmatpush.msra.mxu0 0.0
    %5937 = vmatpush.msra.mxu0 0.0
    %5938 = vmatpush.msra.mxu0 0.0
    %5939 = vmatpush.msra.mxu0 0.0
    %5940 = vmatpush.msra.mxu0 0.0
    %5941 = vmatpush.msra.mxu0 0.0
    %5942 = vmatpush.msra.mxu0 0.0
    %5943 = vmatpush.msra.mxu0 0.0
    %5944 = vmatpush.msra.mxu0 0.0
    %5945 = vmatpush.msra.mxu0 0.0
    %5946 = vmatpush.msra.mxu0 %v5917
    %5947 = vmatpush.msra.mxu0 %v5915
    %5948 = vmatpush.msra.mxu0 %v5913
    %5949 = vmatpush.msra.mxu0 %v5911
    %5950 = vmatmul.f32.gmra.mxu0 %v5923
    %v5951 = vpop.f32.mrf.mxu0
    %v5952 = vadd.f32 0.0, %v5951
    %5953 = vmatmul.f32.gmra.mxu0 %v5926
    %v5954 = vpop.f32.mrf.mxu0
    %v5955 = vadd.f32 0.0, %v5954
    %5956 = vmatmul.f32.gmra.mxu0 %v5929
    %v5957 = vpop.f32.mrf.mxu0
    %v5958 = vadd.f32 0.0, %v5957
    %5959 = vmatmul.f32.gmra.mxu0 %v5932
    %v5960 = vpop.f32.mrf.mxu0
    %v5961 = vadd.f32 0.0, %v5960
    %5962 = vdwg.mxu0
    %5967 = vrot.lane.b32.xlu0 %v4314, 96
    %v5968 = vpop.permute.xlu0 %5967
    %5969 = vrot.lane.b32.xlu0 %v4315, 96
    %v5970 = vpop.permute.xlu0 %5969
    %5971 = vrot.lane.b32.xlu0 %v4316, 96
    %v5972 = vpop.permute.xlu0 %5971
    %5973 = vrot.lane.b32.xlu0 %v4317, 96
    %v5974 = vpop.permute.xlu0 %5973
    %v5980 = vsel %vm1100, %v5512, 0
    %v5983 = vsel %vm1100, %v5527, 0
    %v5986 = vsel %vm1100, %v5542, 0
    %v5989 = vsel %vm1100, %v5557, 0
    %5991 = vmatpush.msra.mxu0 0.0
    %5992 = vmatpush.msra.mxu0 0.0
    %5993 = vmatpush.msra.mxu0 0.0
    %5994 = vmatpush.msra.mxu0 0.0
    %5995 = vmatpush.msra.mxu0 0.0
    %5996 = vmatpush.msra.mxu0 0.0
    %5997 = vmatpush.msra.mxu0 0.0
    %5998 = vmatpush.msra.mxu0 0.0
    %5999 = vmatpush.msra.mxu0 0.0
    %6000 = vmatpush.msra.mxu0 0.0
    %6001 = vmatpush.msra.mxu0 0.0
    %6002 = vmatpush.msra.mxu0 0.0
    %6003 = vmatpush.msra.mxu0 %v5974
    %6004 = vmatpush.msra.mxu0 %v5972
    %6005 = vmatpush.msra.mxu0 %v5970
    %6006 = vmatpush.msra.mxu0 %v5968
    %6007 = vmatmul.f32.gmra.mxu0 %v5980
    %v6008 = vpop.f32.mrf.mxu0
    %v6009 = vadd.f32 0.0, %v6008
    %6010 = vmatmul.f32.gmra.mxu0 %v5983
    %v6011 = vpop.f32.mrf.mxu0
    %v6012 = vadd.f32 0.0, %v6011
    %6013 = vmatmul.f32.gmra.mxu0 %v5986
    %v6014 = vpop.f32.mrf.mxu0
    %v6015 = vadd.f32 0.0, %v6014
    %6016 = vmatmul.f32.gmra.mxu0 %v5989
    %v6017 = vpop.f32.mrf.mxu0
    %v6018 = vadd.f32 0.0, %v6017
    %6019 = vdwg.mxu0
    %6024 = vrot.lane.b32.xlu0 %v4318, 96
    %v6025 = vpop.permute.xlu0 %6024
    %6026 = vrot.lane.b32.xlu0 %v4319, 96
    %v6027 = vpop.permute.xlu0 %6026
    %6028 = vrot.lane.b32.xlu0 %v4320, 96
    %v6029 = vpop.permute.xlu0 %6028
    %6030 = vrot.lane.b32.xlu0 %v4321, 96
    %v6031 = vpop.permute.xlu0 %6030
    %v6037 = vsel %vm1100, %v5572, 0
    %v6040 = vsel %vm1100, %v5587, 0
    %v6043 = vsel %vm1100, %v5602, 0
    %v6046 = vsel %vm1100, %v5617, 0
    %6048 = vmatpush.msra.mxu0 0.0
    %6049 = vmatpush.msra.mxu0 0.0
    %6050 = vmatpush.msra.mxu0 0.0
    %6051 = vmatpush.msra.mxu0 0.0
    %6052 = vmatpush.msra.mxu0 0.0
    %6053 = vmatpush.msra.mxu0 0.0
    %6054 = vmatpush.msra.mxu0 0.0
    %6055 = vmatpush.msra.mxu0 0.0
    %6056 = vmatpush.msra.mxu0 0.0
    %6057 = vmatpush.msra.mxu0 0.0
    %6058 = vmatpush.msra.mxu0 0.0
    %6059 = vmatpush.msra.mxu0 0.0
    %6060 = vmatpush.msra.mxu0 %v6031
    %6061 = vmatpush.msra.mxu0 %v6029
    %6062 = vmatpush.msra.mxu0 %v6027
    %6063 = vmatpush.msra.mxu0 %v6025
    %6064 = vmatmul.f32.gmra.mxu0 %v6037
    %v6065 = vpop.f32.mrf.mxu0
    %v6066 = vadd.f32 0.0, %v6065
    %6067 = vmatmul.f32.gmra.mxu0 %v6040
    %v6068 = vpop.f32.mrf.mxu0
    %v6069 = vadd.f32 0.0, %v6068
    %6070 = vmatmul.f32.gmra.mxu0 %v6043
    %v6071 = vpop.f32.mrf.mxu0
    %v6072 = vadd.f32 0.0, %v6071
    %6073 = vmatmul.f32.gmra.mxu0 %v6046
    %v6074 = vpop.f32.mrf.mxu0
    %v6075 = vadd.f32 0.0, %v6074
    %6076 = vdwg.mxu0
    %6081 = vrot.lane.b32.xlu0 %v4322, 96
    %v6082 = vpop.permute.xlu0 %6081
    %6083 = vrot.lane.b32.xlu0 %v4323, 96
    %v6084 = vpop.permute.xlu0 %6083
    %6085 = vrot.lane.b32.xlu0 %v4324, 96
    %v6086 = vpop.permute.xlu0 %6085
    %6087 = vrot.lane.b32.xlu0 %v4325, 96
    %v6088 = vpop.permute.xlu0 %6087
    %v6094 = vsel %vm1100, %v5632, 0
    %v6097 = vsel %vm1100, %v5647, 0
    %v6100 = vsel %vm1100, %v5662, 0
    %v6103 = vsel %vm1100, %v5677, 0
    %6105 = vmatpush.msra.mxu0 0.0
    %6106 = vmatpush.msra.mxu0 0.0
    %6107 = vmatpush.msra.mxu0 0.0
    %6108 = vmatpush.msra.mxu0 0.0
    %6109 = vmatpush.msra.mxu0 0.0
    %6110 = vmatpush.msra.mxu0 0.0
    %6111 = vmatpush.msra.mxu0 0.0
    %6112 = vmatpush.msra.mxu0 0.0
    %6113 = vmatpush.msra.mxu0 0.0
    %6114 = vmatpush.msra.mxu0 0.0
    %6115 = vmatpush.msra.mxu0 0.0
    %6116 = vmatpush.msra.mxu0 0.0
    %6117 = vmatpush.msra.mxu0 %v6088
    %6118 = vmatpush.msra.mxu0 %v6086
    %6119 = vmatpush.msra.mxu0 %v6084
    %6120 = vmatpush.msra.mxu0 %v6082
    %6121 = vmatmul.f32.gmra.mxu0 %v6094
    %v6122 = vpop.f32.mrf.mxu0
    %v6123 = vadd.f32 0.0, %v6122
    %6124 = vmatmul.f32.gmra.mxu0 %v6097
    %v6125 = vpop.f32.mrf.mxu0
    %v6126 = vadd.f32 0.0, %v6125
    %6127 = vmatmul.f32.gmra.mxu0 %v6100
    %v6128 = vpop.f32.mrf.mxu0
    %v6129 = vadd.f32 0.0, %v6128
    %6130 = vmatmul.f32.gmra.mxu0 %v6103
    %v6131 = vpop.f32.mrf.mxu0
    %v6132 = vadd.f32 0.0, %v6131
    %6133 = vdwg.mxu0
    %6166 = vrot.lane.b32.xlu0 %v5724, 32
    %v6167 = vpop.permute.xlu0 %6166
    %6168 = vrot.lane.b32.xlu0 %v5727, 32
    %v6169 = vpop.permute.xlu0 %6168
    %6170 = vrot.lane.b32.xlu0 %v5730, 32
    %v6171 = vpop.permute.xlu0 %6170
    %6172 = vrot.lane.b32.xlu0 %v5733, 32
    %v6173 = vpop.permute.xlu0 %6172
    %6174 = vrot.lane.b32.xlu0 %v5781, 32
    %v6175 = vpop.permute.xlu0 %6174
    %6176 = vrot.lane.b32.xlu0 %v5784, 32
    %v6177 = vpop.permute.xlu0 %6176
    %6178 = vrot.lane.b32.xlu0 %v5787, 32
    %v6179 = vpop.permute.xlu0 %6178
    %6180 = vrot.lane.b32.xlu0 %v5790, 32
    %v6181 = vpop.permute.xlu0 %6180
    %6182 = vrot.lane.b32.xlu0 %v5838, 32
    %v6183 = vpop.permute.xlu0 %6182
    %6184 = vrot.lane.b32.xlu0 %v5841, 32
    %v6185 = vpop.permute.xlu0 %6184
    %6186 = vrot.lane.b32.xlu0 %v5844, 32
    %v6187 = vpop.permute.xlu0 %6186
    %6188 = vrot.lane.b32.xlu0 %v5847, 32
    %v6189 = vpop.permute.xlu0 %6188
    %6190 = vrot.lane.b32.xlu0 %v5895, 32
    %v6191 = vpop.permute.xlu0 %6190
    %6192 = vrot.lane.b32.xlu0 %v5898, 32
    %v6193 = vpop.permute.xlu0 %6192
    %6194 = vrot.lane.b32.xlu0 %v5901, 32
    %v6195 = vpop.permute.xlu0 %6194
    %6196 = vrot.lane.b32.xlu0 %v5904, 32
    %v6197 = vpop.permute.xlu0 %6196
    %6198 = vrot.lane.b32.xlu0 %v5952, 32
    %v6199 = vpop.permute.xlu0 %6198
    %6200 = vrot.lane.b32.xlu0 %v5955, 32
    %v6201 = vpop.permute.xlu0 %6200
    %6202 = vrot.lane.b32.xlu0 %v5958, 32
    %v6203 = vpop.permute.xlu0 %6202
    %6204 = vrot.lane.b32.xlu0 %v5961, 32
    %v6205 = vpop.permute.xlu0 %6204
    %6206 = vrot.lane.b32.xlu0 %v6009, 32
    %v6207 = vpop.permute.xlu0 %6206
    %6208 = vrot.lane.b32.xlu0 %v6012, 32
    %v6209 = vpop.permute.xlu0 %6208
    %6210 = vrot.lane.b32.xlu0 %v6015, 32
    %v6211 = vpop.permute.xlu0 %6210
    %6212 = vrot.lane.b32.xlu0 %v6018, 32
    %v6213 = vpop.permute.xlu0 %6212
    %6214 = vrot.lane.b32.xlu0 %v6066, 32
    %v6215 = vpop.permute.xlu0 %6214
    %6216 = vrot.lane.b32.xlu0 %v6069, 32
    %v6217 = vpop.permute.xlu0 %6216
    %6218 = vrot.lane.b32.xlu0 %v6072, 32
    %v6219 = vpop.permute.xlu0 %6218
    %6220 = vrot.lane.b32.xlu0 %v6075, 32
    %v6221 = vpop.permute.xlu0 %6220
    %6222 = vrot.lane.b32.xlu0 %v6123, 32
    %v6223 = vpop.permute.xlu0 %6222
    %6224 = vrot.lane.b32.xlu0 %v6126, 32
    %v6225 = vpop.permute.xlu0 %6224
    %6226 = vrot.lane.b32.xlu0 %v6129, 32
    %v6227 = vpop.permute.xlu0 %6226
    %6228 = vrot.lane.b32.xlu0 %v6132, 32
    %v6229 = vpop.permute.xlu0 %6228
    %vm6262 = vcmask 392448
    %6263 = vst.msk [vmem:[#allocation3] sm:$0xff] %vm6262, %v6167
    %6264 = vst.msk [vmem:[#allocation3 + $0x8] sm:$0xff] %vm6262, %v6169
    %6265 = vst.msk [vmem:[#allocation3 + $0x10] sm:$0xff] %vm6262, %v6171
    %6266 = vst.msk [vmem:[#allocation3 + $0x18] sm:$0xff] %vm6262, %v6173
    %6267 = vst.msk [vmem:[#allocation3 + $0x20] sm:$0xff] %vm6262, %v6175
    %6268 = vst.msk [vmem:[#allocation3 + $0x28] sm:$0xff] %vm6262, %v6177
    %6269 = vst.msk [vmem:[#allocation3 + $0x30] sm:$0xff] %vm6262, %v6179
    %6270 = vst.msk [vmem:[#allocation3 + $0x38] sm:$0xff] %vm6262, %v6181
    %6271 = vst.msk [vmem:[#allocation3 + $0x40] sm:$0xff] %vm6262, %v6183
    %6272 = vst.msk [vmem:[#allocation3 + $0x48] sm:$0xff] %vm6262, %v6185
    %6273 = vst.msk [vmem:[#allocation3 + $0x50] sm:$0xff] %vm6262, %v6187
    %6274 = vst.msk [vmem:[#allocation3 + $0x58] sm:$0xff] %vm6262, %v6189
    %6275 = vst.msk [vmem:[#allocation3 + $0x60] sm:$0xff] %vm6262, %v6191
    %6276 = vst.msk [vmem:[#allocation3 + $0x68] sm:$0xff] %vm6262, %v6193
    %6277 = vst.msk [vmem:[#allocation3 + $0x70] sm:$0xff] %vm6262, %v6195
    %6278 = vst.msk [vmem:[#allocation3 + $0x78] sm:$0xff] %vm6262, %v6197
    %6279 = vst.msk [vmem:[#allocation3 + $0x80] sm:$0xff] %vm6262, %v6199
    %6280 = vst.msk [vmem:[#allocation3 + $0x88] sm:$0xff] %vm6262, %v6201
    %6281 = vst.msk [vmem:[#allocation3 + $0x90] sm:$0xff] %vm6262, %v6203
    %6282 = vst.msk [vmem:[#allocation3 + $0x98] sm:$0xff] %vm6262, %v6205
    %6283 = vst.msk [vmem:[#allocation3 + $0xa0] sm:$0xff] %vm6262, %v6207
    %6284 = vst.msk [vmem:[#allocation3 + $0xa8] sm:$0xff] %vm6262, %v6209
    %6285 = vst.msk [vmem:[#allocation3 + $0xb0] sm:$0xff] %vm6262, %v6211
    %6286 = vst.msk [vmem:[#allocation3 + $0xb8] sm:$0xff] %vm6262, %v6213
    %6287 = vst.msk [vmem:[#allocation3 + $0xc0] sm:$0xff] %vm6262, %v6215
    %6288 = vst.msk [vmem:[#allocation3 + $0xc8] sm:$0xff] %vm6262, %v6217
    %6289 = vst.msk [vmem:[#allocation3 + $0xd0] sm:$0xff] %vm6262, %v6219
    %6290 = vst.msk [vmem:[#allocation3 + $0xd8] sm:$0xff] %vm6262, %v6221
    %6291 = vst.msk [vmem:[#allocation3 + $0xe0] sm:$0xff] %vm6262, %v6223
    %6292 = vst.msk [vmem:[#allocation3 + $0xe8] sm:$0xff] %vm6262, %v6225
    %6293 = vst.msk [vmem:[#allocation3 + $0xf0] sm:$0xff] %vm6262, %v6227
    %6294 = vst.msk [vmem:[#allocation3 + $0xf8] sm:$0xff] %vm6262, %v6229
    %v6295 = vld [vmem:[#allocation2] sm:$0xff]
    %v6296 = vld [vmem:[#allocation2 + $0x10] sm:$0xff]
    %v6297 = vld [vmem:[#allocation2 + $0x20] sm:$0xff]
    %v6298 = vld [vmem:[#allocation2 + $0x30] sm:$0xff]
    %v6299 = vld [vmem:[#allocation2 + $0x40] sm:$0xff]
    %v6300 = vld [vmem:[#allocation2 + $0x50] sm:$0xff]
    %v6301 = vld [vmem:[#allocation2 + $0x60] sm:$0xff]
    %v6302 = vld [vmem:[#allocation2 + $0x70] sm:$0xff]
    %v6303 = vld [vmem:[#allocation2 + $0x80] sm:$0xff]
    %v6304 = vld [vmem:[#allocation2 + $0x90] sm:$0xff]
    %v6305 = vld [vmem:[#allocation2 + $0xa0] sm:$0xff]
    %v6306 = vld [vmem:[#allocation2 + $0xb0] sm:$0xff]
    %v6307 = vld [vmem:[#allocation2 + $0xc0] sm:$0xff]
    %v6308 = vld [vmem:[#allocation2 + $0xd0] sm:$0xff]
    %v6309 = vld [vmem:[#allocation2 + $0xe0] sm:$0xff]
    %v6310 = vld [vmem:[#allocation2 + $0xf0] sm:$0xff]
    %v6311 = vld [vmem:[#allocation2 + $0x100] sm:$0xff]
    %v6312 = vld [vmem:[#allocation2 + $0x110] sm:$0xff]
    %v6313 = vld [vmem:[#allocation2 + $0x120] sm:$0xff]
    %v6314 = vld [vmem:[#allocation2 + $0x130] sm:$0xff]
    %v6315 = vld [vmem:[#allocation2 + $0x140] sm:$0xff]
    %v6316 = vld [vmem:[#allocation2 + $0x150] sm:$0xff]
    %v6317 = vld [vmem:[#allocation2 + $0x160] sm:$0xff]
    %v6318 = vld [vmem:[#allocation2 + $0x170] sm:$0xff]
    %v6319 = vld [vmem:[#allocation2 + $0x180] sm:$0xff]
    %v6320 = vld [vmem:[#allocation2 + $0x190] sm:$0xff]
    %v6321 = vld [vmem:[#allocation2 + $0x1a0] sm:$0xff]
    %v6322 = vld [vmem:[#allocation2 + $0x1b0] sm:$0xff]
    %v6323 = vld [vmem:[#allocation2 + $0x1c0] sm:$0xff]
    %v6324 = vld [vmem:[#allocation2 + $0x1d0] sm:$0xff]
    %v6325 = vld [vmem:[#allocation2 + $0x1e0] sm:$0xff]
    %v6326 = vld [vmem:[#allocation2 + $0x1f0] sm:$0xff]
    %v6327 = vld [vmem:[#allocation2 + $0x8] sm:$0xff]
    %v6328 = vld [vmem:[#allocation2 + $0x18] sm:$0xff]
    %v6329 = vld [vmem:[#allocation2 + $0x28] sm:$0xff]
    %v6330 = vld [vmem:[#allocation2 + $0x38] sm:$0xff]
    %v6331 = vld [vmem:[#allocation2 + $0x48] sm:$0xff]
    %v6332 = vld [vmem:[#allocation2 + $0x58] sm:$0xff]
    %v6333 = vld [vmem:[#allocation2 + $0x68] sm:$0xff]
    %v6334 = vld [vmem:[#allocation2 + $0x78] sm:$0xff]
    %v6335 = vld [vmem:[#allocation2 + $0x88] sm:$0xff]
    %v6336 = vld [vmem:[#allocation2 + $0x98] sm:$0xff]
    %v6337 = vld [vmem:[#allocation2 + $0xa8] sm:$0xff]
    %v6338 = vld [vmem:[#allocation2 + $0xb8] sm:$0xff]
    %v6339 = vld [vmem:[#allocation2 + $0xc8] sm:$0xff]
    %v6340 = vld [vmem:[#allocation2 + $0xd8] sm:$0xff]
    %v6341 = vld [vmem:[#allocation2 + $0xe8] sm:$0xff]
    %v6342 = vld [vmem:[#allocation2 + $0xf8] sm:$0xff]
    %v6343 = vld [vmem:[#allocation2 + $0x108] sm:$0xff]
    %v6344 = vld [vmem:[#allocation2 + $0x118] sm:$0xff]
    %v6345 = vld [vmem:[#allocation2 + $0x128] sm:$0xff]
    %v6346 = vld [vmem:[#allocation2 + $0x138] sm:$0xff]
    %v6347 = vld [vmem:[#allocation2 + $0x148] sm:$0xff]
    %v6348 = vld [vmem:[#allocation2 + $0x158] sm:$0xff]
    %v6349 = vld [vmem:[#allocation2 + $0x168] sm:$0xff]
    %v6350 = vld [vmem:[#allocation2 + $0x178] sm:$0xff]
    %v6351 = vld [vmem:[#allocation2 + $0x188] sm:$0xff]
    %v6352 = vld [vmem:[#allocation2 + $0x198] sm:$0xff]
    %v6353 = vld [vmem:[#allocation2 + $0x1a8] sm:$0xff]
    %v6354 = vld [vmem:[#allocation2 + $0x1b8] sm:$0xff]
    %v6355 = vld [vmem:[#allocation2 + $0x1c8] sm:$0xff]
    %v6356 = vld [vmem:[#allocation2 + $0x1d8] sm:$0xff]
    %v6357 = vld [vmem:[#allocation2 + $0x1e8] sm:$0xff]
    %v6358 = vld [vmem:[#allocation2 + $0x1f8] sm:$0xff]
    %6363 = vrot.lane.b32.xlu0 %v6295, 80
    %v6364 = vpop.permute.xlu0 %6363
    %6365 = vrot.lane.b32.xlu0 %v6296, 80
    %v6366 = vpop.permute.xlu0 %6365
    %6367 = vrot.lane.b32.xlu0 %v6297, 80
    %v6368 = vpop.permute.xlu0 %6367
    %6369 = vrot.lane.b32.xlu0 %v6298, 80
    %v6370 = vpop.permute.xlu0 %6369
    %6371 = vrot.lane.b32.xlu0 %v6295, 16
    %v6372 = vpop.permute.xlu0 %6371
    %6373 = vrot.lane.b32.xlu0 %v6296, 16
    %v6374 = vpop.permute.xlu0 %6373
    %6375 = vrot.lane.b32.xlu0 %v6297, 16
    %v6376 = vpop.permute.xlu0 %6375
    %6377 = vrot.lane.b32.xlu0 %v6298, 16
    %v6378 = vpop.permute.xlu0 %6377
    %v6379 = vsel %vm591, %v6364, 0
    %v6381 = vsel %vm591, %v6366, 0
    %v6383 = vsel %vm591, %v6368, 0
    %v6385 = vsel %vm591, %v6370, 0
    %v6387 = vsel %vm591, %v6372, 0
    %v6389 = vsel %vm591, %v6374, 0
    %v6391 = vsel %vm591, %v6376, 0
    %v6393 = vsel %vm591, %v6378, 0
    %6395 = vmatpush.xpose.msra.mxu0 0.0
    %6396 = vmatpush.xpose.msra.mxu0 0.0
    %6397 = vmatpush.xpose.msra.mxu0 0.0
    %6398 = vmatpush.xpose.msra.mxu0 0.0
    %6399 = vmatpush.xpose.msra.mxu0 0.0
    %6400 = vmatpush.xpose.msra.mxu0 0.0
    %6401 = vmatpush.xpose.msra.mxu0 0.0
    %6402 = vmatpush.xpose.msra.mxu0 0.0
    %6403 = vmatpush.xpose.msra.mxu0 0.0
    %6404 = vmatpush.xpose.msra.mxu0 0.0
    %6405 = vmatpush.xpose.msra.mxu0 0.0
    %6406 = vmatpush.xpose.msra.mxu0 0.0
    %6407 = vmatpush.xpose.msra.mxu0 %v6393
    %6408 = vmatpush.xpose.msra.mxu0 %v6391
    %6409 = vmatpush.xpose.msra.mxu0 %v6389
    %6410 = vmatpush.xpose.msra.mxu0 %v6387
    %6411 = vmatmul.f32.gmra.mxu0 %v6379
    %v6412 = vpop.f32.mrf.mxu0
    %v6413 = vadd.f32 0.0, %v6412
    %6414 = vmatmul.f32.gmra.mxu0 %v6381
    %v6415 = vpop.f32.mrf.mxu0
    %v6416 = vadd.f32 0.0, %v6415
    %6417 = vmatmul.f32.gmra.mxu0 %v6383
    %v6418 = vpop.f32.mrf.mxu0
    %v6419 = vadd.f32 0.0, %v6418
    %6420 = vmatmul.f32.gmra.mxu0 %v6385
    %v6421 = vpop.f32.mrf.mxu0
    %v6422 = vadd.f32 0.0, %v6421
    %6423 = vdwg.mxu0
    %6428 = vrot.lane.b32.xlu0 %v6299, 80
    %v6429 = vpop.permute.xlu0 %6428
    %6430 = vrot.lane.b32.xlu0 %v6300, 80
    %v6431 = vpop.permute.xlu0 %6430
    %6432 = vrot.lane.b32.xlu0 %v6301, 80
    %v6433 = vpop.permute.xlu0 %6432
    %6434 = vrot.lane.b32.xlu0 %v6302, 80
    %v6435 = vpop.permute.xlu0 %6434
    %6436 = vrot.lane.b32.xlu0 %v6299, 16
    %v6437 = vpop.permute.xlu0 %6436
    %6438 = vrot.lane.b32.xlu0 %v6300, 16
    %v6439 = vpop.permute.xlu0 %6438
    %6440 = vrot.lane.b32.xlu0 %v6301, 16
    %v6441 = vpop.permute.xlu0 %6440
    %6442 = vrot.lane.b32.xlu0 %v6302, 16
    %v6443 = vpop.permute.xlu0 %6442
    %v6444 = vsel %vm591, %v6429, 0
    %v6446 = vsel %vm591, %v6431, 0
    %v6448 = vsel %vm591, %v6433, 0
    %v6450 = vsel %vm591, %v6435, 0
    %v6452 = vsel %vm591, %v6437, 0
    %v6454 = vsel %vm591, %v6439, 0
    %v6456 = vsel %vm591, %v6441, 0
    %v6458 = vsel %vm591, %v6443, 0
    %6460 = vmatpush.xpose.msra.mxu0 0.0
    %6461 = vmatpush.xpose.msra.mxu0 0.0
    %6462 = vmatpush.xpose.msra.mxu0 0.0
    %6463 = vmatpush.xpose.msra.mxu0 0.0
    %6464 = vmatpush.xpose.msra.mxu0 0.0
    %6465 = vmatpush.xpose.msra.mxu0 0.0
    %6466 = vmatpush.xpose.msra.mxu0 0.0
    %6467 = vmatpush.xpose.msra.mxu0 0.0
    %6468 = vmatpush.xpose.msra.mxu0 0.0
    %6469 = vmatpush.xpose.msra.mxu0 0.0
    %6470 = vmatpush.xpose.msra.mxu0 0.0
    %6471 = vmatpush.xpose.msra.mxu0 0.0
    %6472 = vmatpush.xpose.msra.mxu0 %v6458
    %6473 = vmatpush.xpose.msra.mxu0 %v6456
    %6474 = vmatpush.xpose.msra.mxu0 %v6454
    %6475 = vmatpush.xpose.msra.mxu0 %v6452
    %6476 = vmatmul.f32.gmra.mxu0 %v6444
    %v6477 = vpop.f32.mrf.mxu0
    %v6478 = vadd.f32 0.0, %v6477
    %6479 = vmatmul.f32.gmra.mxu0 %v6446
    %v6480 = vpop.f32.mrf.mxu0
    %v6481 = vadd.f32 0.0, %v6480
    %6482 = vmatmul.f32.gmra.mxu0 %v6448
    %v6483 = vpop.f32.mrf.mxu0
    %v6484 = vadd.f32 0.0, %v6483
    %6485 = vmatmul.f32.gmra.mxu0 %v6450
    %v6486 = vpop.f32.mrf.mxu0
    %v6487 = vadd.f32 0.0, %v6486
    %6488 = vdwg.mxu0
    %6493 = vrot.lane.b32.xlu0 %v6303, 80
    %v6494 = vpop.permute.xlu0 %6493
    %6495 = vrot.lane.b32.xlu0 %v6304, 80
    %v6496 = vpop.permute.xlu0 %6495
    %6497 = vrot.lane.b32.xlu0 %v6305, 80
    %v6498 = vpop.permute.xlu0 %6497
    %6499 = vrot.lane.b32.xlu0 %v6306, 80
    %v6500 = vpop.permute.xlu0 %6499
    %6501 = vrot.lane.b32.xlu0 %v6303, 16
    %v6502 = vpop.permute.xlu0 %6501
    %6503 = vrot.lane.b32.xlu0 %v6304, 16
    %v6504 = vpop.permute.xlu0 %6503
    %6505 = vrot.lane.b32.xlu0 %v6305, 16
    %v6506 = vpop.permute.xlu0 %6505
    %6507 = vrot.lane.b32.xlu0 %v6306, 16
    %v6508 = vpop.permute.xlu0 %6507
    %v6509 = vsel %vm591, %v6494, 0
    %v6511 = vsel %vm591, %v6496, 0
    %v6513 = vsel %vm591, %v6498, 0
    %v6515 = vsel %vm591, %v6500, 0
    %v6517 = vsel %vm591, %v6502, 0
    %v6519 = vsel %vm591, %v6504, 0
    %v6521 = vsel %vm591, %v6506, 0
    %v6523 = vsel %vm591, %v6508, 0
    %6525 = vmatpush.xpose.msra.mxu0 0.0
    %6526 = vmatpush.xpose.msra.mxu0 0.0
    %6527 = vmatpush.xpose.msra.mxu0 0.0
    %6528 = vmatpush.xpose.msra.mxu0 0.0
    %6529 = vmatpush.xpose.msra.mxu0 0.0
    %6530 = vmatpush.xpose.msra.mxu0 0.0
    %6531 = vmatpush.xpose.msra.mxu0 0.0
    %6532 = vmatpush.xpose.msra.mxu0 0.0
    %6533 = vmatpush.xpose.msra.mxu0 0.0
    %6534 = vmatpush.xpose.msra.mxu0 0.0
    %6535 = vmatpush.xpose.msra.mxu0 0.0
    %6536 = vmatpush.xpose.msra.mxu0 0.0
    %6537 = vmatpush.xpose.msra.mxu0 %v6523
    %6538 = vmatpush.xpose.msra.mxu0 %v6521
    %6539 = vmatpush.xpose.msra.mxu0 %v6519
    %6540 = vmatpush.xpose.msra.mxu0 %v6517
    %6541 = vmatmul.f32.gmra.mxu0 %v6509
    %v6542 = vpop.f32.mrf.mxu0
    %v6543 = vadd.f32 0.0, %v6542
    %6544 = vmatmul.f32.gmra.mxu0 %v6511
    %v6545 = vpop.f32.mrf.mxu0
    %v6546 = vadd.f32 0.0, %v6545
    %6547 = vmatmul.f32.gmra.mxu0 %v6513
    %v6548 = vpop.f32.mrf.mxu0
    %v6549 = vadd.f32 0.0, %v6548
    %6550 = vmatmul.f32.gmra.mxu0 %v6515
    %v6551 = vpop.f32.mrf.mxu0
    %v6552 = vadd.f32 0.0, %v6551
    %6553 = vdwg.mxu0
    %6558 = vrot.lane.b32.xlu0 %v6307, 80
    %v6559 = vpop.permute.xlu0 %6558
    %6560 = vrot.lane.b32.xlu0 %v6308, 80
    %v6561 = vpop.permute.xlu0 %6560
    %6562 = vrot.lane.b32.xlu0 %v6309, 80
    %v6563 = vpop.permute.xlu0 %6562
    %6564 = vrot.lane.b32.xlu0 %v6310, 80
    %v6565 = vpop.permute.xlu0 %6564
    %6566 = vrot.lane.b32.xlu0 %v6307, 16
    %v6567 = vpop.permute.xlu0 %6566
    %6568 = vrot.lane.b32.xlu0 %v6308, 16
    %v6569 = vpop.permute.xlu0 %6568
    %6570 = vrot.lane.b32.xlu0 %v6309, 16
    %v6571 = vpop.permute.xlu0 %6570
    %6572 = vrot.lane.b32.xlu0 %v6310, 16
    %v6573 = vpop.permute.xlu0 %6572
    %v6574 = vsel %vm591, %v6559, 0
    %v6576 = vsel %vm591, %v6561, 0
    %v6578 = vsel %vm591, %v6563, 0
    %v6580 = vsel %vm591, %v6565, 0
    %v6582 = vsel %vm591, %v6567, 0
    %v6584 = vsel %vm591, %v6569, 0
    %v6586 = vsel %vm591, %v6571, 0
    %v6588 = vsel %vm591, %v6573, 0
    %6590 = vmatpush.xpose.msra.mxu0 0.0
    %6591 = vmatpush.xpose.msra.mxu0 0.0
    %6592 = vmatpush.xpose.msra.mxu0 0.0
    %6593 = vmatpush.xpose.msra.mxu0 0.0
    %6594 = vmatpush.xpose.msra.mxu0 0.0
    %6595 = vmatpush.xpose.msra.mxu0 0.0
    %6596 = vmatpush.xpose.msra.mxu0 0.0
    %6597 = vmatpush.xpose.msra.mxu0 0.0
    %6598 = vmatpush.xpose.msra.mxu0 0.0
    %6599 = vmatpush.xpose.msra.mxu0 0.0
    %6600 = vmatpush.xpose.msra.mxu0 0.0
    %6601 = vmatpush.xpose.msra.mxu0 0.0
    %6602 = vmatpush.xpose.msra.mxu0 %v6588
    %6603 = vmatpush.xpose.msra.mxu0 %v6586
    %6604 = vmatpush.xpose.msra.mxu0 %v6584
    %6605 = vmatpush.xpose.msra.mxu0 %v6582
    %6606 = vmatmul.f32.gmra.mxu0 %v6574
    %v6607 = vpop.f32.mrf.mxu0
    %v6608 = vadd.f32 0.0, %v6607
    %6609 = vmatmul.f32.gmra.mxu0 %v6576
    %v6610 = vpop.f32.mrf.mxu0
    %v6611 = vadd.f32 0.0, %v6610
    %6612 = vmatmul.f32.gmra.mxu0 %v6578
    %v6613 = vpop.f32.mrf.mxu0
    %v6614 = vadd.f32 0.0, %v6613
    %6615 = vmatmul.f32.gmra.mxu0 %v6580
    %v6616 = vpop.f32.mrf.mxu0
    %v6617 = vadd.f32 0.0, %v6616
    %6618 = vdwg.mxu0
    %6623 = vrot.lane.b32.xlu0 %v6311, 80
    %v6624 = vpop.permute.xlu0 %6623
    %6625 = vrot.lane.b32.xlu0 %v6312, 80
    %v6626 = vpop.permute.xlu0 %6625
    %6627 = vrot.lane.b32.xlu0 %v6313, 80
    %v6628 = vpop.permute.xlu0 %6627
    %6629 = vrot.lane.b32.xlu0 %v6314, 80
    %v6630 = vpop.permute.xlu0 %6629
    %6631 = vrot.lane.b32.xlu0 %v6311, 16
    %v6632 = vpop.permute.xlu0 %6631
    %6633 = vrot.lane.b32.xlu0 %v6312, 16
    %v6634 = vpop.permute.xlu0 %6633
    %6635 = vrot.lane.b32.xlu0 %v6313, 16
    %v6636 = vpop.permute.xlu0 %6635
    %6637 = vrot.lane.b32.xlu0 %v6314, 16
    %v6638 = vpop.permute.xlu0 %6637
    %v6639 = vsel %vm591, %v6624, 0
    %v6641 = vsel %vm591, %v6626, 0
    %v6643 = vsel %vm591, %v6628, 0
    %v6645 = vsel %vm591, %v6630, 0
    %v6647 = vsel %vm591, %v6632, 0
    %v6649 = vsel %vm591, %v6634, 0
    %v6651 = vsel %vm591, %v6636, 0
    %v6653 = vsel %vm591, %v6638, 0
    %6655 = vmatpush.xpose.msra.mxu0 0.0
    %6656 = vmatpush.xpose.msra.mxu0 0.0
    %6657 = vmatpush.xpose.msra.mxu0 0.0
    %6658 = vmatpush.xpose.msra.mxu0 0.0
    %6659 = vmatpush.xpose.msra.mxu0 0.0
    %6660 = vmatpush.xpose.msra.mxu0 0.0
    %6661 = vmatpush.xpose.msra.mxu0 0.0
    %6662 = vmatpush.xpose.msra.mxu0 0.0
    %6663 = vmatpush.xpose.msra.mxu0 0.0
    %6664 = vmatpush.xpose.msra.mxu0 0.0
    %6665 = vmatpush.xpose.msra.mxu0 0.0
    %6666 = vmatpush.xpose.msra.mxu0 0.0
    %6667 = vmatpush.xpose.msra.mxu0 %v6653
    %6668 = vmatpush.xpose.msra.mxu0 %v6651
    %6669 = vmatpush.xpose.msra.mxu0 %v6649
    %6670 = vmatpush.xpose.msra.mxu0 %v6647
    %6671 = vmatmul.f32.gmra.mxu0 %v6639
    %v6672 = vpop.f32.mrf.mxu0
    %v6673 = vadd.f32 0.0, %v6672
    %6674 = vmatmul.f32.gmra.mxu0 %v6641
    %v6675 = vpop.f32.mrf.mxu0
    %v6676 = vadd.f32 0.0, %v6675
    %6677 = vmatmul.f32.gmra.mxu0 %v6643
    %v6678 = vpop.f32.mrf.mxu0
    %v6679 = vadd.f32 0.0, %v6678
    %6680 = vmatmul.f32.gmra.mxu0 %v6645
    %v6681 = vpop.f32.mrf.mxu0
    %v6682 = vadd.f32 0.0, %v6681
    %6683 = vdwg.mxu0
    %6688 = vrot.lane.b32.xlu0 %v6315, 80
    %v6689 = vpop.permute.xlu0 %6688
    %6690 = vrot.lane.b32.xlu0 %v6316, 80
    %v6691 = vpop.permute.xlu0 %6690
    %6692 = vrot.lane.b32.xlu0 %v6317, 80
    %v6693 = vpop.permute.xlu0 %6692
    %6694 = vrot.lane.b32.xlu0 %v6318, 80
    %v6695 = vpop.permute.xlu0 %6694
    %6696 = vrot.lane.b32.xlu0 %v6315, 16
    %v6697 = vpop.permute.xlu0 %6696
    %6698 = vrot.lane.b32.xlu0 %v6316, 16
    %v6699 = vpop.permute.xlu0 %6698
    %6700 = vrot.lane.b32.xlu0 %v6317, 16
    %v6701 = vpop.permute.xlu0 %6700
    %6702 = vrot.lane.b32.xlu0 %v6318, 16
    %v6703 = vpop.permute.xlu0 %6702
    %v6704 = vsel %vm591, %v6689, 0
    %v6706 = vsel %vm591, %v6691, 0
    %v6708 = vsel %vm591, %v6693, 0
    %v6710 = vsel %vm591, %v6695, 0
    %v6712 = vsel %vm591, %v6697, 0
    %v6714 = vsel %vm591, %v6699, 0
    %v6716 = vsel %vm591, %v6701, 0
    %v6718 = vsel %vm591, %v6703, 0
    %6720 = vmatpush.xpose.msra.mxu0 0.0
    %6721 = vmatpush.xpose.msra.mxu0 0.0
    %6722 = vmatpush.xpose.msra.mxu0 0.0
    %6723 = vmatpush.xpose.msra.mxu0 0.0
    %6724 = vmatpush.xpose.msra.mxu0 0.0
    %6725 = vmatpush.xpose.msra.mxu0 0.0
    %6726 = vmatpush.xpose.msra.mxu0 0.0
    %6727 = vmatpush.xpose.msra.mxu0 0.0
    %6728 = vmatpush.xpose.msra.mxu0 0.0
    %6729 = vmatpush.xpose.msra.mxu0 0.0
    %6730 = vmatpush.xpose.msra.mxu0 0.0
    %6731 = vmatpush.xpose.msra.mxu0 0.0
    %6732 = vmatpush.xpose.msra.mxu0 %v6718
    %6733 = vmatpush.xpose.msra.mxu0 %v6716
    %6734 = vmatpush.xpose.msra.mxu0 %v6714
    %6735 = vmatpush.xpose.msra.mxu0 %v6712
    %6736 = vmatmul.f32.gmra.mxu0 %v6704
    %v6737 = vpop.f32.mrf.mxu0
    %v6738 = vadd.f32 0.0, %v6737
    %6739 = vmatmul.f32.gmra.mxu0 %v6706
    %v6740 = vpop.f32.mrf.mxu0
    %v6741 = vadd.f32 0.0, %v6740
    %6742 = vmatmul.f32.gmra.mxu0 %v6708
    %v6743 = vpop.f32.mrf.mxu0
    %v6744 = vadd.f32 0.0, %v6743
    %6745 = vmatmul.f32.gmra.mxu0 %v6710
    %v6746 = vpop.f32.mrf.mxu0
    %v6747 = vadd.f32 0.0, %v6746
    %6748 = vdwg.mxu0
    %6753 = vrot.lane.b32.xlu0 %v6319, 80
    %v6754 = vpop.permute.xlu0 %6753
    %6755 = vrot.lane.b32.xlu0 %v6320, 80
    %v6756 = vpop.permute.xlu0 %6755
    %6757 = vrot.lane.b32.xlu0 %v6321, 80
    %v6758 = vpop.permute.xlu0 %6757
    %6759 = vrot.lane.b32.xlu0 %v6322, 80
    %v6760 = vpop.permute.xlu0 %6759
    %6761 = vrot.lane.b32.xlu0 %v6319, 16
    %v6762 = vpop.permute.xlu0 %6761
    %6763 = vrot.lane.b32.xlu0 %v6320, 16
    %v6764 = vpop.permute.xlu0 %6763
    %6765 = vrot.lane.b32.xlu0 %v6321, 16
    %v6766 = vpop.permute.xlu0 %6765
    %6767 = vrot.lane.b32.xlu0 %v6322, 16
    %v6768 = vpop.permute.xlu0 %6767
    %v6769 = vsel %vm591, %v6754, 0
    %v6771 = vsel %vm591, %v6756, 0
    %v6773 = vsel %vm591, %v6758, 0
    %v6775 = vsel %vm591, %v6760, 0
    %v6777 = vsel %vm591, %v6762, 0
    %v6779 = vsel %vm591, %v6764, 0
    %v6781 = vsel %vm591, %v6766, 0
    %v6783 = vsel %vm591, %v6768, 0
    %6785 = vmatpush.xpose.msra.mxu0 0.0
    %6786 = vmatpush.xpose.msra.mxu0 0.0
    %6787 = vmatpush.xpose.msra.mxu0 0.0
    %6788 = vmatpush.xpose.msra.mxu0 0.0
    %6789 = vmatpush.xpose.msra.mxu0 0.0
    %6790 = vmatpush.xpose.msra.mxu0 0.0
    %6791 = vmatpush.xpose.msra.mxu0 0.0
    %6792 = vmatpush.xpose.msra.mxu0 0.0
    %6793 = vmatpush.xpose.msra.mxu0 0.0
    %6794 = vmatpush.xpose.msra.mxu0 0.0
    %6795 = vmatpush.xpose.msra.mxu0 0.0
    %6796 = vmatpush.xpose.msra.mxu0 0.0
    %6797 = vmatpush.xpose.msra.mxu0 %v6783
    %6798 = vmatpush.xpose.msra.mxu0 %v6781
    %6799 = vmatpush.xpose.msra.mxu0 %v6779
    %6800 = vmatpush.xpose.msra.mxu0 %v6777
    %6801 = vmatmul.f32.gmra.mxu0 %v6769
    %v6802 = vpop.f32.mrf.mxu0
    %v6803 = vadd.f32 0.0, %v6802
    %6804 = vmatmul.f32.gmra.mxu0 %v6771
    %v6805 = vpop.f32.mrf.mxu0
    %v6806 = vadd.f32 0.0, %v6805
    %6807 = vmatmul.f32.gmra.mxu0 %v6773
    %v6808 = vpop.f32.mrf.mxu0
    %v6809 = vadd.f32 0.0, %v6808
    %6810 = vmatmul.f32.gmra.mxu0 %v6775
    %v6811 = vpop.f32.mrf.mxu0
    %v6812 = vadd.f32 0.0, %v6811
    %6813 = vdwg.mxu0
    %6818 = vrot.lane.b32.xlu0 %v6323, 80
    %v6819 = vpop.permute.xlu0 %6818
    %6820 = vrot.lane.b32.xlu0 %v6324, 80
    %v6821 = vpop.permute.xlu0 %6820
    %6822 = vrot.lane.b32.xlu0 %v6325, 80
    %v6823 = vpop.permute.xlu0 %6822
    %6824 = vrot.lane.b32.xlu0 %v6326, 80
    %v6825 = vpop.permute.xlu0 %6824
    %6826 = vrot.lane.b32.xlu0 %v6323, 16
    %v6827 = vpop.permute.xlu0 %6826
    %6828 = vrot.lane.b32.xlu0 %v6324, 16
    %v6829 = vpop.permute.xlu0 %6828
    %6830 = vrot.lane.b32.xlu0 %v6325, 16
    %v6831 = vpop.permute.xlu0 %6830
    %6832 = vrot.lane.b32.xlu0 %v6326, 16
    %v6833 = vpop.permute.xlu0 %6832
    %v6834 = vsel %vm591, %v6819, 0
    %v6836 = vsel %vm591, %v6821, 0
    %v6838 = vsel %vm591, %v6823, 0
    %v6840 = vsel %vm591, %v6825, 0
    %v6842 = vsel %vm591, %v6827, 0
    %v6844 = vsel %vm591, %v6829, 0
    %v6846 = vsel %vm591, %v6831, 0
    %v6848 = vsel %vm591, %v6833, 0
    %6850 = vmatpush.xpose.msra.mxu0 0.0
    %6851 = vmatpush.xpose.msra.mxu0 0.0
    %6852 = vmatpush.xpose.msra.mxu0 0.0
    %6853 = vmatpush.xpose.msra.mxu0 0.0
    %6854 = vmatpush.xpose.msra.mxu0 0.0
    %6855 = vmatpush.xpose.msra.mxu0 0.0
    %6856 = vmatpush.xpose.msra.mxu0 0.0
    %6857 = vmatpush.xpose.msra.mxu0 0.0
    %6858 = vmatpush.xpose.msra.mxu0 0.0
    %6859 = vmatpush.xpose.msra.mxu0 0.0
    %6860 = vmatpush.xpose.msra.mxu0 0.0
    %6861 = vmatpush.xpose.msra.mxu0 0.0
    %6862 = vmatpush.xpose.msra.mxu0 %v6848
    %6863 = vmatpush.xpose.msra.mxu0 %v6846
    %6864 = vmatpush.xpose.msra.mxu0 %v6844
    %6865 = vmatpush.xpose.msra.mxu0 %v6842
    %6866 = vmatmul.f32.gmra.mxu0 %v6834
    %v6867 = vpop.f32.mrf.mxu0
    %v6868 = vadd.f32 0.0, %v6867
    %6869 = vmatmul.f32.gmra.mxu0 %v6836
    %v6870 = vpop.f32.mrf.mxu0
    %v6871 = vadd.f32 0.0, %v6870
    %6872 = vmatmul.f32.gmra.mxu0 %v6838
    %v6873 = vpop.f32.mrf.mxu0
    %v6874 = vadd.f32 0.0, %v6873
    %6875 = vmatmul.f32.gmra.mxu0 %v6840
    %v6876 = vpop.f32.mrf.mxu0
    %v6877 = vadd.f32 0.0, %v6876
    %6878 = vdwg.mxu0
    %v6879 = vmul.f32 %v6413, 0.125
    %v6880 = vmul.f32 %v6416, 0.125
    %v6881 = vmul.f32 %v6419, 0.125
    %v6882 = vmul.f32 %v6422, 0.125
    %v6883 = vmul.f32 %v6478, 0.125
    %v6884 = vmul.f32 %v6481, 0.125
    %v6885 = vmul.f32 %v6484, 0.125
    %v6886 = vmul.f32 %v6487, 0.125
    %v6887 = vmul.f32 %v6543, 0.125
    %v6888 = vmul.f32 %v6546, 0.125
    %v6889 = vmul.f32 %v6549, 0.125
    %v6890 = vmul.f32 %v6552, 0.125
    %v6891 = vmul.f32 %v6608, 0.125
    %v6892 = vmul.f32 %v6611, 0.125
    %v6893 = vmul.f32 %v6614, 0.125
    %v6894 = vmul.f32 %v6617, 0.125
    %v6895 = vmul.f32 %v6673, 0.125
    %v6896 = vmul.f32 %v6676, 0.125
    %v6897 = vmul.f32 %v6679, 0.125
    %v6898 = vmul.f32 %v6682, 0.125
    %v6899 = vmul.f32 %v6738, 0.125
    %v6900 = vmul.f32 %v6741, 0.125
    %v6901 = vmul.f32 %v6744, 0.125
    %v6902 = vmul.f32 %v6747, 0.125
    %v6903 = vmul.f32 %v6803, 0.125
    %v6904 = vmul.f32 %v6806, 0.125
    %v6905 = vmul.f32 %v6809, 0.125
    %v6906 = vmul.f32 %v6812, 0.125
    %v6907 = vmul.f32 %v6868, 0.125
    %v6908 = vmul.f32 %v6871, 0.125
    %v6909 = vmul.f32 %v6874, 0.125
    %v6910 = vmul.f32 %v6877, 0.125
    %v6911 = vadd.f32 %v6879, %v511
    %v6912 = vadd.f32 %v6880, %v512
    %v6913 = vadd.f32 %v6881, %v513
    %v6914 = vadd.f32 %v6882, %v514
    %v6915 = vadd.f32 %v6883, %v511
    %v6916 = vadd.f32 %v6884, %v512
    %v6917 = vadd.f32 %v6885, %v513
    %v6918 = vadd.f32 %v6886, %v514
    %v6919 = vadd.f32 %v6887, %v511
    %v6920 = vadd.f32 %v6888, %v512
    %v6921 = vadd.f32 %v6889, %v513
    %v6922 = vadd.f32 %v6890, %v514
    %v6923 = vadd.f32 %v6891, %v511
    %v6924 = vadd.f32 %v6892, %v512
    %v6925 = vadd.f32 %v6893, %v513
    %v6926 = vadd.f32 %v6894, %v514
    %v6927 = vadd.f32 %v6895, %v511
    %v6928 = vadd.f32 %v6896, %v512
    %v6929 = vadd.f32 %v6897, %v513
    %v6930 = vadd.f32 %v6898, %v514
    %v6931 = vadd.f32 %v6899, %v511
    %v6932 = vadd.f32 %v6900, %v512
    %v6933 = vadd.f32 %v6901, %v513
    %v6934 = vadd.f32 %v6902, %v514
    %v6935 = vadd.f32 %v6903, %v511
    %v6936 = vadd.f32 %v6904, %v512
    %v6937 = vadd.f32 %v6905, %v513
    %v6938 = vadd.f32 %v6906, %v514
    %v6939 = vadd.f32 %v6907, %v511
    %v6940 = vadd.f32 %v6908, %v512
    %v6941 = vadd.f32 %v6909, %v513
    %v6942 = vadd.f32 %v6910, %v514
    %v6943 = vsel %vm1100, %v6911, -inf
    %6944 = vmax.xlane.f32.xlu0 %v6943
    %v6945 = vpop.xlane.xlu0 %6944
    %v6946 = vsel %vm1100, %v6912, -inf
    %6947 = vmax.xlane.f32.xlu0 %v6946
    %v6948 = vpop.xlane.xlu0 %6947
    %v6949 = vsel %vm1100, %v6913, -inf
    %6950 = vmax.xlane.f32.xlu0 %v6949
    %v6951 = vpop.xlane.xlu0 %6950
    %v6952 = vsel %vm1100, %v6914, -inf
    %6953 = vmax.xlane.f32.xlu0 %v6952
    %v6954 = vpop.xlane.xlu0 %6953
    %v6955 = vsel %vm1100, %v6915, -inf
    %6956 = vmax.xlane.f32.xlu0 %v6955
    %v6957 = vpop.xlane.xlu0 %6956
    %v6958 = vsel %vm1100, %v6916, -inf
    %6959 = vmax.xlane.f32.xlu0 %v6958
    %v6960 = vpop.xlane.xlu0 %6959
    %v6961 = vsel %vm1100, %v6917, -inf
    %6962 = vmax.xlane.f32.xlu0 %v6961
    %v6963 = vpop.xlane.xlu0 %6962
    %v6964 = vsel %vm1100, %v6918, -inf
    %6965 = vmax.xlane.f32.xlu0 %v6964
    %v6966 = vpop.xlane.xlu0 %6965
    %v6967 = vsel %vm1100, %v6919, -inf
    %6968 = vmax.xlane.f32.xlu0 %v6967
    %v6969 = vpop.xlane.xlu0 %6968
    %v6970 = vsel %vm1100, %v6920, -inf
    %6971 = vmax.xlane.f32.xlu0 %v6970
    %v6972 = vpop.xlane.xlu0 %6971
    %v6973 = vsel %vm1100, %v6921, -inf
    %6974 = vmax.xlane.f32.xlu0 %v6973
    %v6975 = vpop.xlane.xlu0 %6974
    %v6976 = vsel %vm1100, %v6922, -inf
    %6977 = vmax.xlane.f32.xlu0 %v6976
    %v6978 = vpop.xlane.xlu0 %6977
    %v6979 = vsel %vm1100, %v6923, -inf
    %6980 = vmax.xlane.f32.xlu0 %v6979
    %v6981 = vpop.xlane.xlu0 %6980
    %v6982 = vsel %vm1100, %v6924, -inf
    %6983 = vmax.xlane.f32.xlu0 %v6982
    %v6984 = vpop.xlane.xlu0 %6983
    %v6985 = vsel %vm1100, %v6925, -inf
    %6986 = vmax.xlane.f32.xlu0 %v6985
    %v6987 = vpop.xlane.xlu0 %6986
    %v6988 = vsel %vm1100, %v6926, -inf
    %6989 = vmax.xlane.f32.xlu0 %v6988
    %v6990 = vpop.xlane.xlu0 %6989
    %v6991 = vsel %vm1100, %v6927, -inf
    %6992 = vmax.xlane.f32.xlu0 %v6991
    %v6993 = vpop.xlane.xlu0 %6992
    %v6994 = vsel %vm1100, %v6928, -inf
    %6995 = vmax.xlane.f32.xlu0 %v6994
    %v6996 = vpop.xlane.xlu0 %6995
    %v6997 = vsel %vm1100, %v6929, -inf
    %6998 = vmax.xlane.f32.xlu0 %v6997
    %v6999 = vpop.xlane.xlu0 %6998
    %v7000 = vsel %vm1100, %v6930, -inf
    %7001 = vmax.xlane.f32.xlu0 %v7000
    %v7002 = vpop.xlane.xlu0 %7001
    %v7003 = vsel %vm1100, %v6931, -inf
    %7004 = vmax.xlane.f32.xlu0 %v7003
    %v7005 = vpop.xlane.xlu0 %7004
    %v7006 = vsel %vm1100, %v6932, -inf
    %7007 = vmax.xlane.f32.xlu0 %v7006
    %v7008 = vpop.xlane.xlu0 %7007
    %v7009 = vsel %vm1100, %v6933, -inf
    %7010 = vmax.xlane.f32.xlu0 %v7009
    %v7011 = vpop.xlane.xlu0 %7010
    %v7012 = vsel %vm1100, %v6934, -inf
    %7013 = vmax.xlane.f32.xlu0 %v7012
    %v7014 = vpop.xlane.xlu0 %7013
    %v7015 = vsel %vm1100, %v6935, -inf
    %7016 = vmax.xlane.f32.xlu0 %v7015
    %v7017 = vpop.xlane.xlu0 %7016
    %v7018 = vsel %vm1100, %v6936, -inf
    %7019 = vmax.xlane.f32.xlu0 %v7018
    %v7020 = vpop.xlane.xlu0 %7019
    %v7021 = vsel %vm1100, %v6937, -inf
    %7022 = vmax.xlane.f32.xlu0 %v7021
    %v7023 = vpop.xlane.xlu0 %7022
    %v7024 = vsel %vm1100, %v6938, -inf
    %7025 = vmax.xlane.f32.xlu0 %v7024
    %v7026 = vpop.xlane.xlu0 %7025
    %v7027 = vsel %vm1100, %v6939, -inf
    %7028 = vmax.xlane.f32.xlu0 %v7027
    %v7029 = vpop.xlane.xlu0 %7028
    %v7030 = vsel %vm1100, %v6940, -inf
    %7031 = vmax.xlane.f32.xlu0 %v7030
    %v7032 = vpop.xlane.xlu0 %7031
    %v7033 = vsel %vm1100, %v6941, -inf
    %7034 = vmax.xlane.f32.xlu0 %v7033
    %v7035 = vpop.xlane.xlu0 %7034
    %v7036 = vsel %vm1100, %v6942, -inf
    %7037 = vmax.xlane.f32.xlu0 %v7036
    %v7038 = vpop.xlane.xlu0 %7037
    %v7039 = vsub.f32 %v6911, %v6945
    %v7040 = vsub.f32 %v6912, %v6948
    %v7041 = vsub.f32 %v6913, %v6951
    %v7042 = vsub.f32 %v6914, %v6954
    %v7043 = vsub.f32 %v6915, %v6957
    %v7044 = vsub.f32 %v6916, %v6960
    %v7045 = vsub.f32 %v6917, %v6963
    %v7046 = vsub.f32 %v6918, %v6966
    %v7047 = vsub.f32 %v6919, %v6969
    %v7048 = vsub.f32 %v6920, %v6972
    %v7049 = vsub.f32 %v6921, %v6975
    %v7050 = vsub.f32 %v6922, %v6978
    %v7051 = vsub.f32 %v6923, %v6981
    %v7052 = vsub.f32 %v6924, %v6984
    %v7053 = vsub.f32 %v6925, %v6987
    %v7054 = vsub.f32 %v6926, %v6990
    %v7055 = vsub.f32 %v6927, %v6993
    %v7056 = vsub.f32 %v6928, %v6996
    %v7057 = vsub.f32 %v6929, %v6999
    %v7058 = vsub.f32 %v6930, %v7002
    %v7059 = vsub.f32 %v6931, %v7005
    %v7060 = vsub.f32 %v6932, %v7008
    %v7061 = vsub.f32 %v6933, %v7011
    %v7062 = vsub.f32 %v6934, %v7014
    %v7063 = vsub.f32 %v6935, %v7017
    %v7064 = vsub.f32 %v6936, %v7020
    %v7065 = vsub.f32 %v6937, %v7023
    %v7066 = vsub.f32 %v6938, %v7026
    %v7067 = vsub.f32 %v6939, %v7029
    %v7068 = vsub.f32 %v6940, %v7032
    %v7069 = vsub.f32 %v6941, %v7035
    %v7070 = vsub.f32 %v6942, %v7038
    %v7071 = vmul.f32 %v7039, 1.442695
    %v7072 = vpow.pop %v7071
    %v7073 = vmul.f32 %v7040, 1.442695
    %v7074 = vpow.pop %v7073
    %v7075 = vmul.f32 %v7041, 1.442695
    %v7076 = vpow.pop %v7075
    %v7077 = vmul.f32 %v7042, 1.442695
    %v7078 = vpow.pop %v7077
    %v7079 = vmul.f32 %v7043, 1.442695
    %v7080 = vpow.pop %v7079
    %v7081 = vmul.f32 %v7044, 1.442695
    %v7082 = vpow.pop %v7081
    %v7083 = vmul.f32 %v7045, 1.442695
    %v7084 = vpow.pop %v7083
    %v7085 = vmul.f32 %v7046, 1.442695
    %v7086 = vpow.pop %v7085
    %v7087 = vmul.f32 %v7047, 1.442695
    %v7088 = vpow.pop %v7087
    %v7089 = vmul.f32 %v7048, 1.442695
    %v7090 = vpow.pop %v7089
    %v7091 = vmul.f32 %v7049, 1.442695
    %v7092 = vpow.pop %v7091
    %v7093 = vmul.f32 %v7050, 1.442695
    %v7094 = vpow.pop %v7093
    %v7095 = vmul.f32 %v7051, 1.442695
    %v7096 = vpow.pop %v7095
    %v7097 = vmul.f32 %v7052, 1.442695
    %v7098 = vpow.pop %v7097
    %v7099 = vmul.f32 %v7053, 1.442695
    %v7100 = vpow.pop %v7099
    %v7101 = vmul.f32 %v7054, 1.442695
    %v7102 = vpow.pop %v7101
    %v7103 = vmul.f32 %v7055, 1.442695
    %v7104 = vpow.pop %v7103
    %v7105 = vmul.f32 %v7056, 1.442695
    %v7106 = vpow.pop %v7105
    %v7107 = vmul.f32 %v7057, 1.442695
    %v7108 = vpow.pop %v7107
    %v7109 = vmul.f32 %v7058, 1.442695
    %v7110 = vpow.pop %v7109
    %v7111 = vmul.f32 %v7059, 1.442695
    %v7112 = vpow.pop %v7111
    %v7113 = vmul.f32 %v7060, 1.442695
    %v7114 = vpow.pop %v7113
    %v7115 = vmul.f32 %v7061, 1.442695
    %v7116 = vpow.pop %v7115
    %v7117 = vmul.f32 %v7062, 1.442695
    %v7118 = vpow.pop %v7117
    %v7119 = vmul.f32 %v7063, 1.442695
    %v7120 = vpow.pop %v7119
    %v7121 = vmul.f32 %v7064, 1.442695
    %v7122 = vpow.pop %v7121
    %v7123 = vmul.f32 %v7065, 1.442695
    %v7124 = vpow.pop %v7123
    %v7125 = vmul.f32 %v7066, 1.442695
    %v7126 = vpow.pop %v7125
    %v7127 = vmul.f32 %v7067, 1.442695
    %v7128 = vpow.pop %v7127
    %v7129 = vmul.f32 %v7068, 1.442695
    %v7130 = vpow.pop %v7129
    %v7131 = vmul.f32 %v7069, 1.442695
    %v7132 = vpow.pop %v7131
    %v7133 = vmul.f32 %v7070, 1.442695
    %v7134 = vpow.pop %v7133
    %v7135 = vsel %vm1100, %v7072, 0.0
    %7136 = vadd.xlane.f32.xlu0 %v7135
    %v7137 = vpop.xlane.xlu0 %7136
    %v7138 = vsel %vm1100, %v7074, 0.0
    %7139 = vadd.xlane.f32.xlu0 %v7138
    %v7140 = vpop.xlane.xlu0 %7139
    %v7141 = vsel %vm1100, %v7076, 0.0
    %7142 = vadd.xlane.f32.xlu0 %v7141
    %v7143 = vpop.xlane.xlu0 %7142
    %v7144 = vsel %vm1100, %v7078, 0.0
    %7145 = vadd.xlane.f32.xlu0 %v7144
    %v7146 = vpop.xlane.xlu0 %7145
    %v7147 = vsel %vm1100, %v7080, 0.0
    %7148 = vadd.xlane.f32.xlu0 %v7147
    %v7149 = vpop.xlane.xlu0 %7148
    %v7150 = vsel %vm1100, %v7082, 0.0
    %7151 = vadd.xlane.f32.xlu0 %v7150
    %v7152 = vpop.xlane.xlu0 %7151
    %v7153 = vsel %vm1100, %v7084, 0.0
    %7154 = vadd.xlane.f32.xlu0 %v7153
    %v7155 = vpop.xlane.xlu0 %7154
    %v7156 = vsel %vm1100, %v7086, 0.0
    %7157 = vadd.xlane.f32.xlu0 %v7156
    %v7158 = vpop.xlane.xlu0 %7157
    %v7159 = vsel %vm1100, %v7088, 0.0
    %7160 = vadd.xlane.f32.xlu0 %v7159
    %v7161 = vpop.xlane.xlu0 %7160
    %v7162 = vsel %vm1100, %v7090, 0.0
    %7163 = vadd.xlane.f32.xlu0 %v7162
    %v7164 = vpop.xlane.xlu0 %7163
    %v7165 = vsel %vm1100, %v7092, 0.0
    %7166 = vadd.xlane.f32.xlu0 %v7165
    %v7167 = vpop.xlane.xlu0 %7166
    %v7168 = vsel %vm1100, %v7094, 0.0
    %7169 = vadd.xlane.f32.xlu0 %v7168
    %v7170 = vpop.xlane.xlu0 %7169
    %v7171 = vsel %vm1100, %v7096, 0.0
    %7172 = vadd.xlane.f32.xlu0 %v7171
    %v7173 = vpop.xlane.xlu0 %7172
    %v7174 = vsel %vm1100, %v7098, 0.0
    %7175 = vadd.xlane.f32.xlu0 %v7174
    %v7176 = vpop.xlane.xlu0 %7175
    %v7177 = vsel %vm1100, %v7100, 0.0
    %7178 = vadd.xlane.f32.xlu0 %v7177
    %v7179 = vpop.xlane.xlu0 %7178
    %v7180 = vsel %vm1100, %v7102, 0.0
    %7181 = vadd.xlane.f32.xlu0 %v7180
    %v7182 = vpop.xlane.xlu0 %7181
    %v7183 = vsel %vm1100, %v7104, 0.0
    %7184 = vadd.xlane.f32.xlu0 %v7183
    %v7185 = vpop.xlane.xlu0 %7184
    %v7186 = vsel %vm1100, %v7106, 0.0
    %7187 = vadd.xlane.f32.xlu0 %v7186
    %v7188 = vpop.xlane.xlu0 %7187
    %v7189 = vsel %vm1100, %v7108, 0.0
    %7190 = vadd.xlane.f32.xlu0 %v7189
    %v7191 = vpop.xlane.xlu0 %7190
    %v7192 = vsel %vm1100, %v7110, 0.0
    %7193 = vadd.xlane.f32.xlu0 %v7192
    %v7194 = vpop.xlane.xlu0 %7193
    %v7195 = vsel %vm1100, %v7112, 0.0
    %7196 = vadd.xlane.f32.xlu0 %v7195
    %v7197 = vpop.xlane.xlu0 %7196
    %v7198 = vsel %vm1100, %v7114, 0.0
    %7199 = vadd.xlane.f32.xlu0 %v7198
    %v7200 = vpop.xlane.xlu0 %7199
    %v7201 = vsel %vm1100, %v7116, 0.0
    %7202 = vadd.xlane.f32.xlu0 %v7201
    %v7203 = vpop.xlane.xlu0 %7202
    %v7204 = vsel %vm1100, %v7118, 0.0
    %7205 = vadd.xlane.f32.xlu0 %v7204
    %v7206 = vpop.xlane.xlu0 %7205
    %v7207 = vsel %vm1100, %v7120, 0.0
    %7208 = vadd.xlane.f32.xlu0 %v7207
    %v7209 = vpop.xlane.xlu0 %7208
    %v7210 = vsel %vm1100, %v7122, 0.0
    %7211 = vadd.xlane.f32.xlu0 %v7210
    %v7212 = vpop.xlane.xlu0 %7211
    %v7213 = vsel %vm1100, %v7124, 0.0
    %7214 = vadd.xlane.f32.xlu0 %v7213
    %v7215 = vpop.xlane.xlu0 %7214
    %v7216 = vsel %vm1100, %v7126, 0.0
    %7217 = vadd.xlane.f32.xlu0 %v7216
    %v7218 = vpop.xlane.xlu0 %7217
    %v7219 = vsel %vm1100, %v7128, 0.0
    %7220 = vadd.xlane.f32.xlu0 %v7219
    %v7221 = vpop.xlane.xlu0 %7220
    %v7222 = vsel %vm1100, %v7130, 0.0
    %7223 = vadd.xlane.f32.xlu0 %v7222
    %v7224 = vpop.xlane.xlu0 %7223
    %v7225 = vsel %vm1100, %v7132, 0.0
    %7226 = vadd.xlane.f32.xlu0 %v7225
    %v7227 = vpop.xlane.xlu0 %7226
    %v7228 = vsel %vm1100, %v7134, 0.0
    %7229 = vadd.xlane.f32.xlu0 %v7228
    %v7230 = vpop.xlane.xlu0 %7229
    %v7231 = vrcp.pop %v7137
    %v7232 = vmul.f32 %v7137, %v7231
    %v7233 = vsub.f32 1.0, %v7232
    %v7234 = vmul.f32 %v7231, %v7233
    %v7235 = vadd.f32 %v7231, %v7234
    %vm7236 = vweird.f32 %v7137
    %vm7237 = vweird.f32 %v7231
    %vm7238 = vmor %vm7236, %vm7237
    %v7239 = vsel %vm7238, %v7231, %v7235
    %v7240 = vand.u32 2147483647, %v7137
    %vm7241 = vcmp.eq.f32.partialorder %v7240, 8.507059e+37
    %v7242 = vand.u32 %v7137, 2147483648
    %v7243 = vor.u32 1.1754944e-38, %v7242
    %v7244 = vsel %vm7241, %v7243, %v7239
    %v7245 = vmul.f32 %v7072, %v7244
    %v7246 = vrcp.pop %v7140
    %v7247 = vmul.f32 %v7140, %v7246
    %v7248 = vsub.f32 1.0, %v7247
    %v7249 = vmul.f32 %v7246, %v7248
    %v7250 = vadd.f32 %v7246, %v7249
    %vm7251 = vweird.f32 %v7140
    %vm7252 = vweird.f32 %v7246
    %vm7253 = vmor %vm7251, %vm7252
    %v7254 = vsel %vm7253, %v7246, %v7250
    %v7255 = vand.u32 2147483647, %v7140
    %vm7256 = vcmp.eq.f32.partialorder %v7255, 8.507059e+37
    %v7257 = vand.u32 %v7140, 2147483648
    %v7258 = vor.u32 1.1754944e-38, %v7257
    %v7259 = vsel %vm7256, %v7258, %v7254
    %v7260 = vmul.f32 %v7074, %v7259
    %v7261 = vrcp.pop %v7143
    %v7262 = vmul.f32 %v7143, %v7261
    %v7263 = vsub.f32 1.0, %v7262
    %v7264 = vmul.f32 %v7261, %v7263
    %v7265 = vadd.f32 %v7261, %v7264
    %vm7266 = vweird.f32 %v7143
    %vm7267 = vweird.f32 %v7261
    %vm7268 = vmor %vm7266, %vm7267
    %v7269 = vsel %vm7268, %v7261, %v7265
    %v7270 = vand.u32 2147483647, %v7143
    %vm7271 = vcmp.eq.f32.partialorder %v7270, 8.507059e+37
    %v7272 = vand.u32 %v7143, 2147483648
    %v7273 = vor.u32 1.1754944e-38, %v7272
    %v7274 = vsel %vm7271, %v7273, %v7269
    %v7275 = vmul.f32 %v7076, %v7274
    %v7276 = vrcp.pop %v7146
    %v7277 = vmul.f32 %v7146, %v7276
    %v7278 = vsub.f32 1.0, %v7277
    %v7279 = vmul.f32 %v7276, %v7278
    %v7280 = vadd.f32 %v7276, %v7279
    %vm7281 = vweird.f32 %v7146
    %vm7282 = vweird.f32 %v7276
    %vm7283 = vmor %vm7281, %vm7282
    %v7284 = vsel %vm7283, %v7276, %v7280
    %v7285 = vand.u32 2147483647, %v7146
    %vm7286 = vcmp.eq.f32.partialorder %v7285, 8.507059e+37
    %v7287 = vand.u32 %v7146, 2147483648
    %v7288 = vor.u32 1.1754944e-38, %v7287
    %v7289 = vsel %vm7286, %v7288, %v7284
    %v7290 = vmul.f32 %v7078, %v7289
    %v7291 = vrcp.pop %v7149
    %v7292 = vmul.f32 %v7149, %v7291
    %v7293 = vsub.f32 1.0, %v7292
    %v7294 = vmul.f32 %v7291, %v7293
    %v7295 = vadd.f32 %v7291, %v7294
    %vm7296 = vweird.f32 %v7149
    %vm7297 = vweird.f32 %v7291
    %vm7298 = vmor %vm7296, %vm7297
    %v7299 = vsel %vm7298, %v7291, %v7295
    %v7300 = vand.u32 2147483647, %v7149
    %vm7301 = vcmp.eq.f32.partialorder %v7300, 8.507059e+37
    %v7302 = vand.u32 %v7149, 2147483648
    %v7303 = vor.u32 1.1754944e-38, %v7302
    %v7304 = vsel %vm7301, %v7303, %v7299
    %v7305 = vmul.f32 %v7080, %v7304
    %v7306 = vrcp.pop %v7152
    %v7307 = vmul.f32 %v7152, %v7306
    %v7308 = vsub.f32 1.0, %v7307
    %v7309 = vmul.f32 %v7306, %v7308
    %v7310 = vadd.f32 %v7306, %v7309
    %vm7311 = vweird.f32 %v7152
    %vm7312 = vweird.f32 %v7306
    %vm7313 = vmor %vm7311, %vm7312
    %v7314 = vsel %vm7313, %v7306, %v7310
    %v7315 = vand.u32 2147483647, %v7152
    %vm7316 = vcmp.eq.f32.partialorder %v7315, 8.507059e+37
    %v7317 = vand.u32 %v7152, 2147483648
    %v7318 = vor.u32 1.1754944e-38, %v7317
    %v7319 = vsel %vm7316, %v7318, %v7314
    %v7320 = vmul.f32 %v7082, %v7319
    %v7321 = vrcp.pop %v7155
    %v7322 = vmul.f32 %v7155, %v7321
    %v7323 = vsub.f32 1.0, %v7322
    %v7324 = vmul.f32 %v7321, %v7323
    %v7325 = vadd.f32 %v7321, %v7324
    %vm7326 = vweird.f32 %v7155
    %vm7327 = vweird.f32 %v7321
    %vm7328 = vmor %vm7326, %vm7327
    %v7329 = vsel %vm7328, %v7321, %v7325
    %v7330 = vand.u32 2147483647, %v7155
    %vm7331 = vcmp.eq.f32.partialorder %v7330, 8.507059e+37
    %v7332 = vand.u32 %v7155, 2147483648
    %v7333 = vor.u32 1.1754944e-38, %v7332
    %v7334 = vsel %vm7331, %v7333, %v7329
    %v7335 = vmul.f32 %v7084, %v7334
    %v7336 = vrcp.pop %v7158
    %v7337 = vmul.f32 %v7158, %v7336
    %v7338 = vsub.f32 1.0, %v7337
    %v7339 = vmul.f32 %v7336, %v7338
    %v7340 = vadd.f32 %v7336, %v7339
    %vm7341 = vweird.f32 %v7158
    %vm7342 = vweird.f32 %v7336
    %vm7343 = vmor %vm7341, %vm7342
    %v7344 = vsel %vm7343, %v7336, %v7340
    %v7345 = vand.u32 2147483647, %v7158
    %vm7346 = vcmp.eq.f32.partialorder %v7345, 8.507059e+37
    %v7347 = vand.u32 %v7158, 2147483648
    %v7348 = vor.u32 1.1754944e-38, %v7347
    %v7349 = vsel %vm7346, %v7348, %v7344
    %v7350 = vmul.f32 %v7086, %v7349
    %v7351 = vrcp.pop %v7161
    %v7352 = vmul.f32 %v7161, %v7351
    %v7353 = vsub.f32 1.0, %v7352
    %v7354 = vmul.f32 %v7351, %v7353
    %v7355 = vadd.f32 %v7351, %v7354
    %vm7356 = vweird.f32 %v7161
    %vm7357 = vweird.f32 %v7351
    %vm7358 = vmor %vm7356, %vm7357
    %v7359 = vsel %vm7358, %v7351, %v7355
    %v7360 = vand.u32 2147483647, %v7161
    %vm7361 = vcmp.eq.f32.partialorder %v7360, 8.507059e+37
    %v7362 = vand.u32 %v7161, 2147483648
    %v7363 = vor.u32 1.1754944e-38, %v7362
    %v7364 = vsel %vm7361, %v7363, %v7359
    %v7365 = vmul.f32 %v7088, %v7364
    %v7366 = vrcp.pop %v7164
    %v7367 = vmul.f32 %v7164, %v7366
    %v7368 = vsub.f32 1.0, %v7367
    %v7369 = vmul.f32 %v7366, %v7368
    %v7370 = vadd.f32 %v7366, %v7369
    %vm7371 = vweird.f32 %v7164
    %vm7372 = vweird.f32 %v7366
    %vm7373 = vmor %vm7371, %vm7372
    %v7374 = vsel %vm7373, %v7366, %v7370
    %v7375 = vand.u32 2147483647, %v7164
    %vm7376 = vcmp.eq.f32.partialorder %v7375, 8.507059e+37
    %v7377 = vand.u32 %v7164, 2147483648
    %v7378 = vor.u32 1.1754944e-38, %v7377
    %v7379 = vsel %vm7376, %v7378, %v7374
    %v7380 = vmul.f32 %v7090, %v7379
    %v7381 = vrcp.pop %v7167
    %v7382 = vmul.f32 %v7167, %v7381
    %v7383 = vsub.f32 1.0, %v7382
    %v7384 = vmul.f32 %v7381, %v7383
    %v7385 = vadd.f32 %v7381, %v7384
    %vm7386 = vweird.f32 %v7167
    %vm7387 = vweird.f32 %v7381
    %vm7388 = vmor %vm7386, %vm7387
    %v7389 = vsel %vm7388, %v7381, %v7385
    %v7390 = vand.u32 2147483647, %v7167
    %vm7391 = vcmp.eq.f32.partialorder %v7390, 8.507059e+37
    %v7392 = vand.u32 %v7167, 2147483648
    %v7393 = vor.u32 1.1754944e-38, %v7392
    %v7394 = vsel %vm7391, %v7393, %v7389
    %v7395 = vmul.f32 %v7092, %v7394
    %v7396 = vrcp.pop %v7170
    %v7397 = vmul.f32 %v7170, %v7396
    %v7398 = vsub.f32 1.0, %v7397
    %v7399 = vmul.f32 %v7396, %v7398
    %v7400 = vadd.f32 %v7396, %v7399
    %vm7401 = vweird.f32 %v7170
    %vm7402 = vweird.f32 %v7396
    %vm7403 = vmor %vm7401, %vm7402
    %v7404 = vsel %vm7403, %v7396, %v7400
    %v7405 = vand.u32 2147483647, %v7170
    %vm7406 = vcmp.eq.f32.partialorder %v7405, 8.507059e+37
    %v7407 = vand.u32 %v7170, 2147483648
    %v7408 = vor.u32 1.1754944e-38, %v7407
    %v7409 = vsel %vm7406, %v7408, %v7404
    %v7410 = vmul.f32 %v7094, %v7409
    %v7411 = vrcp.pop %v7173
    %v7412 = vmul.f32 %v7173, %v7411
    %v7413 = vsub.f32 1.0, %v7412
    %v7414 = vmul.f32 %v7411, %v7413
    %v7415 = vadd.f32 %v7411, %v7414
    %vm7416 = vweird.f32 %v7173
    %vm7417 = vweird.f32 %v7411
    %vm7418 = vmor %vm7416, %vm7417
    %v7419 = vsel %vm7418, %v7411, %v7415
    %v7420 = vand.u32 2147483647, %v7173
    %vm7421 = vcmp.eq.f32.partialorder %v7420, 8.507059e+37
    %v7422 = vand.u32 %v7173, 2147483648
    %v7423 = vor.u32 1.1754944e-38, %v7422
    %v7424 = vsel %vm7421, %v7423, %v7419
    %v7425 = vmul.f32 %v7096, %v7424
    %v7426 = vrcp.pop %v7176
    %v7427 = vmul.f32 %v7176, %v7426
    %v7428 = vsub.f32 1.0, %v7427
    %v7429 = vmul.f32 %v7426, %v7428
    %v7430 = vadd.f32 %v7426, %v7429
    %vm7431 = vweird.f32 %v7176
    %vm7432 = vweird.f32 %v7426
    %vm7433 = vmor %vm7431, %vm7432
    %v7434 = vsel %vm7433, %v7426, %v7430
    %v7435 = vand.u32 2147483647, %v7176
    %vm7436 = vcmp.eq.f32.partialorder %v7435, 8.507059e+37
    %v7437 = vand.u32 %v7176, 2147483648
    %v7438 = vor.u32 1.1754944e-38, %v7437
    %v7439 = vsel %vm7436, %v7438, %v7434
    %v7440 = vmul.f32 %v7098, %v7439
    %v7441 = vrcp.pop %v7179
    %v7442 = vmul.f32 %v7179, %v7441
    %v7443 = vsub.f32 1.0, %v7442
    %v7444 = vmul.f32 %v7441, %v7443
    %v7445 = vadd.f32 %v7441, %v7444
    %vm7446 = vweird.f32 %v7179
    %vm7447 = vweird.f32 %v7441
    %vm7448 = vmor %vm7446, %vm7447
    %v7449 = vsel %vm7448, %v7441, %v7445
    %v7450 = vand.u32 2147483647, %v7179
    %vm7451 = vcmp.eq.f32.partialorder %v7450, 8.507059e+37
    %v7452 = vand.u32 %v7179, 2147483648
    %v7453 = vor.u32 1.1754944e-38, %v7452
    %v7454 = vsel %vm7451, %v7453, %v7449
    %v7455 = vmul.f32 %v7100, %v7454
    %v7456 = vrcp.pop %v7182
    %v7457 = vmul.f32 %v7182, %v7456
    %v7458 = vsub.f32 1.0, %v7457
    %v7459 = vmul.f32 %v7456, %v7458
    %v7460 = vadd.f32 %v7456, %v7459
    %vm7461 = vweird.f32 %v7182
    %vm7462 = vweird.f32 %v7456
    %vm7463 = vmor %vm7461, %vm7462
    %v7464 = vsel %vm7463, %v7456, %v7460
    %v7465 = vand.u32 2147483647, %v7182
    %vm7466 = vcmp.eq.f32.partialorder %v7465, 8.507059e+37
    %v7467 = vand.u32 %v7182, 2147483648
    %v7468 = vor.u32 1.1754944e-38, %v7467
    %v7469 = vsel %vm7466, %v7468, %v7464
    %v7470 = vmul.f32 %v7102, %v7469
    %v7471 = vrcp.pop %v7185
    %v7472 = vmul.f32 %v7185, %v7471
    %v7473 = vsub.f32 1.0, %v7472
    %v7474 = vmul.f32 %v7471, %v7473
    %v7475 = vadd.f32 %v7471, %v7474
    %vm7476 = vweird.f32 %v7185
    %vm7477 = vweird.f32 %v7471
    %vm7478 = vmor %vm7476, %vm7477
    %v7479 = vsel %vm7478, %v7471, %v7475
    %v7480 = vand.u32 2147483647, %v7185
    %vm7481 = vcmp.eq.f32.partialorder %v7480, 8.507059e+37
    %v7482 = vand.u32 %v7185, 2147483648
    %v7483 = vor.u32 1.1754944e-38, %v7482
    %v7484 = vsel %vm7481, %v7483, %v7479
    %v7485 = vmul.f32 %v7104, %v7484
    %v7486 = vrcp.pop %v7188
    %v7487 = vmul.f32 %v7188, %v7486
    %v7488 = vsub.f32 1.0, %v7487
    %v7489 = vmul.f32 %v7486, %v7488
    %v7490 = vadd.f32 %v7486, %v7489
    %vm7491 = vweird.f32 %v7188
    %vm7492 = vweird.f32 %v7486
    %vm7493 = vmor %vm7491, %vm7492
    %v7494 = vsel %vm7493, %v7486, %v7490
    %v7495 = vand.u32 2147483647, %v7188
    %vm7496 = vcmp.eq.f32.partialorder %v7495, 8.507059e+37
    %v7497 = vand.u32 %v7188, 2147483648
    %v7498 = vor.u32 1.1754944e-38, %v7497
    %v7499 = vsel %vm7496, %v7498, %v7494
    %v7500 = vmul.f32 %v7106, %v7499
    %v7501 = vrcp.pop %v7191
    %v7502 = vmul.f32 %v7191, %v7501
    %v7503 = vsub.f32 1.0, %v7502
    %v7504 = vmul.f32 %v7501, %v7503
    %v7505 = vadd.f32 %v7501, %v7504
    %vm7506 = vweird.f32 %v7191
    %vm7507 = vweird.f32 %v7501
    %vm7508 = vmor %vm7506, %vm7507
    %v7509 = vsel %vm7508, %v7501, %v7505
    %v7510 = vand.u32 2147483647, %v7191
    %vm7511 = vcmp.eq.f32.partialorder %v7510, 8.507059e+37
    %v7512 = vand.u32 %v7191, 2147483648
    %v7513 = vor.u32 1.1754944e-38, %v7512
    %v7514 = vsel %vm7511, %v7513, %v7509
    %v7515 = vmul.f32 %v7108, %v7514
    %v7516 = vrcp.pop %v7194
    %v7517 = vmul.f32 %v7194, %v7516
    %v7518 = vsub.f32 1.0, %v7517
    %v7519 = vmul.f32 %v7516, %v7518
    %v7520 = vadd.f32 %v7516, %v7519
    %vm7521 = vweird.f32 %v7194
    %vm7522 = vweird.f32 %v7516
    %vm7523 = vmor %vm7521, %vm7522
    %v7524 = vsel %vm7523, %v7516, %v7520
    %v7525 = vand.u32 2147483647, %v7194
    %vm7526 = vcmp.eq.f32.partialorder %v7525, 8.507059e+37
    %v7527 = vand.u32 %v7194, 2147483648
    %v7528 = vor.u32 1.1754944e-38, %v7527
    %v7529 = vsel %vm7526, %v7528, %v7524
    %v7530 = vmul.f32 %v7110, %v7529
    %v7531 = vrcp.pop %v7197
    %v7532 = vmul.f32 %v7197, %v7531
    %v7533 = vsub.f32 1.0, %v7532
    %v7534 = vmul.f32 %v7531, %v7533
    %v7535 = vadd.f32 %v7531, %v7534
    %vm7536 = vweird.f32 %v7197
    %vm7537 = vweird.f32 %v7531
    %vm7538 = vmor %vm7536, %vm7537
    %v7539 = vsel %vm7538, %v7531, %v7535
    %v7540 = vand.u32 2147483647, %v7197
    %vm7541 = vcmp.eq.f32.partialorder %v7540, 8.507059e+37
    %v7542 = vand.u32 %v7197, 2147483648
    %v7543 = vor.u32 1.1754944e-38, %v7542
    %v7544 = vsel %vm7541, %v7543, %v7539
    %v7545 = vmul.f32 %v7112, %v7544
    %v7546 = vrcp.pop %v7200
    %v7547 = vmul.f32 %v7200, %v7546
    %v7548 = vsub.f32 1.0, %v7547
    %v7549 = vmul.f32 %v7546, %v7548
    %v7550 = vadd.f32 %v7546, %v7549
    %vm7551 = vweird.f32 %v7200
    %vm7552 = vweird.f32 %v7546
    %vm7553 = vmor %vm7551, %vm7552
    %v7554 = vsel %vm7553, %v7546, %v7550
    %v7555 = vand.u32 2147483647, %v7200
    %vm7556 = vcmp.eq.f32.partialorder %v7555, 8.507059e+37
    %v7557 = vand.u32 %v7200, 2147483648
    %v7558 = vor.u32 1.1754944e-38, %v7557
    %v7559 = vsel %vm7556, %v7558, %v7554
    %v7560 = vmul.f32 %v7114, %v7559
    %v7561 = vrcp.pop %v7203
    %v7562 = vmul.f32 %v7203, %v7561
    %v7563 = vsub.f32 1.0, %v7562
    %v7564 = vmul.f32 %v7561, %v7563
    %v7565 = vadd.f32 %v7561, %v7564
    %vm7566 = vweird.f32 %v7203
    %vm7567 = vweird.f32 %v7561
    %vm7568 = vmor %vm7566, %vm7567
    %v7569 = vsel %vm7568, %v7561, %v7565
    %v7570 = vand.u32 2147483647, %v7203
    %vm7571 = vcmp.eq.f32.partialorder %v7570, 8.507059e+37
    %v7572 = vand.u32 %v7203, 2147483648
    %v7573 = vor.u32 1.1754944e-38, %v7572
    %v7574 = vsel %vm7571, %v7573, %v7569
    %v7575 = vmul.f32 %v7116, %v7574
    %v7576 = vrcp.pop %v7206
    %v7577 = vmul.f32 %v7206, %v7576
    %v7578 = vsub.f32 1.0, %v7577
    %v7579 = vmul.f32 %v7576, %v7578
    %v7580 = vadd.f32 %v7576, %v7579
    %vm7581 = vweird.f32 %v7206
    %vm7582 = vweird.f32 %v7576
    %vm7583 = vmor %vm7581, %vm7582
    %v7584 = vsel %vm7583, %v7576, %v7580
    %v7585 = vand.u32 2147483647, %v7206
    %vm7586 = vcmp.eq.f32.partialorder %v7585, 8.507059e+37
    %v7587 = vand.u32 %v7206, 2147483648
    %v7588 = vor.u32 1.1754944e-38, %v7587
    %v7589 = vsel %vm7586, %v7588, %v7584
    %v7590 = vmul.f32 %v7118, %v7589
    %v7591 = vrcp.pop %v7209
    %v7592 = vmul.f32 %v7209, %v7591
    %v7593 = vsub.f32 1.0, %v7592
    %v7594 = vmul.f32 %v7591, %v7593
    %v7595 = vadd.f32 %v7591, %v7594
    %vm7596 = vweird.f32 %v7209
    %vm7597 = vweird.f32 %v7591
    %vm7598 = vmor %vm7596, %vm7597
    %v7599 = vsel %vm7598, %v7591, %v7595
    %v7600 = vand.u32 2147483647, %v7209
    %vm7601 = vcmp.eq.f32.partialorder %v7600, 8.507059e+37
    %v7602 = vand.u32 %v7209, 2147483648
    %v7603 = vor.u32 1.1754944e-38, %v7602
    %v7604 = vsel %vm7601, %v7603, %v7599
    %v7605 = vmul.f32 %v7120, %v7604
    %v7606 = vrcp.pop %v7212
    %v7607 = vmul.f32 %v7212, %v7606
    %v7608 = vsub.f32 1.0, %v7607
    %v7609 = vmul.f32 %v7606, %v7608
    %v7610 = vadd.f32 %v7606, %v7609
    %vm7611 = vweird.f32 %v7212
    %vm7612 = vweird.f32 %v7606
    %vm7613 = vmor %vm7611, %vm7612
    %v7614 = vsel %vm7613, %v7606, %v7610
    %v7615 = vand.u32 2147483647, %v7212
    %vm7616 = vcmp.eq.f32.partialorder %v7615, 8.507059e+37
    %v7617 = vand.u32 %v7212, 2147483648
    %v7618 = vor.u32 1.1754944e-38, %v7617
    %v7619 = vsel %vm7616, %v7618, %v7614
    %v7620 = vmul.f32 %v7122, %v7619
    %v7621 = vrcp.pop %v7215
    %v7622 = vmul.f32 %v7215, %v7621
    %v7623 = vsub.f32 1.0, %v7622
    %v7624 = vmul.f32 %v7621, %v7623
    %v7625 = vadd.f32 %v7621, %v7624
    %vm7626 = vweird.f32 %v7215
    %vm7627 = vweird.f32 %v7621
    %vm7628 = vmor %vm7626, %vm7627
    %v7629 = vsel %vm7628, %v7621, %v7625
    %v7630 = vand.u32 2147483647, %v7215
    %vm7631 = vcmp.eq.f32.partialorder %v7630, 8.507059e+37
    %v7632 = vand.u32 %v7215, 2147483648
    %v7633 = vor.u32 1.1754944e-38, %v7632
    %v7634 = vsel %vm7631, %v7633, %v7629
    %v7635 = vmul.f32 %v7124, %v7634
    %v7636 = vrcp.pop %v7218
    %v7637 = vmul.f32 %v7218, %v7636
    %v7638 = vsub.f32 1.0, %v7637
    %v7639 = vmul.f32 %v7636, %v7638
    %v7640 = vadd.f32 %v7636, %v7639
    %vm7641 = vweird.f32 %v7218
    %vm7642 = vweird.f32 %v7636
    %vm7643 = vmor %vm7641, %vm7642
    %v7644 = vsel %vm7643, %v7636, %v7640
    %v7645 = vand.u32 2147483647, %v7218
    %vm7646 = vcmp.eq.f32.partialorder %v7645, 8.507059e+37
    %v7647 = vand.u32 %v7218, 2147483648
    %v7648 = vor.u32 1.1754944e-38, %v7647
    %v7649 = vsel %vm7646, %v7648, %v7644
    %v7650 = vmul.f32 %v7126, %v7649
    %v7651 = vrcp.pop %v7221
    %v7652 = vmul.f32 %v7221, %v7651
    %v7653 = vsub.f32 1.0, %v7652
    %v7654 = vmul.f32 %v7651, %v7653
    %v7655 = vadd.f32 %v7651, %v7654
    %vm7656 = vweird.f32 %v7221
    %vm7657 = vweird.f32 %v7651
    %vm7658 = vmor %vm7656, %vm7657
    %v7659 = vsel %vm7658, %v7651, %v7655
    %v7660 = vand.u32 2147483647, %v7221
    %vm7661 = vcmp.eq.f32.partialorder %v7660, 8.507059e+37
    %v7662 = vand.u32 %v7221, 2147483648
    %v7663 = vor.u32 1.1754944e-38, %v7662
    %v7664 = vsel %vm7661, %v7663, %v7659
    %v7665 = vmul.f32 %v7128, %v7664
    %v7666 = vrcp.pop %v7224
    %v7667 = vmul.f32 %v7224, %v7666
    %v7668 = vsub.f32 1.0, %v7667
    %v7669 = vmul.f32 %v7666, %v7668
    %v7670 = vadd.f32 %v7666, %v7669
    %vm7671 = vweird.f32 %v7224
    %vm7672 = vweird.f32 %v7666
    %vm7673 = vmor %vm7671, %vm7672
    %v7674 = vsel %vm7673, %v7666, %v7670
    %v7675 = vand.u32 2147483647, %v7224
    %vm7676 = vcmp.eq.f32.partialorder %v7675, 8.507059e+37
    %v7677 = vand.u32 %v7224, 2147483648
    %v7678 = vor.u32 1.1754944e-38, %v7677
    %v7679 = vsel %vm7676, %v7678, %v7674
    %v7680 = vmul.f32 %v7130, %v7679
    %v7681 = vrcp.pop %v7227
    %v7682 = vmul.f32 %v7227, %v7681
    %v7683 = vsub.f32 1.0, %v7682
    %v7684 = vmul.f32 %v7681, %v7683
    %v7685 = vadd.f32 %v7681, %v7684
    %vm7686 = vweird.f32 %v7227
    %vm7687 = vweird.f32 %v7681
    %vm7688 = vmor %vm7686, %vm7687
    %v7689 = vsel %vm7688, %v7681, %v7685
    %v7690 = vand.u32 2147483647, %v7227
    %vm7691 = vcmp.eq.f32.partialorder %v7690, 8.507059e+37
    %v7692 = vand.u32 %v7227, 2147483648
    %v7693 = vor.u32 1.1754944e-38, %v7692
    %v7694 = vsel %vm7691, %v7693, %v7689
    %v7695 = vmul.f32 %v7132, %v7694
    %v7696 = vrcp.pop %v7230
    %v7697 = vmul.f32 %v7230, %v7696
    %v7698 = vsub.f32 1.0, %v7697
    %v7699 = vmul.f32 %v7696, %v7698
    %v7700 = vadd.f32 %v7696, %v7699
    %vm7701 = vweird.f32 %v7230
    %vm7702 = vweird.f32 %v7696
    %vm7703 = vmor %vm7701, %vm7702
    %v7704 = vsel %vm7703, %v7696, %v7700
    %v7705 = vand.u32 2147483647, %v7230
    %vm7706 = vcmp.eq.f32.partialorder %v7705, 8.507059e+37
    %v7707 = vand.u32 %v7230, 2147483648
    %v7708 = vor.u32 1.1754944e-38, %v7707
    %v7709 = vsel %vm7706, %v7708, %v7704
    %v7710 = vmul.f32 %v7134, %v7709
    %7715 = vrot.lane.b32.xlu0 %v6327, 80
    %v7716 = vpop.permute.xlu0 %7715
    %7717 = vrot.lane.b32.xlu0 %v6328, 80
    %v7718 = vpop.permute.xlu0 %7717
    %7719 = vrot.lane.b32.xlu0 %v6329, 80
    %v7720 = vpop.permute.xlu0 %7719
    %7721 = vrot.lane.b32.xlu0 %v6330, 80
    %v7722 = vpop.permute.xlu0 %7721
    %v7728 = vsel %vm1100, %v7245, 0
    %v7731 = vsel %vm1100, %v7260, 0
    %v7734 = vsel %vm1100, %v7275, 0
    %v7737 = vsel %vm1100, %v7290, 0
    %7739 = vmatpush.msra.mxu0 0.0
    %7740 = vmatpush.msra.mxu0 0.0
    %7741 = vmatpush.msra.mxu0 0.0
    %7742 = vmatpush.msra.mxu0 0.0
    %7743 = vmatpush.msra.mxu0 0.0
    %7744 = vmatpush.msra.mxu0 0.0
    %7745 = vmatpush.msra.mxu0 0.0
    %7746 = vmatpush.msra.mxu0 0.0
    %7747 = vmatpush.msra.mxu0 0.0
    %7748 = vmatpush.msra.mxu0 0.0
    %7749 = vmatpush.msra.mxu0 0.0
    %7750 = vmatpush.msra.mxu0 0.0
    %7751 = vmatpush.msra.mxu0 %v7722
    %7752 = vmatpush.msra.mxu0 %v7720
    %7753 = vmatpush.msra.mxu0 %v7718
    %7754 = vmatpush.msra.mxu0 %v7716
    %7755 = vmatmul.f32.gmra.mxu0 %v7728
    %v7756 = vpop.f32.mrf.mxu0
    %v7757 = vadd.f32 0.0, %v7756
    %7758 = vmatmul.f32.gmra.mxu0 %v7731
    %v7759 = vpop.f32.mrf.mxu0
    %v7760 = vadd.f32 0.0, %v7759
    %7761 = vmatmul.f32.gmra.mxu0 %v7734
    %v7762 = vpop.f32.mrf.mxu0
    %v7763 = vadd.f32 0.0, %v7762
    %7764 = vmatmul.f32.gmra.mxu0 %v7737
    %v7765 = vpop.f32.mrf.mxu0
    %v7766 = vadd.f32 0.0, %v7765
    %7767 = vdwg.mxu0
    %7772 = vrot.lane.b32.xlu0 %v6331, 80
    %v7773 = vpop.permute.xlu0 %7772
    %7774 = vrot.lane.b32.xlu0 %v6332, 80
    %v7775 = vpop.permute.xlu0 %7774
    %7776 = vrot.lane.b32.xlu0 %v6333, 80
    %v7777 = vpop.permute.xlu0 %7776
    %7778 = vrot.lane.b32.xlu0 %v6334, 80
    %v7779 = vpop.permute.xlu0 %7778
    %v7785 = vsel %vm1100, %v7305, 0
    %v7788 = vsel %vm1100, %v7320, 0
    %v7791 = vsel %vm1100, %v7335, 0
    %v7794 = vsel %vm1100, %v7350, 0
    %7796 = vmatpush.msra.mxu0 0.0
    %7797 = vmatpush.msra.mxu0 0.0
    %7798 = vmatpush.msra.mxu0 0.0
    %7799 = vmatpush.msra.mxu0 0.0
    %7800 = vmatpush.msra.mxu0 0.0
    %7801 = vmatpush.msra.mxu0 0.0
    %7802 = vmatpush.msra.mxu0 0.0
    %7803 = vmatpush.msra.mxu0 0.0
    %7804 = vmatpush.msra.mxu0 0.0
    %7805 = vmatpush.msra.mxu0 0.0
    %7806 = vmatpush.msra.mxu0 0.0
    %7807 = vmatpush.msra.mxu0 0.0
    %7808 = vmatpush.msra.mxu0 %v7779
    %7809 = vmatpush.msra.mxu0 %v7777
    %7810 = vmatpush.msra.mxu0 %v7775
    %7811 = vmatpush.msra.mxu0 %v7773
    %7812 = vmatmul.f32.gmra.mxu0 %v7785
    %v7813 = vpop.f32.mrf.mxu0
    %v7814 = vadd.f32 0.0, %v7813
    %7815 = vmatmul.f32.gmra.mxu0 %v7788
    %v7816 = vpop.f32.mrf.mxu0
    %v7817 = vadd.f32 0.0, %v7816
    %7818 = vmatmul.f32.gmra.mxu0 %v7791
    %v7819 = vpop.f32.mrf.mxu0
    %v7820 = vadd.f32 0.0, %v7819
    %7821 = vmatmul.f32.gmra.mxu0 %v7794
    %v7822 = vpop.f32.mrf.mxu0
    %v7823 = vadd.f32 0.0, %v7822
    %7824 = vdwg.mxu0
    %7829 = vrot.lane.b32.xlu0 %v6335, 80
    %v7830 = vpop.permute.xlu0 %7829
    %7831 = vrot.lane.b32.xlu0 %v6336, 80
    %v7832 = vpop.permute.xlu0 %7831
    %7833 = vrot.lane.b32.xlu0 %v6337, 80
    %v7834 = vpop.permute.xlu0 %7833
    %7835 = vrot.lane.b32.xlu0 %v6338, 80
    %v7836 = vpop.permute.xlu0 %7835
    %v7842 = vsel %vm1100, %v7365, 0
    %v7845 = vsel %vm1100, %v7380, 0
    %v7848 = vsel %vm1100, %v7395, 0
    %v7851 = vsel %vm1100, %v7410, 0
    %7853 = vmatpush.msra.mxu0 0.0
    %7854 = vmatpush.msra.mxu0 0.0
    %7855 = vmatpush.msra.mxu0 0.0
    %7856 = vmatpush.msra.mxu0 0.0
    %7857 = vmatpush.msra.mxu0 0.0
    %7858 = vmatpush.msra.mxu0 0.0
    %7859 = vmatpush.msra.mxu0 0.0
    %7860 = vmatpush.msra.mxu0 0.0
    %7861 = vmatpush.msra.mxu0 0.0
    %7862 = vmatpush.msra.mxu0 0.0
    %7863 = vmatpush.msra.mxu0 0.0
    %7864 = vmatpush.msra.mxu0 0.0
    %7865 = vmatpush.msra.mxu0 %v7836
    %7866 = vmatpush.msra.mxu0 %v7834
    %7867 = vmatpush.msra.mxu0 %v7832
    %7868 = vmatpush.msra.mxu0 %v7830
    %7869 = vmatmul.f32.gmra.mxu0 %v7842
    %v7870 = vpop.f32.mrf.mxu0
    %v7871 = vadd.f32 0.0, %v7870
    %7872 = vmatmul.f32.gmra.mxu0 %v7845
    %v7873 = vpop.f32.mrf.mxu0
    %v7874 = vadd.f32 0.0, %v7873
    %7875 = vmatmul.f32.gmra.mxu0 %v7848
    %v7876 = vpop.f32.mrf.mxu0
    %v7877 = vadd.f32 0.0, %v7876
    %7878 = vmatmul.f32.gmra.mxu0 %v7851
    %v7879 = vpop.f32.mrf.mxu0
    %v7880 = vadd.f32 0.0, %v7879
    %7881 = vdwg.mxu0
    %7886 = vrot.lane.b32.xlu0 %v6339, 80
    %v7887 = vpop.permute.xlu0 %7886
    %7888 = vrot.lane.b32.xlu0 %v6340, 80
    %v7889 = vpop.permute.xlu0 %7888
    %7890 = vrot.lane.b32.xlu0 %v6341, 80
    %v7891 = vpop.permute.xlu0 %7890
    %7892 = vrot.lane.b32.xlu0 %v6342, 80
    %v7893 = vpop.permute.xlu0 %7892
    %v7899 = vsel %vm1100, %v7425, 0
    %v7902 = vsel %vm1100, %v7440, 0
    %v7905 = vsel %vm1100, %v7455, 0
    %v7908 = vsel %vm1100, %v7470, 0
    %7910 = vmatpush.msra.mxu0 0.0
    %7911 = vmatpush.msra.mxu0 0.0
    %7912 = vmatpush.msra.mxu0 0.0
    %7913 = vmatpush.msra.mxu0 0.0
    %7914 = vmatpush.msra.mxu0 0.0
    %7915 = vmatpush.msra.mxu0 0.0
    %7916 = vmatpush.msra.mxu0 0.0
    %7917 = vmatpush.msra.mxu0 0.0
    %7918 = vmatpush.msra.mxu0 0.0
    %7919 = vmatpush.msra.mxu0 0.0
    %7920 = vmatpush.msra.mxu0 0.0
    %7921 = vmatpush.msra.mxu0 0.0
    %7922 = vmatpush.msra.mxu0 %v7893
    %7923 = vmatpush.msra.mxu0 %v7891
    %7924 = vmatpush.msra.mxu0 %v7889
    %7925 = vmatpush.msra.mxu0 %v7887
    %7926 = vmatmul.f32.gmra.mxu0 %v7899
    %v7927 = vpop.f32.mrf.mxu0
    %v7928 = vadd.f32 0.0, %v7927
    %7929 = vmatmul.f32.gmra.mxu0 %v7902
    %v7930 = vpop.f32.mrf.mxu0
    %v7931 = vadd.f32 0.0, %v7930
    %7932 = vmatmul.f32.gmra.mxu0 %v7905
    %v7933 = vpop.f32.mrf.mxu0
    %v7934 = vadd.f32 0.0, %v7933
    %7935 = vmatmul.f32.gmra.mxu0 %v7908
    %v7936 = vpop.f32.mrf.mxu0
    %v7937 = vadd.f32 0.0, %v7936
    %7938 = vdwg.mxu0
    %7943 = vrot.lane.b32.xlu0 %v6343, 80
    %v7944 = vpop.permute.xlu0 %7943
    %7945 = vrot.lane.b32.xlu0 %v6344, 80
    %v7946 = vpop.permute.xlu0 %7945
    %7947 = vrot.lane.b32.xlu0 %v6345, 80
    %v7948 = vpop.permute.xlu0 %7947
    %7949 = vrot.lane.b32.xlu0 %v6346, 80
    %v7950 = vpop.permute.xlu0 %7949
    %v7956 = vsel %vm1100, %v7485, 0
    %v7959 = vsel %vm1100, %v7500, 0
    %v7962 = vsel %vm1100, %v7515, 0
    %v7965 = vsel %vm1100, %v7530, 0
    %7967 = vmatpush.msra.mxu0 0.0
    %7968 = vmatpush.msra.mxu0 0.0
    %7969 = vmatpush.msra.mxu0 0.0
    %7970 = vmatpush.msra.mxu0 0.0
    %7971 = vmatpush.msra.mxu0 0.0
    %7972 = vmatpush.msra.mxu0 0.0
    %7973 = vmatpush.msra.mxu0 0.0
    %7974 = vmatpush.msra.mxu0 0.0
    %7975 = vmatpush.msra.mxu0 0.0
    %7976 = vmatpush.msra.mxu0 0.0
    %7977 = vmatpush.msra.mxu0 0.0
    %7978 = vmatpush.msra.mxu0 0.0
    %7979 = vmatpush.msra.mxu0 %v7950
    %7980 = vmatpush.msra.mxu0 %v7948
    %7981 = vmatpush.msra.mxu0 %v7946
    %7982 = vmatpush.msra.mxu0 %v7944
    %7983 = vmatmul.f32.gmra.mxu0 %v7956
    %v7984 = vpop.f32.mrf.mxu0
    %v7985 = vadd.f32 0.0, %v7984
    %7986 = vmatmul.f32.gmra.mxu0 %v7959
    %v7987 = vpop.f32.mrf.mxu0
    %v7988 = vadd.f32 0.0, %v7987
    %7989 = vmatmul.f32.gmra.mxu0 %v7962
    %v7990 = vpop.f32.mrf.mxu0
    %v7991 = vadd.f32 0.0, %v7990
    %7992 = vmatmul.f32.gmra.mxu0 %v7965
    %v7993 = vpop.f32.mrf.mxu0
    %v7994 = vadd.f32 0.0, %v7993
    %7995 = vdwg.mxu0
    %8000 = vrot.lane.b32.xlu0 %v6347, 80
    %v8001 = vpop.permute.xlu0 %8000
    %8002 = vrot.lane.b32.xlu0 %v6348, 80
    %v8003 = vpop.permute.xlu0 %8002
    %8004 = vrot.lane.b32.xlu0 %v6349, 80
    %v8005 = vpop.permute.xlu0 %8004
    %8006 = vrot.lane.b32.xlu0 %v6350, 80
    %v8007 = vpop.permute.xlu0 %8006
    %v8013 = vsel %vm1100, %v7545, 0
    %v8016 = vsel %vm1100, %v7560, 0
    %v8019 = vsel %vm1100, %v7575, 0
    %v8022 = vsel %vm1100, %v7590, 0
    %8024 = vmatpush.msra.mxu0 0.0
    %8025 = vmatpush.msra.mxu0 0.0
    %8026 = vmatpush.msra.mxu0 0.0
    %8027 = vmatpush.msra.mxu0 0.0
    %8028 = vmatpush.msra.mxu0 0.0
    %8029 = vmatpush.msra.mxu0 0.0
    %8030 = vmatpush.msra.mxu0 0.0
    %8031 = vmatpush.msra.mxu0 0.0
    %8032 = vmatpush.msra.mxu0 0.0
    %8033 = vmatpush.msra.mxu0 0.0
    %8034 = vmatpush.msra.mxu0 0.0
    %8035 = vmatpush.msra.mxu0 0.0
    %8036 = vmatpush.msra.mxu0 %v8007
    %8037 = vmatpush.msra.mxu0 %v8005
    %8038 = vmatpush.msra.mxu0 %v8003
    %8039 = vmatpush.msra.mxu0 %v8001
    %8040 = vmatmul.f32.gmra.mxu0 %v8013
    %v8041 = vpop.f32.mrf.mxu0
    %v8042 = vadd.f32 0.0, %v8041
    %8043 = vmatmul.f32.gmra.mxu0 %v8016
    %v8044 = vpop.f32.mrf.mxu0
    %v8045 = vadd.f32 0.0, %v8044
    %8046 = vmatmul.f32.gmra.mxu0 %v8019
    %v8047 = vpop.f32.mrf.mxu0
    %v8048 = vadd.f32 0.0, %v8047
    %8049 = vmatmul.f32.gmra.mxu0 %v8022
    %v8050 = vpop.f32.mrf.mxu0
    %v8051 = vadd.f32 0.0, %v8050
    %8052 = vdwg.mxu0
    %8057 = vrot.lane.b32.xlu0 %v6351, 80
    %v8058 = vpop.permute.xlu0 %8057
    %8059 = vrot.lane.b32.xlu0 %v6352, 80
    %v8060 = vpop.permute.xlu0 %8059
    %8061 = vrot.lane.b32.xlu0 %v6353, 80
    %v8062 = vpop.permute.xlu0 %8061
    %8063 = vrot.lane.b32.xlu0 %v6354, 80
    %v8064 = vpop.permute.xlu0 %8063
    %v8070 = vsel %vm1100, %v7605, 0
    %v8073 = vsel %vm1100, %v7620, 0
    %v8076 = vsel %vm1100, %v7635, 0
    %v8079 = vsel %vm1100, %v7650, 0
    %8081 = vmatpush.msra.mxu0 0.0
    %8082 = vmatpush.msra.mxu0 0.0
    %8083 = vmatpush.msra.mxu0 0.0
    %8084 = vmatpush.msra.mxu0 0.0
    %8085 = vmatpush.msra.mxu0 0.0
    %8086 = vmatpush.msra.mxu0 0.0
    %8087 = vmatpush.msra.mxu0 0.0
    %8088 = vmatpush.msra.mxu0 0.0
    %8089 = vmatpush.msra.mxu0 0.0
    %8090 = vmatpush.msra.mxu0 0.0
    %8091 = vmatpush.msra.mxu0 0.0
    %8092 = vmatpush.msra.mxu0 0.0
    %8093 = vmatpush.msra.mxu0 %v8064
    %8094 = vmatpush.msra.mxu0 %v8062
    %8095 = vmatpush.msra.mxu0 %v8060
    %8096 = vmatpush.msra.mxu0 %v8058
    %8097 = vmatmul.f32.gmra.mxu0 %v8070
    %v8098 = vpop.f32.mrf.mxu0
    %v8099 = vadd.f32 0.0, %v8098
    %8100 = vmatmul.f32.gmra.mxu0 %v8073
    %v8101 = vpop.f32.mrf.mxu0
    %v8102 = vadd.f32 0.0, %v8101
    %8103 = vmatmul.f32.gmra.mxu0 %v8076
    %v8104 = vpop.f32.mrf.mxu0
    %v8105 = vadd.f32 0.0, %v8104
    %8106 = vmatmul.f32.gmra.mxu0 %v8079
    %v8107 = vpop.f32.mrf.mxu0
    %v8108 = vadd.f32 0.0, %v8107
    %8109 = vdwg.mxu0
    %8114 = vrot.lane.b32.xlu0 %v6355, 80
    %v8115 = vpop.permute.xlu0 %8114
    %8116 = vrot.lane.b32.xlu0 %v6356, 80
    %v8117 = vpop.permute.xlu0 %8116
    %8118 = vrot.lane.b32.xlu0 %v6357, 80
    %v8119 = vpop.permute.xlu0 %8118
    %8120 = vrot.lane.b32.xlu0 %v6358, 80
    %v8121 = vpop.permute.xlu0 %8120
    %v8127 = vsel %vm1100, %v7665, 0
    %v8130 = vsel %vm1100, %v7680, 0
    %v8133 = vsel %vm1100, %v7695, 0
    %v8136 = vsel %vm1100, %v7710, 0
    %8138 = vmatpush.msra.mxu0 0.0
    %8139 = vmatpush.msra.mxu0 0.0
    %8140 = vmatpush.msra.mxu0 0.0
    %8141 = vmatpush.msra.mxu0 0.0
    %8142 = vmatpush.msra.mxu0 0.0
    %8143 = vmatpush.msra.mxu0 0.0
    %8144 = vmatpush.msra.mxu0 0.0
    %8145 = vmatpush.msra.mxu0 0.0
    %8146 = vmatpush.msra.mxu0 0.0
    %8147 = vmatpush.msra.mxu0 0.0
    %8148 = vmatpush.msra.mxu0 0.0
    %8149 = vmatpush.msra.mxu0 0.0
    %8150 = vmatpush.msra.mxu0 %v8121
    %8151 = vmatpush.msra.mxu0 %v8119
    %8152 = vmatpush.msra.mxu0 %v8117
    %8153 = vmatpush.msra.mxu0 %v8115
    %8154 = vmatmul.f32.gmra.mxu0 %v8127
    %v8155 = vpop.f32.mrf.mxu0
    %v8156 = vadd.f32 0.0, %v8155
    %8157 = vmatmul.f32.gmra.mxu0 %v8130
    %v8158 = vpop.f32.mrf.mxu0
    %v8159 = vadd.f32 0.0, %v8158
    %8160 = vmatmul.f32.gmra.mxu0 %v8133
    %v8161 = vpop.f32.mrf.mxu0
    %v8162 = vadd.f32 0.0, %v8161
    %8163 = vmatmul.f32.gmra.mxu0 %v8136
    %v8164 = vpop.f32.mrf.mxu0
    %v8165 = vadd.f32 0.0, %v8164
    %8166 = vdwg.mxu0
    %8199 = vrot.lane.b32.xlu0 %v7757, 48
    %v8200 = vpop.permute.xlu0 %8199
    %8201 = vrot.lane.b32.xlu0 %v7760, 48
    %v8202 = vpop.permute.xlu0 %8201
    %8203 = vrot.lane.b32.xlu0 %v7763, 48
    %v8204 = vpop.permute.xlu0 %8203
    %8205 = vrot.lane.b32.xlu0 %v7766, 48
    %v8206 = vpop.permute.xlu0 %8205
    %8207 = vrot.lane.b32.xlu0 %v7814, 48
    %v8208 = vpop.permute.xlu0 %8207
    %8209 = vrot.lane.b32.xlu0 %v7817, 48
    %v8210 = vpop.permute.xlu0 %8209
    %8211 = vrot.lane.b32.xlu0 %v7820, 48
    %v8212 = vpop.permute.xlu0 %8211
    %8213 = vrot.lane.b32.xlu0 %v7823, 48
    %v8214 = vpop.permute.xlu0 %8213
    %8215 = vrot.lane.b32.xlu0 %v7871, 48
    %v8216 = vpop.permute.xlu0 %8215
    %8217 = vrot.lane.b32.xlu0 %v7874, 48
    %v8218 = vpop.permute.xlu0 %8217
    %8219 = vrot.lane.b32.xlu0 %v7877, 48
    %v8220 = vpop.permute.xlu0 %8219
    %8221 = vrot.lane.b32.xlu0 %v7880, 48
    %v8222 = vpop.permute.xlu0 %8221
    %8223 = vrot.lane.b32.xlu0 %v7928, 48
    %v8224 = vpop.permute.xlu0 %8223
    %8225 = vrot.lane.b32.xlu0 %v7931, 48
    %v8226 = vpop.permute.xlu0 %8225
    %8227 = vrot.lane.b32.xlu0 %v7934, 48
    %v8228 = vpop.permute.xlu0 %8227
    %8229 = vrot.lane.b32.xlu0 %v7937, 48
    %v8230 = vpop.permute.xlu0 %8229
    %8231 = vrot.lane.b32.xlu0 %v7985, 48
    %v8232 = vpop.permute.xlu0 %8231
    %8233 = vrot.lane.b32.xlu0 %v7988, 48
    %v8234 = vpop.permute.xlu0 %8233
    %8235 = vrot.lane.b32.xlu0 %v7991, 48
    %v8236 = vpop.permute.xlu0 %8235
    %8237 = vrot.lane.b32.xlu0 %v7994, 48
    %v8238 = vpop.permute.xlu0 %8237
    %8239 = vrot.lane.b32.xlu0 %v8042, 48
    %v8240 = vpop.permute.xlu0 %8239
    %8241 = vrot.lane.b32.xlu0 %v8045, 48
    %v8242 = vpop.permute.xlu0 %8241
    %8243 = vrot.lane.b32.xlu0 %v8048, 48
    %v8244 = vpop.permute.xlu0 %8243
    %8245 = vrot.lane.b32.xlu0 %v8051, 48
    %v8246 = vpop.permute.xlu0 %8245
    %8247 = vrot.lane.b32.xlu0 %v8099, 48
    %v8248 = vpop.permute.xlu0 %8247
    %8249 = vrot.lane.b32.xlu0 %v8102, 48
    %v8250 = vpop.permute.xlu0 %8249
    %8251 = vrot.lane.b32.xlu0 %v8105, 48
    %v8252 = vpop.permute.xlu0 %8251
    %8253 = vrot.lane.b32.xlu0 %v8108, 48
    %v8254 = vpop.permute.xlu0 %8253
    %8255 = vrot.lane.b32.xlu0 %v8156, 48
    %v8256 = vpop.permute.xlu0 %8255
    %8257 = vrot.lane.b32.xlu0 %v8159, 48
    %v8258 = vpop.permute.xlu0 %8257
    %8259 = vrot.lane.b32.xlu0 %v8162, 48
    %v8260 = vpop.permute.xlu0 %8259
    %8261 = vrot.lane.b32.xlu0 %v8165, 48
    %v8262 = vpop.permute.xlu0 %8261
    %vm8295 = vcmask 523648
    %8296 = vst.msk [vmem:[#allocation3] sm:$0xff] %vm8295, %v8200
    %8297 = vst.msk [vmem:[#allocation3 + $0x8] sm:$0xff] %vm8295, %v8202
    %8298 = vst.msk [vmem:[#allocation3 + $0x10] sm:$0xff] %vm8295, %v8204
    %8299 = vst.msk [vmem:[#allocation3 + $0x18] sm:$0xff] %vm8295, %v8206
    %8300 = vst.msk [vmem:[#allocation3 + $0x20] sm:$0xff] %vm8295, %v8208
    %8301 = vst.msk [vmem:[#allocation3 + $0x28] sm:$0xff] %vm8295, %v8210
    %8302 = vst.msk [vmem:[#allocation3 + $0x30] sm:$0xff] %vm8295, %v8212
    %8303 = vst.msk [vmem:[#allocation3 + $0x38] sm:$0xff] %vm8295, %v8214
    %8304 = vst.msk [vmem:[#allocation3 + $0x40] sm:$0xff] %vm8295, %v8216
    %8305 = vst.msk [vmem:[#allocation3 + $0x48] sm:$0xff] %vm8295, %v8218
    %8306 = vst.msk [vmem:[#allocation3 + $0x50] sm:$0xff] %vm8295, %v8220
    %8307 = vst.msk [vmem:[#allocation3 + $0x58] sm:$0xff] %vm8295, %v8222
    %8308 = vst.msk [vmem:[#allocation3 + $0x60] sm:$0xff] %vm8295, %v8224
    %8309 = vst.msk [vmem:[#allocation3 + $0x68] sm:$0xff] %vm8295, %v8226
    %8310 = vst.msk [vmem:[#allocation3 + $0x70] sm:$0xff] %vm8295, %v8228
    %8311 = vst.msk [vmem:[#allocation3 + $0x78] sm:$0xff] %vm8295, %v8230
    %8312 = vst.msk [vmem:[#allocation3 + $0x80] sm:$0xff] %vm8295, %v8232
    %8313 = vst.msk [vmem:[#allocation3 + $0x88] sm:$0xff] %vm8295, %v8234
    %8314 = vst.msk [vmem:[#allocation3 + $0x90] sm:$0xff] %vm8295, %v8236
    %8315 = vst.msk [vmem:[#allocation3 + $0x98] sm:$0xff] %vm8295, %v8238
    %8316 = vst.msk [vmem:[#allocation3 + $0xa0] sm:$0xff] %vm8295, %v8240
    %8317 = vst.msk [vmem:[#allocation3 + $0xa8] sm:$0xff] %vm8295, %v8242
    %8318 = vst.msk [vmem:[#allocation3 + $0xb0] sm:$0xff] %vm8295, %v8244
    %8319 = vst.msk [vmem:[#allocation3 + $0xb8] sm:$0xff] %vm8295, %v8246
    %8320 = vst.msk [vmem:[#allocation3 + $0xc0] sm:$0xff] %vm8295, %v8248
    %8321 = vst.msk [vmem:[#allocation3 + $0xc8] sm:$0xff] %vm8295, %v8250
    %8322 = vst.msk [vmem:[#allocation3 + $0xd0] sm:$0xff] %vm8295, %v8252
    %8323 = vst.msk [vmem:[#allocation3 + $0xd8] sm:$0xff] %vm8295, %v8254
    %8324 = vst.msk [vmem:[#allocation3 + $0xe0] sm:$0xff] %vm8295, %v8256
    %8325 = vst.msk [vmem:[#allocation3 + $0xe8] sm:$0xff] %vm8295, %v8258
    %8326 = vst.msk [vmem:[#allocation3 + $0xf0] sm:$0xff] %vm8295, %v8260
    %8327 = vst.msk [vmem:[#allocation3 + $0xf8] sm:$0xff] %vm8295, %v8262
    %v8328 = vld [vmem:[#allocation3] sm:$0xff]
    %v8329 = vld [vmem:[#allocation3 + $0x8] sm:$0xff]
    %v8330 = vld [vmem:[#allocation3 + $0x10] sm:$0xff]
    %v8331 = vld [vmem:[#allocation3 + $0x18] sm:$0xff]
    %v8332 = vld [vmem:[#allocation3 + $0x20] sm:$0xff]
    %v8333 = vld [vmem:[#allocation3 + $0x28] sm:$0xff]
    %v8334 = vld [vmem:[#allocation3 + $0x30] sm:$0xff]
    %v8335 = vld [vmem:[#allocation3 + $0x38] sm:$0xff]
    %v8336 = vld [vmem:[#allocation3 + $0x40] sm:$0xff]
    %v8337 = vld [vmem:[#allocation3 + $0x48] sm:$0xff]
    %v8338 = vld [vmem:[#allocation3 + $0x50] sm:$0xff]
    %v8339 = vld [vmem:[#allocation3 + $0x58] sm:$0xff]
    %v8340 = vld [vmem:[#allocation3 + $0x60] sm:$0xff]
    %v8341 = vld [vmem:[#allocation3 + $0x68] sm:$0xff]
    %v8342 = vld [vmem:[#allocation3 + $0x70] sm:$0xff]
    %v8343 = vld [vmem:[#allocation3 + $0x78] sm:$0xff]
    %v8344 = vld [vmem:[#allocation3 + $0x80] sm:$0xff]
    %v8345 = vld [vmem:[#allocation3 + $0x88] sm:$0xff]
    %v8346 = vld [vmem:[#allocation3 + $0x90] sm:$0xff]
    %v8347 = vld [vmem:[#allocation3 + $0x98] sm:$0xff]
    %v8348 = vld [vmem:[#allocation3 + $0xa0] sm:$0xff]
    %v8349 = vld [vmem:[#allocation3 + $0xa8] sm:$0xff]
    %v8350 = vld [vmem:[#allocation3 + $0xb0] sm:$0xff]
    %v8351 = vld [vmem:[#allocation3 + $0xb8] sm:$0xff]
    %v8352 = vld [vmem:[#allocation3 + $0xc0] sm:$0xff]
    %v8353 = vld [vmem:[#allocation3 + $0xc8] sm:$0xff]
    %v8354 = vld [vmem:[#allocation3 + $0xd0] sm:$0xff]
    %v8355 = vld [vmem:[#allocation3 + $0xd8] sm:$0xff]
    %v8356 = vld [vmem:[#allocation3 + $0xe0] sm:$0xff]
    %v8357 = vld [vmem:[#allocation3 + $0xe8] sm:$0xff]
    %v8358 = vld [vmem:[#allocation3 + $0xf0] sm:$0xff]
    %v8359 = vld [vmem:[#allocation3 + $0xf8] sm:$0xff]
    %v8360 = vld [vmem:[#allocation9] sm:$0xff]
    %v8361 = vld [vmem:[#allocation9 + $0x8] sm:$0xff]
    %v8362 = vld [vmem:[#allocation9 + $0x10] sm:$0xff]
    %v8363 = vld [vmem:[#allocation9 + $0x18] sm:$0xff]
    %v8364 = vld [vmem:[#allocation9 + $0x20] sm:$0xff]
    %v8365 = vld [vmem:[#allocation9 + $0x28] sm:$0xff]
    %v8366 = vld [vmem:[#allocation9 + $0x30] sm:$0xff]
    %v8367 = vld [vmem:[#allocation9 + $0x38] sm:$0xff]
    %v8368 = vld [vmem:[%s3] sm:$0x1]
    %v8370 = vperm.slane %v8368, 0
    %v8373 = vsel %vm113, %v8328, 0
    %v8376 = vsel %vm113, %v8329, 0
    %v8379 = vsel %vm113, %v8330, 0
    %v8382 = vsel %vm113, %v8331, 0
    %v8385 = vsel %vm113, %v8332, 0
    %v8388 = vsel %vm113, %v8333, 0
    %v8391 = vsel %vm113, %v8334, 0
    %v8394 = vsel %vm113, %v8335, 0
    %v8397 = vsel %vm113, %v8336, 0
    %v8400 = vsel %vm113, %v8337, 0
    %v8403 = vsel %vm113, %v8338, 0
    %v8406 = vsel %vm113, %v8339, 0
    %v8409 = vsel %vm113, %v8340, 0
    %v8412 = vsel %vm113, %v8341, 0
    %v8415 = vsel %vm113, %v8342, 0
    %v8418 = vsel %vm113, %v8343, 0
    %v8421 = vsel %vm113, %v8344, 0
    %v8424 = vsel %vm113, %v8345, 0
    %v8427 = vsel %vm113, %v8346, 0
    %v8430 = vsel %vm113, %v8347, 0
    %v8433 = vsel %vm113, %v8348, 0
    %v8436 = vsel %vm113, %v8349, 0
    %v8439 = vsel %vm113, %v8350, 0
    %v8442 = vsel %vm113, %v8351, 0
    %v8445 = vsel %vm113, %v8352, 0
    %v8448 = vsel %vm113, %v8353, 0
    %v8451 = vsel %vm113, %v8354, 0
    %v8454 = vsel %vm113, %v8355, 0
    %v8457 = vsel %vm113, %v8356, 0
    %v8460 = vsel %vm113, %v8357, 0
    %v8463 = vsel %vm113, %v8358, 0
    %v8466 = vsel %vm113, %v8359, 0
    %8468 = vmatpush.msra.mxu0 0.0
    %8469 = vmatpush.msra.mxu0 0.0
    %8470 = vmatpush.msra.mxu0 0.0
    %8471 = vmatpush.msra.mxu0 0.0
    %8472 = vmatpush.msra.mxu0 0.0
    %8473 = vmatpush.msra.mxu0 0.0
    %8474 = vmatpush.msra.mxu0 0.0
    %8475 = vmatpush.msra.mxu0 0.0
    %8476 = vmatpush.msra.mxu0 %v8367
    %8477 = vmatpush.msra.mxu0 %v8366
    %8478 = vmatpush.msra.mxu0 %v8365
    %8479 = vmatpush.msra.mxu0 %v8364
    %8480 = vmatpush.msra.mxu0 %v8363
    %8481 = vmatpush.msra.mxu0 %v8362
    %8482 = vmatpush.msra.mxu0 %v8361
    %8483 = vmatpush.msra.mxu0 %v8360
    %8484 = vmatmul.f32.gmra.mxu0 %v8373
    %v8485 = vpop.f32.mrf.mxu0
    %v8486 = vadd.f32 %v8370, %v8485
    %8487 = vmatmul.f32.gmra.mxu0 %v8376
    %v8488 = vpop.f32.mrf.mxu0
    %v8489 = vadd.f32 %v8370, %v8488
    %8490 = vmatmul.f32.gmra.mxu0 %v8379
    %v8491 = vpop.f32.mrf.mxu0
    %v8492 = vadd.f32 %v8370, %v8491
    %8493 = vmatmul.f32.gmra.mxu0 %v8382
    %v8494 = vpop.f32.mrf.mxu0
    %v8495 = vadd.f32 %v8370, %v8494
    %8496 = vmatmul.f32.gmra.mxu0 %v8385
    %v8497 = vpop.f32.mrf.mxu0
    %v8498 = vadd.f32 %v8370, %v8497
    %8499 = vmatmul.f32.gmra.mxu0 %v8388
    %v8500 = vpop.f32.mrf.mxu0
    %v8501 = vadd.f32 %v8370, %v8500
    %8502 = vmatmul.f32.gmra.mxu0 %v8391
    %v8503 = vpop.f32.mrf.mxu0
    %v8504 = vadd.f32 %v8370, %v8503
    %8505 = vmatmul.f32.gmra.mxu0 %v8394
    %v8506 = vpop.f32.mrf.mxu0
    %v8507 = vadd.f32 %v8370, %v8506
    %8508 = vmatmul.f32.gmra.mxu0 %v8397
    %v8509 = vpop.f32.mrf.mxu0
    %v8510 = vadd.f32 %v8370, %v8509
    %8511 = vmatmul.f32.gmra.mxu0 %v8400
    %v8512 = vpop.f32.mrf.mxu0
    %v8513 = vadd.f32 %v8370, %v8512
    %8514 = vmatmul.f32.gmra.mxu0 %v8403
    %v8515 = vpop.f32.mrf.mxu0
    %v8516 = vadd.f32 %v8370, %v8515
    %8517 = vmatmul.f32.gmra.mxu0 %v8406
    %v8518 = vpop.f32.mrf.mxu0
    %v8519 = vadd.f32 %v8370, %v8518
    %8520 = vmatmul.f32.gmra.mxu0 %v8409
    %v8521 = vpop.f32.mrf.mxu0
    %v8522 = vadd.f32 %v8370, %v8521
    %8523 = vmatmul.f32.gmra.mxu0 %v8412
    %v8524 = vpop.f32.mrf.mxu0
    %v8525 = vadd.f32 %v8370, %v8524
    %8526 = vmatmul.f32.gmra.mxu0 %v8415
    %v8527 = vpop.f32.mrf.mxu0
    %v8528 = vadd.f32 %v8370, %v8527
    %8529 = vmatmul.f32.gmra.mxu0 %v8418
    %v8530 = vpop.f32.mrf.mxu0
    %v8531 = vadd.f32 %v8370, %v8530
    %8532 = vmatmul.f32.gmra.mxu0 %v8421
    %v8533 = vpop.f32.mrf.mxu0
    %v8534 = vadd.f32 %v8370, %v8533
    %8535 = vmatmul.f32.gmra.mxu0 %v8424
    %v8536 = vpop.f32.mrf.mxu0
    %v8537 = vadd.f32 %v8370, %v8536
    %8538 = vmatmul.f32.gmra.mxu0 %v8427
    %v8539 = vpop.f32.mrf.mxu0
    %v8540 = vadd.f32 %v8370, %v8539
    %8541 = vmatmul.f32.gmra.mxu0 %v8430
    %v8542 = vpop.f32.mrf.mxu0
    %v8543 = vadd.f32 %v8370, %v8542
    %8544 = vmatmul.f32.gmra.mxu0 %v8433
    %v8545 = vpop.f32.mrf.mxu0
    %v8546 = vadd.f32 %v8370, %v8545
    %8547 = vmatmul.f32.gmra.mxu0 %v8436
    %v8548 = vpop.f32.mrf.mxu0
    %v8549 = vadd.f32 %v8370, %v8548
    %8550 = vmatmul.f32.gmra.mxu0 %v8439
    %v8551 = vpop.f32.mrf.mxu0
    %v8552 = vadd.f32 %v8370, %v8551
    %8553 = vmatmul.f32.gmra.mxu0 %v8442
    %v8554 = vpop.f32.mrf.mxu0
    %v8555 = vadd.f32 %v8370, %v8554
    %8556 = vmatmul.f32.gmra.mxu0 %v8445
    %v8557 = vpop.f32.mrf.mxu0
    %v8558 = vadd.f32 %v8370, %v8557
    %8559 = vmatmul.f32.gmra.mxu0 %v8448
    %v8560 = vpop.f32.mrf.mxu0
    %v8561 = vadd.f32 %v8370, %v8560
    %8562 = vmatmul.f32.gmra.mxu0 %v8451
    %v8563 = vpop.f32.mrf.mxu0
    %v8564 = vadd.f32 %v8370, %v8563
    %8565 = vmatmul.f32.gmra.mxu0 %v8454
    %v8566 = vpop.f32.mrf.mxu0
    %v8567 = vadd.f32 %v8370, %v8566
    %8568 = vmatmul.f32.gmra.mxu0 %v8457
    %v8569 = vpop.f32.mrf.mxu0
    %v8570 = vadd.f32 %v8370, %v8569
    %8571 = vmatmul.f32.gmra.mxu0 %v8460
    %v8572 = vpop.f32.mrf.mxu0
    %v8573 = vadd.f32 %v8370, %v8572
    %8574 = vmatmul.f32.gmra.mxu0 %v8463
    %v8575 = vpop.f32.mrf.mxu0
    %v8576 = vadd.f32 %v8370, %v8575
    %8577 = vmatmul.f32.gmra.mxu0 %v8466
    %v8578 = vpop.f32.mrf.mxu0
    %v8579 = vadd.f32 %v8370, %v8578
    %8580 = vdwg.mxu0
    %8581 = vst.msk [vmem:[#allocation10] sm:$0xff] %vm113, %v8486
    %8582 = vst.msk [vmem:[#allocation10 + $0x8] sm:$0xff] %vm113, %v8489
    %8583 = vst.msk [vmem:[#allocation10 + $0x10] sm:$0xff] %vm113, %v8492
    %8584 = vst.msk [vmem:[#allocation10 + $0x18] sm:$0xff] %vm113, %v8495
    %8585 = vst.msk [vmem:[#allocation10 + $0x20] sm:$0xff] %vm113, %v8498
    %8586 = vst.msk [vmem:[#allocation10 + $0x28] sm:$0xff] %vm113, %v8501
    %8587 = vst.msk [vmem:[#allocation10 + $0x30] sm:$0xff] %vm113, %v8504
    %8588 = vst.msk [vmem:[#allocation10 + $0x38] sm:$0xff] %vm113, %v8507
    %8589 = vst.msk [vmem:[#allocation10 + $0x40] sm:$0xff] %vm113, %v8510
    %8590 = vst.msk [vmem:[#allocation10 + $0x48] sm:$0xff] %vm113, %v8513
    %8591 = vst.msk [vmem:[#allocation10 + $0x50] sm:$0xff] %vm113, %v8516
    %8592 = vst.msk [vmem:[#allocation10 + $0x58] sm:$0xff] %vm113, %v8519
    %8593 = vst.msk [vmem:[#allocation10 + $0x60] sm:$0xff] %vm113, %v8522
    %8594 = vst.msk [vmem:[#allocation10 + $0x68] sm:$0xff] %vm113, %v8525
    %8595 = vst.msk [vmem:[#allocation10 + $0x70] sm:$0xff] %vm113, %v8528
    %8596 = vst.msk [vmem:[#allocation10 + $0x78] sm:$0xff] %vm113, %v8531
    %8597 = vst.msk [vmem:[#allocation10 + $0x80] sm:$0xff] %vm113, %v8534
    %8598 = vst.msk [vmem:[#allocation10 + $0x88] sm:$0xff] %vm113, %v8537
    %8599 = vst.msk [vmem:[#allocation10 + $0x90] sm:$0xff] %vm113, %v8540
    %8600 = vst.msk [vmem:[#allocation10 + $0x98] sm:$0xff] %vm113, %v8543
    %8601 = vst.msk [vmem:[#allocation10 + $0xa0] sm:$0xff] %vm113, %v8546
    %8602 = vst.msk [vmem:[#allocation10 + $0xa8] sm:$0xff] %vm113, %v8549
    %8603 = vst.msk [vmem:[#allocation10 + $0xb0] sm:$0xff] %vm113, %v8552
    %8604 = vst.msk [vmem:[#allocation10 + $0xb8] sm:$0xff] %vm113, %v8555
    %8605 = vst.msk [vmem:[#allocation10 + $0xc0] sm:$0xff] %vm113, %v8558
    %8606 = vst.msk [vmem:[#allocation10 + $0xc8] sm:$0xff] %vm113, %v8561
    %8607 = vst.msk [vmem:[#allocation10 + $0xd0] sm:$0xff] %vm113, %v8564
    %8608 = vst.msk [vmem:[#allocation10 + $0xd8] sm:$0xff] %vm113, %v8567
    %8609 = vst.msk [vmem:[#allocation10 + $0xe0] sm:$0xff] %vm113, %v8570
    %8610 = vst.msk [vmem:[#allocation10 + $0xe8] sm:$0xff] %vm113, %v8573
    %8611 = vst.msk [vmem:[#allocation10 + $0xf0] sm:$0xff] %vm113, %v8576
    %8612 = vst.msk [vmem:[#allocation10 + $0xf8] sm:$0xff] %vm113, %v8579
    // Predicated region
    $region30: #{tpu_custom_call.1} parent=1 // pred_check
      _
    $region31: #{tpu_custom_call.1} parent=1 // pred_check_branch
      %8614 = sbr.rel (0) target = $region33
    $region32: #{tpu_custom_call.1} parent=1 // pred_region
      %8616 = vsyncadd [#allocation6], 0
      %s8617 = sshll.u32 [#allocation10], 4
      %s8618 = int_to_ptr.vmem [resolvable:$true] %s8617
      %s8619 = sshll.u32 %s4, 4
      %s8620 = int_to_ptr.hbm [resolvable:$true] %s8619
      %8625 = dma.vmem_to_hbm [thread:$0]  %s8618, 4096, %s8620, [#allocation6], 128, 128, 8
    $region33: #{tpu_custom_call.1} parent=1 // pred_fallthru
      _
    // Predicated region
    $region34: #{tpu_custom_call.1} parent=1 // pred_check
      _
    $region35: #{tpu_custom_call.1} parent=1 // pred_check_branch
      %8627 = sbr.rel (0) target = $region37
    $region36: #{tpu_custom_call.1} parent=1 // pred_region
      %8629 = dma.done [#allocation6], 4096
    $region37: #{tpu_custom_call.1} parent=1 // pred_fallthru
      _
    %8630 = vsyncpa [#allocation5], 1
    %8631 = vsyncpa [#allocation8], 1
    %8632 = vsyncpa [#allocation6], 1

</llo_original>
